<compile_context>
chip_gen: v7x
topology: tpu7x:2x2x1
jax: 0.10.0
libtpu: 0.0.40
codegen_flags: <defaults>
</compile_context>

<pallas_src>
import functools

import jax
import jax.numpy as jnp
import numpy as np
from jax import lax
from jax.experimental import pallas as pl
from jax.experimental.pallas import tpu as pltpu

# ---- model hyperparameters (model_emo_mh defaults) -------------------------
DI2 = 32                      # embed_dim
NUM_HEADS = 8
HEAD_DIM = DI2 // NUM_HEADS   # 4
FC2 = 64                      # out_dim of attention out_proj
SCALING = float(HEAD_DIM) ** -0.5
LN_EPS = 1e-5                 # torch LayerNorm default eps
L2_EPS = 1e-12                # F.normalize default eps


def _round_up(x, m):
    return (x + m - 1) // m * m


# ---------------------------------------------------------------------------
# Fused kernel: MHA + out_proj + mean/std pooling + LayerNorm + head + sigmoid
# Rows are (batch, stream) instances; lanes are flattened (position, feature).
# ---------------------------------------------------------------------------
def _fused_kernel(x_ref, wproj_ref, bproj_ref, poolih_ref, expih_ref,
                  wo_ref, bo_ref, meanseq_ref, expseq_ref, w2_ref, out_ref):
    NB, LE = x_ref.shape                 # NB = 2 * tb instances, LE = L * E
    TB = NB // 2
    E = DI2
    L = LE // E
    f32 = jnp.float32

    x = x_ref[...]                                                    # (NB, LE)

    # ---- fused projection: [ Q(pre-scaled) | K rep. over i | V rep. over i ]
    qkv = jnp.dot(x, wproj_ref[...], preferred_element_type=f32) + bproj_ref[...]
    q = qkv[:, :LE]                                                   # (NB, LE)
    koff = LE
    voff = LE + L * LE

    pool_ih = poolih_ref[...]                                         # (LE, L*H)
    exp_ih = expih_ref[...]                                           # (L*H, LE)

    # ---- pass 1: scores per key position j, running max over j ------------
    s_list = []
    for j in range(L):                                                # static unroll
        kj = qkv[:, koff + j * LE:koff + (j + 1) * LE]                # 128-aligned slice
        s_list.append(jnp.dot(q * kj, pool_ih,
                              preferred_element_type=f32))            # (NB, L*H)
    m = s_list[0]
    for j in range(1, L):
        m = jnp.maximum(m, s_list[j])

    # ---- pass 2: softmax numerator / denominator ---------------------------
    den = jnp.zeros(m.shape, f32)                                     # (NB, L*H)
    num = jnp.zeros((NB, LE), f32)                                    # (NB, LE)
    for j in range(L):
        e_j = jnp.exp(s_list[j] - m)
        den = den + e_j
        vj = qkv[:, voff + j * LE:voff + (j + 1) * LE]
        num = num + jnp.dot(e_j, exp_ih, preferred_element_type=f32) * vj

    # Exact reciprocal: den is only ~64 vregs now, accuracy > EUP slot savings.
    inv = pl.reciprocal(den, approx=False)
    ctx = num * jnp.dot(inv, exp_ih, preferred_element_type=f32)      # (NB, LE)

    # ---- out_proj (block-diagonal over positions) ---------------------------
    att = jnp.dot(ctx, wo_ref[...], preferred_element_type=f32) + bo_ref[...]  # (NB, L*FC2)

    # ---- per-(batch, stream) mean / population std over the sequence -------
    mean = jnp.dot(att, meanseq_ref[...], preferred_element_type=f32)          # (NB, FC2)
    cen = att - jnp.dot(mean, expseq_ref[...], preferred_element_type=f32)
    var = jnp.dot(cen * cen, meanseq_ref[...], preferred_element_type=f32)
    std = jnp.sqrt(var)                                                         # (NB, FC2)
    feat = jnp.concatenate([mean, std], axis=1)                                 # (NB, 2*FC2)

    # ---- LayerNorm over all 4*FC2 = 256 features of a batch element --------
    feat3 = feat.reshape(TB, 2, 2 * FC2)                              # leading-dim split (free)
    mu = jnp.mean(jnp.mean(feat3, axis=2, keepdims=True), axis=1, keepdims=True)
    c = feat3 - mu
    varln = jnp.mean(jnp.mean(c * c, axis=2, keepdims=True), axis=1, keepdims=True)
    xn = c * lax.rsqrt(varln + LN_EPS)

    # ---- F.linear with L2-normalized weight, then sigmoid ------------------
    w2 = w2_ref[...]                                                  # (2, 2*FC2)
    ssq = jnp.sum(jnp.sum(w2 * w2, axis=1, keepdims=True), axis=0, keepdims=True)
    wn = w2 * lax.rsqrt(jnp.maximum(ssq, L2_EPS * L2_EPS))
    y = jnp.sum(jnp.sum(xn * wn[None, :, :], axis=2), axis=1, keepdims=True)    # (TB, 1)
    out_ref[...] = 1.0 / (1.0 + jnp.exp(-y))                                    # sigmoid


# ---------------------------------------------------------------------------
# Parameter init (deterministic, synthetic; mirrors the module's shapes)
# ---------------------------------------------------------------------------
def init_params(key):
    ks = jax.random.split(key, 9)

    def lin(kw, kb, fan_in, fan_out):
        bound = 1.0 / np.sqrt(fan_in)
        # stored as (in, out) so x @ W applies the layer directly
        w = jax.random.uniform(kw, (fan_in, fan_out), jnp.float32, -bound, bound)
        b = jax.random.uniform(kb, (1, fan_out), jnp.float32, -bound, bound)
        return w, b

    wq, bq = lin(ks[0], ks[1], DI2, DI2)
    wk, bk = lin(ks[2], ks[3], DI2, DI2)
    wv, bv = lin(ks[4], ks[5], DI2, DI2)
    wo, bo = lin(ks[6], ks[7], DI2, FC2)
    W = jax.random.uniform(ks[8], (1, 4 * FC2), jnp.float32, -0.25, 0.25)
    return dict(wq=wq, bq=bq, wk=wk, bk=bk, wv=wv, bv=bv, wo=wo, bo=bo, W=W)


def fuse_params(params, seq_len=8):
    """One-time repacking of the module parameters into the kernel's layout."""
    L, E, H, Hd = seq_len, DI2, NUM_HEADS, HEAD_DIM
    f32 = jnp.float32
    eye_l = jnp.eye(L, dtype=f32)

    # fused projection: Q (scaling folded), K and V replicated across the L
    # query positions so the kernel only takes aligned lane slices.
    wq_big = jnp.kron(eye_l, params["wq"].astype(f32) * SCALING)                # (LE, LE)
    wk_rep = jnp.kron(eye_l, jnp.kron(jnp.ones((1, L), f32),
                                      params["wk"].astype(f32)))               # (LE, L*LE)
    wv_rep = jnp.kron(eye_l, jnp.kron(jnp.ones((1, L), f32),
                                      params["wv"].astype(f32)))               # (LE, L*LE)
    w_proj = jnp.concatenate([wq_big, wk_rep, wv_rep], axis=1)                 # (LE, LE*(1+2L))
    b_proj = jnp.concatenate(
        [jnp.tile(params["bq"].astype(f32) * SCALING, (1, L)),
         jnp.tile(params["bk"].astype(f32), (1, L * L)),
         jnp.tile(params["bv"].astype(f32), (1, L * L))], axis=1)

    # head pooling / expansion over the (position, head, head_dim) lane layout
    pool_ih = jnp.kron(eye_l, jnp.kron(jnp.eye(H, dtype=f32),
                                       jnp.ones((Hd, 1), f32)))                # (LE, L*H)
    exp_ih = pool_ih.T                                                          # (L*H, LE)

    # block-diagonal out_proj + sequence mean pooling / expansion
    wo_big = jnp.kron(eye_l, params["wo"].astype(f32))                          # (LE, L*FC2)
    bo_big = jnp.tile(params["bo"].astype(f32), (1, L))                         # (1, L*FC2)
    mean_seq = jnp.kron(jnp.ones((L, 1), f32), jnp.eye(FC2, dtype=f32)) / float(L)
    exp_seq = jnp.kron(jnp.ones((1, L), f32), jnp.eye(FC2, dtype=f32))

    w2 = params["W"].astype(f32).reshape(2, 2 * FC2)
    return dict(w_proj=w_proj, b_proj=b_proj, pool_ih=pool_ih, exp_ih=exp_ih,
                wo_big=wo_big, bo_big=bo_big, mean_seq=mean_seq, exp_seq=exp_seq,
                w2=w2)


# ---------------------------------------------------------------------------
# Wrapper
# ---------------------------------------------------------------------------
@functools.partial(jax.jit, static_argnames=("tb",))
def model_emo_mh_forward(x1, x2, fused, tb=128):
    B, L, E = x1.shape
    assert E == DI2
    LE = L * E
    assert fused["w_proj"].shape[0] == LE, "fused params built for a different seq_len"

    # instance-major rows (b*2 + s), lane-dense (L*E) columns
    x = jnp.concatenate([x1[:, None], x2[:, None]], axis=1)          # (B, 2, L, E)

    # batch-block size: multiple of 8, capped; keep >= 2 grid steps for big B
    # so v7x's two TensorCores both get work via the "parallel" grid axis.
    tb_eff = max(8, min(int(tb), 256))
    tb_eff = min(tb_eff, _round_up(B, 8))
    tb_eff = min(tb_eff, max(8, _round_up(pl.cdiv(B, 2), 8)))
    tb_eff = _round_up(tb_eff, 8)

    Bp = _round_up(B, tb_eff)
    if Bp != B:
        x = jnp.concatenate([x, jnp.zeros((Bp - B, 2, L, E), x.dtype)], axis=0)
    x2d = x.reshape(Bp * 2, LE)                                       # free reshape in HBM

    def const_spec(shape):
        return pl.BlockSpec(shape, lambda b: (0,) * len(shape))

    y = pl.pallas_call(
        _fused_kernel,
        out_shape=jax.ShapeDtypeStruct((Bp, 1), jnp.float32),
        grid=(Bp // tb_eff,),
        in_specs=[
            pl.BlockSpec((2 * tb_eff, LE), lambda b: (b, 0)),
            const_spec(fused["w_proj"].shape),
            const_spec(fused["b_proj"].shape),
            const_spec(fused["pool_ih"].shape),
            const_spec(fused["exp_ih"].shape),
            const_spec(fused["wo_big"].shape),
            const_spec(fused["bo_big"].shape),
            const_spec(fused["mean_seq"].shape),
            const_spec(fused["exp_seq"].shape),
            const_spec(fused["w2"].shape),
        ],
        out_specs=pl.BlockSpec((tb_eff, 1), lambda b: (b, 0)),
        compiler_params=pltpu.CompilerParams(
            dimension_semantics=("parallel",),
            vmem_limit_bytes=48 * 1024 * 1024,
        ),
    )(x2d, fused["w_proj"], fused["b_proj"], fused["pool_ih"], fused["exp_ih"],
      fused["wo_big"], fused["bo_big"], fused["mean_seq"], fused["exp_seq"],
      fused["w2"])
    return y[:B]


# ---------------------------------------------------------------------------
# Pure-JAX reference (mirrors the PyTorch forward) for a correctness check
# ---------------------------------------------------------------------------
def reference_forward(x1, x2, p):
    B, L, E = x1.shape
    x = jnp.stack([x1, x2], axis=1)                                   # (B, 2, L, E)
    q = (x @ p["wq"] + p["bq"][0]).reshape(B, 2, L, NUM_HEADS, HEAD_DIM)
    k = (x @ p["wk"] + p["bk"][0]).reshape(B, 2, L, NUM_HEADS, HEAD_DIM)
    v = (x @ p["wv"] + p["bv"][0]).reshape(B, 2, L, NUM_HEADS, HEAD_DIM)
    q = jnp.transpose(q, (0, 1, 3, 2, 4))
    k = jnp.transpose(k, (0, 1, 3, 4, 2))
    v = jnp.transpose(v, (0, 1, 3, 2, 4))
    w = jax.nn.softmax(SCALING * (q @ k), axis=-1)
    o = jnp.transpose(w @ v, (0, 1, 3, 2, 4)).reshape(B, 2, L, E)
    att = o @ p["wo"] + p["bo"][0]                                    # (B, 2, L, FC2)
    avg = att.mean(axis=2)
    std = jnp.sqrt(((att - att.mean(axis=2, keepdims=True)) ** 2).mean(axis=2))
    seqr = jnp.concatenate([avg, std], axis=2).reshape(B, -1)
    mu = seqr.mean(-1, keepdims=True)
    var = ((seqr - mu) ** 2).mean(-1, keepdims=True)
    xn = (seqr - mu) / jnp.sqrt(var + LN_EPS)
    Wn = p["W"] / jnp.maximum(jnp.sqrt((p["W"] ** 2).sum(-1, keepdims=True)), L2_EPS)
    return jax.nn.sigmoid(xn @ Wn.T)


if __name__ == "__main__":
    key = jax.random.PRNGKey(0)
    k1, k2, kp = jax.random.split(key, 3)
    params = init_params(kp)

    # Small-shape run (B=2, L=8, E=32), single grid step.
    B, L = 2, 8
    fused = fuse_params(params, seq_len=L)
    x1 = jax.random.normal(k1, (B, L, DI2), jnp.float32)
    x2 = jax.random.normal(k2, (B, L, DI2), jnp.float32)
    out = jax.block_until_ready(model_emo_mh_forward(x1, x2, fused))
    assert out.shape == (B, 1)
    ref = reference_forward(x1, x2, params)
    np.testing.assert_allclose(np.asarray(out), np.asarray(ref),
                               atol=2e-4, rtol=2e-4)

    # Multi-block / padded-tail path (B=40, tb=16 -> grid=(3,), 8 padded rows).
    kb1, kb2 = jax.random.split(jax.random.PRNGKey(1))
    B2 = 40
    x1b = jax.random.normal(kb1, (B2, L, DI2), jnp.float32)
    x2b = jax.random.normal(kb2, (B2, L, DI2), jnp.float32)
    out2 = jax.block_until_ready(model_emo_mh_forward(x1b, x2b, fused, tb=16))
    ref2 = reference_forward(x1b, x2b, params)
    np.testing.assert_allclose(np.asarray(out2), np.asarray(ref2),
                               atol=2e-4, rtol=2e-4)

    print("KERNEL_OK")
</pallas_src>

<mosaic_0001>
module attributes {stable_mosaic.version = 11 : i64} {
  func.func @_fused_kernel(%arg0: i32, %arg1: memref<16x256xf32, #tpu.memory_space<vmem>>, %arg2: memref<256x4352xf32, #tpu.memory_space<vmem>>, %arg3: memref<1x4352xf32, #tpu.memory_space<vmem>>, %arg4: memref<256x64xf32, #tpu.memory_space<vmem>>, %arg5: memref<64x256xf32, #tpu.memory_space<vmem>>, %arg6: memref<256x512xf32, #tpu.memory_space<vmem>>, %arg7: memref<1x512xf32, #tpu.memory_space<vmem>>, %arg8: memref<512x64xf32, #tpu.memory_space<vmem>>, %arg9: memref<64x512xf32, #tpu.memory_space<vmem>>, %arg10: memref<2x128xf32, #tpu.memory_space<vmem>>, %arg11: memref<8x1xf32, #tpu.memory_space<vmem>>) attributes {dimension_semantics = [#tpu.dimension_semantics<parallel>], iteration_bounds = array<i64: 1>, scalar_prefetch = 0 : i64, scratch_operands = 0 : i64, tpu.core_type = #tpu.core_type<tc>, window_params = [{transform_indices = @transform_0, window_bounds = array<i64: 16, 256>}, {pipeline_mode = #tpu.pipeline_mode<synchronous>, transform_indices = @transform_1, window_bounds = array<i64: 256, 4352>}, {pipeline_mode = #tpu.pipeline_mode<synchronous>, transform_indices = @transform_2, window_bounds = array<i64: 1, 4352>}, {pipeline_mode = #tpu.pipeline_mode<synchronous>, transform_indices = @transform_3, window_bounds = array<i64: 256, 64>}, {pipeline_mode = #tpu.pipeline_mode<synchronous>, transform_indices = @transform_4, window_bounds = array<i64: 64, 256>}, {pipeline_mode = #tpu.pipeline_mode<synchronous>, transform_indices = @transform_5, window_bounds = array<i64: 256, 512>}, {pipeline_mode = #tpu.pipeline_mode<synchronous>, transform_indices = @transform_6, window_bounds = array<i64: 1, 512>}, {pipeline_mode = #tpu.pipeline_mode<synchronous>, transform_indices = @transform_7, window_bounds = array<i64: 512, 64>}, {pipeline_mode = #tpu.pipeline_mode<synchronous>, transform_indices = @transform_8, window_bounds = array<i64: 64, 512>}, {pipeline_mode = #tpu.pipeline_mode<synchronous>, transform_indices = @transform_9, window_bounds = array<i64: 2, 128>}, {transform_indices = @transform_10, window_bounds = array<i64: 8, 1>}]} {
    %c0 = arith.constant 0 : index
    %c0_0 = arith.constant 0 : index
    %0 = vector.load %arg1[%c0, %c0_0] : memref<16x256xf32, #tpu.memory_space<vmem>>, vector<16x256xf32>
    %c0_1 = arith.constant 0 : index
    %c0_2 = arith.constant 0 : index
    %1 = vector.load %arg2[%c0_1, %c0_2] : memref<256x4352xf32, #tpu.memory_space<vmem>>, vector<256x4352xf32>
    %cst = arith.constant dense<0.000000e+00> : vector<16x4352xf32>
    %2 = tpu.matmul %0, %1, %cst {dimension_numbers = #tpu.dot_dimension_numbers<[1], [0], [0], [1], [0, 0, 1, 1], [], []>} : vector<16x256xf32>, vector<256x4352xf32>, vector<16x4352xf32> -> vector<16x4352xf32>
    %c0_3 = arith.constant 0 : index
    %c0_4 = arith.constant 0 : index
    %3 = vector.load %arg3[%c0_3, %c0_4] : memref<1x4352xf32, #tpu.memory_space<vmem>>, vector<1x4352xf32>
    %4 = vector.broadcast %3 : vector<1x4352xf32> to vector<16x4352xf32>
    %5 = arith.addf %2, %4 : vector<16x4352xf32>
    %6 = vector.extract_strided_slice %5 {offsets = [0, 0], sizes = [16, 256], strides = [1, 1]} : vector<16x4352xf32> to vector<16x256xf32>
    %c0_5 = arith.constant 0 : index
    %c0_6 = arith.constant 0 : index
    %7 = vector.load %arg4[%c0_5, %c0_6] : memref<256x64xf32, #tpu.memory_space<vmem>>, vector<256x64xf32>
    %c0_7 = arith.constant 0 : index
    %c0_8 = arith.constant 0 : index
    %8 = vector.load %arg5[%c0_7, %c0_8] : memref<64x256xf32, #tpu.memory_space<vmem>>, vector<64x256xf32>
    %9 = vector.extract_strided_slice %5 {offsets = [0, 256], sizes = [16, 256], strides = [1, 1]} : vector<16x4352xf32> to vector<16x256xf32>
    %10 = arith.mulf %6, %9 : vector<16x256xf32>
    %cst_9 = arith.constant dense<0.000000e+00> : vector<16x64xf32>
    %11 = tpu.matmul %10, %7, %cst_9 {dimension_numbers = #tpu.dot_dimension_numbers<[1], [0], [0], [1], [0, 0, 1, 1], [], []>} : vector<16x256xf32>, vector<256x64xf32>, vector<16x64xf32> -> vector<16x64xf32>
    %12 = vector.extract_strided_slice %5 {offsets = [0, 512], sizes = [16, 256], strides = [1, 1]} : vector<16x4352xf32> to vector<16x256xf32>
    %13 = arith.mulf %6, %12 : vector<16x256xf32>
    %cst_10 = arith.constant dense<0.000000e+00> : vector<16x64xf32>
    %14 = tpu.matmul %13, %7, %cst_10 {dimension_numbers = #tpu.dot_dimension_numbers<[1], [0], [0], [1], [0, 0, 1, 1], [], []>} : vector<16x256xf32>, vector<256x64xf32>, vector<16x64xf32> -> vector<16x64xf32>
    %15 = vector.extract_strided_slice %5 {offsets = [0, 768], sizes = [16, 256], strides = [1, 1]} : vector<16x4352xf32> to vector<16x256xf32>
    %16 = arith.mulf %6, %15 : vector<16x256xf32>
    %cst_11 = arith.constant dense<0.000000e+00> : vector<16x64xf32>
    %17 = tpu.matmul %16, %7, %cst_11 {dimension_numbers = #tpu.dot_dimension_numbers<[1], [0], [0], [1], [0, 0, 1, 1], [], []>} : vector<16x256xf32>, vector<256x64xf32>, vector<16x64xf32> -> vector<16x64xf32>
    %18 = vector.extract_strided_slice %5 {offsets = [0, 1024], sizes = [16, 256], strides = [1, 1]} : vector<16x4352xf32> to vector<16x256xf32>
    %19 = arith.mulf %6, %18 : vector<16x256xf32>
    %cst_12 = arith.constant dense<0.000000e+00> : vector<16x64xf32>
    %20 = tpu.matmul %19, %7, %cst_12 {dimension_numbers = #tpu.dot_dimension_numbers<[1], [0], [0], [1], [0, 0, 1, 1], [], []>} : vector<16x256xf32>, vector<256x64xf32>, vector<16x64xf32> -> vector<16x64xf32>
    %21 = vector.extract_strided_slice %5 {offsets = [0, 1280], sizes = [16, 256], strides = [1, 1]} : vector<16x4352xf32> to vector<16x256xf32>
    %22 = arith.mulf %6, %21 : vector<16x256xf32>
    %cst_13 = arith.constant dense<0.000000e+00> : vector<16x64xf32>
    %23 = tpu.matmul %22, %7, %cst_13 {dimension_numbers = #tpu.dot_dimension_numbers<[1], [0], [0], [1], [0, 0, 1, 1], [], []>} : vector<16x256xf32>, vector<256x64xf32>, vector<16x64xf32> -> vector<16x64xf32>
    %24 = vector.extract_strided_slice %5 {offsets = [0, 1536], sizes = [16, 256], strides = [1, 1]} : vector<16x4352xf32> to vector<16x256xf32>
    %25 = arith.mulf %6, %24 : vector<16x256xf32>
    %cst_14 = arith.constant dense<0.000000e+00> : vector<16x64xf32>
    %26 = tpu.matmul %25, %7, %cst_14 {dimension_numbers = #tpu.dot_dimension_numbers<[1], [0], [0], [1], [0, 0, 1, 1], [], []>} : vector<16x256xf32>, vector<256x64xf32>, vector<16x64xf32> -> vector<16x64xf32>
    %27 = vector.extract_strided_slice %5 {offsets = [0, 1792], sizes = [16, 256], strides = [1, 1]} : vector<16x4352xf32> to vector<16x256xf32>
    %28 = arith.mulf %6, %27 : vector<16x256xf32>
    %cst_15 = arith.constant dense<0.000000e+00> : vector<16x64xf32>
    %29 = tpu.matmul %28, %7, %cst_15 {dimension_numbers = #tpu.dot_dimension_numbers<[1], [0], [0], [1], [0, 0, 1, 1], [], []>} : vector<16x256xf32>, vector<256x64xf32>, vector<16x64xf32> -> vector<16x64xf32>
    %30 = vector.extract_strided_slice %5 {offsets = [0, 2048], sizes = [16, 256], strides = [1, 1]} : vector<16x4352xf32> to vector<16x256xf32>
    %31 = arith.mulf %6, %30 : vector<16x256xf32>
    %cst_16 = arith.constant dense<0.000000e+00> : vector<16x64xf32>
    %32 = tpu.matmul %31, %7, %cst_16 {dimension_numbers = #tpu.dot_dimension_numbers<[1], [0], [0], [1], [0, 0, 1, 1], [], []>} : vector<16x256xf32>, vector<256x64xf32>, vector<16x64xf32> -> vector<16x64xf32>
    %33 = arith.maximumf %11, %14 : vector<16x64xf32>
    %34 = arith.maximumf %33, %17 : vector<16x64xf32>
    %35 = arith.maximumf %34, %20 : vector<16x64xf32>
    %36 = arith.maximumf %35, %23 : vector<16x64xf32>
    %37 = arith.maximumf %36, %26 : vector<16x64xf32>
    %38 = arith.maximumf %37, %29 : vector<16x64xf32>
    %39 = arith.maximumf %38, %32 : vector<16x64xf32>
    %cst_17 = arith.constant 0.000000e+00 : f32
    %40 = vector.broadcast %cst_17 : f32 to vector<16x64xf32>
    %cst_18 = arith.constant 0.000000e+00 : f32
    %41 = vector.broadcast %cst_18 : f32 to vector<16x256xf32>
    %42 = arith.subf %11, %39 : vector<16x64xf32>
    %43 = math.exp %42 : vector<16x64xf32>
    %44 = arith.addf %40, %43 : vector<16x64xf32>
    %45 = vector.extract_strided_slice %5 {offsets = [0, 2304], sizes = [16, 256], strides = [1, 1]} : vector<16x4352xf32> to vector<16x256xf32>
    %cst_19 = arith.constant dense<0.000000e+00> : vector<16x256xf32>
    %46 = tpu.matmul %43, %8, %cst_19 {dimension_numbers = #tpu.dot_dimension_numbers<[1], [0], [0], [1], [0, 0, 1, 1], [], []>} : vector<16x64xf32>, vector<64x256xf32>, vector<16x256xf32> -> vector<16x256xf32>
    %47 = arith.mulf %46, %45 : vector<16x256xf32>
    %48 = arith.addf %41, %47 : vector<16x256xf32>
    %49 = arith.subf %14, %39 : vector<16x64xf32>
    %50 = math.exp %49 : vector<16x64xf32>
    %51 = arith.addf %44, %50 : vector<16x64xf32>
    %52 = vector.extract_strided_slice %5 {offsets = [0, 2560], sizes = [16, 256], strides = [1, 1]} : vector<16x4352xf32> to vector<16x256xf32>
    %cst_20 = arith.constant dense<0.000000e+00> : vector<16x256xf32>
    %53 = tpu.matmul %50, %8, %cst_20 {dimension_numbers = #tpu.dot_dimension_numbers<[1], [0], [0], [1], [0, 0, 1, 1], [], []>} : vector<16x64xf32>, vector<64x256xf32>, vector<16x256xf32> -> vector<16x256xf32>
    %54 = arith.mulf %53, %52 : vector<16x256xf32>
    %55 = arith.addf %48, %54 : vector<16x256xf32>
    %56 = arith.subf %17, %39 : vector<16x64xf32>
    %57 = math.exp %56 : vector<16x64xf32>
    %58 = arith.addf %51, %57 : vector<16x64xf32>
    %59 = vector.extract_strided_slice %5 {offsets = [0, 2816], sizes = [16, 256], strides = [1, 1]} : vector<16x4352xf32> to vector<16x256xf32>
    %cst_21 = arith.constant dense<0.000000e+00> : vector<16x256xf32>
    %60 = tpu.matmul %57, %8, %cst_21 {dimension_numbers = #tpu.dot_dimension_numbers<[1], [0], [0], [1], [0, 0, 1, 1], [], []>} : vector<16x64xf32>, vector<64x256xf32>, vector<16x256xf32> -> vector<16x256xf32>
    %61 = arith.mulf %60, %59 : vector<16x256xf32>
    %62 = arith.addf %55, %61 : vector<16x256xf32>
    %63 = arith.subf %20, %39 : vector<16x64xf32>
    %64 = math.exp %63 : vector<16x64xf32>
    %65 = arith.addf %58, %64 : vector<16x64xf32>
    %66 = vector.extract_strided_slice %5 {offsets = [0, 3072], sizes = [16, 256], strides = [1, 1]} : vector<16x4352xf32> to vector<16x256xf32>
    %cst_22 = arith.constant dense<0.000000e+00> : vector<16x256xf32>
    %67 = tpu.matmul %64, %8, %cst_22 {dimension_numbers = #tpu.dot_dimension_numbers<[1], [0], [0], [1], [0, 0, 1, 1], [], []>} : vector<16x64xf32>, vector<64x256xf32>, vector<16x256xf32> -> vector<16x256xf32>
    %68 = arith.mulf %67, %66 : vector<16x256xf32>
    %69 = arith.addf %62, %68 : vector<16x256xf32>
    %70 = arith.subf %23, %39 : vector<16x64xf32>
    %71 = math.exp %70 : vector<16x64xf32>
    %72 = arith.addf %65, %71 : vector<16x64xf32>
    %73 = vector.extract_strided_slice %5 {offsets = [0, 3328], sizes = [16, 256], strides = [1, 1]} : vector<16x4352xf32> to vector<16x256xf32>
    %cst_23 = arith.constant dense<0.000000e+00> : vector<16x256xf32>
    %74 = tpu.matmul %71, %8, %cst_23 {dimension_numbers = #tpu.dot_dimension_numbers<[1], [0], [0], [1], [0, 0, 1, 1], [], []>} : vector<16x64xf32>, vector<64x256xf32>, vector<16x256xf32> -> vector<16x256xf32>
    %75 = arith.mulf %74, %73 : vector<16x256xf32>
    %76 = arith.addf %69, %75 : vector<16x256xf32>
    %77 = arith.subf %26, %39 : vector<16x64xf32>
    %78 = math.exp %77 : vector<16x64xf32>
    %79 = arith.addf %72, %78 : vector<16x64xf32>
    %80 = vector.extract_strided_slice %5 {offsets = [0, 3584], sizes = [16, 256], strides = [1, 1]} : vector<16x4352xf32> to vector<16x256xf32>
    %cst_24 = arith.constant dense<0.000000e+00> : vector<16x256xf32>
    %81 = tpu.matmul %78, %8, %cst_24 {dimension_numbers = #tpu.dot_dimension_numbers<[1], [0], [0], [1], [0, 0, 1, 1], [], []>} : vector<16x64xf32>, vector<64x256xf32>, vector<16x256xf32> -> vector<16x256xf32>
    %82 = arith.mulf %81, %80 : vector<16x256xf32>
    %83 = arith.addf %76, %82 : vector<16x256xf32>
    %84 = arith.subf %29, %39 : vector<16x64xf32>
    %85 = math.exp %84 : vector<16x64xf32>
    %86 = arith.addf %79, %85 : vector<16x64xf32>
    %87 = vector.extract_strided_slice %5 {offsets = [0, 3840], sizes = [16, 256], strides = [1, 1]} : vector<16x4352xf32> to vector<16x256xf32>
    %cst_25 = arith.constant dense<0.000000e+00> : vector<16x256xf32>
    %88 = tpu.matmul %85, %8, %cst_25 {dimension_numbers = #tpu.dot_dimension_numbers<[1], [0], [0], [1], [0, 0, 1, 1], [], []>} : vector<16x64xf32>, vector<64x256xf32>, vector<16x256xf32> -> vector<16x256xf32>
    %89 = arith.mulf %88, %87 : vector<16x256xf32>
    %90 = arith.addf %83, %89 : vector<16x256xf32>
    %91 = arith.subf %32, %39 : vector<16x64xf32>
    %92 = math.exp %91 : vector<16x64xf32>
    %93 = arith.addf %86, %92 : vector<16x64xf32>
    %94 = vector.extract_strided_slice %5 {offsets = [0, 4096], sizes = [16, 256], strides = [1, 1]} : vector<16x4352xf32> to vector<16x256xf32>
    %cst_26 = arith.constant dense<0.000000e+00> : vector<16x256xf32>
    %95 = tpu.matmul %92, %8, %cst_26 {dimension_numbers = #tpu.dot_dimension_numbers<[1], [0], [0], [1], [0, 0, 1, 1], [], []>} : vector<16x64xf32>, vector<64x256xf32>, vector<16x256xf32> -> vector<16x256xf32>
    %96 = arith.mulf %95, %94 : vector<16x256xf32>
    %97 = arith.addf %90, %96 : vector<16x256xf32>
    %98 = tpu.reciprocal %93 : vector<16x64xf32> -> vector<16x64xf32>
    %cst_27 = arith.constant dense<0.000000e+00> : vector<16x256xf32>
    %99 = tpu.matmul %98, %8, %cst_27 {dimension_numbers = #tpu.dot_dimension_numbers<[1], [0], [0], [1], [0, 0, 1, 1], [], []>} : vector<16x64xf32>, vector<64x256xf32>, vector<16x256xf32> -> vector<16x256xf32>
    %100 = arith.mulf %97, %99 : vector<16x256xf32>
    %c0_28 = arith.constant 0 : index
    %c0_29 = arith.constant 0 : index
    %101 = vector.load %arg6[%c0_28, %c0_29] : memref<256x512xf32, #tpu.memory_space<vmem>>, vector<256x512xf32>
    %cst_30 = arith.constant dense<0.000000e+00> : vector<16x512xf32>
    %102 = tpu.matmul %100, %101, %cst_30 {dimension_numbers = #tpu.dot_dimension_numbers<[1], [0], [0], [1], [0, 0, 1, 1], [], []>} : vector<16x256xf32>, vector<256x512xf32>, vector<16x512xf32> -> vector<16x512xf32>
    %c0_31 = arith.constant 0 : index
    %c0_32 = arith.constant 0 : index
    %103 = vector.load %arg7[%c0_31, %c0_32] : memref<1x512xf32, #tpu.memory_space<vmem>>, vector<1x512xf32>
    %104 = vector.broadcast %103 : vector<1x512xf32> to vector<16x512xf32>
    %105 = arith.addf %102, %104 : vector<16x512xf32>
    %c0_33 = arith.constant 0 : index
    %c0_34 = arith.constant 0 : index
    %106 = vector.load %arg8[%c0_33, %c0_34] : memref<512x64xf32, #tpu.memory_space<vmem>>, vector<512x64xf32>
    %cst_35 = arith.constant dense<0.000000e+00> : vector<16x64xf32>
    %107 = tpu.matmul %105, %106, %cst_35 {dimension_numbers = #tpu.dot_dimension_numbers<[1], [0], [0], [1], [0, 0, 1, 1], [], []>} : vector<16x512xf32>, vector<512x64xf32>, vector<16x64xf32> -> vector<16x64xf32>
    %c0_36 = arith.constant 0 : index
    %c0_37 = arith.constant 0 : index
    %108 = vector.load %arg9[%c0_36, %c0_37] : memref<64x512xf32, #tpu.memory_space<vmem>>, vector<64x512xf32>
    %cst_38 = arith.constant dense<0.000000e+00> : vector<16x512xf32>
    %109 = tpu.matmul %107, %108, %cst_38 {dimension_numbers = #tpu.dot_dimension_numbers<[1], [0], [0], [1], [0, 0, 1, 1], [], []>} : vector<16x64xf32>, vector<64x512xf32>, vector<16x512xf32> -> vector<16x512xf32>
    %110 = arith.subf %105, %109 : vector<16x512xf32>
    %111 = arith.mulf %110, %110 : vector<16x512xf32>
    %c0_39 = arith.constant 0 : index
    %c0_40 = arith.constant 0 : index
    %112 = vector.load %arg8[%c0_39, %c0_40] : memref<512x64xf32, #tpu.memory_space<vmem>>, vector<512x64xf32>
    %cst_41 = arith.constant dense<0.000000e+00> : vector<16x64xf32>
    %113 = tpu.matmul %111, %112, %cst_41 {dimension_numbers = #tpu.dot_dimension_numbers<[1], [0], [0], [1], [0, 0, 1, 1], [], []>} : vector<16x512xf32>, vector<512x64xf32>, vector<16x64xf32> -> vector<16x64xf32>
    %114 = math.sqrt %113 : vector<16x64xf32>
    %115 = tpu.concatenate %107, %114 in 1 : vector<16x64xf32>, vector<16x64xf32> -> vector<16x128xf32>
    %116 = vector.shape_cast %115 : vector<16x128xf32> to vector<8x2x128xf32>
    %cst_42 = arith.constant dense<0.000000e+00> : vector<8x2xf32>
    %117 = vector.multi_reduction <add>, %116, %cst_42 [2] : vector<8x2x128xf32> to vector<8x2xf32>
    %118 = vector.shape_cast %117 : vector<8x2xf32> to vector<8x2x1xf32>
    %cst_43 = arith.constant 1.280000e+02 : f32
    %119 = vector.broadcast %cst_43 : f32 to vector<8x2x1xf32>
    %120 = arith.divf %118, %119 : vector<8x2x1xf32>
    %cst_44 = arith.constant dense<0.000000e+00> : vector<8x1xf32>
    %121 = vector.multi_reduction <add>, %120, %cst_44 [1] : vector<8x2x1xf32> to vector<8x1xf32>
    %122 = vector.shape_cast %121 : vector<8x1xf32> to vector<8x1x1xf32>
    %cst_45 = arith.constant 2.000000e+00 : f32
    %123 = vector.broadcast %cst_45 : f32 to vector<8x1x1xf32>
    %124 = arith.divf %122, %123 : vector<8x1x1xf32>
    %125 = vector.broadcast %124 : vector<8x1x1xf32> to vector<8x2x128xf32>
    %126 = arith.subf %116, %125 : vector<8x2x128xf32>
    %127 = arith.mulf %126, %126 : vector<8x2x128xf32>
    %cst_46 = arith.constant dense<0.000000e+00> : vector<8x2xf32>
    %128 = vector.multi_reduction <add>, %127, %cst_46 [2] : vector<8x2x128xf32> to vector<8x2xf32>
    %129 = vector.shape_cast %128 : vector<8x2xf32> to vector<8x2x1xf32>
    %cst_47 = arith.constant 1.280000e+02 : f32
    %130 = vector.broadcast %cst_47 : f32 to vector<8x2x1xf32>
    %131 = arith.divf %129, %130 : vector<8x2x1xf32>
    %cst_48 = arith.constant dense<0.000000e+00> : vector<8x1xf32>
    %132 = vector.multi_reduction <add>, %131, %cst_48 [1] : vector<8x2x1xf32> to vector<8x1xf32>
    %133 = vector.shape_cast %132 : vector<8x1xf32> to vector<8x1x1xf32>
    %cst_49 = arith.constant 2.000000e+00 : f32
    %134 = vector.broadcast %cst_49 : f32 to vector<8x1x1xf32>
    %135 = arith.divf %133, %134 : vector<8x1x1xf32>
    %cst_50 = arith.constant 9.99999974E-6 : f32
    %136 = vector.broadcast %cst_50 : f32 to vector<8x1x1xf32>
    %137 = arith.addf %135, %136 : vector<8x1x1xf32>
    %138 = math.rsqrt %137 : vector<8x1x1xf32>
    %139 = vector.broadcast %138 : vector<8x1x1xf32> to vector<8x2x128xf32>
    %140 = arith.mulf %126, %139 : vector<8x2x128xf32>
    %c0_51 = arith.constant 0 : index
    %c0_52 = arith.constant 0 : index
    %141 = vector.load %arg10[%c0_51, %c0_52] : memref<2x128xf32, #tpu.memory_space<vmem>>, vector<2x128xf32>
    %142 = arith.mulf %141, %141 : vector<2x128xf32>
    %cst_53 = arith.constant dense<0.000000e+00> : vector<2xf32>
    %143 = vector.multi_reduction <add>, %142, %cst_53 [1] : vector<2x128xf32> to vector<2xf32>
    %144 = vector.shape_cast %143 : vector<2xf32> to vector<2x1xf32>
    %cst_54 = arith.constant dense<0.000000e+00> : vector<1xf32>
    %145 = vector.multi_reduction <add>, %144, %cst_54 [0] : vector<2x1xf32> to vector<1xf32>
    %146 = vector.shape_cast %145 : vector<1xf32> to vector<1x1xf32>
    %cst_55 = arith.constant 1.000000e-24 : f32
    %147 = vector.broadcast %cst_55 : f32 to vector<1x1xf32>
    %148 = arith.maximumf %146, %147 : vector<1x1xf32>
    %149 = math.rsqrt %148 : vector<1x1xf32>
    %150 = vector.broadcast %149 : vector<1x1xf32> to vector<2x128xf32>
    %151 = arith.mulf %141, %150 : vector<2x128xf32>
    %152 = vector.shape_cast %151 : vector<2x128xf32> to vector<1x2x128xf32>
    %153 = vector.broadcast %152 : vector<1x2x128xf32> to vector<8x2x128xf32>
    %154 = arith.mulf %140, %153 : vector<8x2x128xf32>
    %cst_56 = arith.constant dense<0.000000e+00> : vector<8x2xf32>
    %155 = vector.multi_reduction <add>, %154, %cst_56 [2] : vector<8x2x128xf32> to vector<8x2xf32>
    %cst_57 = arith.constant dense<0.000000e+00> : vector<8xf32>
    %156 = vector.multi_reduction <add>, %155, %cst_57 [1] : vector<8x2xf32> to vector<8xf32>
    %157 = vector.shape_cast %156 : vector<8xf32> to vector<8x1xf32>
    %cst_58 = arith.constant 0.000000e+00 : f32
    %158 = vector.broadcast %cst_58 : f32 to vector<8x1xf32>
    %159 = arith.subf %158, %157 : vector<8x1xf32>
    %160 = math.exp %159 : vector<8x1xf32>
    %cst_59 = arith.constant 1.000000e+00 : f32
    %161 = vector.broadcast %cst_59 : f32 to vector<8x1xf32>
    %162 = arith.addf %161, %160 : vector<8x1xf32>
    %cst_60 = arith.constant 1.000000e+00 : f32
    %163 = vector.broadcast %cst_60 : f32 to vector<8x1xf32>
    %164 = arith.divf %163, %162 : vector<8x1xf32>
    %c0_61 = arith.constant 0 : index
    %c0_62 = arith.constant 0 : index
    %165 = vector.load %arg11[%c0_61, %c0_62] : memref<8x1xf32, #tpu.memory_space<vmem>>, vector<8x1xf32>
    tpu.vector_store %arg11[%c0_61, %c0_62], %164 {strides = array<i32>} : memref<8x1xf32, #tpu.memory_space<vmem>>, vector<8x1xf32>,
    return
  }
  func.func @transform_0(%arg0: i32) -> (i32, i32) {
    %c0_i32 = arith.constant 0 : i32
    %c0_i32_0 = arith.constant 0 : i32
    return %arg0, %c0_i32 : i32, i32
  }
  func.func @transform_1(%arg0: i32) -> (i32, i32) {
    %c0_i32 = arith.constant 0 : i32
    %c0_i32_0 = arith.constant 0 : i32
    %c0_i32_1 = arith.constant 0 : i32
    return %c0_i32, %c0_i32_0 : i32, i32
  }
  func.func @transform_2(%arg0: i32) -> (i32, i32) {
    %c0_i32 = arith.constant 0 : i32
    %c0_i32_0 = arith.constant 0 : i32
    %c0_i32_1 = arith.constant 0 : i32
    return %c0_i32, %c0_i32_0 : i32, i32
  }
  func.func @transform_3(%arg0: i32) -> (i32, i32) {
    %c0_i32 = arith.constant 0 : i32
    %c0_i32_0 = arith.constant 0 : i32
    %c0_i32_1 = arith.constant 0 : i32
    return %c0_i32, %c0_i32_0 : i32, i32
  }
  func.func @transform_4(%arg0: i32) -> (i32, i32) {
    %c0_i32 = arith.constant 0 : i32
    %c0_i32_0 = arith.constant 0 : i32
    %c0_i32_1 = arith.constant 0 : i32
    return %c0_i32, %c0_i32_0 : i32, i32
  }
  func.func @transform_5(%arg0: i32) -> (i32, i32) {
    %c0_i32 = arith.constant 0 : i32
    %c0_i32_0 = arith.constant 0 : i32
    %c0_i32_1 = arith.constant 0 : i32
    return %c0_i32, %c0_i32_0 : i32, i32
  }
  func.func @transform_6(%arg0: i32) -> (i32, i32) {
    %c0_i32 = arith.constant 0 : i32
    %c0_i32_0 = arith.constant 0 : i32
    %c0_i32_1 = arith.constant 0 : i32
    return %c0_i32, %c0_i32_0 : i32, i32
  }
  func.func @transform_7(%arg0: i32) -> (i32, i32) {
    %c0_i32 = arith.constant 0 : i32
    %c0_i32_0 = arith.constant 0 : i32
    %c0_i32_1 = arith.constant 0 : i32
    return %c0_i32, %c0_i32_0 : i32, i32
  }
  func.func @transform_8(%arg0: i32) -> (i32, i32) {
    %c0_i32 = arith.constant 0 : i32
    %c0_i32_0 = arith.constant 0 : i32
    %c0_i32_1 = arith.constant 0 : i32
    return %c0_i32, %c0_i32_0 : i32, i32
  }
  func.func @transform_9(%arg0: i32) -> (i32, i32) {
    %c0_i32 = arith.constant 0 : i32
    %c0_i32_0 = arith.constant 0 : i32
    %c0_i32_1 = arith.constant 0 : i32
    return %c0_i32, %c0_i32_0 : i32, i32
  }
  func.func @transform_10(%arg0: i32) -> (i32, i32) {
    %c0_i32 = arith.constant 0 : i32
    %c0_i32_0 = arith.constant 0 : i32
    return %arg0, %c0_i32 : i32, i32
  }
}

</mosaic_0001>

<llo_original>
// kernel: model_emo_mh_forward.1
$region0: #{model_emo_mh_forward.1}
  #allocation0 [shape = 'u32[]', space=smem, size = 0x4, offset = 0x4, fixed_abs, tag = 'smem constant byte address 0x4 - core index']
  #allocation1 [shape = 'u32[144,128]{1,0:T(1,128)}', space=vmem, size = 0x12000, scoped, tag = 'internal scratch']
  %s0 = inlined_call_operand.vmem [shape: f32[16,256], index: 0, kind: input, shape index: {}]
  %s1 = inlined_call_operand.hbm [shape: f32[256,4352], index: 1, kind: input, shape index: {}]
  %s2 = inlined_call_operand.hbm [shape: f32[1,4352], index: 2, kind: input, shape index: {}]
  %s3 = inlined_call_operand.vmem [shape: f32[256,64], index: 3, kind: input, shape index: {}]
  %s4 = inlined_call_operand.hbm [shape: f32[64,256], index: 4, kind: input, shape index: {}]
  %s5 = inlined_call_operand.hbm [shape: f32[256,512], index: 5, kind: input, shape index: {}]
  %s6 = inlined_call_operand.hbm [shape: f32[1,512], index: 6, kind: input, shape index: {}]
  %s7 = inlined_call_operand.vmem [shape: f32[512,64], index: 7, kind: input, shape index: {}]
  %s8 = inlined_call_operand.hbm [shape: f32[64,512], index: 8, kind: input, shape index: {}]
  %s9 = inlined_call_operand.hbm [shape: f32[2,128], index: 9, kind: input, shape index: {}]
  %s10 = inlined_call_operand.vmem [shape: f32[8,1], index: 10, kind: output, shape index: {}]
  %s11 = sld [smem:[#allocation0]]
  $region78: #{model_emo_mh_forward.1} parent=0
    _
  %s13 = ssub.s32 1, %s11
  %s14 = scalar_select 0, %s13, %s11
  $region1: #{model_emo_mh_forward.1} parent=0
    #allocation2 [shape = 'u8[4456448]{0}', space=vmem, size = 0x440000, scoped, tag = 'input window, operand 1, single buffered']
    #allocation3 [shape = 's32[1]{0}', space=sflag, size = 0x4, scoped, tag = 'scoped memory for model_emo_mh_forward.1']
    #allocation4 [shape = 'u8[17408]{0}', space=vmem, size = 0x4400, scoped, tag = 'input window, operand 2, single buffered']
    #allocation5 [shape = 's32[1]{0}', space=sflag, size = 0x4, scoped, tag = 'scoped memory for model_emo_mh_forward.1']
    #allocation6 [shape = 'u8[65536]{0}', space=vmem, size = 0x10000, scoped, tag = 'input window, operand 4, single buffered']
    #allocation7 [shape = 'u8[524288]{0}', space=vmem, size = 0x80000, scoped, tag = 'input window, operand 5, single buffered']
    #allocation8 [shape = 's32[1]{0}', space=sflag, size = 0x4, scoped, tag = 'scoped memory for model_emo_mh_forward.1']
    #allocation9 [shape = 'u8[2048]{0}', space=vmem, size = 0x800, scoped, tag = 'input window, operand 6, single buffered']
    #allocation10 [shape = 'u8[131072]{0}', space=vmem, size = 0x20000, scoped, tag = 'input window, operand 8, single buffered']
    #allocation11 [shape = 's32[1]{0}', space=sflag, size = 0x4, scoped, tag = 'scoped memory for model_emo_mh_forward.1']
    #allocation12 [shape = 'u8[1024]{0}', space=vmem, size = 0x400, scoped, tag = 'input window, operand 9, single buffered']
    %15 = vsyncpa [#allocation3], 0
    %16 = vsyncpa [#allocation5], 0
    %17 = vsyncpa [#allocation8], 0
    %18 = vsyncpa [#allocation11], 0
    // Predicated region
    $region2: #{model_emo_mh_forward.1} parent=1 // pred_check
      _
    $region3: #{model_emo_mh_forward.1} parent=1 // pred_check_branch
      %20 = sbr.rel (0) target = $region5
    $region4: #{model_emo_mh_forward.1} parent=1 // pred_region
      _
    $region5: #{model_emo_mh_forward.1} parent=1 // pred_fallthru
      _
    // Predicated region
    $region6: #{model_emo_mh_forward.1} parent=1 // pred_check
      _
    $region7: #{model_emo_mh_forward.1} parent=1 // pred_check_branch
      %22 = sbr.rel (0) target = $region9
    $region8: #{model_emo_mh_forward.1} parent=1 // pred_region
      %s24 = ssub.s32 139264, 139264
      %25 = vsyncadd [#allocation3], %s24
      %s26 = sshll.u32 [#allocation2], 4
      %s27 = int_to_ptr.vmem [resolvable:$true] %s26
      %32 = dma.hbm_to_vmem [thread:$0]  %s1, 139264, %s27, [#allocation3], 4352, 4352, 272
    $region9: #{model_emo_mh_forward.1} parent=1 // pred_fallthru
      _
    // Predicated region
    $region10: #{model_emo_mh_forward.1} parent=1 // pred_check
      _
    $region11: #{model_emo_mh_forward.1} parent=1 // pred_check_branch
      %34 = sbr.rel (0) target = $region13
    $region12: #{model_emo_mh_forward.1} parent=1 // pred_region
      %s36 = ssub.s32 544, 544
      %37 = vsyncadd [#allocation5], %s36
      %s39 = sshll.u32 [#allocation4], 4
      %s40 = int_to_ptr.vmem [resolvable:$true] %s39
      %42 = dma.hbm_to_vmem [thread:$0]  %s2, 544, %s40, [#allocation5]
    $region13: #{model_emo_mh_forward.1} parent=1 // pred_fallthru
      _
    // Predicated region
    $region14: #{model_emo_mh_forward.1} parent=1 // pred_check
      _
    $region15: #{model_emo_mh_forward.1} parent=1 // pred_check_branch
      %44 = sbr.rel (0) target = $region17
    $region16: #{model_emo_mh_forward.1} parent=1 // pred_region
      _
    $region17: #{model_emo_mh_forward.1} parent=1 // pred_fallthru
      _
    // Predicated region
    $region18: #{model_emo_mh_forward.1} parent=1 // pred_check
      _
    $region19: #{model_emo_mh_forward.1} parent=1 // pred_check_branch
      %46 = sbr.rel (0) target = $region21
    $region20: #{model_emo_mh_forward.1} parent=1 // pred_region
      %s48 = ssub.s32 2048, 2048
      %49 = vsyncadd [#allocation5], %s48
      %s50 = sshll.u32 [#allocation6], 4
      %s51 = int_to_ptr.vmem [resolvable:$true] %s50
      %56 = dma.hbm_to_vmem [thread:$0]  %s4, 2048, %s51, [#allocation5], 256, 256, 16
    $region21: #{model_emo_mh_forward.1} parent=1 // pred_fallthru
      _
    // Predicated region
    $region22: #{model_emo_mh_forward.1} parent=1 // pred_check
      _
    $region23: #{model_emo_mh_forward.1} parent=1 // pred_check_branch
      %58 = sbr.rel (0) target = $region25
    $region24: #{model_emo_mh_forward.1} parent=1 // pred_region
      %s60 = ssub.s32 16384, 16384
      %61 = vsyncadd [#allocation8], %s60
      %s62 = sshll.u32 [#allocation7], 4
      %s63 = int_to_ptr.vmem [resolvable:$true] %s62
      %68 = dma.hbm_to_vmem [thread:$0]  %s5, 16384, %s63, [#allocation8], 512, 512, 32
    $region25: #{model_emo_mh_forward.1} parent=1 // pred_fallthru
      _
    // Predicated region
    $region26: #{model_emo_mh_forward.1} parent=1 // pred_check
      _
    $region27: #{model_emo_mh_forward.1} parent=1 // pred_check_branch
      %70 = sbr.rel (0) target = $region29
    $region28: #{model_emo_mh_forward.1} parent=1 // pred_region
      %s72 = ssub.s32 64, 64
      %73 = vsyncadd [#allocation8], %s72
      %s75 = sshll.u32 [#allocation9], 4
      %s76 = int_to_ptr.vmem [resolvable:$true] %s75
      %78 = dma.hbm_to_vmem [thread:$0]  %s6, 64, %s76, [#allocation8]
    $region29: #{model_emo_mh_forward.1} parent=1 // pred_fallthru
      _
    // Predicated region
    $region30: #{model_emo_mh_forward.1} parent=1 // pred_check
      _
    $region31: #{model_emo_mh_forward.1} parent=1 // pred_check_branch
      %80 = sbr.rel (0) target = $region33
    $region32: #{model_emo_mh_forward.1} parent=1 // pred_region
      _
    $region33: #{model_emo_mh_forward.1} parent=1 // pred_fallthru
      _
    // Predicated region
    $region34: #{model_emo_mh_forward.1} parent=1 // pred_check
      _
    $region35: #{model_emo_mh_forward.1} parent=1 // pred_check_branch
      %82 = sbr.rel (0) target = $region37
    $region36: #{model_emo_mh_forward.1} parent=1 // pred_region
      %s84 = ssub.s32 4096, 4096
      %85 = vsyncadd [#allocation11], %s84
      %s86 = sshll.u32 [#allocation10], 4
      %s87 = int_to_ptr.vmem [resolvable:$true] %s86
      %92 = dma.hbm_to_vmem [thread:$0]  %s8, 4096, %s87, [#allocation11], 512, 512, 32
    $region37: #{model_emo_mh_forward.1} parent=1 // pred_fallthru
      _
    // Predicated region
    $region38: #{model_emo_mh_forward.1} parent=1 // pred_check
      _
    $region39: #{model_emo_mh_forward.1} parent=1 // pred_check_branch
      %94 = sbr.rel (0) target = $region41
    $region40: #{model_emo_mh_forward.1} parent=1 // pred_region
      %s96 = ssub.s32 32, 32
      %97 = vsyncadd [#allocation11], %s96
      %s99 = sshll.u32 [#allocation12], 4
      %s100 = int_to_ptr.vmem [resolvable:$true] %s99
      %102 = dma.hbm_to_vmem [thread:$0]  %s9, 32, %s100, [#allocation11]
    $region41: #{model_emo_mh_forward.1} parent=1 // pred_fallthru
      _
    // Predicated region
    $region42: #{model_emo_mh_forward.1} parent=1 // pred_check
      _
    $region43: #{model_emo_mh_forward.1} parent=1 // pred_check_branch
      %104 = sbr.rel (0) target = $region45
    $region44: #{model_emo_mh_forward.1} parent=1 // pred_region
      %105 = dma.done [#allocation3], 139264
    $region45: #{model_emo_mh_forward.1} parent=1 // pred_fallthru
      _
    // Predicated region
    $region46: #{model_emo_mh_forward.1} parent=1 // pred_check
      _
    $region47: #{model_emo_mh_forward.1} parent=1 // pred_check_branch
      %107 = sbr.rel (0) target = $region49
    $region48: #{model_emo_mh_forward.1} parent=1 // pred_region
      %108 = dma.done [#allocation5], 544
    $region49: #{model_emo_mh_forward.1} parent=1 // pred_fallthru
      _
    // Predicated region
    $region50: #{model_emo_mh_forward.1} parent=1 // pred_check
      _
    $region51: #{model_emo_mh_forward.1} parent=1 // pred_check_branch
      %110 = sbr.rel (0) target = $region53
    $region52: #{model_emo_mh_forward.1} parent=1 // pred_region
      %111 = dma.done [#allocation5], 2048
    $region53: #{model_emo_mh_forward.1} parent=1 // pred_fallthru
      _
    // Predicated region
    $region54: #{model_emo_mh_forward.1} parent=1 // pred_check
      _
    $region55: #{model_emo_mh_forward.1} parent=1 // pred_check_branch
      %113 = sbr.rel (0) target = $region57
    $region56: #{model_emo_mh_forward.1} parent=1 // pred_region
      %114 = dma.done [#allocation8], 16384
    $region57: #{model_emo_mh_forward.1} parent=1 // pred_fallthru
      _
    // Predicated region
    $region58: #{model_emo_mh_forward.1} parent=1 // pred_check
      _
    $region59: #{model_emo_mh_forward.1} parent=1 // pred_check_branch
      %116 = sbr.rel (0) target = $region61
    $region60: #{model_emo_mh_forward.1} parent=1 // pred_region
      %117 = dma.done [#allocation8], 64
    $region61: #{model_emo_mh_forward.1} parent=1 // pred_fallthru
      _
    // Predicated region
    $region62: #{model_emo_mh_forward.1} parent=1 // pred_check
      _
    $region63: #{model_emo_mh_forward.1} parent=1 // pred_check_branch
      %119 = sbr.rel (0) target = $region65
    $region64: #{model_emo_mh_forward.1} parent=1 // pred_region
      %120 = dma.done [#allocation11], 4096
    $region65: #{model_emo_mh_forward.1} parent=1 // pred_fallthru
      _
    // Predicated region
    $region66: #{model_emo_mh_forward.1} parent=1 // pred_check
      _
    $region67: #{model_emo_mh_forward.1} parent=1 // pred_check_branch
      %122 = sbr.rel (0) target = $region69
    $region68: #{model_emo_mh_forward.1} parent=1 // pred_region
      %123 = dma.done [#allocation11], 32
    $region69: #{model_emo_mh_forward.1} parent=1 // pred_fallthru
      _
    %v124 = vld [vmem:[%s0] sm:$0xff]
    %v125 = vld [vmem:[%s0 + $0x8] sm:$0xff]
    %v126 = vld [vmem:[%s0 + $0x10] sm:$0xff]
    %v127 = vld [vmem:[%s0 + $0x18] sm:$0xff]
    %v128 = vld [vmem:[#allocation2] sm:$0xff]
    %v129 = vld [vmem:[#allocation2 + $0x8] sm:$0xff]
    %v130 = vld [vmem:[#allocation2 + $0x10] sm:$0xff]
    %v131 = vld [vmem:[#allocation2 + $0x18] sm:$0xff]
    %v132 = vld [vmem:[#allocation2 + $0x20] sm:$0xff]
    %v133 = vld [vmem:[#allocation2 + $0x28] sm:$0xff]
    %v134 = vld [vmem:[#allocation2 + $0x30] sm:$0xff]
    %v135 = vld [vmem:[#allocation2 + $0x38] sm:$0xff]
    %v136 = vld [vmem:[#allocation2 + $0x40] sm:$0xff]
    %v137 = vld [vmem:[#allocation2 + $0x48] sm:$0xff]
    %v138 = vld [vmem:[#allocation2 + $0x50] sm:$0xff]
    %v139 = vld [vmem:[#allocation2 + $0x58] sm:$0xff]
    %v140 = vld [vmem:[#allocation2 + $0x60] sm:$0xff]
    %v141 = vld [vmem:[#allocation2 + $0x68] sm:$0xff]
    %v142 = vld [vmem:[#allocation2 + $0x70] sm:$0xff]
    %v143 = vld [vmem:[#allocation2 + $0x78] sm:$0xff]
    %v144 = vld [vmem:[#allocation2 + $0x80] sm:$0xff]
    %v145 = vld [vmem:[#allocation2 + $0x88] sm:$0xff]
    %v146 = vld [vmem:[#allocation2 + $0x90] sm:$0xff]
    %v147 = vld [vmem:[#allocation2 + $0x98] sm:$0xff]
    %v148 = vld [vmem:[#allocation2 + $0xa0] sm:$0xff]
    %v149 = vld [vmem:[#allocation2 + $0xa8] sm:$0xff]
    %v150 = vld [vmem:[#allocation2 + $0xb0] sm:$0xff]
    %v151 = vld [vmem:[#allocation2 + $0xb8] sm:$0xff]
    %v152 = vld [vmem:[#allocation2 + $0xc0] sm:$0xff]
    %v153 = vld [vmem:[#allocation2 + $0xc8] sm:$0xff]
    %v154 = vld [vmem:[#allocation2 + $0xd0] sm:$0xff]
    %v155 = vld [vmem:[#allocation2 + $0xd8] sm:$0xff]
    %v156 = vld [vmem:[#allocation2 + $0xe0] sm:$0xff]
    %v157 = vld [vmem:[#allocation2 + $0xe8] sm:$0xff]
    %v158 = vld [vmem:[#allocation2 + $0xf0] sm:$0xff]
    %v159 = vld [vmem:[#allocation2 + $0xf8] sm:$0xff]
    %v160 = vld [vmem:[#allocation2 + $0x100] sm:$0xff]
    %v161 = vld [vmem:[#allocation2 + $0x108] sm:$0xff]
    %v162 = vld [vmem:[#allocation2 + $0x110] sm:$0xff]
    %v163 = vld [vmem:[#allocation2 + $0x118] sm:$0xff]
    %v164 = vld [vmem:[#allocation2 + $0x120] sm:$0xff]
    %v165 = vld [vmem:[#allocation2 + $0x128] sm:$0xff]
    %v166 = vld [vmem:[#allocation2 + $0x130] sm:$0xff]
    %v167 = vld [vmem:[#allocation2 + $0x138] sm:$0xff]
    %v168 = vld [vmem:[#allocation2 + $0x140] sm:$0xff]
    %v169 = vld [vmem:[#allocation2 + $0x148] sm:$0xff]
    %v170 = vld [vmem:[#allocation2 + $0x150] sm:$0xff]
    %v171 = vld [vmem:[#allocation2 + $0x158] sm:$0xff]
    %v172 = vld [vmem:[#allocation2 + $0x160] sm:$0xff]
    %v173 = vld [vmem:[#allocation2 + $0x168] sm:$0xff]
    %v174 = vld [vmem:[#allocation2 + $0x170] sm:$0xff]
    %v175 = vld [vmem:[#allocation2 + $0x178] sm:$0xff]
    %v176 = vld [vmem:[#allocation2 + $0x180] sm:$0xff]
    %v177 = vld [vmem:[#allocation2 + $0x188] sm:$0xff]
    %v178 = vld [vmem:[#allocation2 + $0x190] sm:$0xff]
    %v179 = vld [vmem:[#allocation2 + $0x198] sm:$0xff]
    %v180 = vld [vmem:[#allocation2 + $0x1a0] sm:$0xff]
    %v181 = vld [vmem:[#allocation2 + $0x1a8] sm:$0xff]
    %v182 = vld [vmem:[#allocation2 + $0x1b0] sm:$0xff]
    %v183 = vld [vmem:[#allocation2 + $0x1b8] sm:$0xff]
    %v184 = vld [vmem:[#allocation2 + $0x1c0] sm:$0xff]
    %v185 = vld [vmem:[#allocation2 + $0x1c8] sm:$0xff]
    %v186 = vld [vmem:[#allocation2 + $0x1d0] sm:$0xff]
    %v187 = vld [vmem:[#allocation2 + $0x1d8] sm:$0xff]
    %v188 = vld [vmem:[#allocation2 + $0x1e0] sm:$0xff]
    %v189 = vld [vmem:[#allocation2 + $0x1e8] sm:$0xff]
    %v190 = vld [vmem:[#allocation2 + $0x1f0] sm:$0xff]
    %v191 = vld [vmem:[#allocation2 + $0x1f8] sm:$0xff]
    %v192 = vld [vmem:[#allocation2 + $0x200] sm:$0xff]
    %v193 = vld [vmem:[#allocation2 + $0x208] sm:$0xff]
    %v194 = vld [vmem:[#allocation2 + $0x210] sm:$0xff]
    %v195 = vld [vmem:[#allocation2 + $0x218] sm:$0xff]
    %v196 = vld [vmem:[#allocation2 + $0x220] sm:$0xff]
    %v197 = vld [vmem:[#allocation2 + $0x228] sm:$0xff]
    %v198 = vld [vmem:[#allocation2 + $0x230] sm:$0xff]
    %v199 = vld [vmem:[#allocation2 + $0x238] sm:$0xff]
    %v200 = vld [vmem:[#allocation2 + $0x240] sm:$0xff]
    %v201 = vld [vmem:[#allocation2 + $0x248] sm:$0xff]
    %v202 = vld [vmem:[#allocation2 + $0x250] sm:$0xff]
    %v203 = vld [vmem:[#allocation2 + $0x258] sm:$0xff]
    %v204 = vld [vmem:[#allocation2 + $0x260] sm:$0xff]
    %v205 = vld [vmem:[#allocation2 + $0x268] sm:$0xff]
    %v206 = vld [vmem:[#allocation2 + $0x270] sm:$0xff]
    %v207 = vld [vmem:[#allocation2 + $0x278] sm:$0xff]
    %v208 = vld [vmem:[#allocation2 + $0x280] sm:$0xff]
    %v209 = vld [vmem:[#allocation2 + $0x288] sm:$0xff]
    %v210 = vld [vmem:[#allocation2 + $0x290] sm:$0xff]
    %v211 = vld [vmem:[#allocation2 + $0x298] sm:$0xff]
    %v212 = vld [vmem:[#allocation2 + $0x2a0] sm:$0xff]
    %v213 = vld [vmem:[#allocation2 + $0x2a8] sm:$0xff]
    %v214 = vld [vmem:[#allocation2 + $0x2b0] sm:$0xff]
    %v215 = vld [vmem:[#allocation2 + $0x2b8] sm:$0xff]
    %v216 = vld [vmem:[#allocation2 + $0x2c0] sm:$0xff]
    %v217 = vld [vmem:[#allocation2 + $0x2c8] sm:$0xff]
    %v218 = vld [vmem:[#allocation2 + $0x2d0] sm:$0xff]
    %v219 = vld [vmem:[#allocation2 + $0x2d8] sm:$0xff]
    %v220 = vld [vmem:[#allocation2 + $0x2e0] sm:$0xff]
    %v221 = vld [vmem:[#allocation2 + $0x2e8] sm:$0xff]
    %v222 = vld [vmem:[#allocation2 + $0x2f0] sm:$0xff]
    %v223 = vld [vmem:[#allocation2 + $0x2f8] sm:$0xff]
    %v224 = vld [vmem:[#allocation2 + $0x300] sm:$0xff]
    %v225 = vld [vmem:[#allocation2 + $0x308] sm:$0xff]
    %v226 = vld [vmem:[#allocation2 + $0x310] sm:$0xff]
    %v227 = vld [vmem:[#allocation2 + $0x318] sm:$0xff]
    %v228 = vld [vmem:[#allocation2 + $0x320] sm:$0xff]
    %v229 = vld [vmem:[#allocation2 + $0x328] sm:$0xff]
    %v230 = vld [vmem:[#allocation2 + $0x330] sm:$0xff]
    %v231 = vld [vmem:[#allocation2 + $0x338] sm:$0xff]
    %v232 = vld [vmem:[#allocation2 + $0x340] sm:$0xff]
    %v233 = vld [vmem:[#allocation2 + $0x348] sm:$0xff]
    %v234 = vld [vmem:[#allocation2 + $0x350] sm:$0xff]
    %v235 = vld [vmem:[#allocation2 + $0x358] sm:$0xff]
    %v236 = vld [vmem:[#allocation2 + $0x360] sm:$0xff]
    %v237 = vld [vmem:[#allocation2 + $0x368] sm:$0xff]
    %v238 = vld [vmem:[#allocation2 + $0x370] sm:$0xff]
    %v239 = vld [vmem:[#allocation2 + $0x378] sm:$0xff]
    %v240 = vld [vmem:[#allocation2 + $0x380] sm:$0xff]
    %v241 = vld [vmem:[#allocation2 + $0x388] sm:$0xff]
    %v242 = vld [vmem:[#allocation2 + $0x390] sm:$0xff]
    %v243 = vld [vmem:[#allocation2 + $0x398] sm:$0xff]
    %v244 = vld [vmem:[#allocation2 + $0x3a0] sm:$0xff]
    %v245 = vld [vmem:[#allocation2 + $0x3a8] sm:$0xff]
    %v246 = vld [vmem:[#allocation2 + $0x3b0] sm:$0xff]
    %v247 = vld [vmem:[#allocation2 + $0x3b8] sm:$0xff]
    %v248 = vld [vmem:[#allocation2 + $0x3c0] sm:$0xff]
    %v249 = vld [vmem:[#allocation2 + $0x3c8] sm:$0xff]
    %v250 = vld [vmem:[#allocation2 + $0x3d0] sm:$0xff]
    %v251 = vld [vmem:[#allocation2 + $0x3d8] sm:$0xff]
    %v252 = vld [vmem:[#allocation2 + $0x3e0] sm:$0xff]
    %v253 = vld [vmem:[#allocation2 + $0x3e8] sm:$0xff]
    %v254 = vld [vmem:[#allocation2 + $0x3f0] sm:$0xff]
    %v255 = vld [vmem:[#allocation2 + $0x3f8] sm:$0xff]
    %v256 = vld [vmem:[#allocation2 + $0x400] sm:$0xff]
    %v257 = vld [vmem:[#allocation2 + $0x408] sm:$0xff]
    %v258 = vld [vmem:[#allocation2 + $0x410] sm:$0xff]
    %v259 = vld [vmem:[#allocation2 + $0x418] sm:$0xff]
    %v260 = vld [vmem:[#allocation2 + $0x420] sm:$0xff]
    %v261 = vld [vmem:[#allocation2 + $0x428] sm:$0xff]
    %v262 = vld [vmem:[#allocation2 + $0x430] sm:$0xff]
    %v263 = vld [vmem:[#allocation2 + $0x438] sm:$0xff]
    %v264 = vld [vmem:[#allocation2 + $0x440] sm:$0xff]
    %v265 = vld [vmem:[#allocation2 + $0x448] sm:$0xff]
    %v266 = vld [vmem:[#allocation2 + $0x450] sm:$0xff]
    %v267 = vld [vmem:[#allocation2 + $0x458] sm:$0xff]
    %v268 = vld [vmem:[#allocation2 + $0x460] sm:$0xff]
    %v269 = vld [vmem:[#allocation2 + $0x468] sm:$0xff]
    %v270 = vld [vmem:[#allocation2 + $0x470] sm:$0xff]
    %v271 = vld [vmem:[#allocation2 + $0x478] sm:$0xff]
    %v272 = vld [vmem:[#allocation2 + $0x480] sm:$0xff]
    %v273 = vld [vmem:[#allocation2 + $0x488] sm:$0xff]
    %v274 = vld [vmem:[#allocation2 + $0x490] sm:$0xff]
    %v275 = vld [vmem:[#allocation2 + $0x498] sm:$0xff]
    %v276 = vld [vmem:[#allocation2 + $0x4a0] sm:$0xff]
    %v277 = vld [vmem:[#allocation2 + $0x4a8] sm:$0xff]
    %v278 = vld [vmem:[#allocation2 + $0x4b0] sm:$0xff]
    %v279 = vld [vmem:[#allocation2 + $0x4b8] sm:$0xff]
    %v280 = vld [vmem:[#allocation2 + $0x4c0] sm:$0xff]
    %v281 = vld [vmem:[#allocation2 + $0x4c8] sm:$0xff]
    %v282 = vld [vmem:[#allocation2 + $0x4d0] sm:$0xff]
    %v283 = vld [vmem:[#allocation2 + $0x4d8] sm:$0xff]
    %v284 = vld [vmem:[#allocation2 + $0x4e0] sm:$0xff]
    %v285 = vld [vmem:[#allocation2 + $0x4e8] sm:$0xff]
    %v286 = vld [vmem:[#allocation2 + $0x4f0] sm:$0xff]
    %v287 = vld [vmem:[#allocation2 + $0x4f8] sm:$0xff]
    %v288 = vld [vmem:[#allocation2 + $0x500] sm:$0xff]
    %v289 = vld [vmem:[#allocation2 + $0x508] sm:$0xff]
    %v290 = vld [vmem:[#allocation2 + $0x510] sm:$0xff]
    %v291 = vld [vmem:[#allocation2 + $0x518] sm:$0xff]
    %v292 = vld [vmem:[#allocation2 + $0x520] sm:$0xff]
    %v293 = vld [vmem:[#allocation2 + $0x528] sm:$0xff]
    %v294 = vld [vmem:[#allocation2 + $0x530] sm:$0xff]
    %v295 = vld [vmem:[#allocation2 + $0x538] sm:$0xff]
    %v296 = vld [vmem:[#allocation2 + $0x540] sm:$0xff]
    %v297 = vld [vmem:[#allocation2 + $0x548] sm:$0xff]
    %v298 = vld [vmem:[#allocation2 + $0x550] sm:$0xff]
    %v299 = vld [vmem:[#allocation2 + $0x558] sm:$0xff]
    %v300 = vld [vmem:[#allocation2 + $0x560] sm:$0xff]
    %v301 = vld [vmem:[#allocation2 + $0x568] sm:$0xff]
    %v302 = vld [vmem:[#allocation2 + $0x570] sm:$0xff]
    %v303 = vld [vmem:[#allocation2 + $0x578] sm:$0xff]
    %v304 = vld [vmem:[#allocation2 + $0x580] sm:$0xff]
    %v305 = vld [vmem:[#allocation2 + $0x588] sm:$0xff]
    %v306 = vld [vmem:[#allocation2 + $0x590] sm:$0xff]
    %v307 = vld [vmem:[#allocation2 + $0x598] sm:$0xff]
    %v308 = vld [vmem:[#allocation2 + $0x5a0] sm:$0xff]
    %v309 = vld [vmem:[#allocation2 + $0x5a8] sm:$0xff]
    %v310 = vld [vmem:[#allocation2 + $0x5b0] sm:$0xff]
    %v311 = vld [vmem:[#allocation2 + $0x5b8] sm:$0xff]
    %v312 = vld [vmem:[#allocation2 + $0x5c0] sm:$0xff]
    %v313 = vld [vmem:[#allocation2 + $0x5c8] sm:$0xff]
    %v314 = vld [vmem:[#allocation2 + $0x5d0] sm:$0xff]
    %v315 = vld [vmem:[#allocation2 + $0x5d8] sm:$0xff]
    %v316 = vld [vmem:[#allocation2 + $0x5e0] sm:$0xff]
    %v317 = vld [vmem:[#allocation2 + $0x5e8] sm:$0xff]
    %v318 = vld [vmem:[#allocation2 + $0x5f0] sm:$0xff]
    %v319 = vld [vmem:[#allocation2 + $0x5f8] sm:$0xff]
    %v320 = vld [vmem:[#allocation2 + $0x600] sm:$0xff]
    %v321 = vld [vmem:[#allocation2 + $0x608] sm:$0xff]
    %v322 = vld [vmem:[#allocation2 + $0x610] sm:$0xff]
    %v323 = vld [vmem:[#allocation2 + $0x618] sm:$0xff]
    %v324 = vld [vmem:[#allocation2 + $0x620] sm:$0xff]
    %v325 = vld [vmem:[#allocation2 + $0x628] sm:$0xff]
    %v326 = vld [vmem:[#allocation2 + $0x630] sm:$0xff]
    %v327 = vld [vmem:[#allocation2 + $0x638] sm:$0xff]
    %v328 = vld [vmem:[#allocation2 + $0x640] sm:$0xff]
    %v329 = vld [vmem:[#allocation2 + $0x648] sm:$0xff]
    %v330 = vld [vmem:[#allocation2 + $0x650] sm:$0xff]
    %v331 = vld [vmem:[#allocation2 + $0x658] sm:$0xff]
    %v332 = vld [vmem:[#allocation2 + $0x660] sm:$0xff]
    %v333 = vld [vmem:[#allocation2 + $0x668] sm:$0xff]
    %v334 = vld [vmem:[#allocation2 + $0x670] sm:$0xff]
    %v335 = vld [vmem:[#allocation2 + $0x678] sm:$0xff]
    %v336 = vld [vmem:[#allocation2 + $0x680] sm:$0xff]
    %v337 = vld [vmem:[#allocation2 + $0x688] sm:$0xff]
    %v338 = vld [vmem:[#allocation2 + $0x690] sm:$0xff]
    %v339 = vld [vmem:[#allocation2 + $0x698] sm:$0xff]
    %v340 = vld [vmem:[#allocation2 + $0x6a0] sm:$0xff]
    %v341 = vld [vmem:[#allocation2 + $0x6a8] sm:$0xff]
    %v342 = vld [vmem:[#allocation2 + $0x6b0] sm:$0xff]
    %v343 = vld [vmem:[#allocation2 + $0x6b8] sm:$0xff]
    %v344 = vld [vmem:[#allocation2 + $0x6c0] sm:$0xff]
    %v345 = vld [vmem:[#allocation2 + $0x6c8] sm:$0xff]
    %v346 = vld [vmem:[#allocation2 + $0x6d0] sm:$0xff]
    %v347 = vld [vmem:[#allocation2 + $0x6d8] sm:$0xff]
    %v348 = vld [vmem:[#allocation2 + $0x6e0] sm:$0xff]
    %v349 = vld [vmem:[#allocation2 + $0x6e8] sm:$0xff]
    %v350 = vld [vmem:[#allocation2 + $0x6f0] sm:$0xff]
    %v351 = vld [vmem:[#allocation2 + $0x6f8] sm:$0xff]
    %v352 = vld [vmem:[#allocation2 + $0x700] sm:$0xff]
    %v353 = vld [vmem:[#allocation2 + $0x708] sm:$0xff]
    %v354 = vld [vmem:[#allocation2 + $0x710] sm:$0xff]
    %v355 = vld [vmem:[#allocation2 + $0x718] sm:$0xff]
    %v356 = vld [vmem:[#allocation2 + $0x720] sm:$0xff]
    %v357 = vld [vmem:[#allocation2 + $0x728] sm:$0xff]
    %v358 = vld [vmem:[#allocation2 + $0x730] sm:$0xff]
    %v359 = vld [vmem:[#allocation2 + $0x738] sm:$0xff]
    %v360 = vld [vmem:[#allocation2 + $0x740] sm:$0xff]
    %v361 = vld [vmem:[#allocation2 + $0x748] sm:$0xff]
    %v362 = vld [vmem:[#allocation2 + $0x750] sm:$0xff]
    %v363 = vld [vmem:[#allocation2 + $0x758] sm:$0xff]
    %v364 = vld [vmem:[#allocation2 + $0x760] sm:$0xff]
    %v365 = vld [vmem:[#allocation2 + $0x768] sm:$0xff]
    %v366 = vld [vmem:[#allocation2 + $0x770] sm:$0xff]
    %v367 = vld [vmem:[#allocation2 + $0x778] sm:$0xff]
    %v368 = vld [vmem:[#allocation2 + $0x780] sm:$0xff]
    %v369 = vld [vmem:[#allocation2 + $0x788] sm:$0xff]
    %v370 = vld [vmem:[#allocation2 + $0x790] sm:$0xff]
    %v371 = vld [vmem:[#allocation2 + $0x798] sm:$0xff]
    %v372 = vld [vmem:[#allocation2 + $0x7a0] sm:$0xff]
    %v373 = vld [vmem:[#allocation2 + $0x7a8] sm:$0xff]
    %v374 = vld [vmem:[#allocation2 + $0x7b0] sm:$0xff]
    %v375 = vld [vmem:[#allocation2 + $0x7b8] sm:$0xff]
    %v376 = vld [vmem:[#allocation2 + $0x7c0] sm:$0xff]
    %v377 = vld [vmem:[#allocation2 + $0x7c8] sm:$0xff]
    %v378 = vld [vmem:[#allocation2 + $0x7d0] sm:$0xff]
    %v379 = vld [vmem:[#allocation2 + $0x7d8] sm:$0xff]
    %v380 = vld [vmem:[#allocation2 + $0x7e0] sm:$0xff]
    %v381 = vld [vmem:[#allocation2 + $0x7e8] sm:$0xff]
    %v382 = vld [vmem:[#allocation2 + $0x7f0] sm:$0xff]
    %v383 = vld [vmem:[#allocation2 + $0x7f8] sm:$0xff]
    %v384 = vld [vmem:[#allocation2 + $0x800] sm:$0xff]
    %v385 = vld [vmem:[#allocation2 + $0x808] sm:$0xff]
    %v386 = vld [vmem:[#allocation2 + $0x810] sm:$0xff]
    %v387 = vld [vmem:[#allocation2 + $0x818] sm:$0xff]
    %v388 = vld [vmem:[#allocation2 + $0x820] sm:$0xff]
    %v389 = vld [vmem:[#allocation2 + $0x828] sm:$0xff]
    %v390 = vld [vmem:[#allocation2 + $0x830] sm:$0xff]
    %v391 = vld [vmem:[#allocation2 + $0x838] sm:$0xff]
    %v392 = vld [vmem:[#allocation2 + $0x840] sm:$0xff]
    %v393 = vld [vmem:[#allocation2 + $0x848] sm:$0xff]
    %v394 = vld [vmem:[#allocation2 + $0x850] sm:$0xff]
    %v395 = vld [vmem:[#allocation2 + $0x858] sm:$0xff]
    %v396 = vld [vmem:[#allocation2 + $0x860] sm:$0xff]
    %v397 = vld [vmem:[#allocation2 + $0x868] sm:$0xff]
    %v398 = vld [vmem:[#allocation2 + $0x870] sm:$0xff]
    %v399 = vld [vmem:[#allocation2 + $0x878] sm:$0xff]
    %v400 = vld [vmem:[#allocation2 + $0x880] sm:$0xff]
    %v401 = vld [vmem:[#allocation2 + $0x888] sm:$0xff]
    %v402 = vld [vmem:[#allocation2 + $0x890] sm:$0xff]
    %v403 = vld [vmem:[#allocation2 + $0x898] sm:$0xff]
    %v404 = vld [vmem:[#allocation2 + $0x8a0] sm:$0xff]
    %v405 = vld [vmem:[#allocation2 + $0x8a8] sm:$0xff]
    %v406 = vld [vmem:[#allocation2 + $0x8b0] sm:$0xff]
    %v407 = vld [vmem:[#allocation2 + $0x8b8] sm:$0xff]
    %v408 = vld [vmem:[#allocation2 + $0x8c0] sm:$0xff]
    %v409 = vld [vmem:[#allocation2 + $0x8c8] sm:$0xff]
    %v410 = vld [vmem:[#allocation2 + $0x8d0] sm:$0xff]
    %v411 = vld [vmem:[#allocation2 + $0x8d8] sm:$0xff]
    %v412 = vld [vmem:[#allocation2 + $0x8e0] sm:$0xff]
    %v413 = vld [vmem:[#allocation2 + $0x8e8] sm:$0xff]
    %v414 = vld [vmem:[#allocation2 + $0x8f0] sm:$0xff]
    %v415 = vld [vmem:[#allocation2 + $0x8f8] sm:$0xff]
    %v416 = vld [vmem:[#allocation2 + $0x900] sm:$0xff]
    %v417 = vld [vmem:[#allocation2 + $0x908] sm:$0xff]
    %v418 = vld [vmem:[#allocation2 + $0x910] sm:$0xff]
    %v419 = vld [vmem:[#allocation2 + $0x918] sm:$0xff]
    %v420 = vld [vmem:[#allocation2 + $0x920] sm:$0xff]
    %v421 = vld [vmem:[#allocation2 + $0x928] sm:$0xff]
    %v422 = vld [vmem:[#allocation2 + $0x930] sm:$0xff]
    %v423 = vld [vmem:[#allocation2 + $0x938] sm:$0xff]
    %v424 = vld [vmem:[#allocation2 + $0x940] sm:$0xff]
    %v425 = vld [vmem:[#allocation2 + $0x948] sm:$0xff]
    %v426 = vld [vmem:[#allocation2 + $0x950] sm:$0xff]
    %v427 = vld [vmem:[#allocation2 + $0x958] sm:$0xff]
    %v428 = vld [vmem:[#allocation2 + $0x960] sm:$0xff]
    %v429 = vld [vmem:[#allocation2 + $0x968] sm:$0xff]
    %v430 = vld [vmem:[#allocation2 + $0x970] sm:$0xff]
    %v431 = vld [vmem:[#allocation2 + $0x978] sm:$0xff]
    %v432 = vld [vmem:[#allocation2 + $0x980] sm:$0xff]
    %v433 = vld [vmem:[#allocation2 + $0x988] sm:$0xff]
    %v434 = vld [vmem:[#allocation2 + $0x990] sm:$0xff]
    %v435 = vld [vmem:[#allocation2 + $0x998] sm:$0xff]
    %v436 = vld [vmem:[#allocation2 + $0x9a0] sm:$0xff]
    %v437 = vld [vmem:[#allocation2 + $0x9a8] sm:$0xff]
    %v438 = vld [vmem:[#allocation2 + $0x9b0] sm:$0xff]
    %v439 = vld [vmem:[#allocation2 + $0x9b8] sm:$0xff]
    %v440 = vld [vmem:[#allocation2 + $0x9c0] sm:$0xff]
    %v441 = vld [vmem:[#allocation2 + $0x9c8] sm:$0xff]
    %v442 = vld [vmem:[#allocation2 + $0x9d0] sm:$0xff]
    %v443 = vld [vmem:[#allocation2 + $0x9d8] sm:$0xff]
    %v444 = vld [vmem:[#allocation2 + $0x9e0] sm:$0xff]
    %v445 = vld [vmem:[#allocation2 + $0x9e8] sm:$0xff]
    %v446 = vld [vmem:[#allocation2 + $0x9f0] sm:$0xff]
    %v447 = vld [vmem:[#allocation2 + $0x9f8] sm:$0xff]
    %v448 = vld [vmem:[#allocation2 + $0xa00] sm:$0xff]
    %v449 = vld [vmem:[#allocation2 + $0xa08] sm:$0xff]
    %v450 = vld [vmem:[#allocation2 + $0xa10] sm:$0xff]
    %v451 = vld [vmem:[#allocation2 + $0xa18] sm:$0xff]
    %v452 = vld [vmem:[#allocation2 + $0xa20] sm:$0xff]
    %v453 = vld [vmem:[#allocation2 + $0xa28] sm:$0xff]
    %v454 = vld [vmem:[#allocation2 + $0xa30] sm:$0xff]
    %v455 = vld [vmem:[#allocation2 + $0xa38] sm:$0xff]
    %v456 = vld [vmem:[#allocation2 + $0xa40] sm:$0xff]
    %v457 = vld [vmem:[#allocation2 + $0xa48] sm:$0xff]
    %v458 = vld [vmem:[#allocation2 + $0xa50] sm:$0xff]
    %v459 = vld [vmem:[#allocation2 + $0xa58] sm:$0xff]
    %v460 = vld [vmem:[#allocation2 + $0xa60] sm:$0xff]
    %v461 = vld [vmem:[#allocation2 + $0xa68] sm:$0xff]
    %v462 = vld [vmem:[#allocation2 + $0xa70] sm:$0xff]
    %v463 = vld [vmem:[#allocation2 + $0xa78] sm:$0xff]
    %v464 = vld [vmem:[#allocation2 + $0xa80] sm:$0xff]
    %v465 = vld [vmem:[#allocation2 + $0xa88] sm:$0xff]
    %v466 = vld [vmem:[#allocation2 + $0xa90] sm:$0xff]
    %v467 = vld [vmem:[#allocation2 + $0xa98] sm:$0xff]
    %v468 = vld [vmem:[#allocation2 + $0xaa0] sm:$0xff]
    %v469 = vld [vmem:[#allocation2 + $0xaa8] sm:$0xff]
    %v470 = vld [vmem:[#allocation2 + $0xab0] sm:$0xff]
    %v471 = vld [vmem:[#allocation2 + $0xab8] sm:$0xff]
    %v472 = vld [vmem:[#allocation2 + $0xac0] sm:$0xff]
    %v473 = vld [vmem:[#allocation2 + $0xac8] sm:$0xff]
    %v474 = vld [vmem:[#allocation2 + $0xad0] sm:$0xff]
    %v475 = vld [vmem:[#allocation2 + $0xad8] sm:$0xff]
    %v476 = vld [vmem:[#allocation2 + $0xae0] sm:$0xff]
    %v477 = vld [vmem:[#allocation2 + $0xae8] sm:$0xff]
    %v478 = vld [vmem:[#allocation2 + $0xaf0] sm:$0xff]
    %v479 = vld [vmem:[#allocation2 + $0xaf8] sm:$0xff]
    %v480 = vld [vmem:[#allocation2 + $0xb00] sm:$0xff]
    %v481 = vld [vmem:[#allocation2 + $0xb08] sm:$0xff]
    %v482 = vld [vmem:[#allocation2 + $0xb10] sm:$0xff]
    %v483 = vld [vmem:[#allocation2 + $0xb18] sm:$0xff]
    %v484 = vld [vmem:[#allocation2 + $0xb20] sm:$0xff]
    %v485 = vld [vmem:[#allocation2 + $0xb28] sm:$0xff]
    %v486 = vld [vmem:[#allocation2 + $0xb30] sm:$0xff]
    %v487 = vld [vmem:[#allocation2 + $0xb38] sm:$0xff]
    %v488 = vld [vmem:[#allocation2 + $0xb40] sm:$0xff]
    %v489 = vld [vmem:[#allocation2 + $0xb48] sm:$0xff]
    %v490 = vld [vmem:[#allocation2 + $0xb50] sm:$0xff]
    %v491 = vld [vmem:[#allocation2 + $0xb58] sm:$0xff]
    %v492 = vld [vmem:[#allocation2 + $0xb60] sm:$0xff]
    %v493 = vld [vmem:[#allocation2 + $0xb68] sm:$0xff]
    %v494 = vld [vmem:[#allocation2 + $0xb70] sm:$0xff]
    %v495 = vld [vmem:[#allocation2 + $0xb78] sm:$0xff]
    %v496 = vld [vmem:[#allocation2 + $0xb80] sm:$0xff]
    %v497 = vld [vmem:[#allocation2 + $0xb88] sm:$0xff]
    %v498 = vld [vmem:[#allocation2 + $0xb90] sm:$0xff]
    %v499 = vld [vmem:[#allocation2 + $0xb98] sm:$0xff]
    %v500 = vld [vmem:[#allocation2 + $0xba0] sm:$0xff]
    %v501 = vld [vmem:[#allocation2 + $0xba8] sm:$0xff]
    %v502 = vld [vmem:[#allocation2 + $0xbb0] sm:$0xff]
    %v503 = vld [vmem:[#allocation2 + $0xbb8] sm:$0xff]
    %v504 = vld [vmem:[#allocation2 + $0xbc0] sm:$0xff]
    %v505 = vld [vmem:[#allocation2 + $0xbc8] sm:$0xff]
    %v506 = vld [vmem:[#allocation2 + $0xbd0] sm:$0xff]
    %v507 = vld [vmem:[#allocation2 + $0xbd8] sm:$0xff]
    %v508 = vld [vmem:[#allocation2 + $0xbe0] sm:$0xff]
    %v509 = vld [vmem:[#allocation2 + $0xbe8] sm:$0xff]
    %v510 = vld [vmem:[#allocation2 + $0xbf0] sm:$0xff]
    %v511 = vld [vmem:[#allocation2 + $0xbf8] sm:$0xff]
    %v512 = vld [vmem:[#allocation2 + $0xc00] sm:$0xff]
    %v513 = vld [vmem:[#allocation2 + $0xc08] sm:$0xff]
    %v514 = vld [vmem:[#allocation2 + $0xc10] sm:$0xff]
    %v515 = vld [vmem:[#allocation2 + $0xc18] sm:$0xff]
    %v516 = vld [vmem:[#allocation2 + $0xc20] sm:$0xff]
    %v517 = vld [vmem:[#allocation2 + $0xc28] sm:$0xff]
    %v518 = vld [vmem:[#allocation2 + $0xc30] sm:$0xff]
    %v519 = vld [vmem:[#allocation2 + $0xc38] sm:$0xff]
    %v520 = vld [vmem:[#allocation2 + $0xc40] sm:$0xff]
    %v521 = vld [vmem:[#allocation2 + $0xc48] sm:$0xff]
    %v522 = vld [vmem:[#allocation2 + $0xc50] sm:$0xff]
    %v523 = vld [vmem:[#allocation2 + $0xc58] sm:$0xff]
    %v524 = vld [vmem:[#allocation2 + $0xc60] sm:$0xff]
    %v525 = vld [vmem:[#allocation2 + $0xc68] sm:$0xff]
    %v526 = vld [vmem:[#allocation2 + $0xc70] sm:$0xff]
    %v527 = vld [vmem:[#allocation2 + $0xc78] sm:$0xff]
    %v528 = vld [vmem:[#allocation2 + $0xc80] sm:$0xff]
    %v529 = vld [vmem:[#allocation2 + $0xc88] sm:$0xff]
    %v530 = vld [vmem:[#allocation2 + $0xc90] sm:$0xff]
    %v531 = vld [vmem:[#allocation2 + $0xc98] sm:$0xff]
    %v532 = vld [vmem:[#allocation2 + $0xca0] sm:$0xff]
    %v533 = vld [vmem:[#allocation2 + $0xca8] sm:$0xff]
    %v534 = vld [vmem:[#allocation2 + $0xcb0] sm:$0xff]
    %v535 = vld [vmem:[#allocation2 + $0xcb8] sm:$0xff]
    %v536 = vld [vmem:[#allocation2 + $0xcc0] sm:$0xff]
    %v537 = vld [vmem:[#allocation2 + $0xcc8] sm:$0xff]
    %v538 = vld [vmem:[#allocation2 + $0xcd0] sm:$0xff]
    %v539 = vld [vmem:[#allocation2 + $0xcd8] sm:$0xff]
    %v540 = vld [vmem:[#allocation2 + $0xce0] sm:$0xff]
    %v541 = vld [vmem:[#allocation2 + $0xce8] sm:$0xff]
    %v542 = vld [vmem:[#allocation2 + $0xcf0] sm:$0xff]
    %v543 = vld [vmem:[#allocation2 + $0xcf8] sm:$0xff]
    %v544 = vld [vmem:[#allocation2 + $0xd00] sm:$0xff]
    %v545 = vld [vmem:[#allocation2 + $0xd08] sm:$0xff]
    %v546 = vld [vmem:[#allocation2 + $0xd10] sm:$0xff]
    %v547 = vld [vmem:[#allocation2 + $0xd18] sm:$0xff]
    %v548 = vld [vmem:[#allocation2 + $0xd20] sm:$0xff]
    %v549 = vld [vmem:[#allocation2 + $0xd28] sm:$0xff]
    %v550 = vld [vmem:[#allocation2 + $0xd30] sm:$0xff]
    %v551 = vld [vmem:[#allocation2 + $0xd38] sm:$0xff]
    %v552 = vld [vmem:[#allocation2 + $0xd40] sm:$0xff]
    %v553 = vld [vmem:[#allocation2 + $0xd48] sm:$0xff]
    %v554 = vld [vmem:[#allocation2 + $0xd50] sm:$0xff]
    %v555 = vld [vmem:[#allocation2 + $0xd58] sm:$0xff]
    %v556 = vld [vmem:[#allocation2 + $0xd60] sm:$0xff]
    %v557 = vld [vmem:[#allocation2 + $0xd68] sm:$0xff]
    %v558 = vld [vmem:[#allocation2 + $0xd70] sm:$0xff]
    %v559 = vld [vmem:[#allocation2 + $0xd78] sm:$0xff]
    %v560 = vld [vmem:[#allocation2 + $0xd80] sm:$0xff]
    %v561 = vld [vmem:[#allocation2 + $0xd88] sm:$0xff]
    %v562 = vld [vmem:[#allocation2 + $0xd90] sm:$0xff]
    %v563 = vld [vmem:[#allocation2 + $0xd98] sm:$0xff]
    %v564 = vld [vmem:[#allocation2 + $0xda0] sm:$0xff]
    %v565 = vld [vmem:[#allocation2 + $0xda8] sm:$0xff]
    %v566 = vld [vmem:[#allocation2 + $0xdb0] sm:$0xff]
    %v567 = vld [vmem:[#allocation2 + $0xdb8] sm:$0xff]
    %v568 = vld [vmem:[#allocation2 + $0xdc0] sm:$0xff]
    %v569 = vld [vmem:[#allocation2 + $0xdc8] sm:$0xff]
    %v570 = vld [vmem:[#allocation2 + $0xdd0] sm:$0xff]
    %v571 = vld [vmem:[#allocation2 + $0xdd8] sm:$0xff]
    %v572 = vld [vmem:[#allocation2 + $0xde0] sm:$0xff]
    %v573 = vld [vmem:[#allocation2 + $0xde8] sm:$0xff]
    %v574 = vld [vmem:[#allocation2 + $0xdf0] sm:$0xff]
    %v575 = vld [vmem:[#allocation2 + $0xdf8] sm:$0xff]
    %v576 = vld [vmem:[#allocation2 + $0xe00] sm:$0xff]
    %v577 = vld [vmem:[#allocation2 + $0xe08] sm:$0xff]
    %v578 = vld [vmem:[#allocation2 + $0xe10] sm:$0xff]
    %v579 = vld [vmem:[#allocation2 + $0xe18] sm:$0xff]
    %v580 = vld [vmem:[#allocation2 + $0xe20] sm:$0xff]
    %v581 = vld [vmem:[#allocation2 + $0xe28] sm:$0xff]
    %v582 = vld [vmem:[#allocation2 + $0xe30] sm:$0xff]
    %v583 = vld [vmem:[#allocation2 + $0xe38] sm:$0xff]
    %v584 = vld [vmem:[#allocation2 + $0xe40] sm:$0xff]
    %v585 = vld [vmem:[#allocation2 + $0xe48] sm:$0xff]
    %v586 = vld [vmem:[#allocation2 + $0xe50] sm:$0xff]
    %v587 = vld [vmem:[#allocation2 + $0xe58] sm:$0xff]
    %v588 = vld [vmem:[#allocation2 + $0xe60] sm:$0xff]
    %v589 = vld [vmem:[#allocation2 + $0xe68] sm:$0xff]
    %v590 = vld [vmem:[#allocation2 + $0xe70] sm:$0xff]
    %v591 = vld [vmem:[#allocation2 + $0xe78] sm:$0xff]
    %v592 = vld [vmem:[#allocation2 + $0xe80] sm:$0xff]
    %v593 = vld [vmem:[#allocation2 + $0xe88] sm:$0xff]
    %v594 = vld [vmem:[#allocation2 + $0xe90] sm:$0xff]
    %v595 = vld [vmem:[#allocation2 + $0xe98] sm:$0xff]
    %v596 = vld [vmem:[#allocation2 + $0xea0] sm:$0xff]
    %v597 = vld [vmem:[#allocation2 + $0xea8] sm:$0xff]
    %v598 = vld [vmem:[#allocation2 + $0xeb0] sm:$0xff]
    %v599 = vld [vmem:[#allocation2 + $0xeb8] sm:$0xff]
    %v600 = vld [vmem:[#allocation2 + $0xec0] sm:$0xff]
    %v601 = vld [vmem:[#allocation2 + $0xec8] sm:$0xff]
    %v602 = vld [vmem:[#allocation2 + $0xed0] sm:$0xff]
    %v603 = vld [vmem:[#allocation2 + $0xed8] sm:$0xff]
    %v604 = vld [vmem:[#allocation2 + $0xee0] sm:$0xff]
    %v605 = vld [vmem:[#allocation2 + $0xee8] sm:$0xff]
    %v606 = vld [vmem:[#allocation2 + $0xef0] sm:$0xff]
    %v607 = vld [vmem:[#allocation2 + $0xef8] sm:$0xff]
    %v608 = vld [vmem:[#allocation2 + $0xf00] sm:$0xff]
    %v609 = vld [vmem:[#allocation2 + $0xf08] sm:$0xff]
    %v610 = vld [vmem:[#allocation2 + $0xf10] sm:$0xff]
    %v611 = vld [vmem:[#allocation2 + $0xf18] sm:$0xff]
    %v612 = vld [vmem:[#allocation2 + $0xf20] sm:$0xff]
    %v613 = vld [vmem:[#allocation2 + $0xf28] sm:$0xff]
    %v614 = vld [vmem:[#allocation2 + $0xf30] sm:$0xff]
    %v615 = vld [vmem:[#allocation2 + $0xf38] sm:$0xff]
    %v616 = vld [vmem:[#allocation2 + $0xf40] sm:$0xff]
    %v617 = vld [vmem:[#allocation2 + $0xf48] sm:$0xff]
    %v618 = vld [vmem:[#allocation2 + $0xf50] sm:$0xff]
    %v619 = vld [vmem:[#allocation2 + $0xf58] sm:$0xff]
    %v620 = vld [vmem:[#allocation2 + $0xf60] sm:$0xff]
    %v621 = vld [vmem:[#allocation2 + $0xf68] sm:$0xff]
    %v622 = vld [vmem:[#allocation2 + $0xf70] sm:$0xff]
    %v623 = vld [vmem:[#allocation2 + $0xf78] sm:$0xff]
    %v624 = vld [vmem:[#allocation2 + $0xf80] sm:$0xff]
    %v625 = vld [vmem:[#allocation2 + $0xf88] sm:$0xff]
    %v626 = vld [vmem:[#allocation2 + $0xf90] sm:$0xff]
    %v627 = vld [vmem:[#allocation2 + $0xf98] sm:$0xff]
    %v628 = vld [vmem:[#allocation2 + $0xfa0] sm:$0xff]
    %v629 = vld [vmem:[#allocation2 + $0xfa8] sm:$0xff]
    %v630 = vld [vmem:[#allocation2 + $0xfb0] sm:$0xff]
    %v631 = vld [vmem:[#allocation2 + $0xfb8] sm:$0xff]
    %v632 = vld [vmem:[#allocation2 + $0xfc0] sm:$0xff]
    %v633 = vld [vmem:[#allocation2 + $0xfc8] sm:$0xff]
    %v634 = vld [vmem:[#allocation2 + $0xfd0] sm:$0xff]
    %v635 = vld [vmem:[#allocation2 + $0xfd8] sm:$0xff]
    %v636 = vld [vmem:[#allocation2 + $0xfe0] sm:$0xff]
    %v637 = vld [vmem:[#allocation2 + $0xfe8] sm:$0xff]
    %v638 = vld [vmem:[#allocation2 + $0xff0] sm:$0xff]
    %v639 = vld [vmem:[#allocation2 + $0xff8] sm:$0xff]
    %v640 = vld [vmem:[#allocation2 + $0x1000] sm:$0xff]
    %v641 = vld [vmem:[#allocation2 + $0x1008] sm:$0xff]
    %v642 = vld [vmem:[#allocation2 + $0x1010] sm:$0xff]
    %v643 = vld [vmem:[#allocation2 + $0x1018] sm:$0xff]
    %v644 = vld [vmem:[#allocation2 + $0x1020] sm:$0xff]
    %v645 = vld [vmem:[#allocation2 + $0x1028] sm:$0xff]
    %v646 = vld [vmem:[#allocation2 + $0x1030] sm:$0xff]
    %v647 = vld [vmem:[#allocation2 + $0x1038] sm:$0xff]
    %v648 = vld [vmem:[#allocation2 + $0x1040] sm:$0xff]
    %v649 = vld [vmem:[#allocation2 + $0x1048] sm:$0xff]
    %v650 = vld [vmem:[#allocation2 + $0x1050] sm:$0xff]
    %v651 = vld [vmem:[#allocation2 + $0x1058] sm:$0xff]
    %v652 = vld [vmem:[#allocation2 + $0x1060] sm:$0xff]
    %v653 = vld [vmem:[#allocation2 + $0x1068] sm:$0xff]
    %v654 = vld [vmem:[#allocation2 + $0x1070] sm:$0xff]
    %v655 = vld [vmem:[#allocation2 + $0x1078] sm:$0xff]
    %v656 = vld [vmem:[#allocation2 + $0x1080] sm:$0xff]
    %v657 = vld [vmem:[#allocation2 + $0x1088] sm:$0xff]
    %v658 = vld [vmem:[#allocation2 + $0x1090] sm:$0xff]
    %v659 = vld [vmem:[#allocation2 + $0x1098] sm:$0xff]
    %v660 = vld [vmem:[#allocation2 + $0x10a0] sm:$0xff]
    %v661 = vld [vmem:[#allocation2 + $0x10a8] sm:$0xff]
    %v662 = vld [vmem:[#allocation2 + $0x10b0] sm:$0xff]
    %v663 = vld [vmem:[#allocation2 + $0x10b8] sm:$0xff]
    %v664 = vld [vmem:[#allocation2 + $0x10c0] sm:$0xff]
    %v665 = vld [vmem:[#allocation2 + $0x10c8] sm:$0xff]
    %v666 = vld [vmem:[#allocation2 + $0x10d0] sm:$0xff]
    %v667 = vld [vmem:[#allocation2 + $0x10d8] sm:$0xff]
    %v668 = vld [vmem:[#allocation2 + $0x10e0] sm:$0xff]
    %v669 = vld [vmem:[#allocation2 + $0x10e8] sm:$0xff]
    %v670 = vld [vmem:[#allocation2 + $0x10f0] sm:$0xff]
    %v671 = vld [vmem:[#allocation2 + $0x10f8] sm:$0xff]
    %v672 = vld [vmem:[#allocation2 + $0x1100] sm:$0xff]
    %v673 = vld [vmem:[#allocation2 + $0x1108] sm:$0xff]
    %v674 = vld [vmem:[#allocation2 + $0x1110] sm:$0xff]
    %v675 = vld [vmem:[#allocation2 + $0x1118] sm:$0xff]
    %v676 = vld [vmem:[#allocation2 + $0x1120] sm:$0xff]
    %v677 = vld [vmem:[#allocation2 + $0x1128] sm:$0xff]
    %v678 = vld [vmem:[#allocation2 + $0x1130] sm:$0xff]
    %v679 = vld [vmem:[#allocation2 + $0x1138] sm:$0xff]
    %v680 = vld [vmem:[#allocation2 + $0x1140] sm:$0xff]
    %v681 = vld [vmem:[#allocation2 + $0x1148] sm:$0xff]
    %v682 = vld [vmem:[#allocation2 + $0x1150] sm:$0xff]
    %v683 = vld [vmem:[#allocation2 + $0x1158] sm:$0xff]
    %v684 = vld [vmem:[#allocation2 + $0x1160] sm:$0xff]
    %v685 = vld [vmem:[#allocation2 + $0x1168] sm:$0xff]
    %v686 = vld [vmem:[#allocation2 + $0x1170] sm:$0xff]
    %v687 = vld [vmem:[#allocation2 + $0x1178] sm:$0xff]
    %v688 = vld [vmem:[#allocation2 + $0x1180] sm:$0xff]
    %v689 = vld [vmem:[#allocation2 + $0x1188] sm:$0xff]
    %v690 = vld [vmem:[#allocation2 + $0x1190] sm:$0xff]
    %v691 = vld [vmem:[#allocation2 + $0x1198] sm:$0xff]
    %v692 = vld [vmem:[#allocation2 + $0x11a0] sm:$0xff]
    %v693 = vld [vmem:[#allocation2 + $0x11a8] sm:$0xff]
    %v694 = vld [vmem:[#allocation2 + $0x11b0] sm:$0xff]
    %v695 = vld [vmem:[#allocation2 + $0x11b8] sm:$0xff]
    %v696 = vld [vmem:[#allocation2 + $0x11c0] sm:$0xff]
    %v697 = vld [vmem:[#allocation2 + $0x11c8] sm:$0xff]
    %v698 = vld [vmem:[#allocation2 + $0x11d0] sm:$0xff]
    %v699 = vld [vmem:[#allocation2 + $0x11d8] sm:$0xff]
    %v700 = vld [vmem:[#allocation2 + $0x11e0] sm:$0xff]
    %v701 = vld [vmem:[#allocation2 + $0x11e8] sm:$0xff]
    %v702 = vld [vmem:[#allocation2 + $0x11f0] sm:$0xff]
    %v703 = vld [vmem:[#allocation2 + $0x11f8] sm:$0xff]
    %v704 = vld [vmem:[#allocation2 + $0x1200] sm:$0xff]
    %v705 = vld [vmem:[#allocation2 + $0x1208] sm:$0xff]
    %v706 = vld [vmem:[#allocation2 + $0x1210] sm:$0xff]
    %v707 = vld [vmem:[#allocation2 + $0x1218] sm:$0xff]
    %v708 = vld [vmem:[#allocation2 + $0x1220] sm:$0xff]
    %v709 = vld [vmem:[#allocation2 + $0x1228] sm:$0xff]
    %v710 = vld [vmem:[#allocation2 + $0x1230] sm:$0xff]
    %v711 = vld [vmem:[#allocation2 + $0x1238] sm:$0xff]
    %v712 = vld [vmem:[#allocation2 + $0x1240] sm:$0xff]
    %v713 = vld [vmem:[#allocation2 + $0x1248] sm:$0xff]
    %v714 = vld [vmem:[#allocation2 + $0x1250] sm:$0xff]
    %v715 = vld [vmem:[#allocation2 + $0x1258] sm:$0xff]
    %v716 = vld [vmem:[#allocation2 + $0x1260] sm:$0xff]
    %v717 = vld [vmem:[#allocation2 + $0x1268] sm:$0xff]
    %v718 = vld [vmem:[#allocation2 + $0x1270] sm:$0xff]
    %v719 = vld [vmem:[#allocation2 + $0x1278] sm:$0xff]
    %v720 = vld [vmem:[#allocation2 + $0x1280] sm:$0xff]
    %v721 = vld [vmem:[#allocation2 + $0x1288] sm:$0xff]
    %v722 = vld [vmem:[#allocation2 + $0x1290] sm:$0xff]
    %v723 = vld [vmem:[#allocation2 + $0x1298] sm:$0xff]
    %v724 = vld [vmem:[#allocation2 + $0x12a0] sm:$0xff]
    %v725 = vld [vmem:[#allocation2 + $0x12a8] sm:$0xff]
    %v726 = vld [vmem:[#allocation2 + $0x12b0] sm:$0xff]
    %v727 = vld [vmem:[#allocation2 + $0x12b8] sm:$0xff]
    %v728 = vld [vmem:[#allocation2 + $0x12c0] sm:$0xff]
    %v729 = vld [vmem:[#allocation2 + $0x12c8] sm:$0xff]
    %v730 = vld [vmem:[#allocation2 + $0x12d0] sm:$0xff]
    %v731 = vld [vmem:[#allocation2 + $0x12d8] sm:$0xff]
    %v732 = vld [vmem:[#allocation2 + $0x12e0] sm:$0xff]
    %v733 = vld [vmem:[#allocation2 + $0x12e8] sm:$0xff]
    %v734 = vld [vmem:[#allocation2 + $0x12f0] sm:$0xff]
    %v735 = vld [vmem:[#allocation2 + $0x12f8] sm:$0xff]
    %v736 = vld [vmem:[#allocation2 + $0x1300] sm:$0xff]
    %v737 = vld [vmem:[#allocation2 + $0x1308] sm:$0xff]
    %v738 = vld [vmem:[#allocation2 + $0x1310] sm:$0xff]
    %v739 = vld [vmem:[#allocation2 + $0x1318] sm:$0xff]
    %v740 = vld [vmem:[#allocation2 + $0x1320] sm:$0xff]
    %v741 = vld [vmem:[#allocation2 + $0x1328] sm:$0xff]
    %v742 = vld [vmem:[#allocation2 + $0x1330] sm:$0xff]
    %v743 = vld [vmem:[#allocation2 + $0x1338] sm:$0xff]
    %v744 = vld [vmem:[#allocation2 + $0x1340] sm:$0xff]
    %v745 = vld [vmem:[#allocation2 + $0x1348] sm:$0xff]
    %v746 = vld [vmem:[#allocation2 + $0x1350] sm:$0xff]
    %v747 = vld [vmem:[#allocation2 + $0x1358] sm:$0xff]
    %v748 = vld [vmem:[#allocation2 + $0x1360] sm:$0xff]
    %v749 = vld [vmem:[#allocation2 + $0x1368] sm:$0xff]
    %v750 = vld [vmem:[#allocation2 + $0x1370] sm:$0xff]
    %v751 = vld [vmem:[#allocation2 + $0x1378] sm:$0xff]
    %v752 = vld [vmem:[#allocation2 + $0x1380] sm:$0xff]
    %v753 = vld [vmem:[#allocation2 + $0x1388] sm:$0xff]
    %v754 = vld [vmem:[#allocation2 + $0x1390] sm:$0xff]
    %v755 = vld [vmem:[#allocation2 + $0x1398] sm:$0xff]
    %v756 = vld [vmem:[#allocation2 + $0x13a0] sm:$0xff]
    %v757 = vld [vmem:[#allocation2 + $0x13a8] sm:$0xff]
    %v758 = vld [vmem:[#allocation2 + $0x13b0] sm:$0xff]
    %v759 = vld [vmem:[#allocation2 + $0x13b8] sm:$0xff]
    %v760 = vld [vmem:[#allocation2 + $0x13c0] sm:$0xff]
    %v761 = vld [vmem:[#allocation2 + $0x13c8] sm:$0xff]
    %v762 = vld [vmem:[#allocation2 + $0x13d0] sm:$0xff]
    %v763 = vld [vmem:[#allocation2 + $0x13d8] sm:$0xff]
    %v764 = vld [vmem:[#allocation2 + $0x13e0] sm:$0xff]
    %v765 = vld [vmem:[#allocation2 + $0x13e8] sm:$0xff]
    %v766 = vld [vmem:[#allocation2 + $0x13f0] sm:$0xff]
    %v767 = vld [vmem:[#allocation2 + $0x13f8] sm:$0xff]
    %v768 = vld [vmem:[#allocation2 + $0x1400] sm:$0xff]
    %v769 = vld [vmem:[#allocation2 + $0x1408] sm:$0xff]
    %v770 = vld [vmem:[#allocation2 + $0x1410] sm:$0xff]
    %v771 = vld [vmem:[#allocation2 + $0x1418] sm:$0xff]
    %v772 = vld [vmem:[#allocation2 + $0x1420] sm:$0xff]
    %v773 = vld [vmem:[#allocation2 + $0x1428] sm:$0xff]
    %v774 = vld [vmem:[#allocation2 + $0x1430] sm:$0xff]
    %v775 = vld [vmem:[#allocation2 + $0x1438] sm:$0xff]
    %v776 = vld [vmem:[#allocation2 + $0x1440] sm:$0xff]
    %v777 = vld [vmem:[#allocation2 + $0x1448] sm:$0xff]
    %v778 = vld [vmem:[#allocation2 + $0x1450] sm:$0xff]
    %v779 = vld [vmem:[#allocation2 + $0x1458] sm:$0xff]
    %v780 = vld [vmem:[#allocation2 + $0x1460] sm:$0xff]
    %v781 = vld [vmem:[#allocation2 + $0x1468] sm:$0xff]
    %v782 = vld [vmem:[#allocation2 + $0x1470] sm:$0xff]
    %v783 = vld [vmem:[#allocation2 + $0x1478] sm:$0xff]
    %v784 = vld [vmem:[#allocation2 + $0x1480] sm:$0xff]
    %v785 = vld [vmem:[#allocation2 + $0x1488] sm:$0xff]
    %v786 = vld [vmem:[#allocation2 + $0x1490] sm:$0xff]
    %v787 = vld [vmem:[#allocation2 + $0x1498] sm:$0xff]
    %v788 = vld [vmem:[#allocation2 + $0x14a0] sm:$0xff]
    %v789 = vld [vmem:[#allocation2 + $0x14a8] sm:$0xff]
    %v790 = vld [vmem:[#allocation2 + $0x14b0] sm:$0xff]
    %v791 = vld [vmem:[#allocation2 + $0x14b8] sm:$0xff]
    %v792 = vld [vmem:[#allocation2 + $0x14c0] sm:$0xff]
    %v793 = vld [vmem:[#allocation2 + $0x14c8] sm:$0xff]
    %v794 = vld [vmem:[#allocation2 + $0x14d0] sm:$0xff]
    %v795 = vld [vmem:[#allocation2 + $0x14d8] sm:$0xff]
    %v796 = vld [vmem:[#allocation2 + $0x14e0] sm:$0xff]
    %v797 = vld [vmem:[#allocation2 + $0x14e8] sm:$0xff]
    %v798 = vld [vmem:[#allocation2 + $0x14f0] sm:$0xff]
    %v799 = vld [vmem:[#allocation2 + $0x14f8] sm:$0xff]
    %v800 = vld [vmem:[#allocation2 + $0x1500] sm:$0xff]
    %v801 = vld [vmem:[#allocation2 + $0x1508] sm:$0xff]
    %v802 = vld [vmem:[#allocation2 + $0x1510] sm:$0xff]
    %v803 = vld [vmem:[#allocation2 + $0x1518] sm:$0xff]
    %v804 = vld [vmem:[#allocation2 + $0x1520] sm:$0xff]
    %v805 = vld [vmem:[#allocation2 + $0x1528] sm:$0xff]
    %v806 = vld [vmem:[#allocation2 + $0x1530] sm:$0xff]
    %v807 = vld [vmem:[#allocation2 + $0x1538] sm:$0xff]
    %v808 = vld [vmem:[#allocation2 + $0x1540] sm:$0xff]
    %v809 = vld [vmem:[#allocation2 + $0x1548] sm:$0xff]
    %v810 = vld [vmem:[#allocation2 + $0x1550] sm:$0xff]
    %v811 = vld [vmem:[#allocation2 + $0x1558] sm:$0xff]
    %v812 = vld [vmem:[#allocation2 + $0x1560] sm:$0xff]
    %v813 = vld [vmem:[#allocation2 + $0x1568] sm:$0xff]
    %v814 = vld [vmem:[#allocation2 + $0x1570] sm:$0xff]
    %v815 = vld [vmem:[#allocation2 + $0x1578] sm:$0xff]
    %v816 = vld [vmem:[#allocation2 + $0x1580] sm:$0xff]
    %v817 = vld [vmem:[#allocation2 + $0x1588] sm:$0xff]
    %v818 = vld [vmem:[#allocation2 + $0x1590] sm:$0xff]
    %v819 = vld [vmem:[#allocation2 + $0x1598] sm:$0xff]
    %v820 = vld [vmem:[#allocation2 + $0x15a0] sm:$0xff]
    %v821 = vld [vmem:[#allocation2 + $0x15a8] sm:$0xff]
    %v822 = vld [vmem:[#allocation2 + $0x15b0] sm:$0xff]
    %v823 = vld [vmem:[#allocation2 + $0x15b8] sm:$0xff]
    %v824 = vld [vmem:[#allocation2 + $0x15c0] sm:$0xff]
    %v825 = vld [vmem:[#allocation2 + $0x15c8] sm:$0xff]
    %v826 = vld [vmem:[#allocation2 + $0x15d0] sm:$0xff]
    %v827 = vld [vmem:[#allocation2 + $0x15d8] sm:$0xff]
    %v828 = vld [vmem:[#allocation2 + $0x15e0] sm:$0xff]
    %v829 = vld [vmem:[#allocation2 + $0x15e8] sm:$0xff]
    %v830 = vld [vmem:[#allocation2 + $0x15f0] sm:$0xff]
    %v831 = vld [vmem:[#allocation2 + $0x15f8] sm:$0xff]
    %v832 = vld [vmem:[#allocation2 + $0x1600] sm:$0xff]
    %v833 = vld [vmem:[#allocation2 + $0x1608] sm:$0xff]
    %v834 = vld [vmem:[#allocation2 + $0x1610] sm:$0xff]
    %v835 = vld [vmem:[#allocation2 + $0x1618] sm:$0xff]
    %v836 = vld [vmem:[#allocation2 + $0x1620] sm:$0xff]
    %v837 = vld [vmem:[#allocation2 + $0x1628] sm:$0xff]
    %v838 = vld [vmem:[#allocation2 + $0x1630] sm:$0xff]
    %v839 = vld [vmem:[#allocation2 + $0x1638] sm:$0xff]
    %v840 = vld [vmem:[#allocation2 + $0x1640] sm:$0xff]
    %v841 = vld [vmem:[#allocation2 + $0x1648] sm:$0xff]
    %v842 = vld [vmem:[#allocation2 + $0x1650] sm:$0xff]
    %v843 = vld [vmem:[#allocation2 + $0x1658] sm:$0xff]
    %v844 = vld [vmem:[#allocation2 + $0x1660] sm:$0xff]
    %v845 = vld [vmem:[#allocation2 + $0x1668] sm:$0xff]
    %v846 = vld [vmem:[#allocation2 + $0x1670] sm:$0xff]
    %v847 = vld [vmem:[#allocation2 + $0x1678] sm:$0xff]
    %v848 = vld [vmem:[#allocation2 + $0x1680] sm:$0xff]
    %v849 = vld [vmem:[#allocation2 + $0x1688] sm:$0xff]
    %v850 = vld [vmem:[#allocation2 + $0x1690] sm:$0xff]
    %v851 = vld [vmem:[#allocation2 + $0x1698] sm:$0xff]
    %v852 = vld [vmem:[#allocation2 + $0x16a0] sm:$0xff]
    %v853 = vld [vmem:[#allocation2 + $0x16a8] sm:$0xff]
    %v854 = vld [vmem:[#allocation2 + $0x16b0] sm:$0xff]
    %v855 = vld [vmem:[#allocation2 + $0x16b8] sm:$0xff]
    %v856 = vld [vmem:[#allocation2 + $0x16c0] sm:$0xff]
    %v857 = vld [vmem:[#allocation2 + $0x16c8] sm:$0xff]
    %v858 = vld [vmem:[#allocation2 + $0x16d0] sm:$0xff]
    %v859 = vld [vmem:[#allocation2 + $0x16d8] sm:$0xff]
    %v860 = vld [vmem:[#allocation2 + $0x16e0] sm:$0xff]
    %v861 = vld [vmem:[#allocation2 + $0x16e8] sm:$0xff]
    %v862 = vld [vmem:[#allocation2 + $0x16f0] sm:$0xff]
    %v863 = vld [vmem:[#allocation2 + $0x16f8] sm:$0xff]
    %v864 = vld [vmem:[#allocation2 + $0x1700] sm:$0xff]
    %v865 = vld [vmem:[#allocation2 + $0x1708] sm:$0xff]
    %v866 = vld [vmem:[#allocation2 + $0x1710] sm:$0xff]
    %v867 = vld [vmem:[#allocation2 + $0x1718] sm:$0xff]
    %v868 = vld [vmem:[#allocation2 + $0x1720] sm:$0xff]
    %v869 = vld [vmem:[#allocation2 + $0x1728] sm:$0xff]
    %v870 = vld [vmem:[#allocation2 + $0x1730] sm:$0xff]
    %v871 = vld [vmem:[#allocation2 + $0x1738] sm:$0xff]
    %v872 = vld [vmem:[#allocation2 + $0x1740] sm:$0xff]
    %v873 = vld [vmem:[#allocation2 + $0x1748] sm:$0xff]
    %v874 = vld [vmem:[#allocation2 + $0x1750] sm:$0xff]
    %v875 = vld [vmem:[#allocation2 + $0x1758] sm:$0xff]
    %v876 = vld [vmem:[#allocation2 + $0x1760] sm:$0xff]
    %v877 = vld [vmem:[#allocation2 + $0x1768] sm:$0xff]
    %v878 = vld [vmem:[#allocation2 + $0x1770] sm:$0xff]
    %v879 = vld [vmem:[#allocation2 + $0x1778] sm:$0xff]
    %v880 = vld [vmem:[#allocation2 + $0x1780] sm:$0xff]
    %v881 = vld [vmem:[#allocation2 + $0x1788] sm:$0xff]
    %v882 = vld [vmem:[#allocation2 + $0x1790] sm:$0xff]
    %v883 = vld [vmem:[#allocation2 + $0x1798] sm:$0xff]
    %v884 = vld [vmem:[#allocation2 + $0x17a0] sm:$0xff]
    %v885 = vld [vmem:[#allocation2 + $0x17a8] sm:$0xff]
    %v886 = vld [vmem:[#allocation2 + $0x17b0] sm:$0xff]
    %v887 = vld [vmem:[#allocation2 + $0x17b8] sm:$0xff]
    %v888 = vld [vmem:[#allocation2 + $0x17c0] sm:$0xff]
    %v889 = vld [vmem:[#allocation2 + $0x17c8] sm:$0xff]
    %v890 = vld [vmem:[#allocation2 + $0x17d0] sm:$0xff]
    %v891 = vld [vmem:[#allocation2 + $0x17d8] sm:$0xff]
    %v892 = vld [vmem:[#allocation2 + $0x17e0] sm:$0xff]
    %v893 = vld [vmem:[#allocation2 + $0x17e8] sm:$0xff]
    %v894 = vld [vmem:[#allocation2 + $0x17f0] sm:$0xff]
    %v895 = vld [vmem:[#allocation2 + $0x17f8] sm:$0xff]
    %v896 = vld [vmem:[#allocation2 + $0x1800] sm:$0xff]
    %v897 = vld [vmem:[#allocation2 + $0x1808] sm:$0xff]
    %v898 = vld [vmem:[#allocation2 + $0x1810] sm:$0xff]
    %v899 = vld [vmem:[#allocation2 + $0x1818] sm:$0xff]
    %v900 = vld [vmem:[#allocation2 + $0x1820] sm:$0xff]
    %v901 = vld [vmem:[#allocation2 + $0x1828] sm:$0xff]
    %v902 = vld [vmem:[#allocation2 + $0x1830] sm:$0xff]
    %v903 = vld [vmem:[#allocation2 + $0x1838] sm:$0xff]
    %v904 = vld [vmem:[#allocation2 + $0x1840] sm:$0xff]
    %v905 = vld [vmem:[#allocation2 + $0x1848] sm:$0xff]
    %v906 = vld [vmem:[#allocation2 + $0x1850] sm:$0xff]
    %v907 = vld [vmem:[#allocation2 + $0x1858] sm:$0xff]
    %v908 = vld [vmem:[#allocation2 + $0x1860] sm:$0xff]
    %v909 = vld [vmem:[#allocation2 + $0x1868] sm:$0xff]
    %v910 = vld [vmem:[#allocation2 + $0x1870] sm:$0xff]
    %v911 = vld [vmem:[#allocation2 + $0x1878] sm:$0xff]
    %v912 = vld [vmem:[#allocation2 + $0x1880] sm:$0xff]
    %v913 = vld [vmem:[#allocation2 + $0x1888] sm:$0xff]
    %v914 = vld [vmem:[#allocation2 + $0x1890] sm:$0xff]
    %v915 = vld [vmem:[#allocation2 + $0x1898] sm:$0xff]
    %v916 = vld [vmem:[#allocation2 + $0x18a0] sm:$0xff]
    %v917 = vld [vmem:[#allocation2 + $0x18a8] sm:$0xff]
    %v918 = vld [vmem:[#allocation2 + $0x18b0] sm:$0xff]
    %v919 = vld [vmem:[#allocation2 + $0x18b8] sm:$0xff]
    %v920 = vld [vmem:[#allocation2 + $0x18c0] sm:$0xff]
    %v921 = vld [vmem:[#allocation2 + $0x18c8] sm:$0xff]
    %v922 = vld [vmem:[#allocation2 + $0x18d0] sm:$0xff]
    %v923 = vld [vmem:[#allocation2 + $0x18d8] sm:$0xff]
    %v924 = vld [vmem:[#allocation2 + $0x18e0] sm:$0xff]
    %v925 = vld [vmem:[#allocation2 + $0x18e8] sm:$0xff]
    %v926 = vld [vmem:[#allocation2 + $0x18f0] sm:$0xff]
    %v927 = vld [vmem:[#allocation2 + $0x18f8] sm:$0xff]
    %v928 = vld [vmem:[#allocation2 + $0x1900] sm:$0xff]
    %v929 = vld [vmem:[#allocation2 + $0x1908] sm:$0xff]
    %v930 = vld [vmem:[#allocation2 + $0x1910] sm:$0xff]
    %v931 = vld [vmem:[#allocation2 + $0x1918] sm:$0xff]
    %v932 = vld [vmem:[#allocation2 + $0x1920] sm:$0xff]
    %v933 = vld [vmem:[#allocation2 + $0x1928] sm:$0xff]
    %v934 = vld [vmem:[#allocation2 + $0x1930] sm:$0xff]
    %v935 = vld [vmem:[#allocation2 + $0x1938] sm:$0xff]
    %v936 = vld [vmem:[#allocation2 + $0x1940] sm:$0xff]
    %v937 = vld [vmem:[#allocation2 + $0x1948] sm:$0xff]
    %v938 = vld [vmem:[#allocation2 + $0x1950] sm:$0xff]
    %v939 = vld [vmem:[#allocation2 + $0x1958] sm:$0xff]
    %v940 = vld [vmem:[#allocation2 + $0x1960] sm:$0xff]
    %v941 = vld [vmem:[#allocation2 + $0x1968] sm:$0xff]
    %v942 = vld [vmem:[#allocation2 + $0x1970] sm:$0xff]
    %v943 = vld [vmem:[#allocation2 + $0x1978] sm:$0xff]
    %v944 = vld [vmem:[#allocation2 + $0x1980] sm:$0xff]
    %v945 = vld [vmem:[#allocation2 + $0x1988] sm:$0xff]
    %v946 = vld [vmem:[#allocation2 + $0x1990] sm:$0xff]
    %v947 = vld [vmem:[#allocation2 + $0x1998] sm:$0xff]
    %v948 = vld [vmem:[#allocation2 + $0x19a0] sm:$0xff]
    %v949 = vld [vmem:[#allocation2 + $0x19a8] sm:$0xff]
    %v950 = vld [vmem:[#allocation2 + $0x19b0] sm:$0xff]
    %v951 = vld [vmem:[#allocation2 + $0x19b8] sm:$0xff]
    %v952 = vld [vmem:[#allocation2 + $0x19c0] sm:$0xff]
    %v953 = vld [vmem:[#allocation2 + $0x19c8] sm:$0xff]
    %v954 = vld [vmem:[#allocation2 + $0x19d0] sm:$0xff]
    %v955 = vld [vmem:[#allocation2 + $0x19d8] sm:$0xff]
    %v956 = vld [vmem:[#allocation2 + $0x19e0] sm:$0xff]
    %v957 = vld [vmem:[#allocation2 + $0x19e8] sm:$0xff]
    %v958 = vld [vmem:[#allocation2 + $0x19f0] sm:$0xff]
    %v959 = vld [vmem:[#allocation2 + $0x19f8] sm:$0xff]
    %v960 = vld [vmem:[#allocation2 + $0x1a00] sm:$0xff]
    %v961 = vld [vmem:[#allocation2 + $0x1a08] sm:$0xff]
    %v962 = vld [vmem:[#allocation2 + $0x1a10] sm:$0xff]
    %v963 = vld [vmem:[#allocation2 + $0x1a18] sm:$0xff]
    %v964 = vld [vmem:[#allocation2 + $0x1a20] sm:$0xff]
    %v965 = vld [vmem:[#allocation2 + $0x1a28] sm:$0xff]
    %v966 = vld [vmem:[#allocation2 + $0x1a30] sm:$0xff]
    %v967 = vld [vmem:[#allocation2 + $0x1a38] sm:$0xff]
    %v968 = vld [vmem:[#allocation2 + $0x1a40] sm:$0xff]
    %v969 = vld [vmem:[#allocation2 + $0x1a48] sm:$0xff]
    %v970 = vld [vmem:[#allocation2 + $0x1a50] sm:$0xff]
    %v971 = vld [vmem:[#allocation2 + $0x1a58] sm:$0xff]
    %v972 = vld [vmem:[#allocation2 + $0x1a60] sm:$0xff]
    %v973 = vld [vmem:[#allocation2 + $0x1a68] sm:$0xff]
    %v974 = vld [vmem:[#allocation2 + $0x1a70] sm:$0xff]
    %v975 = vld [vmem:[#allocation2 + $0x1a78] sm:$0xff]
    %v976 = vld [vmem:[#allocation2 + $0x1a80] sm:$0xff]
    %v977 = vld [vmem:[#allocation2 + $0x1a88] sm:$0xff]
    %v978 = vld [vmem:[#allocation2 + $0x1a90] sm:$0xff]
    %v979 = vld [vmem:[#allocation2 + $0x1a98] sm:$0xff]
    %v980 = vld [vmem:[#allocation2 + $0x1aa0] sm:$0xff]
    %v981 = vld [vmem:[#allocation2 + $0x1aa8] sm:$0xff]
    %v982 = vld [vmem:[#allocation2 + $0x1ab0] sm:$0xff]
    %v983 = vld [vmem:[#allocation2 + $0x1ab8] sm:$0xff]
    %v984 = vld [vmem:[#allocation2 + $0x1ac0] sm:$0xff]
    %v985 = vld [vmem:[#allocation2 + $0x1ac8] sm:$0xff]
    %v986 = vld [vmem:[#allocation2 + $0x1ad0] sm:$0xff]
    %v987 = vld [vmem:[#allocation2 + $0x1ad8] sm:$0xff]
    %v988 = vld [vmem:[#allocation2 + $0x1ae0] sm:$0xff]
    %v989 = vld [vmem:[#allocation2 + $0x1ae8] sm:$0xff]
    %v990 = vld [vmem:[#allocation2 + $0x1af0] sm:$0xff]
    %v991 = vld [vmem:[#allocation2 + $0x1af8] sm:$0xff]
    %v992 = vld [vmem:[#allocation2 + $0x1b00] sm:$0xff]
    %v993 = vld [vmem:[#allocation2 + $0x1b08] sm:$0xff]
    %v994 = vld [vmem:[#allocation2 + $0x1b10] sm:$0xff]
    %v995 = vld [vmem:[#allocation2 + $0x1b18] sm:$0xff]
    %v996 = vld [vmem:[#allocation2 + $0x1b20] sm:$0xff]
    %v997 = vld [vmem:[#allocation2 + $0x1b28] sm:$0xff]
    %v998 = vld [vmem:[#allocation2 + $0x1b30] sm:$0xff]
    %v999 = vld [vmem:[#allocation2 + $0x1b38] sm:$0xff]
    %v1000 = vld [vmem:[#allocation2 + $0x1b40] sm:$0xff]
    %v1001 = vld [vmem:[#allocation2 + $0x1b48] sm:$0xff]
    %v1002 = vld [vmem:[#allocation2 + $0x1b50] sm:$0xff]
    %v1003 = vld [vmem:[#allocation2 + $0x1b58] sm:$0xff]
    %v1004 = vld [vmem:[#allocation2 + $0x1b60] sm:$0xff]
    %v1005 = vld [vmem:[#allocation2 + $0x1b68] sm:$0xff]
    %v1006 = vld [vmem:[#allocation2 + $0x1b70] sm:$0xff]
    %v1007 = vld [vmem:[#allocation2 + $0x1b78] sm:$0xff]
    %v1008 = vld [vmem:[#allocation2 + $0x1b80] sm:$0xff]
    %v1009 = vld [vmem:[#allocation2 + $0x1b88] sm:$0xff]
    %v1010 = vld [vmem:[#allocation2 + $0x1b90] sm:$0xff]
    %v1011 = vld [vmem:[#allocation2 + $0x1b98] sm:$0xff]
    %v1012 = vld [vmem:[#allocation2 + $0x1ba0] sm:$0xff]
    %v1013 = vld [vmem:[#allocation2 + $0x1ba8] sm:$0xff]
    %v1014 = vld [vmem:[#allocation2 + $0x1bb0] sm:$0xff]
    %v1015 = vld [vmem:[#allocation2 + $0x1bb8] sm:$0xff]
    %v1016 = vld [vmem:[#allocation2 + $0x1bc0] sm:$0xff]
    %v1017 = vld [vmem:[#allocation2 + $0x1bc8] sm:$0xff]
    %v1018 = vld [vmem:[#allocation2 + $0x1bd0] sm:$0xff]
    %v1019 = vld [vmem:[#allocation2 + $0x1bd8] sm:$0xff]
    %v1020 = vld [vmem:[#allocation2 + $0x1be0] sm:$0xff]
    %v1021 = vld [vmem:[#allocation2 + $0x1be8] sm:$0xff]
    %v1022 = vld [vmem:[#allocation2 + $0x1bf0] sm:$0xff]
    %v1023 = vld [vmem:[#allocation2 + $0x1bf8] sm:$0xff]
    %v1024 = vld [vmem:[#allocation2 + $0x1c00] sm:$0xff]
    %v1025 = vld [vmem:[#allocation2 + $0x1c08] sm:$0xff]
    %v1026 = vld [vmem:[#allocation2 + $0x1c10] sm:$0xff]
    %v1027 = vld [vmem:[#allocation2 + $0x1c18] sm:$0xff]
    %v1028 = vld [vmem:[#allocation2 + $0x1c20] sm:$0xff]
    %v1029 = vld [vmem:[#allocation2 + $0x1c28] sm:$0xff]
    %v1030 = vld [vmem:[#allocation2 + $0x1c30] sm:$0xff]
    %v1031 = vld [vmem:[#allocation2 + $0x1c38] sm:$0xff]
    %v1032 = vld [vmem:[#allocation2 + $0x1c40] sm:$0xff]
    %v1033 = vld [vmem:[#allocation2 + $0x1c48] sm:$0xff]
    %v1034 = vld [vmem:[#allocation2 + $0x1c50] sm:$0xff]
    %v1035 = vld [vmem:[#allocation2 + $0x1c58] sm:$0xff]
    %v1036 = vld [vmem:[#allocation2 + $0x1c60] sm:$0xff]
    %v1037 = vld [vmem:[#allocation2 + $0x1c68] sm:$0xff]
    %v1038 = vld [vmem:[#allocation2 + $0x1c70] sm:$0xff]
    %v1039 = vld [vmem:[#allocation2 + $0x1c78] sm:$0xff]
    %v1040 = vld [vmem:[#allocation2 + $0x1c80] sm:$0xff]
    %v1041 = vld [vmem:[#allocation2 + $0x1c88] sm:$0xff]
    %v1042 = vld [vmem:[#allocation2 + $0x1c90] sm:$0xff]
    %v1043 = vld [vmem:[#allocation2 + $0x1c98] sm:$0xff]
    %v1044 = vld [vmem:[#allocation2 + $0x1ca0] sm:$0xff]
    %v1045 = vld [vmem:[#allocation2 + $0x1ca8] sm:$0xff]
    %v1046 = vld [vmem:[#allocation2 + $0x1cb0] sm:$0xff]
    %v1047 = vld [vmem:[#allocation2 + $0x1cb8] sm:$0xff]
    %v1048 = vld [vmem:[#allocation2 + $0x1cc0] sm:$0xff]
    %v1049 = vld [vmem:[#allocation2 + $0x1cc8] sm:$0xff]
    %v1050 = vld [vmem:[#allocation2 + $0x1cd0] sm:$0xff]
    %v1051 = vld [vmem:[#allocation2 + $0x1cd8] sm:$0xff]
    %v1052 = vld [vmem:[#allocation2 + $0x1ce0] sm:$0xff]
    %v1053 = vld [vmem:[#allocation2 + $0x1ce8] sm:$0xff]
    %v1054 = vld [vmem:[#allocation2 + $0x1cf0] sm:$0xff]
    %v1055 = vld [vmem:[#allocation2 + $0x1cf8] sm:$0xff]
    %v1056 = vld [vmem:[#allocation2 + $0x1d00] sm:$0xff]
    %v1057 = vld [vmem:[#allocation2 + $0x1d08] sm:$0xff]
    %v1058 = vld [vmem:[#allocation2 + $0x1d10] sm:$0xff]
    %v1059 = vld [vmem:[#allocation2 + $0x1d18] sm:$0xff]
    %v1060 = vld [vmem:[#allocation2 + $0x1d20] sm:$0xff]
    %v1061 = vld [vmem:[#allocation2 + $0x1d28] sm:$0xff]
    %v1062 = vld [vmem:[#allocation2 + $0x1d30] sm:$0xff]
    %v1063 = vld [vmem:[#allocation2 + $0x1d38] sm:$0xff]
    %v1064 = vld [vmem:[#allocation2 + $0x1d40] sm:$0xff]
    %v1065 = vld [vmem:[#allocation2 + $0x1d48] sm:$0xff]
    %v1066 = vld [vmem:[#allocation2 + $0x1d50] sm:$0xff]
    %v1067 = vld [vmem:[#allocation2 + $0x1d58] sm:$0xff]
    %v1068 = vld [vmem:[#allocation2 + $0x1d60] sm:$0xff]
    %v1069 = vld [vmem:[#allocation2 + $0x1d68] sm:$0xff]
    %v1070 = vld [vmem:[#allocation2 + $0x1d70] sm:$0xff]
    %v1071 = vld [vmem:[#allocation2 + $0x1d78] sm:$0xff]
    %v1072 = vld [vmem:[#allocation2 + $0x1d80] sm:$0xff]
    %v1073 = vld [vmem:[#allocation2 + $0x1d88] sm:$0xff]
    %v1074 = vld [vmem:[#allocation2 + $0x1d90] sm:$0xff]
    %v1075 = vld [vmem:[#allocation2 + $0x1d98] sm:$0xff]
    %v1076 = vld [vmem:[#allocation2 + $0x1da0] sm:$0xff]
    %v1077 = vld [vmem:[#allocation2 + $0x1da8] sm:$0xff]
    %v1078 = vld [vmem:[#allocation2 + $0x1db0] sm:$0xff]
    %v1079 = vld [vmem:[#allocation2 + $0x1db8] sm:$0xff]
    %v1080 = vld [vmem:[#allocation2 + $0x1dc0] sm:$0xff]
    %v1081 = vld [vmem:[#allocation2 + $0x1dc8] sm:$0xff]
    %v1082 = vld [vmem:[#allocation2 + $0x1dd0] sm:$0xff]
    %v1083 = vld [vmem:[#allocation2 + $0x1dd8] sm:$0xff]
    %v1084 = vld [vmem:[#allocation2 + $0x1de0] sm:$0xff]
    %v1085 = vld [vmem:[#allocation2 + $0x1de8] sm:$0xff]
    %v1086 = vld [vmem:[#allocation2 + $0x1df0] sm:$0xff]
    %v1087 = vld [vmem:[#allocation2 + $0x1df8] sm:$0xff]
    %v1088 = vld [vmem:[#allocation2 + $0x1e00] sm:$0xff]
    %v1089 = vld [vmem:[#allocation2 + $0x1e08] sm:$0xff]
    %v1090 = vld [vmem:[#allocation2 + $0x1e10] sm:$0xff]
    %v1091 = vld [vmem:[#allocation2 + $0x1e18] sm:$0xff]
    %v1092 = vld [vmem:[#allocation2 + $0x1e20] sm:$0xff]
    %v1093 = vld [vmem:[#allocation2 + $0x1e28] sm:$0xff]
    %v1094 = vld [vmem:[#allocation2 + $0x1e30] sm:$0xff]
    %v1095 = vld [vmem:[#allocation2 + $0x1e38] sm:$0xff]
    %v1096 = vld [vmem:[#allocation2 + $0x1e40] sm:$0xff]
    %v1097 = vld [vmem:[#allocation2 + $0x1e48] sm:$0xff]
    %v1098 = vld [vmem:[#allocation2 + $0x1e50] sm:$0xff]
    %v1099 = vld [vmem:[#allocation2 + $0x1e58] sm:$0xff]
    %v1100 = vld [vmem:[#allocation2 + $0x1e60] sm:$0xff]
    %v1101 = vld [vmem:[#allocation2 + $0x1e68] sm:$0xff]
    %v1102 = vld [vmem:[#allocation2 + $0x1e70] sm:$0xff]
    %v1103 = vld [vmem:[#allocation2 + $0x1e78] sm:$0xff]
    %v1104 = vld [vmem:[#allocation2 + $0x1e80] sm:$0xff]
    %v1105 = vld [vmem:[#allocation2 + $0x1e88] sm:$0xff]
    %v1106 = vld [vmem:[#allocation2 + $0x1e90] sm:$0xff]
    %v1107 = vld [vmem:[#allocation2 + $0x1e98] sm:$0xff]
    %v1108 = vld [vmem:[#allocation2 + $0x1ea0] sm:$0xff]
    %v1109 = vld [vmem:[#allocation2 + $0x1ea8] sm:$0xff]
    %v1110 = vld [vmem:[#allocation2 + $0x1eb0] sm:$0xff]
    %v1111 = vld [vmem:[#allocation2 + $0x1eb8] sm:$0xff]
    %v1112 = vld [vmem:[#allocation2 + $0x1ec0] sm:$0xff]
    %v1113 = vld [vmem:[#allocation2 + $0x1ec8] sm:$0xff]
    %v1114 = vld [vmem:[#allocation2 + $0x1ed0] sm:$0xff]
    %v1115 = vld [vmem:[#allocation2 + $0x1ed8] sm:$0xff]
    %v1116 = vld [vmem:[#allocation2 + $0x1ee0] sm:$0xff]
    %v1117 = vld [vmem:[#allocation2 + $0x1ee8] sm:$0xff]
    %v1118 = vld [vmem:[#allocation2 + $0x1ef0] sm:$0xff]
    %v1119 = vld [vmem:[#allocation2 + $0x1ef8] sm:$0xff]
    %v1120 = vld [vmem:[#allocation2 + $0x1f00] sm:$0xff]
    %v1121 = vld [vmem:[#allocation2 + $0x1f08] sm:$0xff]
    %v1122 = vld [vmem:[#allocation2 + $0x1f10] sm:$0xff]
    %v1123 = vld [vmem:[#allocation2 + $0x1f18] sm:$0xff]
    %v1124 = vld [vmem:[#allocation2 + $0x1f20] sm:$0xff]
    %v1125 = vld [vmem:[#allocation2 + $0x1f28] sm:$0xff]
    %v1126 = vld [vmem:[#allocation2 + $0x1f30] sm:$0xff]
    %v1127 = vld [vmem:[#allocation2 + $0x1f38] sm:$0xff]
    %v1128 = vld [vmem:[#allocation2 + $0x1f40] sm:$0xff]
    %v1129 = vld [vmem:[#allocation2 + $0x1f48] sm:$0xff]
    %v1130 = vld [vmem:[#allocation2 + $0x1f50] sm:$0xff]
    %v1131 = vld [vmem:[#allocation2 + $0x1f58] sm:$0xff]
    %v1132 = vld [vmem:[#allocation2 + $0x1f60] sm:$0xff]
    %v1133 = vld [vmem:[#allocation2 + $0x1f68] sm:$0xff]
    %v1134 = vld [vmem:[#allocation2 + $0x1f70] sm:$0xff]
    %v1135 = vld [vmem:[#allocation2 + $0x1f78] sm:$0xff]
    %v1136 = vld [vmem:[#allocation2 + $0x1f80] sm:$0xff]
    %v1137 = vld [vmem:[#allocation2 + $0x1f88] sm:$0xff]
    %v1138 = vld [vmem:[#allocation2 + $0x1f90] sm:$0xff]
    %v1139 = vld [vmem:[#allocation2 + $0x1f98] sm:$0xff]
    %v1140 = vld [vmem:[#allocation2 + $0x1fa0] sm:$0xff]
    %v1141 = vld [vmem:[#allocation2 + $0x1fa8] sm:$0xff]
    %v1142 = vld [vmem:[#allocation2 + $0x1fb0] sm:$0xff]
    %v1143 = vld [vmem:[#allocation2 + $0x1fb8] sm:$0xff]
    %v1144 = vld [vmem:[#allocation2 + $0x1fc0] sm:$0xff]
    %v1145 = vld [vmem:[#allocation2 + $0x1fc8] sm:$0xff]
    %v1146 = vld [vmem:[#allocation2 + $0x1fd0] sm:$0xff]
    %v1147 = vld [vmem:[#allocation2 + $0x1fd8] sm:$0xff]
    %v1148 = vld [vmem:[#allocation2 + $0x1fe0] sm:$0xff]
    %v1149 = vld [vmem:[#allocation2 + $0x1fe8] sm:$0xff]
    %v1150 = vld [vmem:[#allocation2 + $0x1ff0] sm:$0xff]
    %v1151 = vld [vmem:[#allocation2 + $0x1ff8] sm:$0xff]
    %v1152 = vld [vmem:[#allocation2 + $0x2000] sm:$0xff]
    %v1153 = vld [vmem:[#allocation2 + $0x2008] sm:$0xff]
    %v1154 = vld [vmem:[#allocation2 + $0x2010] sm:$0xff]
    %v1155 = vld [vmem:[#allocation2 + $0x2018] sm:$0xff]
    %v1156 = vld [vmem:[#allocation2 + $0x2020] sm:$0xff]
    %v1157 = vld [vmem:[#allocation2 + $0x2028] sm:$0xff]
    %v1158 = vld [vmem:[#allocation2 + $0x2030] sm:$0xff]
    %v1159 = vld [vmem:[#allocation2 + $0x2038] sm:$0xff]
    %v1160 = vld [vmem:[#allocation2 + $0x2040] sm:$0xff]
    %v1161 = vld [vmem:[#allocation2 + $0x2048] sm:$0xff]
    %v1162 = vld [vmem:[#allocation2 + $0x2050] sm:$0xff]
    %v1163 = vld [vmem:[#allocation2 + $0x2058] sm:$0xff]
    %v1164 = vld [vmem:[#allocation2 + $0x2060] sm:$0xff]
    %v1165 = vld [vmem:[#allocation2 + $0x2068] sm:$0xff]
    %v1166 = vld [vmem:[#allocation2 + $0x2070] sm:$0xff]
    %v1167 = vld [vmem:[#allocation2 + $0x2078] sm:$0xff]
    %v1168 = vld [vmem:[#allocation2 + $0x2080] sm:$0xff]
    %v1169 = vld [vmem:[#allocation2 + $0x2088] sm:$0xff]
    %v1170 = vld [vmem:[#allocation2 + $0x2090] sm:$0xff]
    %v1171 = vld [vmem:[#allocation2 + $0x2098] sm:$0xff]
    %v1172 = vld [vmem:[#allocation2 + $0x20a0] sm:$0xff]
    %v1173 = vld [vmem:[#allocation2 + $0x20a8] sm:$0xff]
    %v1174 = vld [vmem:[#allocation2 + $0x20b0] sm:$0xff]
    %v1175 = vld [vmem:[#allocation2 + $0x20b8] sm:$0xff]
    %v1176 = vld [vmem:[#allocation2 + $0x20c0] sm:$0xff]
    %v1177 = vld [vmem:[#allocation2 + $0x20c8] sm:$0xff]
    %v1178 = vld [vmem:[#allocation2 + $0x20d0] sm:$0xff]
    %v1179 = vld [vmem:[#allocation2 + $0x20d8] sm:$0xff]
    %v1180 = vld [vmem:[#allocation2 + $0x20e0] sm:$0xff]
    %v1181 = vld [vmem:[#allocation2 + $0x20e8] sm:$0xff]
    %v1182 = vld [vmem:[#allocation2 + $0x20f0] sm:$0xff]
    %v1183 = vld [vmem:[#allocation2 + $0x20f8] sm:$0xff]
    %v1184 = vld [vmem:[#allocation2 + $0x2100] sm:$0xff]
    %v1185 = vld [vmem:[#allocation2 + $0x2108] sm:$0xff]
    %v1186 = vld [vmem:[#allocation2 + $0x2110] sm:$0xff]
    %v1187 = vld [vmem:[#allocation2 + $0x2118] sm:$0xff]
    %v1188 = vld [vmem:[#allocation2 + $0x2120] sm:$0xff]
    %v1189 = vld [vmem:[#allocation2 + $0x2128] sm:$0xff]
    %v1190 = vld [vmem:[#allocation2 + $0x2130] sm:$0xff]
    %v1191 = vld [vmem:[#allocation2 + $0x2138] sm:$0xff]
    %v1192 = vld [vmem:[#allocation2 + $0x2140] sm:$0xff]
    %v1193 = vld [vmem:[#allocation2 + $0x2148] sm:$0xff]
    %v1194 = vld [vmem:[#allocation2 + $0x2150] sm:$0xff]
    %v1195 = vld [vmem:[#allocation2 + $0x2158] sm:$0xff]
    %v1196 = vld [vmem:[#allocation2 + $0x2160] sm:$0xff]
    %v1197 = vld [vmem:[#allocation2 + $0x2168] sm:$0xff]
    %v1198 = vld [vmem:[#allocation2 + $0x2170] sm:$0xff]
    %v1199 = vld [vmem:[#allocation2 + $0x2178] sm:$0xff]
    %v1200 = vld [vmem:[#allocation2 + $0x2180] sm:$0xff]
    %v1201 = vld [vmem:[#allocation2 + $0x2188] sm:$0xff]
    %v1202 = vld [vmem:[#allocation2 + $0x2190] sm:$0xff]
    %v1203 = vld [vmem:[#allocation2 + $0x2198] sm:$0xff]
    %v1204 = vld [vmem:[#allocation2 + $0x21a0] sm:$0xff]
    %v1205 = vld [vmem:[#allocation2 + $0x21a8] sm:$0xff]
    %v1206 = vld [vmem:[#allocation2 + $0x21b0] sm:$0xff]
    %v1207 = vld [vmem:[#allocation2 + $0x21b8] sm:$0xff]
    %v1208 = vld [vmem:[#allocation2 + $0x21c0] sm:$0xff]
    %v1209 = vld [vmem:[#allocation2 + $0x21c8] sm:$0xff]
    %v1210 = vld [vmem:[#allocation2 + $0x21d0] sm:$0xff]
    %v1211 = vld [vmem:[#allocation2 + $0x21d8] sm:$0xff]
    %v1212 = vld [vmem:[#allocation2 + $0x21e0] sm:$0xff]
    %v1213 = vld [vmem:[#allocation2 + $0x21e8] sm:$0xff]
    %v1214 = vld [vmem:[#allocation2 + $0x21f0] sm:$0xff]
    %v1215 = vld [vmem:[#allocation2 + $0x21f8] sm:$0xff]
    %v1216 = vld [vmem:[#allocation4] sm:$0xff]
    %v1217 = vld [vmem:[#allocation4 + $0x8] sm:$0xff]
    %v1218 = vld [vmem:[#allocation4 + $0x10] sm:$0xff]
    %v1219 = vld [vmem:[#allocation4 + $0x18] sm:$0xff]
    %v1220 = vld [vmem:[#allocation4 + $0x20] sm:$0x3]
    %v1226 = vlaneseq
    %v1227 = vshrl.u32 %v1226, 7
    %v1228 = vsub.s32 0, %v1227
    %v1229 = vrot.slane %v1216, %v1228
    %v1230 = vlaneseq
    %v1231 = vshrl.u32 %v1230, 7
    %v1232 = vsub.s32 1, %v1231
    %v1233 = vrot.slane %v1216, %v1232
    %v1234 = vlaneseq
    %v1235 = vshrl.u32 %v1234, 7
    %v1236 = vsub.s32 2, %v1235
    %v1237 = vrot.slane %v1216, %v1236
    %v1238 = vlaneseq
    %v1239 = vshrl.u32 %v1238, 7
    %v1240 = vsub.s32 3, %v1239
    %v1241 = vrot.slane %v1216, %v1240
    %v1242 = vlaneseq
    %v1243 = vshrl.u32 %v1242, 7
    %v1244 = vsub.s32 4, %v1243
    %v1245 = vrot.slane %v1216, %v1244
    %v1246 = vlaneseq
    %v1247 = vshrl.u32 %v1246, 7
    %v1248 = vsub.s32 5, %v1247
    %v1249 = vrot.slane %v1216, %v1248
    %v1250 = vlaneseq
    %v1251 = vshrl.u32 %v1250, 7
    %v1252 = vsub.s32 6, %v1251
    %v1253 = vrot.slane %v1216, %v1252
    %v1254 = vlaneseq
    %v1255 = vshrl.u32 %v1254, 7
    %v1256 = vsub.s32 7, %v1255
    %v1257 = vrot.slane %v1216, %v1256
    %v1258 = vlaneseq
    %v1259 = vshrl.u32 %v1258, 7
    %v1260 = vsub.s32 0, %v1259
    %v1261 = vrot.slane %v1217, %v1260
    %v1262 = vlaneseq
    %v1263 = vshrl.u32 %v1262, 7
    %v1264 = vsub.s32 1, %v1263
    %v1265 = vrot.slane %v1217, %v1264
    %v1266 = vlaneseq
    %v1267 = vshrl.u32 %v1266, 7
    %v1268 = vsub.s32 2, %v1267
    %v1269 = vrot.slane %v1217, %v1268
    %v1270 = vlaneseq
    %v1271 = vshrl.u32 %v1270, 7
    %v1272 = vsub.s32 3, %v1271
    %v1273 = vrot.slane %v1217, %v1272
    %v1274 = vlaneseq
    %v1275 = vshrl.u32 %v1274, 7
    %v1276 = vsub.s32 4, %v1275
    %v1277 = vrot.slane %v1217, %v1276
    %v1278 = vlaneseq
    %v1279 = vshrl.u32 %v1278, 7
    %v1280 = vsub.s32 5, %v1279
    %v1281 = vrot.slane %v1217, %v1280
    %v1282 = vlaneseq
    %v1283 = vshrl.u32 %v1282, 7
    %v1284 = vsub.s32 6, %v1283
    %v1285 = vrot.slane %v1217, %v1284
    %v1286 = vlaneseq
    %v1287 = vshrl.u32 %v1286, 7
    %v1288 = vsub.s32 7, %v1287
    %v1289 = vrot.slane %v1217, %v1288
    %v1290 = vlaneseq
    %v1291 = vshrl.u32 %v1290, 7
    %v1292 = vsub.s32 0, %v1291
    %v1293 = vrot.slane %v1218, %v1292
    %v1294 = vlaneseq
    %v1295 = vshrl.u32 %v1294, 7
    %v1296 = vsub.s32 1, %v1295
    %v1297 = vrot.slane %v1218, %v1296
    %v1298 = vlaneseq
    %v1299 = vshrl.u32 %v1298, 7
    %v1300 = vsub.s32 2, %v1299
    %v1301 = vrot.slane %v1218, %v1300
    %v1302 = vlaneseq
    %v1303 = vshrl.u32 %v1302, 7
    %v1304 = vsub.s32 3, %v1303
    %v1305 = vrot.slane %v1218, %v1304
    %v1306 = vlaneseq
    %v1307 = vshrl.u32 %v1306, 7
    %v1308 = vsub.s32 4, %v1307
    %v1309 = vrot.slane %v1218, %v1308
    %v1310 = vlaneseq
    %v1311 = vshrl.u32 %v1310, 7
    %v1312 = vsub.s32 5, %v1311
    %v1313 = vrot.slane %v1218, %v1312
    %v1314 = vlaneseq
    %v1315 = vshrl.u32 %v1314, 7
    %v1316 = vsub.s32 6, %v1315
    %v1317 = vrot.slane %v1218, %v1316
    %v1318 = vlaneseq
    %v1319 = vshrl.u32 %v1318, 7
    %v1320 = vsub.s32 7, %v1319
    %v1321 = vrot.slane %v1218, %v1320
    %v1322 = vlaneseq
    %v1323 = vshrl.u32 %v1322, 7
    %v1324 = vsub.s32 0, %v1323
    %v1325 = vrot.slane %v1219, %v1324
    %v1326 = vlaneseq
    %v1327 = vshrl.u32 %v1326, 7
    %v1328 = vsub.s32 1, %v1327
    %v1329 = vrot.slane %v1219, %v1328
    %v1330 = vlaneseq
    %v1331 = vshrl.u32 %v1330, 7
    %v1332 = vsub.s32 2, %v1331
    %v1333 = vrot.slane %v1219, %v1332
    %v1334 = vlaneseq
    %v1335 = vshrl.u32 %v1334, 7
    %v1336 = vsub.s32 3, %v1335
    %v1337 = vrot.slane %v1219, %v1336
    %v1338 = vlaneseq
    %v1339 = vshrl.u32 %v1338, 7
    %v1340 = vsub.s32 4, %v1339
    %v1341 = vrot.slane %v1219, %v1340
    %v1342 = vlaneseq
    %v1343 = vshrl.u32 %v1342, 7
    %v1344 = vsub.s32 5, %v1343
    %v1345 = vrot.slane %v1219, %v1344
    %v1346 = vlaneseq
    %v1347 = vshrl.u32 %v1346, 7
    %v1348 = vsub.s32 6, %v1347
    %v1349 = vrot.slane %v1219, %v1348
    %v1350 = vlaneseq
    %v1351 = vshrl.u32 %v1350, 7
    %v1352 = vsub.s32 7, %v1351
    %v1353 = vrot.slane %v1219, %v1352
    %v1354 = vlaneseq
    %v1355 = vshrl.u32 %v1354, 7
    %v1356 = vsub.s32 0, %v1355
    %v1357 = vrot.slane %v1220, %v1356
    %v1358 = vlaneseq
    %v1359 = vshrl.u32 %v1358, 7
    %v1360 = vsub.s32 1, %v1359
    %v1361 = vrot.slane %v1220, %v1360
    %1396 = vmatprep.subr.mxu0 %v129
    %1397 = vmatpush1.msra.mxu0 %v128
    %1398 = vmatprep.subr.mxu0 %v163
    %1399 = vmatpush1.msra.mxu0 %v162
    %1400 = vmatprep.subr.mxu0 %v197
    %1401 = vmatpush1.msra.mxu0 %v196
    %1402 = vmatprep.subr.mxu0 %v231
    %1403 = vmatpush1.msra.mxu0 %v230
    %1404 = vmatprep.subr.mxu0 %v265
    %1405 = vmatpush1.msra.mxu0 %v264
    %1406 = vmatprep.subr.mxu0 %v299
    %1407 = vmatpush1.msra.mxu0 %v298
    %1408 = vmatprep.subr.mxu0 %v333
    %1409 = vmatpush1.msra.mxu0 %v332
    %1410 = vmatprep.subr.mxu0 %v367
    %1411 = vmatpush1.msra.mxu0 %v366
    %1412 = vmatprep.subr.mxu0 %v401
    %1413 = vmatpush1.msra.mxu0 %v400
    %1414 = vmatprep.subr.mxu0 %v435
    %1415 = vmatpush1.msra.mxu0 %v434
    %1416 = vmatprep.subr.mxu0 %v469
    %1417 = vmatpush1.msra.mxu0 %v468
    %1418 = vmatprep.subr.mxu0 %v503
    %1419 = vmatpush1.msra.mxu0 %v502
    %1420 = vmatprep.subr.mxu0 %v537
    %1421 = vmatpush1.msra.mxu0 %v536
    %1422 = vmatprep.subr.mxu0 %v571
    %1423 = vmatpush1.msra.mxu0 %v570
    %1424 = vmatprep.subr.mxu0 %v605
    %1425 = vmatpush1.msra.mxu0 %v604
    %1426 = vmatprep.subr.mxu0 %v639
    %1427 = vmatpush1.msra.mxu0 %v638
    %1428 = vmatprep.subr.mxu0 %v673
    %1429 = vmatpush1.msra.mxu0 %v672
    %1430 = vmatprep.subr.mxu0 %v707
    %1431 = vmatpush1.msra.mxu0 %v706
    %1432 = vmatprep.subr.mxu0 %v741
    %1433 = vmatpush1.msra.mxu0 %v740
    %1434 = vmatprep.subr.mxu0 %v775
    %1435 = vmatpush1.msra.mxu0 %v774
    %1436 = vmatprep.subr.mxu0 %v809
    %1437 = vmatpush1.msra.mxu0 %v808
    %1438 = vmatprep.subr.mxu0 %v843
    %1439 = vmatpush1.msra.mxu0 %v842
    %1440 = vmatprep.subr.mxu0 %v877
    %1441 = vmatpush1.msra.mxu0 %v876
    %1442 = vmatprep.subr.mxu0 %v911
    %1443 = vmatpush1.msra.mxu0 %v910
    %1444 = vmatprep.subr.mxu0 %v945
    %1445 = vmatpush1.msra.mxu0 %v944
    %1446 = vmatprep.subr.mxu0 %v979
    %1447 = vmatpush1.msra.mxu0 %v978
    %1448 = vmatprep.subr.mxu0 %v1013
    %1449 = vmatpush1.msra.mxu0 %v1012
    %1450 = vmatprep.subr.mxu0 %v1047
    %1451 = vmatpush1.msra.mxu0 %v1046
    %1452 = vmatprep.subr.mxu0 %v1081
    %1453 = vmatpush1.msra.mxu0 %v1080
    %1454 = vmatprep.subr.mxu0 %v1115
    %1455 = vmatpush1.msra.mxu0 %v1114
    %1456 = vmatprep.subr.mxu0 %v1149
    %1457 = vmatpush1.msra.mxu0 %v1148
    %1458 = vmatprep.subr.mxu0 %v1183
    %1459 = vmatpush1.msra.mxu0 %v1182
    %1460 = vmatprep.mubr.f32.mxu0 %v125
    %1461 = vmatmul.mubr.f32.gmra.mrb[0].mxu0 %v124
    %v1462 = vpop.f32.mrb[0].mxu0
    %v1463 = vadd.f32 %v1229, %v1462
    %v1464 = vpop.f32.mrb[0].mxu0
    %v1465 = vadd.f32 %v1233, %v1464
    %1466 = vmatprep.mubr.f32.mxu0 %v127
    %1467 = vmatmul.mubr.f32.gmra.mrb[0].mxu0 %v126
    %v1468 = vpop.f32.mrb[0].mxu0
    %v1469 = vadd.f32 %v1229, %v1468
    %v1470 = vpop.f32.mrb[0].mxu0
    %v1471 = vadd.f32 %v1233, %v1470
    %1472 = vdwg.mxu0
    %1473 = vmatprep.subr.mxu0 %v131
    %1474 = vmatpush1.msra.mxu0 %v130
    %1475 = vmatprep.subr.mxu0 %v165
    %1476 = vmatpush1.msra.mxu0 %v164
    %1477 = vmatprep.subr.mxu0 %v199
    %1478 = vmatpush1.msra.mxu0 %v198
    %1479 = vmatprep.subr.mxu0 %v233
    %1480 = vmatpush1.msra.mxu0 %v232
    %1481 = vmatprep.subr.mxu0 %v267
    %1482 = vmatpush1.msra.mxu0 %v266
    %1483 = vmatprep.subr.mxu0 %v301
    %1484 = vmatpush1.msra.mxu0 %v300
    %1485 = vmatprep.subr.mxu0 %v335
    %1486 = vmatpush1.msra.mxu0 %v334
    %1487 = vmatprep.subr.mxu0 %v369
    %1488 = vmatpush1.msra.mxu0 %v368
    %1489 = vmatprep.subr.mxu0 %v403
    %1490 = vmatpush1.msra.mxu0 %v402
    %1491 = vmatprep.subr.mxu0 %v437
    %1492 = vmatpush1.msra.mxu0 %v436
    %1493 = vmatprep.subr.mxu0 %v471
    %1494 = vmatpush1.msra.mxu0 %v470
    %1495 = vmatprep.subr.mxu0 %v505
    %1496 = vmatpush1.msra.mxu0 %v504
    %1497 = vmatprep.subr.mxu0 %v539
    %1498 = vmatpush1.msra.mxu0 %v538
    %1499 = vmatprep.subr.mxu0 %v573
    %1500 = vmatpush1.msra.mxu0 %v572
    %1501 = vmatprep.subr.mxu0 %v607
    %1502 = vmatpush1.msra.mxu0 %v606
    %1503 = vmatprep.subr.mxu0 %v641
    %1504 = vmatpush1.msra.mxu0 %v640
    %1505 = vmatprep.subr.mxu0 %v675
    %1506 = vmatpush1.msra.mxu0 %v674
    %1507 = vmatprep.subr.mxu0 %v709
    %1508 = vmatpush1.msra.mxu0 %v708
    %1509 = vmatprep.subr.mxu0 %v743
    %1510 = vmatpush1.msra.mxu0 %v742
    %1511 = vmatprep.subr.mxu0 %v777
    %1512 = vmatpush1.msra.mxu0 %v776
    %1513 = vmatprep.subr.mxu0 %v811
    %1514 = vmatpush1.msra.mxu0 %v810
    %1515 = vmatprep.subr.mxu0 %v845
    %1516 = vmatpush1.msra.mxu0 %v844
    %1517 = vmatprep.subr.mxu0 %v879
    %1518 = vmatpush1.msra.mxu0 %v878
    %1519 = vmatprep.subr.mxu0 %v913
    %1520 = vmatpush1.msra.mxu0 %v912
    %1521 = vmatprep.subr.mxu0 %v947
    %1522 = vmatpush1.msra.mxu0 %v946
    %1523 = vmatprep.subr.mxu0 %v981
    %1524 = vmatpush1.msra.mxu0 %v980
    %1525 = vmatprep.subr.mxu0 %v1015
    %1526 = vmatpush1.msra.mxu0 %v1014
    %1527 = vmatprep.subr.mxu0 %v1049
    %1528 = vmatpush1.msra.mxu0 %v1048
    %1529 = vmatprep.subr.mxu0 %v1083
    %1530 = vmatpush1.msra.mxu0 %v1082
    %1531 = vmatprep.subr.mxu0 %v1117
    %1532 = vmatpush1.msra.mxu0 %v1116
    %1533 = vmatprep.subr.mxu0 %v1151
    %1534 = vmatpush1.msra.mxu0 %v1150
    %1535 = vmatprep.subr.mxu0 %v1185
    %1536 = vmatpush1.msra.mxu0 %v1184
    %1537 = vmatprep.mubr.f32.mxu0 %v125
    %1538 = vmatmul.mubr.f32.gmra.mrb[0].mxu0 %v124
    %v1539 = vpop.f32.mrb[0].mxu0
    %v1540 = vadd.f32 %v1237, %v1539
    %v1541 = vpop.f32.mrb[0].mxu0
    %v1542 = vadd.f32 %v1241, %v1541
    %1543 = vmatprep.mubr.f32.mxu0 %v127
    %1544 = vmatmul.mubr.f32.gmra.mrb[0].mxu0 %v126
    %v1545 = vpop.f32.mrb[0].mxu0
    %v1546 = vadd.f32 %v1237, %v1545
    %v1547 = vpop.f32.mrb[0].mxu0
    %v1548 = vadd.f32 %v1241, %v1547
    %1549 = vdwg.mxu0
    %1550 = vmatprep.subr.mxu0 %v133
    %1551 = vmatpush1.msra.mxu0 %v132
    %1552 = vmatprep.subr.mxu0 %v167
    %1553 = vmatpush1.msra.mxu0 %v166
    %1554 = vmatprep.subr.mxu0 %v201
    %1555 = vmatpush1.msra.mxu0 %v200
    %1556 = vmatprep.subr.mxu0 %v235
    %1557 = vmatpush1.msra.mxu0 %v234
    %1558 = vmatprep.subr.mxu0 %v269
    %1559 = vmatpush1.msra.mxu0 %v268
    %1560 = vmatprep.subr.mxu0 %v303
    %1561 = vmatpush1.msra.mxu0 %v302
    %1562 = vmatprep.subr.mxu0 %v337
    %1563 = vmatpush1.msra.mxu0 %v336
    %1564 = vmatprep.subr.mxu0 %v371
    %1565 = vmatpush1.msra.mxu0 %v370
    %1566 = vmatprep.subr.mxu0 %v405
    %1567 = vmatpush1.msra.mxu0 %v404
    %1568 = vmatprep.subr.mxu0 %v439
    %1569 = vmatpush1.msra.mxu0 %v438
    %1570 = vmatprep.subr.mxu0 %v473
    %1571 = vmatpush1.msra.mxu0 %v472
    %1572 = vmatprep.subr.mxu0 %v507
    %1573 = vmatpush1.msra.mxu0 %v506
    %1574 = vmatprep.subr.mxu0 %v541
    %1575 = vmatpush1.msra.mxu0 %v540
    %1576 = vmatprep.subr.mxu0 %v575
    %1577 = vmatpush1.msra.mxu0 %v574
    %1578 = vmatprep.subr.mxu0 %v609
    %1579 = vmatpush1.msra.mxu0 %v608
    %1580 = vmatprep.subr.mxu0 %v643
    %1581 = vmatpush1.msra.mxu0 %v642
    %1582 = vmatprep.subr.mxu0 %v677
    %1583 = vmatpush1.msra.mxu0 %v676
    %1584 = vmatprep.subr.mxu0 %v711
    %1585 = vmatpush1.msra.mxu0 %v710
    %1586 = vmatprep.subr.mxu0 %v745
    %1587 = vmatpush1.msra.mxu0 %v744
    %1588 = vmatprep.subr.mxu0 %v779
    %1589 = vmatpush1.msra.mxu0 %v778
    %1590 = vmatprep.subr.mxu0 %v813
    %1591 = vmatpush1.msra.mxu0 %v812
    %1592 = vmatprep.subr.mxu0 %v847
    %1593 = vmatpush1.msra.mxu0 %v846
    %1594 = vmatprep.subr.mxu0 %v881
    %1595 = vmatpush1.msra.mxu0 %v880
    %1596 = vmatprep.subr.mxu0 %v915
    %1597 = vmatpush1.msra.mxu0 %v914
    %1598 = vmatprep.subr.mxu0 %v949
    %1599 = vmatpush1.msra.mxu0 %v948
    %1600 = vmatprep.subr.mxu0 %v983
    %1601 = vmatpush1.msra.mxu0 %v982
    %1602 = vmatprep.subr.mxu0 %v1017
    %1603 = vmatpush1.msra.mxu0 %v1016
    %1604 = vmatprep.subr.mxu0 %v1051
    %1605 = vmatpush1.msra.mxu0 %v1050
    %1606 = vmatprep.subr.mxu0 %v1085
    %1607 = vmatpush1.msra.mxu0 %v1084
    %1608 = vmatprep.subr.mxu0 %v1119
    %1609 = vmatpush1.msra.mxu0 %v1118
    %1610 = vmatprep.subr.mxu0 %v1153
    %1611 = vmatpush1.msra.mxu0 %v1152
    %1612 = vmatprep.subr.mxu0 %v1187
    %1613 = vmatpush1.msra.mxu0 %v1186
    %1614 = vmatprep.mubr.f32.mxu0 %v125
    %1615 = vmatmul.mubr.f32.gmra.mrb[0].mxu0 %v124
    %v1616 = vpop.f32.mrb[0].mxu0
    %v1617 = vadd.f32 %v1245, %v1616
    %v1618 = vpop.f32.mrb[0].mxu0
    %v1619 = vadd.f32 %v1249, %v1618
    %1620 = vmatprep.mubr.f32.mxu0 %v127
    %1621 = vmatmul.mubr.f32.gmra.mrb[0].mxu0 %v126
    %v1622 = vpop.f32.mrb[0].mxu0
    %v1623 = vadd.f32 %v1245, %v1622
    %v1624 = vpop.f32.mrb[0].mxu0
    %v1625 = vadd.f32 %v1249, %v1624
    %1626 = vdwg.mxu0
    %1627 = vmatprep.subr.mxu0 %v135
    %1628 = vmatpush1.msra.mxu0 %v134
    %1629 = vmatprep.subr.mxu0 %v169
    %1630 = vmatpush1.msra.mxu0 %v168
    %1631 = vmatprep.subr.mxu0 %v203
    %1632 = vmatpush1.msra.mxu0 %v202
    %1633 = vmatprep.subr.mxu0 %v237
    %1634 = vmatpush1.msra.mxu0 %v236
    %1635 = vmatprep.subr.mxu0 %v271
    %1636 = vmatpush1.msra.mxu0 %v270
    %1637 = vmatprep.subr.mxu0 %v305
    %1638 = vmatpush1.msra.mxu0 %v304
    %1639 = vmatprep.subr.mxu0 %v339
    %1640 = vmatpush1.msra.mxu0 %v338
    %1641 = vmatprep.subr.mxu0 %v373
    %1642 = vmatpush1.msra.mxu0 %v372
    %1643 = vmatprep.subr.mxu0 %v407
    %1644 = vmatpush1.msra.mxu0 %v406
    %1645 = vmatprep.subr.mxu0 %v441
    %1646 = vmatpush1.msra.mxu0 %v440
    %1647 = vmatprep.subr.mxu0 %v475
    %1648 = vmatpush1.msra.mxu0 %v474
    %1649 = vmatprep.subr.mxu0 %v509
    %1650 = vmatpush1.msra.mxu0 %v508
    %1651 = vmatprep.subr.mxu0 %v543
    %1652 = vmatpush1.msra.mxu0 %v542
    %1653 = vmatprep.subr.mxu0 %v577
    %1654 = vmatpush1.msra.mxu0 %v576
    %1655 = vmatprep.subr.mxu0 %v611
    %1656 = vmatpush1.msra.mxu0 %v610
    %1657 = vmatprep.subr.mxu0 %v645
    %1658 = vmatpush1.msra.mxu0 %v644
    %1659 = vmatprep.subr.mxu0 %v679
    %1660 = vmatpush1.msra.mxu0 %v678
    %1661 = vmatprep.subr.mxu0 %v713
    %1662 = vmatpush1.msra.mxu0 %v712
    %1663 = vmatprep.subr.mxu0 %v747
    %1664 = vmatpush1.msra.mxu0 %v746
    %1665 = vmatprep.subr.mxu0 %v781
    %1666 = vmatpush1.msra.mxu0 %v780
    %1667 = vmatprep.subr.mxu0 %v815
    %1668 = vmatpush1.msra.mxu0 %v814
    %1669 = vmatprep.subr.mxu0 %v849
    %1670 = vmatpush1.msra.mxu0 %v848
    %1671 = vmatprep.subr.mxu0 %v883
    %1672 = vmatpush1.msra.mxu0 %v882
    %1673 = vmatprep.subr.mxu0 %v917
    %1674 = vmatpush1.msra.mxu0 %v916
    %1675 = vmatprep.subr.mxu0 %v951
    %1676 = vmatpush1.msra.mxu0 %v950
    %1677 = vmatprep.subr.mxu0 %v985
    %1678 = vmatpush1.msra.mxu0 %v984
    %1679 = vmatprep.subr.mxu0 %v1019
    %1680 = vmatpush1.msra.mxu0 %v1018
    %1681 = vmatprep.subr.mxu0 %v1053
    %1682 = vmatpush1.msra.mxu0 %v1052
    %1683 = vmatprep.subr.mxu0 %v1087
    %1684 = vmatpush1.msra.mxu0 %v1086
    %1685 = vmatprep.subr.mxu0 %v1121
    %1686 = vmatpush1.msra.mxu0 %v1120
    %1687 = vmatprep.subr.mxu0 %v1155
    %1688 = vmatpush1.msra.mxu0 %v1154
    %1689 = vmatprep.subr.mxu0 %v1189
    %1690 = vmatpush1.msra.mxu0 %v1188
    %1691 = vmatprep.mubr.f32.mxu0 %v125
    %1692 = vmatmul.mubr.f32.gmra.mrb[0].mxu0 %v124
    %v1693 = vpop.f32.mrb[0].mxu0
    %v1694 = vadd.f32 %v1253, %v1693
    %v1695 = vpop.f32.mrb[0].mxu0
    %v1696 = vadd.f32 %v1257, %v1695
    %1697 = vmatprep.mubr.f32.mxu0 %v127
    %1698 = vmatmul.mubr.f32.gmra.mrb[0].mxu0 %v126
    %v1699 = vpop.f32.mrb[0].mxu0
    %v1700 = vadd.f32 %v1253, %v1699
    %v1701 = vpop.f32.mrb[0].mxu0
    %v1702 = vadd.f32 %v1257, %v1701
    %1703 = vdwg.mxu0
    %1704 = vmatprep.subr.mxu0 %v137
    %1705 = vmatpush1.msra.mxu0 %v136
    %1706 = vmatprep.subr.mxu0 %v171
    %1707 = vmatpush1.msra.mxu0 %v170
    %1708 = vmatprep.subr.mxu0 %v205
    %1709 = vmatpush1.msra.mxu0 %v204
    %1710 = vmatprep.subr.mxu0 %v239
    %1711 = vmatpush1.msra.mxu0 %v238
    %1712 = vmatprep.subr.mxu0 %v273
    %1713 = vmatpush1.msra.mxu0 %v272
    %1714 = vmatprep.subr.mxu0 %v307
    %1715 = vmatpush1.msra.mxu0 %v306
    %1716 = vmatprep.subr.mxu0 %v341
    %1717 = vmatpush1.msra.mxu0 %v340
    %1718 = vmatprep.subr.mxu0 %v375
    %1719 = vmatpush1.msra.mxu0 %v374
    %1720 = vmatprep.subr.mxu0 %v409
    %1721 = vmatpush1.msra.mxu0 %v408
    %1722 = vmatprep.subr.mxu0 %v443
    %1723 = vmatpush1.msra.mxu0 %v442
    %1724 = vmatprep.subr.mxu0 %v477
    %1725 = vmatpush1.msra.mxu0 %v476
    %1726 = vmatprep.subr.mxu0 %v511
    %1727 = vmatpush1.msra.mxu0 %v510
    %1728 = vmatprep.subr.mxu0 %v545
    %1729 = vmatpush1.msra.mxu0 %v544
    %1730 = vmatprep.subr.mxu0 %v579
    %1731 = vmatpush1.msra.mxu0 %v578
    %1732 = vmatprep.subr.mxu0 %v613
    %1733 = vmatpush1.msra.mxu0 %v612
    %1734 = vmatprep.subr.mxu0 %v647
    %1735 = vmatpush1.msra.mxu0 %v646
    %1736 = vmatprep.subr.mxu0 %v681
    %1737 = vmatpush1.msra.mxu0 %v680
    %1738 = vmatprep.subr.mxu0 %v715
    %1739 = vmatpush1.msra.mxu0 %v714
    %1740 = vmatprep.subr.mxu0 %v749
    %1741 = vmatpush1.msra.mxu0 %v748
    %1742 = vmatprep.subr.mxu0 %v783
    %1743 = vmatpush1.msra.mxu0 %v782
    %1744 = vmatprep.subr.mxu0 %v817
    %1745 = vmatpush1.msra.mxu0 %v816
    %1746 = vmatprep.subr.mxu0 %v851
    %1747 = vmatpush1.msra.mxu0 %v850
    %1748 = vmatprep.subr.mxu0 %v885
    %1749 = vmatpush1.msra.mxu0 %v884
    %1750 = vmatprep.subr.mxu0 %v919
    %1751 = vmatpush1.msra.mxu0 %v918
    %1752 = vmatprep.subr.mxu0 %v953
    %1753 = vmatpush1.msra.mxu0 %v952
    %1754 = vmatprep.subr.mxu0 %v987
    %1755 = vmatpush1.msra.mxu0 %v986
    %1756 = vmatprep.subr.mxu0 %v1021
    %1757 = vmatpush1.msra.mxu0 %v1020
    %1758 = vmatprep.subr.mxu0 %v1055
    %1759 = vmatpush1.msra.mxu0 %v1054
    %1760 = vmatprep.subr.mxu0 %v1089
    %1761 = vmatpush1.msra.mxu0 %v1088
    %1762 = vmatprep.subr.mxu0 %v1123
    %1763 = vmatpush1.msra.mxu0 %v1122
    %1764 = vmatprep.subr.mxu0 %v1157
    %1765 = vmatpush1.msra.mxu0 %v1156
    %1766 = vmatprep.subr.mxu0 %v1191
    %1767 = vmatpush1.msra.mxu0 %v1190
    %1768 = vmatprep.mubr.f32.mxu0 %v125
    %1769 = vmatmul.mubr.f32.gmra.mrb[0].mxu0 %v124
    %v1770 = vpop.f32.mrb[0].mxu0
    %v1771 = vadd.f32 %v1261, %v1770
    %v1772 = vpop.f32.mrb[0].mxu0
    %v1773 = vadd.f32 %v1265, %v1772
    %1774 = vmatprep.mubr.f32.mxu0 %v127
    %1775 = vmatmul.mubr.f32.gmra.mrb[0].mxu0 %v126
    %v1776 = vpop.f32.mrb[0].mxu0
    %v1777 = vadd.f32 %v1261, %v1776
    %v1778 = vpop.f32.mrb[0].mxu0
    %v1779 = vadd.f32 %v1265, %v1778
    %1780 = vdwg.mxu0
    %1781 = vmatprep.subr.mxu0 %v139
    %1782 = vmatpush1.msra.mxu0 %v138
    %1783 = vmatprep.subr.mxu0 %v173
    %1784 = vmatpush1.msra.mxu0 %v172
    %1785 = vmatprep.subr.mxu0 %v207
    %1786 = vmatpush1.msra.mxu0 %v206
    %1787 = vmatprep.subr.mxu0 %v241
    %1788 = vmatpush1.msra.mxu0 %v240
    %1789 = vmatprep.subr.mxu0 %v275
    %1790 = vmatpush1.msra.mxu0 %v274
    %1791 = vmatprep.subr.mxu0 %v309
    %1792 = vmatpush1.msra.mxu0 %v308
    %1793 = vmatprep.subr.mxu0 %v343
    %1794 = vmatpush1.msra.mxu0 %v342
    %1795 = vmatprep.subr.mxu0 %v377
    %1796 = vmatpush1.msra.mxu0 %v376
    %1797 = vmatprep.subr.mxu0 %v411
    %1798 = vmatpush1.msra.mxu0 %v410
    %1799 = vmatprep.subr.mxu0 %v445
    %1800 = vmatpush1.msra.mxu0 %v444
    %1801 = vmatprep.subr.mxu0 %v479
    %1802 = vmatpush1.msra.mxu0 %v478
    %1803 = vmatprep.subr.mxu0 %v513
    %1804 = vmatpush1.msra.mxu0 %v512
    %1805 = vmatprep.subr.mxu0 %v547
    %1806 = vmatpush1.msra.mxu0 %v546
    %1807 = vmatprep.subr.mxu0 %v581
    %1808 = vmatpush1.msra.mxu0 %v580
    %1809 = vmatprep.subr.mxu0 %v615
    %1810 = vmatpush1.msra.mxu0 %v614
    %1811 = vmatprep.subr.mxu0 %v649
    %1812 = vmatpush1.msra.mxu0 %v648
    %1813 = vmatprep.subr.mxu0 %v683
    %1814 = vmatpush1.msra.mxu0 %v682
    %1815 = vmatprep.subr.mxu0 %v717
    %1816 = vmatpush1.msra.mxu0 %v716
    %1817 = vmatprep.subr.mxu0 %v751
    %1818 = vmatpush1.msra.mxu0 %v750
    %1819 = vmatprep.subr.mxu0 %v785
    %1820 = vmatpush1.msra.mxu0 %v784
    %1821 = vmatprep.subr.mxu0 %v819
    %1822 = vmatpush1.msra.mxu0 %v818
    %1823 = vmatprep.subr.mxu0 %v853
    %1824 = vmatpush1.msra.mxu0 %v852
    %1825 = vmatprep.subr.mxu0 %v887
    %1826 = vmatpush1.msra.mxu0 %v886
    %1827 = vmatprep.subr.mxu0 %v921
    %1828 = vmatpush1.msra.mxu0 %v920
    %1829 = vmatprep.subr.mxu0 %v955
    %1830 = vmatpush1.msra.mxu0 %v954
    %1831 = vmatprep.subr.mxu0 %v989
    %1832 = vmatpush1.msra.mxu0 %v988
    %1833 = vmatprep.subr.mxu0 %v1023
    %1834 = vmatpush1.msra.mxu0 %v1022
    %1835 = vmatprep.subr.mxu0 %v1057
    %1836 = vmatpush1.msra.mxu0 %v1056
    %1837 = vmatprep.subr.mxu0 %v1091
    %1838 = vmatpush1.msra.mxu0 %v1090
    %1839 = vmatprep.subr.mxu0 %v1125
    %1840 = vmatpush1.msra.mxu0 %v1124
    %1841 = vmatprep.subr.mxu0 %v1159
    %1842 = vmatpush1.msra.mxu0 %v1158
    %1843 = vmatprep.subr.mxu0 %v1193
    %1844 = vmatpush1.msra.mxu0 %v1192
    %1845 = vmatprep.mubr.f32.mxu0 %v125
    %1846 = vmatmul.mubr.f32.gmra.mrb[0].mxu0 %v124
    %v1847 = vpop.f32.mrb[0].mxu0
    %v1848 = vadd.f32 %v1269, %v1847
    %v1849 = vpop.f32.mrb[0].mxu0
    %v1850 = vadd.f32 %v1273, %v1849
    %1851 = vmatprep.mubr.f32.mxu0 %v127
    %1852 = vmatmul.mubr.f32.gmra.mrb[0].mxu0 %v126
    %v1853 = vpop.f32.mrb[0].mxu0
    %v1854 = vadd.f32 %v1269, %v1853
    %v1855 = vpop.f32.mrb[0].mxu0
    %v1856 = vadd.f32 %v1273, %v1855
    %1857 = vdwg.mxu0
    %1858 = vmatprep.subr.mxu0 %v141
    %1859 = vmatpush1.msra.mxu0 %v140
    %1860 = vmatprep.subr.mxu0 %v175
    %1861 = vmatpush1.msra.mxu0 %v174
    %1862 = vmatprep.subr.mxu0 %v209
    %1863 = vmatpush1.msra.mxu0 %v208
    %1864 = vmatprep.subr.mxu0 %v243
    %1865 = vmatpush1.msra.mxu0 %v242
    %1866 = vmatprep.subr.mxu0 %v277
    %1867 = vmatpush1.msra.mxu0 %v276
    %1868 = vmatprep.subr.mxu0 %v311
    %1869 = vmatpush1.msra.mxu0 %v310
    %1870 = vmatprep.subr.mxu0 %v345
    %1871 = vmatpush1.msra.mxu0 %v344
    %1872 = vmatprep.subr.mxu0 %v379
    %1873 = vmatpush1.msra.mxu0 %v378
    %1874 = vmatprep.subr.mxu0 %v413
    %1875 = vmatpush1.msra.mxu0 %v412
    %1876 = vmatprep.subr.mxu0 %v447
    %1877 = vmatpush1.msra.mxu0 %v446
    %1878 = vmatprep.subr.mxu0 %v481
    %1879 = vmatpush1.msra.mxu0 %v480
    %1880 = vmatprep.subr.mxu0 %v515
    %1881 = vmatpush1.msra.mxu0 %v514
    %1882 = vmatprep.subr.mxu0 %v549
    %1883 = vmatpush1.msra.mxu0 %v548
    %1884 = vmatprep.subr.mxu0 %v583
    %1885 = vmatpush1.msra.mxu0 %v582
    %1886 = vmatprep.subr.mxu0 %v617
    %1887 = vmatpush1.msra.mxu0 %v616
    %1888 = vmatprep.subr.mxu0 %v651
    %1889 = vmatpush1.msra.mxu0 %v650
    %1890 = vmatprep.subr.mxu0 %v685
    %1891 = vmatpush1.msra.mxu0 %v684
    %1892 = vmatprep.subr.mxu0 %v719
    %1893 = vmatpush1.msra.mxu0 %v718
    %1894 = vmatprep.subr.mxu0 %v753
    %1895 = vmatpush1.msra.mxu0 %v752
    %1896 = vmatprep.subr.mxu0 %v787
    %1897 = vmatpush1.msra.mxu0 %v786
    %1898 = vmatprep.subr.mxu0 %v821
    %1899 = vmatpush1.msra.mxu0 %v820
    %1900 = vmatprep.subr.mxu0 %v855
    %1901 = vmatpush1.msra.mxu0 %v854
    %1902 = vmatprep.subr.mxu0 %v889
    %1903 = vmatpush1.msra.mxu0 %v888
    %1904 = vmatprep.subr.mxu0 %v923
    %1905 = vmatpush1.msra.mxu0 %v922
    %1906 = vmatprep.subr.mxu0 %v957
    %1907 = vmatpush1.msra.mxu0 %v956
    %1908 = vmatprep.subr.mxu0 %v991
    %1909 = vmatpush1.msra.mxu0 %v990
    %1910 = vmatprep.subr.mxu0 %v1025
    %1911 = vmatpush1.msra.mxu0 %v1024
    %1912 = vmatprep.subr.mxu0 %v1059
    %1913 = vmatpush1.msra.mxu0 %v1058
    %1914 = vmatprep.subr.mxu0 %v1093
    %1915 = vmatpush1.msra.mxu0 %v1092
    %1916 = vmatprep.subr.mxu0 %v1127
    %1917 = vmatpush1.msra.mxu0 %v1126
    %1918 = vmatprep.subr.mxu0 %v1161
    %1919 = vmatpush1.msra.mxu0 %v1160
    %1920 = vmatprep.subr.mxu0 %v1195
    %1921 = vmatpush1.msra.mxu0 %v1194
    %1922 = vmatprep.mubr.f32.mxu0 %v125
    %1923 = vmatmul.mubr.f32.gmra.mrb[0].mxu0 %v124
    %v1924 = vpop.f32.mrb[0].mxu0
    %v1925 = vadd.f32 %v1277, %v1924
    %v1926 = vpop.f32.mrb[0].mxu0
    %v1927 = vadd.f32 %v1281, %v1926
    %1928 = vmatprep.mubr.f32.mxu0 %v127
    %1929 = vmatmul.mubr.f32.gmra.mrb[0].mxu0 %v126
    %v1930 = vpop.f32.mrb[0].mxu0
    %v1931 = vadd.f32 %v1277, %v1930
    %v1932 = vpop.f32.mrb[0].mxu0
    %v1933 = vadd.f32 %v1281, %v1932
    %1934 = vdwg.mxu0
    %1935 = vmatprep.subr.mxu0 %v143
    %1936 = vmatpush1.msra.mxu0 %v142
    %1937 = vmatprep.subr.mxu0 %v177
    %1938 = vmatpush1.msra.mxu0 %v176
    %1939 = vmatprep.subr.mxu0 %v211
    %1940 = vmatpush1.msra.mxu0 %v210
    %1941 = vmatprep.subr.mxu0 %v245
    %1942 = vmatpush1.msra.mxu0 %v244
    %1943 = vmatprep.subr.mxu0 %v279
    %1944 = vmatpush1.msra.mxu0 %v278
    %1945 = vmatprep.subr.mxu0 %v313
    %1946 = vmatpush1.msra.mxu0 %v312
    %1947 = vmatprep.subr.mxu0 %v347
    %1948 = vmatpush1.msra.mxu0 %v346
    %1949 = vmatprep.subr.mxu0 %v381
    %1950 = vmatpush1.msra.mxu0 %v380
    %1951 = vmatprep.subr.mxu0 %v415
    %1952 = vmatpush1.msra.mxu0 %v414
    %1953 = vmatprep.subr.mxu0 %v449
    %1954 = vmatpush1.msra.mxu0 %v448
    %1955 = vmatprep.subr.mxu0 %v483
    %1956 = vmatpush1.msra.mxu0 %v482
    %1957 = vmatprep.subr.mxu0 %v517
    %1958 = vmatpush1.msra.mxu0 %v516
    %1959 = vmatprep.subr.mxu0 %v551
    %1960 = vmatpush1.msra.mxu0 %v550
    %1961 = vmatprep.subr.mxu0 %v585
    %1962 = vmatpush1.msra.mxu0 %v584
    %1963 = vmatprep.subr.mxu0 %v619
    %1964 = vmatpush1.msra.mxu0 %v618
    %1965 = vmatprep.subr.mxu0 %v653
    %1966 = vmatpush1.msra.mxu0 %v652
    %1967 = vmatprep.subr.mxu0 %v687
    %1968 = vmatpush1.msra.mxu0 %v686
    %1969 = vmatprep.subr.mxu0 %v721
    %1970 = vmatpush1.msra.mxu0 %v720
    %1971 = vmatprep.subr.mxu0 %v755
    %1972 = vmatpush1.msra.mxu0 %v754
    %1973 = vmatprep.subr.mxu0 %v789
    %1974 = vmatpush1.msra.mxu0 %v788
    %1975 = vmatprep.subr.mxu0 %v823
    %1976 = vmatpush1.msra.mxu0 %v822
    %1977 = vmatprep.subr.mxu0 %v857
    %1978 = vmatpush1.msra.mxu0 %v856
    %1979 = vmatprep.subr.mxu0 %v891
    %1980 = vmatpush1.msra.mxu0 %v890
    %1981 = vmatprep.subr.mxu0 %v925
    %1982 = vmatpush1.msra.mxu0 %v924
    %1983 = vmatprep.subr.mxu0 %v959
    %1984 = vmatpush1.msra.mxu0 %v958
    %1985 = vmatprep.subr.mxu0 %v993
    %1986 = vmatpush1.msra.mxu0 %v992
    %1987 = vmatprep.subr.mxu0 %v1027
    %1988 = vmatpush1.msra.mxu0 %v1026
    %1989 = vmatprep.subr.mxu0 %v1061
    %1990 = vmatpush1.msra.mxu0 %v1060
    %1991 = vmatprep.subr.mxu0 %v1095
    %1992 = vmatpush1.msra.mxu0 %v1094
    %1993 = vmatprep.subr.mxu0 %v1129
    %1994 = vmatpush1.msra.mxu0 %v1128
    %1995 = vmatprep.subr.mxu0 %v1163
    %1996 = vmatpush1.msra.mxu0 %v1162
    %1997 = vmatprep.subr.mxu0 %v1197
    %1998 = vmatpush1.msra.mxu0 %v1196
    %1999 = vmatprep.mubr.f32.mxu0 %v125
    %2000 = vmatmul.mubr.f32.gmra.mrb[0].mxu0 %v124
    %v2001 = vpop.f32.mrb[0].mxu0
    %v2002 = vadd.f32 %v1285, %v2001
    %v2003 = vpop.f32.mrb[0].mxu0
    %v2004 = vadd.f32 %v1289, %v2003
    %2005 = vmatprep.mubr.f32.mxu0 %v127
    %2006 = vmatmul.mubr.f32.gmra.mrb[0].mxu0 %v126
    %v2007 = vpop.f32.mrb[0].mxu0
    %v2008 = vadd.f32 %v1285, %v2007
    %v2009 = vpop.f32.mrb[0].mxu0
    %v2010 = vadd.f32 %v1289, %v2009
    %2011 = vdwg.mxu0
    %2012 = vmatprep.subr.mxu0 %v145
    %2013 = vmatpush1.msra.mxu0 %v144
    %2014 = vmatprep.subr.mxu0 %v179
    %2015 = vmatpush1.msra.mxu0 %v178
    %2016 = vmatprep.subr.mxu0 %v213
    %2017 = vmatpush1.msra.mxu0 %v212
    %2018 = vmatprep.subr.mxu0 %v247
    %2019 = vmatpush1.msra.mxu0 %v246
    %2020 = vmatprep.subr.mxu0 %v281
    %2021 = vmatpush1.msra.mxu0 %v280
    %2022 = vmatprep.subr.mxu0 %v315
    %2023 = vmatpush1.msra.mxu0 %v314
    %2024 = vmatprep.subr.mxu0 %v349
    %2025 = vmatpush1.msra.mxu0 %v348
    %2026 = vmatprep.subr.mxu0 %v383
    %2027 = vmatpush1.msra.mxu0 %v382
    %2028 = vmatprep.subr.mxu0 %v417
    %2029 = vmatpush1.msra.mxu0 %v416
    %2030 = vmatprep.subr.mxu0 %v451
    %2031 = vmatpush1.msra.mxu0 %v450
    %2032 = vmatprep.subr.mxu0 %v485
    %2033 = vmatpush1.msra.mxu0 %v484
    %2034 = vmatprep.subr.mxu0 %v519
    %2035 = vmatpush1.msra.mxu0 %v518
    %2036 = vmatprep.subr.mxu0 %v553
    %2037 = vmatpush1.msra.mxu0 %v552
    %2038 = vmatprep.subr.mxu0 %v587
    %2039 = vmatpush1.msra.mxu0 %v586
    %2040 = vmatprep.subr.mxu0 %v621
    %2041 = vmatpush1.msra.mxu0 %v620
    %2042 = vmatprep.subr.mxu0 %v655
    %2043 = vmatpush1.msra.mxu0 %v654
    %2044 = vmatprep.subr.mxu0 %v689
    %2045 = vmatpush1.msra.mxu0 %v688
    %2046 = vmatprep.subr.mxu0 %v723
    %2047 = vmatpush1.msra.mxu0 %v722
    %2048 = vmatprep.subr.mxu0 %v757
    %2049 = vmatpush1.msra.mxu0 %v756
    %2050 = vmatprep.subr.mxu0 %v791
    %2051 = vmatpush1.msra.mxu0 %v790
    %2052 = vmatprep.subr.mxu0 %v825
    %2053 = vmatpush1.msra.mxu0 %v824
    %2054 = vmatprep.subr.mxu0 %v859
    %2055 = vmatpush1.msra.mxu0 %v858
    %2056 = vmatprep.subr.mxu0 %v893
    %2057 = vmatpush1.msra.mxu0 %v892
    %2058 = vmatprep.subr.mxu0 %v927
    %2059 = vmatpush1.msra.mxu0 %v926
    %2060 = vmatprep.subr.mxu0 %v961
    %2061 = vmatpush1.msra.mxu0 %v960
    %2062 = vmatprep.subr.mxu0 %v995
    %2063 = vmatpush1.msra.mxu0 %v994
    %2064 = vmatprep.subr.mxu0 %v1029
    %2065 = vmatpush1.msra.mxu0 %v1028
    %2066 = vmatprep.subr.mxu0 %v1063
    %2067 = vmatpush1.msra.mxu0 %v1062
    %2068 = vmatprep.subr.mxu0 %v1097
    %2069 = vmatpush1.msra.mxu0 %v1096
    %2070 = vmatprep.subr.mxu0 %v1131
    %2071 = vmatpush1.msra.mxu0 %v1130
    %2072 = vmatprep.subr.mxu0 %v1165
    %2073 = vmatpush1.msra.mxu0 %v1164
    %2074 = vmatprep.subr.mxu0 %v1199
    %2075 = vmatpush1.msra.mxu0 %v1198
    %2076 = vmatprep.mubr.f32.mxu0 %v125
    %2077 = vmatmul.mubr.f32.gmra.mrb[0].mxu0 %v124
    %v2078 = vpop.f32.mrb[0].mxu0
    %v2079 = vadd.f32 %v1293, %v2078
    %v2080 = vpop.f32.mrb[0].mxu0
    %v2081 = vadd.f32 %v1297, %v2080
    %2082 = vmatprep.mubr.f32.mxu0 %v127
    %2083 = vmatmul.mubr.f32.gmra.mrb[0].mxu0 %v126
    %v2084 = vpop.f32.mrb[0].mxu0
    %v2085 = vadd.f32 %v1293, %v2084
    %v2086 = vpop.f32.mrb[0].mxu0
    %v2087 = vadd.f32 %v1297, %v2086
    %2088 = vdwg.mxu0
    %2089 = vmatprep.subr.mxu0 %v147
    %2090 = vmatpush1.msra.mxu0 %v146
    %2091 = vmatprep.subr.mxu0 %v181
    %2092 = vmatpush1.msra.mxu0 %v180
    %2093 = vmatprep.subr.mxu0 %v215
    %2094 = vmatpush1.msra.mxu0 %v214
    %2095 = vmatprep.subr.mxu0 %v249
    %2096 = vmatpush1.msra.mxu0 %v248
    %2097 = vmatprep.subr.mxu0 %v283
    %2098 = vmatpush1.msra.mxu0 %v282
    %2099 = vmatprep.subr.mxu0 %v317
    %2100 = vmatpush1.msra.mxu0 %v316
    %2101 = vmatprep.subr.mxu0 %v351
    %2102 = vmatpush1.msra.mxu0 %v350
    %2103 = vmatprep.subr.mxu0 %v385
    %2104 = vmatpush1.msra.mxu0 %v384
    %2105 = vmatprep.subr.mxu0 %v419
    %2106 = vmatpush1.msra.mxu0 %v418
    %2107 = vmatprep.subr.mxu0 %v453
    %2108 = vmatpush1.msra.mxu0 %v452
    %2109 = vmatprep.subr.mxu0 %v487
    %2110 = vmatpush1.msra.mxu0 %v486
    %2111 = vmatprep.subr.mxu0 %v521
    %2112 = vmatpush1.msra.mxu0 %v520
    %2113 = vmatprep.subr.mxu0 %v555
    %2114 = vmatpush1.msra.mxu0 %v554
    %2115 = vmatprep.subr.mxu0 %v589
    %2116 = vmatpush1.msra.mxu0 %v588
    %2117 = vmatprep.subr.mxu0 %v623
    %2118 = vmatpush1.msra.mxu0 %v622
    %2119 = vmatprep.subr.mxu0 %v657
    %2120 = vmatpush1.msra.mxu0 %v656
    %2121 = vmatprep.subr.mxu0 %v691
    %2122 = vmatpush1.msra.mxu0 %v690
    %2123 = vmatprep.subr.mxu0 %v725
    %2124 = vmatpush1.msra.mxu0 %v724
    %2125 = vmatprep.subr.mxu0 %v759
    %2126 = vmatpush1.msra.mxu0 %v758
    %2127 = vmatprep.subr.mxu0 %v793
    %2128 = vmatpush1.msra.mxu0 %v792
    %2129 = vmatprep.subr.mxu0 %v827
    %2130 = vmatpush1.msra.mxu0 %v826
    %2131 = vmatprep.subr.mxu0 %v861
    %2132 = vmatpush1.msra.mxu0 %v860
    %2133 = vmatprep.subr.mxu0 %v895
    %2134 = vmatpush1.msra.mxu0 %v894
    %2135 = vmatprep.subr.mxu0 %v929
    %2136 = vmatpush1.msra.mxu0 %v928
    %2137 = vmatprep.subr.mxu0 %v963
    %2138 = vmatpush1.msra.mxu0 %v962
    %2139 = vmatprep.subr.mxu0 %v997
    %2140 = vmatpush1.msra.mxu0 %v996
    %2141 = vmatprep.subr.mxu0 %v1031
    %2142 = vmatpush1.msra.mxu0 %v1030
    %2143 = vmatprep.subr.mxu0 %v1065
    %2144 = vmatpush1.msra.mxu0 %v1064
    %2145 = vmatprep.subr.mxu0 %v1099
    %2146 = vmatpush1.msra.mxu0 %v1098
    %2147 = vmatprep.subr.mxu0 %v1133
    %2148 = vmatpush1.msra.mxu0 %v1132
    %2149 = vmatprep.subr.mxu0 %v1167
    %2150 = vmatpush1.msra.mxu0 %v1166
    %2151 = vmatprep.subr.mxu0 %v1201
    %2152 = vmatpush1.msra.mxu0 %v1200
    %2153 = vmatprep.mubr.f32.mxu0 %v125
    %2154 = vmatmul.mubr.f32.gmra.mrb[0].mxu0 %v124
    %v2155 = vpop.f32.mrb[0].mxu0
    %v2156 = vadd.f32 %v1301, %v2155
    %v2157 = vpop.f32.mrb[0].mxu0
    %v2158 = vadd.f32 %v1305, %v2157
    %2159 = vmatprep.mubr.f32.mxu0 %v127
    %2160 = vmatmul.mubr.f32.gmra.mrb[0].mxu0 %v126
    %v2161 = vpop.f32.mrb[0].mxu0
    %v2162 = vadd.f32 %v1301, %v2161
    %v2163 = vpop.f32.mrb[0].mxu0
    %v2164 = vadd.f32 %v1305, %v2163
    %2165 = vdwg.mxu0
    %2166 = vmatprep.subr.mxu0 %v149
    %2167 = vmatpush1.msra.mxu0 %v148
    %2168 = vmatprep.subr.mxu0 %v183
    %2169 = vmatpush1.msra.mxu0 %v182
    %2170 = vmatprep.subr.mxu0 %v217
    %2171 = vmatpush1.msra.mxu0 %v216
    %2172 = vmatprep.subr.mxu0 %v251
    %2173 = vmatpush1.msra.mxu0 %v250
    %2174 = vmatprep.subr.mxu0 %v285
    %2175 = vmatpush1.msra.mxu0 %v284
    %2176 = vmatprep.subr.mxu0 %v319
    %2177 = vmatpush1.msra.mxu0 %v318
    %2178 = vmatprep.subr.mxu0 %v353
    %2179 = vmatpush1.msra.mxu0 %v352
    %2180 = vmatprep.subr.mxu0 %v387
    %2181 = vmatpush1.msra.mxu0 %v386
    %2182 = vmatprep.subr.mxu0 %v421
    %2183 = vmatpush1.msra.mxu0 %v420
    %2184 = vmatprep.subr.mxu0 %v455
    %2185 = vmatpush1.msra.mxu0 %v454
    %2186 = vmatprep.subr.mxu0 %v489
    %2187 = vmatpush1.msra.mxu0 %v488
    %2188 = vmatprep.subr.mxu0 %v523
    %2189 = vmatpush1.msra.mxu0 %v522
    %2190 = vmatprep.subr.mxu0 %v557
    %2191 = vmatpush1.msra.mxu0 %v556
    %2192 = vmatprep.subr.mxu0 %v591
    %2193 = vmatpush1.msra.mxu0 %v590
    %2194 = vmatprep.subr.mxu0 %v625
    %2195 = vmatpush1.msra.mxu0 %v624
    %2196 = vmatprep.subr.mxu0 %v659
    %2197 = vmatpush1.msra.mxu0 %v658
    %2198 = vmatprep.subr.mxu0 %v693
    %2199 = vmatpush1.msra.mxu0 %v692
    %2200 = vmatprep.subr.mxu0 %v727
    %2201 = vmatpush1.msra.mxu0 %v726
    %2202 = vmatprep.subr.mxu0 %v761
    %2203 = vmatpush1.msra.mxu0 %v760
    %2204 = vmatprep.subr.mxu0 %v795
    %2205 = vmatpush1.msra.mxu0 %v794
    %2206 = vmatprep.subr.mxu0 %v829
    %2207 = vmatpush1.msra.mxu0 %v828
    %2208 = vmatprep.subr.mxu0 %v863
    %2209 = vmatpush1.msra.mxu0 %v862
    %2210 = vmatprep.subr.mxu0 %v897
    %2211 = vmatpush1.msra.mxu0 %v896
    %2212 = vmatprep.subr.mxu0 %v931
    %2213 = vmatpush1.msra.mxu0 %v930
    %2214 = vmatprep.subr.mxu0 %v965
    %2215 = vmatpush1.msra.mxu0 %v964
    %2216 = vmatprep.subr.mxu0 %v999
    %2217 = vmatpush1.msra.mxu0 %v998
    %2218 = vmatprep.subr.mxu0 %v1033
    %2219 = vmatpush1.msra.mxu0 %v1032
    %2220 = vmatprep.subr.mxu0 %v1067
    %2221 = vmatpush1.msra.mxu0 %v1066
    %2222 = vmatprep.subr.mxu0 %v1101
    %2223 = vmatpush1.msra.mxu0 %v1100
    %2224 = vmatprep.subr.mxu0 %v1135
    %2225 = vmatpush1.msra.mxu0 %v1134
    %2226 = vmatprep.subr.mxu0 %v1169
    %2227 = vmatpush1.msra.mxu0 %v1168
    %2228 = vmatprep.subr.mxu0 %v1203
    %2229 = vmatpush1.msra.mxu0 %v1202
    %2230 = vmatprep.mubr.f32.mxu0 %v125
    %2231 = vmatmul.mubr.f32.gmra.mrb[0].mxu0 %v124
    %v2232 = vpop.f32.mrb[0].mxu0
    %v2233 = vadd.f32 %v1309, %v2232
    %v2234 = vpop.f32.mrb[0].mxu0
    %v2235 = vadd.f32 %v1313, %v2234
    %2236 = vmatprep.mubr.f32.mxu0 %v127
    %2237 = vmatmul.mubr.f32.gmra.mrb[0].mxu0 %v126
    %v2238 = vpop.f32.mrb[0].mxu0
    %v2239 = vadd.f32 %v1309, %v2238
    %v2240 = vpop.f32.mrb[0].mxu0
    %v2241 = vadd.f32 %v1313, %v2240
    %2242 = vdwg.mxu0
    %2243 = vmatprep.subr.mxu0 %v151
    %2244 = vmatpush1.msra.mxu0 %v150
    %2245 = vmatprep.subr.mxu0 %v185
    %2246 = vmatpush1.msra.mxu0 %v184
    %2247 = vmatprep.subr.mxu0 %v219
    %2248 = vmatpush1.msra.mxu0 %v218
    %2249 = vmatprep.subr.mxu0 %v253
    %2250 = vmatpush1.msra.mxu0 %v252
    %2251 = vmatprep.subr.mxu0 %v287
    %2252 = vmatpush1.msra.mxu0 %v286
    %2253 = vmatprep.subr.mxu0 %v321
    %2254 = vmatpush1.msra.mxu0 %v320
    %2255 = vmatprep.subr.mxu0 %v355
    %2256 = vmatpush1.msra.mxu0 %v354
    %2257 = vmatprep.subr.mxu0 %v389
    %2258 = vmatpush1.msra.mxu0 %v388
    %2259 = vmatprep.subr.mxu0 %v423
    %2260 = vmatpush1.msra.mxu0 %v422
    %2261 = vmatprep.subr.mxu0 %v457
    %2262 = vmatpush1.msra.mxu0 %v456
    %2263 = vmatprep.subr.mxu0 %v491
    %2264 = vmatpush1.msra.mxu0 %v490
    %2265 = vmatprep.subr.mxu0 %v525
    %2266 = vmatpush1.msra.mxu0 %v524
    %2267 = vmatprep.subr.mxu0 %v559
    %2268 = vmatpush1.msra.mxu0 %v558
    %2269 = vmatprep.subr.mxu0 %v593
    %2270 = vmatpush1.msra.mxu0 %v592
    %2271 = vmatprep.subr.mxu0 %v627
    %2272 = vmatpush1.msra.mxu0 %v626
    %2273 = vmatprep.subr.mxu0 %v661
    %2274 = vmatpush1.msra.mxu0 %v660
    %2275 = vmatprep.subr.mxu0 %v695
    %2276 = vmatpush1.msra.mxu0 %v694
    %2277 = vmatprep.subr.mxu0 %v729
    %2278 = vmatpush1.msra.mxu0 %v728
    %2279 = vmatprep.subr.mxu0 %v763
    %2280 = vmatpush1.msra.mxu0 %v762
    %2281 = vmatprep.subr.mxu0 %v797
    %2282 = vmatpush1.msra.mxu0 %v796
    %2283 = vmatprep.subr.mxu0 %v831
    %2284 = vmatpush1.msra.mxu0 %v830
    %2285 = vmatprep.subr.mxu0 %v865
    %2286 = vmatpush1.msra.mxu0 %v864
    %2287 = vmatprep.subr.mxu0 %v899
    %2288 = vmatpush1.msra.mxu0 %v898
    %2289 = vmatprep.subr.mxu0 %v933
    %2290 = vmatpush1.msra.mxu0 %v932
    %2291 = vmatprep.subr.mxu0 %v967
    %2292 = vmatpush1.msra.mxu0 %v966
    %2293 = vmatprep.subr.mxu0 %v1001
    %2294 = vmatpush1.msra.mxu0 %v1000
    %2295 = vmatprep.subr.mxu0 %v1035
    %2296 = vmatpush1.msra.mxu0 %v1034
    %2297 = vmatprep.subr.mxu0 %v1069
    %2298 = vmatpush1.msra.mxu0 %v1068
    %2299 = vmatprep.subr.mxu0 %v1103
    %2300 = vmatpush1.msra.mxu0 %v1102
    %2301 = vmatprep.subr.mxu0 %v1137
    %2302 = vmatpush1.msra.mxu0 %v1136
    %2303 = vmatprep.subr.mxu0 %v1171
    %2304 = vmatpush1.msra.mxu0 %v1170
    %2305 = vmatprep.subr.mxu0 %v1205
    %2306 = vmatpush1.msra.mxu0 %v1204
    %2307 = vmatprep.mubr.f32.mxu0 %v125
    %2308 = vmatmul.mubr.f32.gmra.mrb[0].mxu0 %v124
    %v2309 = vpop.f32.mrb[0].mxu0
    %v2310 = vadd.f32 %v1317, %v2309
    %v2311 = vpop.f32.mrb[0].mxu0
    %v2312 = vadd.f32 %v1321, %v2311
    %2313 = vmatprep.mubr.f32.mxu0 %v127
    %2314 = vmatmul.mubr.f32.gmra.mrb[0].mxu0 %v126
    %v2315 = vpop.f32.mrb[0].mxu0
    %v2316 = vadd.f32 %v1317, %v2315
    %v2317 = vpop.f32.mrb[0].mxu0
    %v2318 = vadd.f32 %v1321, %v2317
    %2319 = vdwg.mxu0
    %2320 = vmatprep.subr.mxu0 %v153
    %2321 = vmatpush1.msra.mxu0 %v152
    %2322 = vmatprep.subr.mxu0 %v187
    %2323 = vmatpush1.msra.mxu0 %v186
    %2324 = vmatprep.subr.mxu0 %v221
    %2325 = vmatpush1.msra.mxu0 %v220
    %2326 = vmatprep.subr.mxu0 %v255
    %2327 = vmatpush1.msra.mxu0 %v254
    %2328 = vmatprep.subr.mxu0 %v289
    %2329 = vmatpush1.msra.mxu0 %v288
    %2330 = vmatprep.subr.mxu0 %v323
    %2331 = vmatpush1.msra.mxu0 %v322
    %2332 = vmatprep.subr.mxu0 %v357
    %2333 = vmatpush1.msra.mxu0 %v356
    %2334 = vmatprep.subr.mxu0 %v391
    %2335 = vmatpush1.msra.mxu0 %v390
    %2336 = vmatprep.subr.mxu0 %v425
    %2337 = vmatpush1.msra.mxu0 %v424
    %2338 = vmatprep.subr.mxu0 %v459
    %2339 = vmatpush1.msra.mxu0 %v458
    %2340 = vmatprep.subr.mxu0 %v493
    %2341 = vmatpush1.msra.mxu0 %v492
    %2342 = vmatprep.subr.mxu0 %v527
    %2343 = vmatpush1.msra.mxu0 %v526
    %2344 = vmatprep.subr.mxu0 %v561
    %2345 = vmatpush1.msra.mxu0 %v560
    %2346 = vmatprep.subr.mxu0 %v595
    %2347 = vmatpush1.msra.mxu0 %v594
    %2348 = vmatprep.subr.mxu0 %v629
    %2349 = vmatpush1.msra.mxu0 %v628
    %2350 = vmatprep.subr.mxu0 %v663
    %2351 = vmatpush1.msra.mxu0 %v662
    %2352 = vmatprep.subr.mxu0 %v697
    %2353 = vmatpush1.msra.mxu0 %v696
    %2354 = vmatprep.subr.mxu0 %v731
    %2355 = vmatpush1.msra.mxu0 %v730
    %2356 = vmatprep.subr.mxu0 %v765
    %2357 = vmatpush1.msra.mxu0 %v764
    %2358 = vmatprep.subr.mxu0 %v799
    %2359 = vmatpush1.msra.mxu0 %v798
    %2360 = vmatprep.subr.mxu0 %v833
    %2361 = vmatpush1.msra.mxu0 %v832
    %2362 = vmatprep.subr.mxu0 %v867
    %2363 = vmatpush1.msra.mxu0 %v866
    %2364 = vmatprep.subr.mxu0 %v901
    %2365 = vmatpush1.msra.mxu0 %v900
    %2366 = vmatprep.subr.mxu0 %v935
    %2367 = vmatpush1.msra.mxu0 %v934
    %2368 = vmatprep.subr.mxu0 %v969
    %2369 = vmatpush1.msra.mxu0 %v968
    %2370 = vmatprep.subr.mxu0 %v1003
    %2371 = vmatpush1.msra.mxu0 %v1002
    %2372 = vmatprep.subr.mxu0 %v1037
    %2373 = vmatpush1.msra.mxu0 %v1036
    %2374 = vmatprep.subr.mxu0 %v1071
    %2375 = vmatpush1.msra.mxu0 %v1070
    %2376 = vmatprep.subr.mxu0 %v1105
    %2377 = vmatpush1.msra.mxu0 %v1104
    %2378 = vmatprep.subr.mxu0 %v1139
    %2379 = vmatpush1.msra.mxu0 %v1138
    %2380 = vmatprep.subr.mxu0 %v1173
    %2381 = vmatpush1.msra.mxu0 %v1172
    %2382 = vmatprep.subr.mxu0 %v1207
    %2383 = vmatpush1.msra.mxu0 %v1206
    %2384 = vmatprep.mubr.f32.mxu0 %v125
    %2385 = vmatmul.mubr.f32.gmra.mrb[0].mxu0 %v124
    %v2386 = vpop.f32.mrb[0].mxu0
    %v2387 = vadd.f32 %v1325, %v2386
    %v2388 = vpop.f32.mrb[0].mxu0
    %v2389 = vadd.f32 %v1329, %v2388
    %2390 = vmatprep.mubr.f32.mxu0 %v127
    %2391 = vmatmul.mubr.f32.gmra.mrb[0].mxu0 %v126
    %v2392 = vpop.f32.mrb[0].mxu0
    %v2393 = vadd.f32 %v1325, %v2392
    %v2394 = vpop.f32.mrb[0].mxu0
    %v2395 = vadd.f32 %v1329, %v2394
    %2396 = vdwg.mxu0
    %2397 = vmatprep.subr.mxu0 %v155
    %2398 = vmatpush1.msra.mxu0 %v154
    %2399 = vmatprep.subr.mxu0 %v189
    %2400 = vmatpush1.msra.mxu0 %v188
    %2401 = vmatprep.subr.mxu0 %v223
    %2402 = vmatpush1.msra.mxu0 %v222
    %2403 = vmatprep.subr.mxu0 %v257
    %2404 = vmatpush1.msra.mxu0 %v256
    %2405 = vmatprep.subr.mxu0 %v291
    %2406 = vmatpush1.msra.mxu0 %v290
    %2407 = vmatprep.subr.mxu0 %v325
    %2408 = vmatpush1.msra.mxu0 %v324
    %2409 = vmatprep.subr.mxu0 %v359
    %2410 = vmatpush1.msra.mxu0 %v358
    %2411 = vmatprep.subr.mxu0 %v393
    %2412 = vmatpush1.msra.mxu0 %v392
    %2413 = vmatprep.subr.mxu0 %v427
    %2414 = vmatpush1.msra.mxu0 %v426
    %2415 = vmatprep.subr.mxu0 %v461
    %2416 = vmatpush1.msra.mxu0 %v460
    %2417 = vmatprep.subr.mxu0 %v495
    %2418 = vmatpush1.msra.mxu0 %v494
    %2419 = vmatprep.subr.mxu0 %v529
    %2420 = vmatpush1.msra.mxu0 %v528
    %2421 = vmatprep.subr.mxu0 %v563
    %2422 = vmatpush1.msra.mxu0 %v562
    %2423 = vmatprep.subr.mxu0 %v597
    %2424 = vmatpush1.msra.mxu0 %v596
    %2425 = vmatprep.subr.mxu0 %v631
    %2426 = vmatpush1.msra.mxu0 %v630
    %2427 = vmatprep.subr.mxu0 %v665
    %2428 = vmatpush1.msra.mxu0 %v664
    %2429 = vmatprep.subr.mxu0 %v699
    %2430 = vmatpush1.msra.mxu0 %v698
    %2431 = vmatprep.subr.mxu0 %v733
    %2432 = vmatpush1.msra.mxu0 %v732
    %2433 = vmatprep.subr.mxu0 %v767
    %2434 = vmatpush1.msra.mxu0 %v766
    %2435 = vmatprep.subr.mxu0 %v801
    %2436 = vmatpush1.msra.mxu0 %v800
    %2437 = vmatprep.subr.mxu0 %v835
    %2438 = vmatpush1.msra.mxu0 %v834
    %2439 = vmatprep.subr.mxu0 %v869
    %2440 = vmatpush1.msra.mxu0 %v868
    %2441 = vmatprep.subr.mxu0 %v903
    %2442 = vmatpush1.msra.mxu0 %v902
    %2443 = vmatprep.subr.mxu0 %v937
    %2444 = vmatpush1.msra.mxu0 %v936
    %2445 = vmatprep.subr.mxu0 %v971
    %2446 = vmatpush1.msra.mxu0 %v970
    %2447 = vmatprep.subr.mxu0 %v1005
    %2448 = vmatpush1.msra.mxu0 %v1004
    %2449 = vmatprep.subr.mxu0 %v1039
    %2450 = vmatpush1.msra.mxu0 %v1038
    %2451 = vmatprep.subr.mxu0 %v1073
    %2452 = vmatpush1.msra.mxu0 %v1072
    %2453 = vmatprep.subr.mxu0 %v1107
    %2454 = vmatpush1.msra.mxu0 %v1106
    %2455 = vmatprep.subr.mxu0 %v1141
    %2456 = vmatpush1.msra.mxu0 %v1140
    %2457 = vmatprep.subr.mxu0 %v1175
    %2458 = vmatpush1.msra.mxu0 %v1174
    %2459 = vmatprep.subr.mxu0 %v1209
    %2460 = vmatpush1.msra.mxu0 %v1208
    %2461 = vmatprep.mubr.f32.mxu0 %v125
    %2462 = vmatmul.mubr.f32.gmra.mrb[0].mxu0 %v124
    %v2463 = vpop.f32.mrb[0].mxu0
    %v2464 = vadd.f32 %v1333, %v2463
    %v2465 = vpop.f32.mrb[0].mxu0
    %v2466 = vadd.f32 %v1337, %v2465
    %2467 = vmatprep.mubr.f32.mxu0 %v127
    %2468 = vmatmul.mubr.f32.gmra.mrb[0].mxu0 %v126
    %v2469 = vpop.f32.mrb[0].mxu0
    %v2470 = vadd.f32 %v1333, %v2469
    %v2471 = vpop.f32.mrb[0].mxu0
    %v2472 = vadd.f32 %v1337, %v2471
    %2473 = vdwg.mxu0
    %2474 = vmatprep.subr.mxu0 %v157
    %2475 = vmatpush1.msra.mxu0 %v156
    %2476 = vmatprep.subr.mxu0 %v191
    %2477 = vmatpush1.msra.mxu0 %v190
    %2478 = vmatprep.subr.mxu0 %v225
    %2479 = vmatpush1.msra.mxu0 %v224
    %2480 = vmatprep.subr.mxu0 %v259
    %2481 = vmatpush1.msra.mxu0 %v258
    %2482 = vmatprep.subr.mxu0 %v293
    %2483 = vmatpush1.msra.mxu0 %v292
    %2484 = vmatprep.subr.mxu0 %v327
    %2485 = vmatpush1.msra.mxu0 %v326
    %2486 = vmatprep.subr.mxu0 %v361
    %2487 = vmatpush1.msra.mxu0 %v360
    %2488 = vmatprep.subr.mxu0 %v395
    %2489 = vmatpush1.msra.mxu0 %v394
    %2490 = vmatprep.subr.mxu0 %v429
    %2491 = vmatpush1.msra.mxu0 %v428
    %2492 = vmatprep.subr.mxu0 %v463
    %2493 = vmatpush1.msra.mxu0 %v462
    %2494 = vmatprep.subr.mxu0 %v497
    %2495 = vmatpush1.msra.mxu0 %v496
    %2496 = vmatprep.subr.mxu0 %v531
    %2497 = vmatpush1.msra.mxu0 %v530
    %2498 = vmatprep.subr.mxu0 %v565
    %2499 = vmatpush1.msra.mxu0 %v564
    %2500 = vmatprep.subr.mxu0 %v599
    %2501 = vmatpush1.msra.mxu0 %v598
    %2502 = vmatprep.subr.mxu0 %v633
    %2503 = vmatpush1.msra.mxu0 %v632
    %2504 = vmatprep.subr.mxu0 %v667
    %2505 = vmatpush1.msra.mxu0 %v666
    %2506 = vmatprep.subr.mxu0 %v701
    %2507 = vmatpush1.msra.mxu0 %v700
    %2508 = vmatprep.subr.mxu0 %v735
    %2509 = vmatpush1.msra.mxu0 %v734
    %2510 = vmatprep.subr.mxu0 %v769
    %2511 = vmatpush1.msra.mxu0 %v768
    %2512 = vmatprep.subr.mxu0 %v803
    %2513 = vmatpush1.msra.mxu0 %v802
    %2514 = vmatprep.subr.mxu0 %v837
    %2515 = vmatpush1.msra.mxu0 %v836
    %2516 = vmatprep.subr.mxu0 %v871
    %2517 = vmatpush1.msra.mxu0 %v870
    %2518 = vmatprep.subr.mxu0 %v905
    %2519 = vmatpush1.msra.mxu0 %v904
    %2520 = vmatprep.subr.mxu0 %v939
    %2521 = vmatpush1.msra.mxu0 %v938
    %2522 = vmatprep.subr.mxu0 %v973
    %2523 = vmatpush1.msra.mxu0 %v972
    %2524 = vmatprep.subr.mxu0 %v1007
    %2525 = vmatpush1.msra.mxu0 %v1006
    %2526 = vmatprep.subr.mxu0 %v1041
    %2527 = vmatpush1.msra.mxu0 %v1040
    %2528 = vmatprep.subr.mxu0 %v1075
    %2529 = vmatpush1.msra.mxu0 %v1074
    %2530 = vmatprep.subr.mxu0 %v1109
    %2531 = vmatpush1.msra.mxu0 %v1108
    %2532 = vmatprep.subr.mxu0 %v1143
    %2533 = vmatpush1.msra.mxu0 %v1142
    %2534 = vmatprep.subr.mxu0 %v1177
    %2535 = vmatpush1.msra.mxu0 %v1176
    %2536 = vmatprep.subr.mxu0 %v1211
    %2537 = vmatpush1.msra.mxu0 %v1210
    %2538 = vmatprep.mubr.f32.mxu0 %v125
    %2539 = vmatmul.mubr.f32.gmra.mrb[0].mxu0 %v124
    %v2540 = vpop.f32.mrb[0].mxu0
    %v2541 = vadd.f32 %v1341, %v2540
    %v2542 = vpop.f32.mrb[0].mxu0
    %v2543 = vadd.f32 %v1345, %v2542
    %2544 = vmatprep.mubr.f32.mxu0 %v127
    %2545 = vmatmul.mubr.f32.gmra.mrb[0].mxu0 %v126
    %v2546 = vpop.f32.mrb[0].mxu0
    %v2547 = vadd.f32 %v1341, %v2546
    %v2548 = vpop.f32.mrb[0].mxu0
    %v2549 = vadd.f32 %v1345, %v2548
    %2550 = vdwg.mxu0
    %2551 = vmatprep.subr.mxu0 %v159
    %2552 = vmatpush1.msra.mxu0 %v158
    %2553 = vmatprep.subr.mxu0 %v193
    %2554 = vmatpush1.msra.mxu0 %v192
    %2555 = vmatprep.subr.mxu0 %v227
    %2556 = vmatpush1.msra.mxu0 %v226
    %2557 = vmatprep.subr.mxu0 %v261
    %2558 = vmatpush1.msra.mxu0 %v260
    %2559 = vmatprep.subr.mxu0 %v295
    %2560 = vmatpush1.msra.mxu0 %v294
    %2561 = vmatprep.subr.mxu0 %v329
    %2562 = vmatpush1.msra.mxu0 %v328
    %2563 = vmatprep.subr.mxu0 %v363
    %2564 = vmatpush1.msra.mxu0 %v362
    %2565 = vmatprep.subr.mxu0 %v397
    %2566 = vmatpush1.msra.mxu0 %v396
    %2567 = vmatprep.subr.mxu0 %v431
    %2568 = vmatpush1.msra.mxu0 %v430
    %2569 = vmatprep.subr.mxu0 %v465
    %2570 = vmatpush1.msra.mxu0 %v464
    %2571 = vmatprep.subr.mxu0 %v499
    %2572 = vmatpush1.msra.mxu0 %v498
    %2573 = vmatprep.subr.mxu0 %v533
    %2574 = vmatpush1.msra.mxu0 %v532
    %2575 = vmatprep.subr.mxu0 %v567
    %2576 = vmatpush1.msra.mxu0 %v566
    %2577 = vmatprep.subr.mxu0 %v601
    %2578 = vmatpush1.msra.mxu0 %v600
    %2579 = vmatprep.subr.mxu0 %v635
    %2580 = vmatpush1.msra.mxu0 %v634
    %2581 = vmatprep.subr.mxu0 %v669
    %2582 = vmatpush1.msra.mxu0 %v668
    %2583 = vmatprep.subr.mxu0 %v703
    %2584 = vmatpush1.msra.mxu0 %v702
    %2585 = vmatprep.subr.mxu0 %v737
    %2586 = vmatpush1.msra.mxu0 %v736
    %2587 = vmatprep.subr.mxu0 %v771
    %2588 = vmatpush1.msra.mxu0 %v770
    %2589 = vmatprep.subr.mxu0 %v805
    %2590 = vmatpush1.msra.mxu0 %v804
    %2591 = vmatprep.subr.mxu0 %v839
    %2592 = vmatpush1.msra.mxu0 %v838
    %2593 = vmatprep.subr.mxu0 %v873
    %2594 = vmatpush1.msra.mxu0 %v872
    %2595 = vmatprep.subr.mxu0 %v907
    %2596 = vmatpush1.msra.mxu0 %v906
    %2597 = vmatprep.subr.mxu0 %v941
    %2598 = vmatpush1.msra.mxu0 %v940
    %2599 = vmatprep.subr.mxu0 %v975
    %2600 = vmatpush1.msra.mxu0 %v974
    %2601 = vmatprep.subr.mxu0 %v1009
    %2602 = vmatpush1.msra.mxu0 %v1008
    %2603 = vmatprep.subr.mxu0 %v1043
    %2604 = vmatpush1.msra.mxu0 %v1042
    %2605 = vmatprep.subr.mxu0 %v1077
    %2606 = vmatpush1.msra.mxu0 %v1076
    %2607 = vmatprep.subr.mxu0 %v1111
    %2608 = vmatpush1.msra.mxu0 %v1110
    %2609 = vmatprep.subr.mxu0 %v1145
    %2610 = vmatpush1.msra.mxu0 %v1144
    %2611 = vmatprep.subr.mxu0 %v1179
    %2612 = vmatpush1.msra.mxu0 %v1178
    %2613 = vmatprep.subr.mxu0 %v1213
    %2614 = vmatpush1.msra.mxu0 %v1212
    %2615 = vmatprep.mubr.f32.mxu0 %v125
    %2616 = vmatmul.mubr.f32.gmra.mrb[0].mxu0 %v124
    %v2617 = vpop.f32.mrb[0].mxu0
    %v2618 = vadd.f32 %v1349, %v2617
    %v2619 = vpop.f32.mrb[0].mxu0
    %v2620 = vadd.f32 %v1353, %v2619
    %2621 = vmatprep.mubr.f32.mxu0 %v127
    %2622 = vmatmul.mubr.f32.gmra.mrb[0].mxu0 %v126
    %v2623 = vpop.f32.mrb[0].mxu0
    %v2624 = vadd.f32 %v1349, %v2623
    %v2625 = vpop.f32.mrb[0].mxu0
    %v2626 = vadd.f32 %v1353, %v2625
    %2627 = vdwg.mxu0
    %2628 = vmatprep.subr.mxu0 %v161
    %2629 = vmatpush1.msra.mxu0 %v160
    %2630 = vmatprep.subr.mxu0 %v195
    %2631 = vmatpush1.msra.mxu0 %v194
    %2632 = vmatprep.subr.mxu0 %v229
    %2633 = vmatpush1.msra.mxu0 %v228
    %2634 = vmatprep.subr.mxu0 %v263
    %2635 = vmatpush1.msra.mxu0 %v262
    %2636 = vmatprep.subr.mxu0 %v297
    %2637 = vmatpush1.msra.mxu0 %v296
    %2638 = vmatprep.subr.mxu0 %v331
    %2639 = vmatpush1.msra.mxu0 %v330
    %2640 = vmatprep.subr.mxu0 %v365
    %2641 = vmatpush1.msra.mxu0 %v364
    %2642 = vmatprep.subr.mxu0 %v399
    %2643 = vmatpush1.msra.mxu0 %v398
    %2644 = vmatprep.subr.mxu0 %v433
    %2645 = vmatpush1.msra.mxu0 %v432
    %2646 = vmatprep.subr.mxu0 %v467
    %2647 = vmatpush1.msra.mxu0 %v466
    %2648 = vmatprep.subr.mxu0 %v501
    %2649 = vmatpush1.msra.mxu0 %v500
    %2650 = vmatprep.subr.mxu0 %v535
    %2651 = vmatpush1.msra.mxu0 %v534
    %2652 = vmatprep.subr.mxu0 %v569
    %2653 = vmatpush1.msra.mxu0 %v568
    %2654 = vmatprep.subr.mxu0 %v603
    %2655 = vmatpush1.msra.mxu0 %v602
    %2656 = vmatprep.subr.mxu0 %v637
    %2657 = vmatpush1.msra.mxu0 %v636
    %2658 = vmatprep.subr.mxu0 %v671
    %2659 = vmatpush1.msra.mxu0 %v670
    %2660 = vmatprep.subr.mxu0 %v705
    %2661 = vmatpush1.msra.mxu0 %v704
    %2662 = vmatprep.subr.mxu0 %v739
    %2663 = vmatpush1.msra.mxu0 %v738
    %2664 = vmatprep.subr.mxu0 %v773
    %2665 = vmatpush1.msra.mxu0 %v772
    %2666 = vmatprep.subr.mxu0 %v807
    %2667 = vmatpush1.msra.mxu0 %v806
    %2668 = vmatprep.subr.mxu0 %v841
    %2669 = vmatpush1.msra.mxu0 %v840
    %2670 = vmatprep.subr.mxu0 %v875
    %2671 = vmatpush1.msra.mxu0 %v874
    %2672 = vmatprep.subr.mxu0 %v909
    %2673 = vmatpush1.msra.mxu0 %v908
    %2674 = vmatprep.subr.mxu0 %v943
    %2675 = vmatpush1.msra.mxu0 %v942
    %2676 = vmatprep.subr.mxu0 %v977
    %2677 = vmatpush1.msra.mxu0 %v976
    %2678 = vmatprep.subr.mxu0 %v1011
    %2679 = vmatpush1.msra.mxu0 %v1010
    %2680 = vmatprep.subr.mxu0 %v1045
    %2681 = vmatpush1.msra.mxu0 %v1044
    %2682 = vmatprep.subr.mxu0 %v1079
    %2683 = vmatpush1.msra.mxu0 %v1078
    %2684 = vmatprep.subr.mxu0 %v1113
    %2685 = vmatpush1.msra.mxu0 %v1112
    %2686 = vmatprep.subr.mxu0 %v1147
    %2687 = vmatpush1.msra.mxu0 %v1146
    %2688 = vmatprep.subr.mxu0 %v1181
    %2689 = vmatpush1.msra.mxu0 %v1180
    %2690 = vmatprep.subr.mxu0 %v1215
    %2691 = vmatpush1.msra.mxu0 %v1214
    %2692 = vmatprep.mubr.f32.mxu0 %v125
    %2693 = vmatmul.mubr.f32.gmra.mrb[0].mxu0 %v124
    %v2694 = vpop.f32.mrb[0].mxu0
    %v2695 = vadd.f32 %v1357, %v2694
    %v2696 = vpop.f32.mrb[0].mxu0
    %v2697 = vadd.f32 %v1361, %v2696
    %2698 = vmatprep.mubr.f32.mxu0 %v127
    %2699 = vmatmul.mubr.f32.gmra.mrb[0].mxu0 %v126
    %v2700 = vpop.f32.mrb[0].mxu0
    %v2701 = vadd.f32 %v1357, %v2700
    %v2702 = vpop.f32.mrb[0].mxu0
    %v2703 = vadd.f32 %v1361, %v2702
    %2704 = vdwg.mxu0
    %v2705 = vld [vmem:[%s3] sm:$0xff]
    %v2706 = vld [vmem:[%s3 + $0x8] sm:$0xff]
    %v2707 = vld [vmem:[%s3 + $0x10] sm:$0xff]
    %v2708 = vld [vmem:[%s3 + $0x18] sm:$0xff]
    %v2709 = vld [vmem:[%s3 + $0x20] sm:$0xff]
    %v2710 = vld [vmem:[%s3 + $0x28] sm:$0xff]
    %v2711 = vld [vmem:[%s3 + $0x30] sm:$0xff]
    %v2712 = vld [vmem:[%s3 + $0x38] sm:$0xff]
    %v2713 = vld [vmem:[%s3 + $0x40] sm:$0xff]
    %v2714 = vld [vmem:[%s3 + $0x48] sm:$0xff]
    %v2715 = vld [vmem:[%s3 + $0x50] sm:$0xff]
    %v2716 = vld [vmem:[%s3 + $0x58] sm:$0xff]
    %v2717 = vld [vmem:[%s3 + $0x60] sm:$0xff]
    %v2718 = vld [vmem:[%s3 + $0x68] sm:$0xff]
    %v2719 = vld [vmem:[%s3 + $0x70] sm:$0xff]
    %v2720 = vld [vmem:[%s3 + $0x78] sm:$0xff]
    %v2721 = vld [vmem:[%s3 + $0x80] sm:$0xff]
    %v2722 = vld [vmem:[%s3 + $0x88] sm:$0xff]
    %v2723 = vld [vmem:[%s3 + $0x90] sm:$0xff]
    %v2724 = vld [vmem:[%s3 + $0x98] sm:$0xff]
    %v2725 = vld [vmem:[%s3 + $0xa0] sm:$0xff]
    %v2726 = vld [vmem:[%s3 + $0xa8] sm:$0xff]
    %v2727 = vld [vmem:[%s3 + $0xb0] sm:$0xff]
    %v2728 = vld [vmem:[%s3 + $0xb8] sm:$0xff]
    %v2729 = vld [vmem:[%s3 + $0xc0] sm:$0xff]
    %v2730 = vld [vmem:[%s3 + $0xc8] sm:$0xff]
    %v2731 = vld [vmem:[%s3 + $0xd0] sm:$0xff]
    %v2732 = vld [vmem:[%s3 + $0xd8] sm:$0xff]
    %v2733 = vld [vmem:[%s3 + $0xe0] sm:$0xff]
    %v2734 = vld [vmem:[%s3 + $0xe8] sm:$0xff]
    %v2735 = vld [vmem:[%s3 + $0xf0] sm:$0xff]
    %v2736 = vld [vmem:[%s3 + $0xf8] sm:$0xff]
    %v2737 = vld [vmem:[#allocation6] sm:$0xff]
    %v2738 = vld [vmem:[#allocation6 + $0x8] sm:$0xff]
    %v2739 = vld [vmem:[#allocation6 + $0x10] sm:$0xff]
    %v2740 = vld [vmem:[#allocation6 + $0x18] sm:$0xff]
    %v2741 = vld [vmem:[#allocation6 + $0x20] sm:$0xff]
    %v2742 = vld [vmem:[#allocation6 + $0x28] sm:$0xff]
    %v2743 = vld [vmem:[#allocation6 + $0x30] sm:$0xff]
    %v2744 = vld [vmem:[#allocation6 + $0x38] sm:$0xff]
    %v2745 = vld [vmem:[#allocation6 + $0x40] sm:$0xff]
    %v2746 = vld [vmem:[#allocation6 + $0x48] sm:$0xff]
    %v2747 = vld [vmem:[#allocation6 + $0x50] sm:$0xff]
    %v2748 = vld [vmem:[#allocation6 + $0x58] sm:$0xff]
    %v2749 = vld [vmem:[#allocation6 + $0x60] sm:$0xff]
    %v2750 = vld [vmem:[#allocation6 + $0x68] sm:$0xff]
    %v2751 = vld [vmem:[#allocation6 + $0x70] sm:$0xff]
    %v2752 = vld [vmem:[#allocation6 + $0x78] sm:$0xff]
    %v2753 = vmul.f32 %v1463, %v1540
    %v2754 = vmul.f32 %v1465, %v1542
    %v2755 = vmul.f32 %v1469, %v1546
    %v2756 = vmul.f32 %v1471, %v1548
    %2757 = vmatprep.subr.mxu0 0.0
    %2758 = vmatpush1.msra.mxu0 %v2705
    %2759 = vmatprep.subr.mxu0 0.0
    %2760 = vmatpush1.msra.mxu0 %v2706
    %2761 = vmatprep.subr.mxu0 0.0
    %2762 = vmatpush1.msra.mxu0 %v2707
    %2763 = vmatprep.subr.mxu0 0.0
    %2764 = vmatpush1.msra.mxu0 %v2708
    %2765 = vmatprep.subr.mxu0 0.0
    %2766 = vmatpush1.msra.mxu0 %v2709
    %2767 = vmatprep.subr.mxu0 0.0
    %2768 = vmatpush1.msra.mxu0 %v2710
    %2769 = vmatprep.subr.mxu0 0.0
    %2770 = vmatpush1.msra.mxu0 %v2711
    %2771 = vmatprep.subr.mxu0 0.0
    %2772 = vmatpush1.msra.mxu0 %v2712
    %2773 = vmatprep.subr.mxu0 0.0
    %2774 = vmatpush1.msra.mxu0 %v2713
    %2775 = vmatprep.subr.mxu0 0.0
    %2776 = vmatpush1.msra.mxu0 %v2714
    %2777 = vmatprep.subr.mxu0 0.0
    %2778 = vmatpush1.msra.mxu0 %v2715
    %2779 = vmatprep.subr.mxu0 0.0
    %2780 = vmatpush1.msra.mxu0 %v2716
    %2781 = vmatprep.subr.mxu0 0.0
    %2782 = vmatpush1.msra.mxu0 %v2717
    %2783 = vmatprep.subr.mxu0 0.0
    %2784 = vmatpush1.msra.mxu0 %v2718
    %2785 = vmatprep.subr.mxu0 0.0
    %2786 = vmatpush1.msra.mxu0 %v2719
    %2787 = vmatprep.subr.mxu0 0.0
    %2788 = vmatpush1.msra.mxu0 %v2720
    %2789 = vmatprep.subr.mxu0 0.0
    %2790 = vmatpush1.msra.mxu0 %v2721
    %2791 = vmatprep.subr.mxu0 0.0
    %2792 = vmatpush1.msra.mxu0 %v2722
    %2793 = vmatprep.subr.mxu0 0.0
    %2794 = vmatpush1.msra.mxu0 %v2723
    %2795 = vmatprep.subr.mxu0 0.0
    %2796 = vmatpush1.msra.mxu0 %v2724
    %2797 = vmatprep.subr.mxu0 0.0
    %2798 = vmatpush1.msra.mxu0 %v2725
    %2799 = vmatprep.subr.mxu0 0.0
    %2800 = vmatpush1.msra.mxu0 %v2726
    %2801 = vmatprep.subr.mxu0 0.0
    %2802 = vmatpush1.msra.mxu0 %v2727
    %2803 = vmatprep.subr.mxu0 0.0
    %2804 = vmatpush1.msra.mxu0 %v2728
    %2805 = vmatprep.subr.mxu0 0.0
    %2806 = vmatpush1.msra.mxu0 %v2729
    %2807 = vmatprep.subr.mxu0 0.0
    %2808 = vmatpush1.msra.mxu0 %v2730
    %2809 = vmatprep.subr.mxu0 0.0
    %2810 = vmatpush1.msra.mxu0 %v2731
    %2811 = vmatprep.subr.mxu0 0.0
    %2812 = vmatpush1.msra.mxu0 %v2732
    %2813 = vmatprep.subr.mxu0 0.0
    %2814 = vmatpush1.msra.mxu0 %v2733
    %2815 = vmatprep.subr.mxu0 0.0
    %2816 = vmatpush1.msra.mxu0 %v2734
    %2817 = vmatprep.subr.mxu0 0.0
    %2818 = vmatpush1.msra.mxu0 %v2735
    %2819 = vmatprep.subr.mxu0 0.0
    %2820 = vmatpush1.msra.mxu0 %v2736
    %2821 = vmatprep.mubr.f32.mxu0 %v2754
    %2822 = vmatmul.mubr.f32.gmra.mrb[0].mxu0 %v2753
    %v2823 = vpop.f32.mrb[0].mxu0
    %v2824 = vadd.f32 0.0, %v2823
    %v2825 = vpop.f32.mrb[0].mxu0
    %2826 = vmatprep.mubr.f32.mxu0 %v2756
    %2827 = vmatmul.mubr.f32.gmra.mrb[0].mxu0 %v2755
    %v2828 = vpop.f32.mrb[0].mxu0
    %v2829 = vadd.f32 0.0, %v2828
    %v2830 = vpop.f32.mrb[0].mxu0
    %2831 = vdwg.mxu0
    %v2832 = vmul.f32 %v1463, %v1617
    %v2833 = vmul.f32 %v1465, %v1619
    %v2834 = vmul.f32 %v1469, %v1623
    %v2835 = vmul.f32 %v1471, %v1625
    %2836 = vmatprep.subr.mxu0 0.0
    %2837 = vmatpush1.msra.mxu0 %v2705
    %2838 = vmatprep.subr.mxu0 0.0
    %2839 = vmatpush1.msra.mxu0 %v2706
    %2840 = vmatprep.subr.mxu0 0.0
    %2841 = vmatpush1.msra.mxu0 %v2707
    %2842 = vmatprep.subr.mxu0 0.0
    %2843 = vmatpush1.msra.mxu0 %v2708
    %2844 = vmatprep.subr.mxu0 0.0
    %2845 = vmatpush1.msra.mxu0 %v2709
    %2846 = vmatprep.subr.mxu0 0.0
    %2847 = vmatpush1.msra.mxu0 %v2710
    %2848 = vmatprep.subr.mxu0 0.0
    %2849 = vmatpush1.msra.mxu0 %v2711
    %2850 = vmatprep.subr.mxu0 0.0
    %2851 = vmatpush1.msra.mxu0 %v2712
    %2852 = vmatprep.subr.mxu0 0.0
    %2853 = vmatpush1.msra.mxu0 %v2713
    %2854 = vmatprep.subr.mxu0 0.0
    %2855 = vmatpush1.msra.mxu0 %v2714
    %2856 = vmatprep.subr.mxu0 0.0
    %2857 = vmatpush1.msra.mxu0 %v2715
    %2858 = vmatprep.subr.mxu0 0.0
    %2859 = vmatpush1.msra.mxu0 %v2716
    %2860 = vmatprep.subr.mxu0 0.0
    %2861 = vmatpush1.msra.mxu0 %v2717
    %2862 = vmatprep.subr.mxu0 0.0
    %2863 = vmatpush1.msra.mxu0 %v2718
    %2864 = vmatprep.subr.mxu0 0.0
    %2865 = vmatpush1.msra.mxu0 %v2719
    %2866 = vmatprep.subr.mxu0 0.0
    %2867 = vmatpush1.msra.mxu0 %v2720
    %2868 = vmatprep.subr.mxu0 0.0
    %2869 = vmatpush1.msra.mxu0 %v2721
    %2870 = vmatprep.subr.mxu0 0.0
    %2871 = vmatpush1.msra.mxu0 %v2722
    %2872 = vmatprep.subr.mxu0 0.0
    %2873 = vmatpush1.msra.mxu0 %v2723
    %2874 = vmatprep.subr.mxu0 0.0
    %2875 = vmatpush1.msra.mxu0 %v2724
    %2876 = vmatprep.subr.mxu0 0.0
    %2877 = vmatpush1.msra.mxu0 %v2725
    %2878 = vmatprep.subr.mxu0 0.0
    %2879 = vmatpush1.msra.mxu0 %v2726
    %2880 = vmatprep.subr.mxu0 0.0
    %2881 = vmatpush1.msra.mxu0 %v2727
    %2882 = vmatprep.subr.mxu0 0.0
    %2883 = vmatpush1.msra.mxu0 %v2728
    %2884 = vmatprep.subr.mxu0 0.0
    %2885 = vmatpush1.msra.mxu0 %v2729
    %2886 = vmatprep.subr.mxu0 0.0
    %2887 = vmatpush1.msra.mxu0 %v2730
    %2888 = vmatprep.subr.mxu0 0.0
    %2889 = vmatpush1.msra.mxu0 %v2731
    %2890 = vmatprep.subr.mxu0 0.0
    %2891 = vmatpush1.msra.mxu0 %v2732
    %2892 = vmatprep.subr.mxu0 0.0
    %2893 = vmatpush1.msra.mxu0 %v2733
    %2894 = vmatprep.subr.mxu0 0.0
    %2895 = vmatpush1.msra.mxu0 %v2734
    %2896 = vmatprep.subr.mxu0 0.0
    %2897 = vmatpush1.msra.mxu0 %v2735
    %2898 = vmatprep.subr.mxu0 0.0
    %2899 = vmatpush1.msra.mxu0 %v2736
    %2900 = vmatprep.mubr.f32.mxu0 %v2833
    %2901 = vmatmul.mubr.f32.gmra.mrb[0].mxu0 %v2832
    %v2902 = vpop.f32.mrb[0].mxu0
    %v2903 = vadd.f32 0.0, %v2902
    %v2904 = vpop.f32.mrb[0].mxu0
    %2905 = vmatprep.mubr.f32.mxu0 %v2835
    %2906 = vmatmul.mubr.f32.gmra.mrb[0].mxu0 %v2834
    %v2907 = vpop.f32.mrb[0].mxu0
    %v2908 = vadd.f32 0.0, %v2907
    %v2909 = vpop.f32.mrb[0].mxu0
    %2910 = vdwg.mxu0
    %v2911 = vmul.f32 %v1463, %v1694
    %v2912 = vmul.f32 %v1465, %v1696
    %v2913 = vmul.f32 %v1469, %v1700
    %v2914 = vmul.f32 %v1471, %v1702
    %2915 = vmatprep.subr.mxu0 0.0
    %2916 = vmatpush1.msra.mxu0 %v2705
    %2917 = vmatprep.subr.mxu0 0.0
    %2918 = vmatpush1.msra.mxu0 %v2706
    %2919 = vmatprep.subr.mxu0 0.0
    %2920 = vmatpush1.msra.mxu0 %v2707
    %2921 = vmatprep.subr.mxu0 0.0
    %2922 = vmatpush1.msra.mxu0 %v2708
    %2923 = vmatprep.subr.mxu0 0.0
    %2924 = vmatpush1.msra.mxu0 %v2709
    %2925 = vmatprep.subr.mxu0 0.0
    %2926 = vmatpush1.msra.mxu0 %v2710
    %2927 = vmatprep.subr.mxu0 0.0
    %2928 = vmatpush1.msra.mxu0 %v2711
    %2929 = vmatprep.subr.mxu0 0.0
    %2930 = vmatpush1.msra.mxu0 %v2712
    %2931 = vmatprep.subr.mxu0 0.0
    %2932 = vmatpush1.msra.mxu0 %v2713
    %2933 = vmatprep.subr.mxu0 0.0
    %2934 = vmatpush1.msra.mxu0 %v2714
    %2935 = vmatprep.subr.mxu0 0.0
    %2936 = vmatpush1.msra.mxu0 %v2715
    %2937 = vmatprep.subr.mxu0 0.0
    %2938 = vmatpush1.msra.mxu0 %v2716
    %2939 = vmatprep.subr.mxu0 0.0
    %2940 = vmatpush1.msra.mxu0 %v2717
    %2941 = vmatprep.subr.mxu0 0.0
    %2942 = vmatpush1.msra.mxu0 %v2718
    %2943 = vmatprep.subr.mxu0 0.0
    %2944 = vmatpush1.msra.mxu0 %v2719
    %2945 = vmatprep.subr.mxu0 0.0
    %2946 = vmatpush1.msra.mxu0 %v2720
    %2947 = vmatprep.subr.mxu0 0.0
    %2948 = vmatpush1.msra.mxu0 %v2721
    %2949 = vmatprep.subr.mxu0 0.0
    %2950 = vmatpush1.msra.mxu0 %v2722
    %2951 = vmatprep.subr.mxu0 0.0
    %2952 = vmatpush1.msra.mxu0 %v2723
    %2953 = vmatprep.subr.mxu0 0.0
    %2954 = vmatpush1.msra.mxu0 %v2724
    %2955 = vmatprep.subr.mxu0 0.0
    %2956 = vmatpush1.msra.mxu0 %v2725
    %2957 = vmatprep.subr.mxu0 0.0
    %2958 = vmatpush1.msra.mxu0 %v2726
    %2959 = vmatprep.subr.mxu0 0.0
    %2960 = vmatpush1.msra.mxu0 %v2727
    %2961 = vmatprep.subr.mxu0 0.0
    %2962 = vmatpush1.msra.mxu0 %v2728
    %2963 = vmatprep.subr.mxu0 0.0
    %2964 = vmatpush1.msra.mxu0 %v2729
    %2965 = vmatprep.subr.mxu0 0.0
    %2966 = vmatpush1.msra.mxu0 %v2730
    %2967 = vmatprep.subr.mxu0 0.0
    %2968 = vmatpush1.msra.mxu0 %v2731
    %2969 = vmatprep.subr.mxu0 0.0
    %2970 = vmatpush1.msra.mxu0 %v2732
    %2971 = vmatprep.subr.mxu0 0.0
    %2972 = vmatpush1.msra.mxu0 %v2733
    %2973 = vmatprep.subr.mxu0 0.0
    %2974 = vmatpush1.msra.mxu0 %v2734
    %2975 = vmatprep.subr.mxu0 0.0
    %2976 = vmatpush1.msra.mxu0 %v2735
    %2977 = vmatprep.subr.mxu0 0.0
    %2978 = vmatpush1.msra.mxu0 %v2736
    %2979 = vmatprep.mubr.f32.mxu0 %v2912
    %2980 = vmatmul.mubr.f32.gmra.mrb[0].mxu0 %v2911
    %v2981 = vpop.f32.mrb[0].mxu0
    %v2982 = vadd.f32 0.0, %v2981
    %v2983 = vpop.f32.mrb[0].mxu0
    %2984 = vmatprep.mubr.f32.mxu0 %v2914
    %2985 = vmatmul.mubr.f32.gmra.mrb[0].mxu0 %v2913
    %v2986 = vpop.f32.mrb[0].mxu0
    %v2987 = vadd.f32 0.0, %v2986
    %v2988 = vpop.f32.mrb[0].mxu0
    %2989 = vdwg.mxu0
    %v2990 = vmul.f32 %v1463, %v1771
    %v2991 = vmul.f32 %v1465, %v1773
    %v2992 = vmul.f32 %v1469, %v1777
    %v2993 = vmul.f32 %v1471, %v1779
    %2994 = vmatprep.subr.mxu0 0.0
    %2995 = vmatpush1.msra.mxu0 %v2705
    %2996 = vmatprep.subr.mxu0 0.0
    %2997 = vmatpush1.msra.mxu0 %v2706
    %2998 = vmatprep.subr.mxu0 0.0
    %2999 = vmatpush1.msra.mxu0 %v2707
    %3000 = vmatprep.subr.mxu0 0.0
    %3001 = vmatpush1.msra.mxu0 %v2708
    %3002 = vmatprep.subr.mxu0 0.0
    %3003 = vmatpush1.msra.mxu0 %v2709
    %3004 = vmatprep.subr.mxu0 0.0
    %3005 = vmatpush1.msra.mxu0 %v2710
    %3006 = vmatprep.subr.mxu0 0.0
    %3007 = vmatpush1.msra.mxu0 %v2711
    %3008 = vmatprep.subr.mxu0 0.0
    %3009 = vmatpush1.msra.mxu0 %v2712
    %3010 = vmatprep.subr.mxu0 0.0
    %3011 = vmatpush1.msra.mxu0 %v2713
    %3012 = vmatprep.subr.mxu0 0.0
    %3013 = vmatpush1.msra.mxu0 %v2714
    %3014 = vmatprep.subr.mxu0 0.0
    %3015 = vmatpush1.msra.mxu0 %v2715
    %3016 = vmatprep.subr.mxu0 0.0
    %3017 = vmatpush1.msra.mxu0 %v2716
    %3018 = vmatprep.subr.mxu0 0.0
    %3019 = vmatpush1.msra.mxu0 %v2717
    %3020 = vmatprep.subr.mxu0 0.0
    %3021 = vmatpush1.msra.mxu0 %v2718
    %3022 = vmatprep.subr.mxu0 0.0
    %3023 = vmatpush1.msra.mxu0 %v2719
    %3024 = vmatprep.subr.mxu0 0.0
    %3025 = vmatpush1.msra.mxu0 %v2720
    %3026 = vmatprep.subr.mxu0 0.0
    %3027 = vmatpush1.msra.mxu0 %v2721
    %3028 = vmatprep.subr.mxu0 0.0
    %3029 = vmatpush1.msra.mxu0 %v2722
    %3030 = vmatprep.subr.mxu0 0.0
    %3031 = vmatpush1.msra.mxu0 %v2723
    %3032 = vmatprep.subr.mxu0 0.0
    %3033 = vmatpush1.msra.mxu0 %v2724
    %3034 = vmatprep.subr.mxu0 0.0
    %3035 = vmatpush1.msra.mxu0 %v2725
    %3036 = vmatprep.subr.mxu0 0.0
    %3037 = vmatpush1.msra.mxu0 %v2726
    %3038 = vmatprep.subr.mxu0 0.0
    %3039 = vmatpush1.msra.mxu0 %v2727
    %3040 = vmatprep.subr.mxu0 0.0
    %3041 = vmatpush1.msra.mxu0 %v2728
    %3042 = vmatprep.subr.mxu0 0.0
    %3043 = vmatpush1.msra.mxu0 %v2729
    %3044 = vmatprep.subr.mxu0 0.0
    %3045 = vmatpush1.msra.mxu0 %v2730
    %3046 = vmatprep.subr.mxu0 0.0
    %3047 = vmatpush1.msra.mxu0 %v2731
    %3048 = vmatprep.subr.mxu0 0.0
    %3049 = vmatpush1.msra.mxu0 %v2732
    %3050 = vmatprep.subr.mxu0 0.0
    %3051 = vmatpush1.msra.mxu0 %v2733
    %3052 = vmatprep.subr.mxu0 0.0
    %3053 = vmatpush1.msra.mxu0 %v2734
    %3054 = vmatprep.subr.mxu0 0.0
    %3055 = vmatpush1.msra.mxu0 %v2735
    %3056 = vmatprep.subr.mxu0 0.0
    %3057 = vmatpush1.msra.mxu0 %v2736
    %3058 = vmatprep.mubr.f32.mxu0 %v2991
    %3059 = vmatmul.mubr.f32.gmra.mrb[0].mxu0 %v2990
    %v3060 = vpop.f32.mrb[0].mxu0
    %v3061 = vadd.f32 0.0, %v3060
    %v3062 = vpop.f32.mrb[0].mxu0
    %3063 = vmatprep.mubr.f32.mxu0 %v2993
    %3064 = vmatmul.mubr.f32.gmra.mrb[0].mxu0 %v2992
    %v3065 = vpop.f32.mrb[0].mxu0
    %v3066 = vadd.f32 0.0, %v3065
    %v3067 = vpop.f32.mrb[0].mxu0
    %3068 = vdwg.mxu0
    %v3069 = vmul.f32 %v1463, %v1848
    %v3070 = vmul.f32 %v1465, %v1850
    %v3071 = vmul.f32 %v1469, %v1854
    %v3072 = vmul.f32 %v1471, %v1856
    %3073 = vmatprep.subr.mxu0 0.0
    %3074 = vmatpush1.msra.mxu0 %v2705
    %3075 = vmatprep.subr.mxu0 0.0
    %3076 = vmatpush1.msra.mxu0 %v2706
    %3077 = vmatprep.subr.mxu0 0.0
    %3078 = vmatpush1.msra.mxu0 %v2707
    %3079 = vmatprep.subr.mxu0 0.0
    %3080 = vmatpush1.msra.mxu0 %v2708
    %3081 = vmatprep.subr.mxu0 0.0
    %3082 = vmatpush1.msra.mxu0 %v2709
    %3083 = vmatprep.subr.mxu0 0.0
    %3084 = vmatpush1.msra.mxu0 %v2710
    %3085 = vmatprep.subr.mxu0 0.0
    %3086 = vmatpush1.msra.mxu0 %v2711
    %3087 = vmatprep.subr.mxu0 0.0
    %3088 = vmatpush1.msra.mxu0 %v2712
    %3089 = vmatprep.subr.mxu0 0.0
    %3090 = vmatpush1.msra.mxu0 %v2713
    %3091 = vmatprep.subr.mxu0 0.0
    %3092 = vmatpush1.msra.mxu0 %v2714
    %3093 = vmatprep.subr.mxu0 0.0
    %3094 = vmatpush1.msra.mxu0 %v2715
    %3095 = vmatprep.subr.mxu0 0.0
    %3096 = vmatpush1.msra.mxu0 %v2716
    %3097 = vmatprep.subr.mxu0 0.0
    %3098 = vmatpush1.msra.mxu0 %v2717
    %3099 = vmatprep.subr.mxu0 0.0
    %3100 = vmatpush1.msra.mxu0 %v2718
    %3101 = vmatprep.subr.mxu0 0.0
    %3102 = vmatpush1.msra.mxu0 %v2719
    %3103 = vmatprep.subr.mxu0 0.0
    %3104 = vmatpush1.msra.mxu0 %v2720
    %3105 = vmatprep.subr.mxu0 0.0
    %3106 = vmatpush1.msra.mxu0 %v2721
    %3107 = vmatprep.subr.mxu0 0.0
    %3108 = vmatpush1.msra.mxu0 %v2722
    %3109 = vmatprep.subr.mxu0 0.0
    %3110 = vmatpush1.msra.mxu0 %v2723
    %3111 = vmatprep.subr.mxu0 0.0
    %3112 = vmatpush1.msra.mxu0 %v2724
    %3113 = vmatprep.subr.mxu0 0.0
    %3114 = vmatpush1.msra.mxu0 %v2725
    %3115 = vmatprep.subr.mxu0 0.0
    %3116 = vmatpush1.msra.mxu0 %v2726
    %3117 = vmatprep.subr.mxu0 0.0
    %3118 = vmatpush1.msra.mxu0 %v2727
    %3119 = vmatprep.subr.mxu0 0.0
    %3120 = vmatpush1.msra.mxu0 %v2728
    %3121 = vmatprep.subr.mxu0 0.0
    %3122 = vmatpush1.msra.mxu0 %v2729
    %3123 = vmatprep.subr.mxu0 0.0
    %3124 = vmatpush1.msra.mxu0 %v2730
    %3125 = vmatprep.subr.mxu0 0.0
    %3126 = vmatpush1.msra.mxu0 %v2731
    %3127 = vmatprep.subr.mxu0 0.0
    %3128 = vmatpush1.msra.mxu0 %v2732
    %3129 = vmatprep.subr.mxu0 0.0
    %3130 = vmatpush1.msra.mxu0 %v2733
    %3131 = vmatprep.subr.mxu0 0.0
    %3132 = vmatpush1.msra.mxu0 %v2734
    %3133 = vmatprep.subr.mxu0 0.0
    %3134 = vmatpush1.msra.mxu0 %v2735
    %3135 = vmatprep.subr.mxu0 0.0
    %3136 = vmatpush1.msra.mxu0 %v2736
    %3137 = vmatprep.mubr.f32.mxu0 %v3070
    %3138 = vmatmul.mubr.f32.gmra.mrb[0].mxu0 %v3069
    %v3139 = vpop.f32.mrb[0].mxu0
    %v3140 = vadd.f32 0.0, %v3139
    %v3141 = vpop.f32.mrb[0].mxu0
    %3142 = vmatprep.mubr.f32.mxu0 %v3072
    %3143 = vmatmul.mubr.f32.gmra.mrb[0].mxu0 %v3071
    %v3144 = vpop.f32.mrb[0].mxu0
    %v3145 = vadd.f32 0.0, %v3144
    %v3146 = vpop.f32.mrb[0].mxu0
    %3147 = vdwg.mxu0
    %v3148 = vmul.f32 %v1463, %v1925
    %v3149 = vmul.f32 %v1465, %v1927
    %v3150 = vmul.f32 %v1469, %v1931
    %v3151 = vmul.f32 %v1471, %v1933
    %3152 = vmatprep.subr.mxu0 0.0
    %3153 = vmatpush1.msra.mxu0 %v2705
    %3154 = vmatprep.subr.mxu0 0.0
    %3155 = vmatpush1.msra.mxu0 %v2706
    %3156 = vmatprep.subr.mxu0 0.0
    %3157 = vmatpush1.msra.mxu0 %v2707
    %3158 = vmatprep.subr.mxu0 0.0
    %3159 = vmatpush1.msra.mxu0 %v2708
    %3160 = vmatprep.subr.mxu0 0.0
    %3161 = vmatpush1.msra.mxu0 %v2709
    %3162 = vmatprep.subr.mxu0 0.0
    %3163 = vmatpush1.msra.mxu0 %v2710
    %3164 = vmatprep.subr.mxu0 0.0
    %3165 = vmatpush1.msra.mxu0 %v2711
    %3166 = vmatprep.subr.mxu0 0.0
    %3167 = vmatpush1.msra.mxu0 %v2712
    %3168 = vmatprep.subr.mxu0 0.0
    %3169 = vmatpush1.msra.mxu0 %v2713
    %3170 = vmatprep.subr.mxu0 0.0
    %3171 = vmatpush1.msra.mxu0 %v2714
    %3172 = vmatprep.subr.mxu0 0.0
    %3173 = vmatpush1.msra.mxu0 %v2715
    %3174 = vmatprep.subr.mxu0 0.0
    %3175 = vmatpush1.msra.mxu0 %v2716
    %3176 = vmatprep.subr.mxu0 0.0
    %3177 = vmatpush1.msra.mxu0 %v2717
    %3178 = vmatprep.subr.mxu0 0.0
    %3179 = vmatpush1.msra.mxu0 %v2718
    %3180 = vmatprep.subr.mxu0 0.0
    %3181 = vmatpush1.msra.mxu0 %v2719
    %3182 = vmatprep.subr.mxu0 0.0
    %3183 = vmatpush1.msra.mxu0 %v2720
    %3184 = vmatprep.subr.mxu0 0.0
    %3185 = vmatpush1.msra.mxu0 %v2721
    %3186 = vmatprep.subr.mxu0 0.0
    %3187 = vmatpush1.msra.mxu0 %v2722
    %3188 = vmatprep.subr.mxu0 0.0
    %3189 = vmatpush1.msra.mxu0 %v2723
    %3190 = vmatprep.subr.mxu0 0.0
    %3191 = vmatpush1.msra.mxu0 %v2724
    %3192 = vmatprep.subr.mxu0 0.0
    %3193 = vmatpush1.msra.mxu0 %v2725
    %3194 = vmatprep.subr.mxu0 0.0
    %3195 = vmatpush1.msra.mxu0 %v2726
    %3196 = vmatprep.subr.mxu0 0.0
    %3197 = vmatpush1.msra.mxu0 %v2727
    %3198 = vmatprep.subr.mxu0 0.0
    %3199 = vmatpush1.msra.mxu0 %v2728
    %3200 = vmatprep.subr.mxu0 0.0
    %3201 = vmatpush1.msra.mxu0 %v2729
    %3202 = vmatprep.subr.mxu0 0.0
    %3203 = vmatpush1.msra.mxu0 %v2730
    %3204 = vmatprep.subr.mxu0 0.0
    %3205 = vmatpush1.msra.mxu0 %v2731
    %3206 = vmatprep.subr.mxu0 0.0
    %3207 = vmatpush1.msra.mxu0 %v2732
    %3208 = vmatprep.subr.mxu0 0.0
    %3209 = vmatpush1.msra.mxu0 %v2733
    %3210 = vmatprep.subr.mxu0 0.0
    %3211 = vmatpush1.msra.mxu0 %v2734
    %3212 = vmatprep.subr.mxu0 0.0
    %3213 = vmatpush1.msra.mxu0 %v2735
    %3214 = vmatprep.subr.mxu0 0.0
    %3215 = vmatpush1.msra.mxu0 %v2736
    %3216 = vmatprep.mubr.f32.mxu0 %v3149
    %3217 = vmatmul.mubr.f32.gmra.mrb[0].mxu0 %v3148
    %v3218 = vpop.f32.mrb[0].mxu0
    %v3219 = vadd.f32 0.0, %v3218
    %v3220 = vpop.f32.mrb[0].mxu0
    %3221 = vmatprep.mubr.f32.mxu0 %v3151
    %3222 = vmatmul.mubr.f32.gmra.mrb[0].mxu0 %v3150
    %v3223 = vpop.f32.mrb[0].mxu0
    %v3224 = vadd.f32 0.0, %v3223
    %v3225 = vpop.f32.mrb[0].mxu0
    %3226 = vdwg.mxu0
    %v3227 = vmul.f32 %v1463, %v2002
    %v3228 = vmul.f32 %v1465, %v2004
    %v3229 = vmul.f32 %v1469, %v2008
    %v3230 = vmul.f32 %v1471, %v2010
    %3231 = vmatprep.subr.mxu0 0.0
    %3232 = vmatpush1.msra.mxu0 %v2705
    %3233 = vmatprep.subr.mxu0 0.0
    %3234 = vmatpush1.msra.mxu0 %v2706
    %3235 = vmatprep.subr.mxu0 0.0
    %3236 = vmatpush1.msra.mxu0 %v2707
    %3237 = vmatprep.subr.mxu0 0.0
    %3238 = vmatpush1.msra.mxu0 %v2708
    %3239 = vmatprep.subr.mxu0 0.0
    %3240 = vmatpush1.msra.mxu0 %v2709
    %3241 = vmatprep.subr.mxu0 0.0
    %3242 = vmatpush1.msra.mxu0 %v2710
    %3243 = vmatprep.subr.mxu0 0.0
    %3244 = vmatpush1.msra.mxu0 %v2711
    %3245 = vmatprep.subr.mxu0 0.0
    %3246 = vmatpush1.msra.mxu0 %v2712
    %3247 = vmatprep.subr.mxu0 0.0
    %3248 = vmatpush1.msra.mxu0 %v2713
    %3249 = vmatprep.subr.mxu0 0.0
    %3250 = vmatpush1.msra.mxu0 %v2714
    %3251 = vmatprep.subr.mxu0 0.0
    %3252 = vmatpush1.msra.mxu0 %v2715
    %3253 = vmatprep.subr.mxu0 0.0
    %3254 = vmatpush1.msra.mxu0 %v2716
    %3255 = vmatprep.subr.mxu0 0.0
    %3256 = vmatpush1.msra.mxu0 %v2717
    %3257 = vmatprep.subr.mxu0 0.0
    %3258 = vmatpush1.msra.mxu0 %v2718
    %3259 = vmatprep.subr.mxu0 0.0
    %3260 = vmatpush1.msra.mxu0 %v2719
    %3261 = vmatprep.subr.mxu0 0.0
    %3262 = vmatpush1.msra.mxu0 %v2720
    %3263 = vmatprep.subr.mxu0 0.0
    %3264 = vmatpush1.msra.mxu0 %v2721
    %3265 = vmatprep.subr.mxu0 0.0
    %3266 = vmatpush1.msra.mxu0 %v2722
    %3267 = vmatprep.subr.mxu0 0.0
    %3268 = vmatpush1.msra.mxu0 %v2723
    %3269 = vmatprep.subr.mxu0 0.0
    %3270 = vmatpush1.msra.mxu0 %v2724
    %3271 = vmatprep.subr.mxu0 0.0
    %3272 = vmatpush1.msra.mxu0 %v2725
    %3273 = vmatprep.subr.mxu0 0.0
    %3274 = vmatpush1.msra.mxu0 %v2726
    %3275 = vmatprep.subr.mxu0 0.0
    %3276 = vmatpush1.msra.mxu0 %v2727
    %3277 = vmatprep.subr.mxu0 0.0
    %3278 = vmatpush1.msra.mxu0 %v2728
    %3279 = vmatprep.subr.mxu0 0.0
    %3280 = vmatpush1.msra.mxu0 %v2729
    %3281 = vmatprep.subr.mxu0 0.0
    %3282 = vmatpush1.msra.mxu0 %v2730
    %3283 = vmatprep.subr.mxu0 0.0
    %3284 = vmatpush1.msra.mxu0 %v2731
    %3285 = vmatprep.subr.mxu0 0.0
    %3286 = vmatpush1.msra.mxu0 %v2732
    %3287 = vmatprep.subr.mxu0 0.0
    %3288 = vmatpush1.msra.mxu0 %v2733
    %3289 = vmatprep.subr.mxu0 0.0
    %3290 = vmatpush1.msra.mxu0 %v2734
    %3291 = vmatprep.subr.mxu0 0.0
    %3292 = vmatpush1.msra.mxu0 %v2735
    %3293 = vmatprep.subr.mxu0 0.0
    %3294 = vmatpush1.msra.mxu0 %v2736
    %3295 = vmatprep.mubr.f32.mxu0 %v3228
    %3296 = vmatmul.mubr.f32.gmra.mrb[0].mxu0 %v3227
    %v3297 = vpop.f32.mrb[0].mxu0
    %v3298 = vadd.f32 0.0, %v3297
    %v3299 = vpop.f32.mrb[0].mxu0
    %3300 = vmatprep.mubr.f32.mxu0 %v3230
    %3301 = vmatmul.mubr.f32.gmra.mrb[0].mxu0 %v3229
    %v3302 = vpop.f32.mrb[0].mxu0
    %v3303 = vadd.f32 0.0, %v3302
    %v3304 = vpop.f32.mrb[0].mxu0
    %3305 = vdwg.mxu0
    %v3306 = vmul.f32 %v1463, %v2079
    %v3307 = vmul.f32 %v1465, %v2081
    %v3308 = vmul.f32 %v1469, %v2085
    %v3309 = vmul.f32 %v1471, %v2087
    %3310 = vmatprep.subr.mxu0 0.0
    %3311 = vmatpush1.msra.mxu0 %v2705
    %3312 = vmatprep.subr.mxu0 0.0
    %3313 = vmatpush1.msra.mxu0 %v2706
    %3314 = vmatprep.subr.mxu0 0.0
    %3315 = vmatpush1.msra.mxu0 %v2707
    %3316 = vmatprep.subr.mxu0 0.0
    %3317 = vmatpush1.msra.mxu0 %v2708
    %3318 = vmatprep.subr.mxu0 0.0
    %3319 = vmatpush1.msra.mxu0 %v2709
    %3320 = vmatprep.subr.mxu0 0.0
    %3321 = vmatpush1.msra.mxu0 %v2710
    %3322 = vmatprep.subr.mxu0 0.0
    %3323 = vmatpush1.msra.mxu0 %v2711
    %3324 = vmatprep.subr.mxu0 0.0
    %3325 = vmatpush1.msra.mxu0 %v2712
    %3326 = vmatprep.subr.mxu0 0.0
    %3327 = vmatpush1.msra.mxu0 %v2713
    %3328 = vmatprep.subr.mxu0 0.0
    %3329 = vmatpush1.msra.mxu0 %v2714
    %3330 = vmatprep.subr.mxu0 0.0
    %3331 = vmatpush1.msra.mxu0 %v2715
    %3332 = vmatprep.subr.mxu0 0.0
    %3333 = vmatpush1.msra.mxu0 %v2716
    %3334 = vmatprep.subr.mxu0 0.0
    %3335 = vmatpush1.msra.mxu0 %v2717
    %3336 = vmatprep.subr.mxu0 0.0
    %3337 = vmatpush1.msra.mxu0 %v2718
    %3338 = vmatprep.subr.mxu0 0.0
    %3339 = vmatpush1.msra.mxu0 %v2719
    %3340 = vmatprep.subr.mxu0 0.0
    %3341 = vmatpush1.msra.mxu0 %v2720
    %3342 = vmatprep.subr.mxu0 0.0
    %3343 = vmatpush1.msra.mxu0 %v2721
    %3344 = vmatprep.subr.mxu0 0.0
    %3345 = vmatpush1.msra.mxu0 %v2722
    %3346 = vmatprep.subr.mxu0 0.0
    %3347 = vmatpush1.msra.mxu0 %v2723
    %3348 = vmatprep.subr.mxu0 0.0
    %3349 = vmatpush1.msra.mxu0 %v2724
    %3350 = vmatprep.subr.mxu0 0.0
    %3351 = vmatpush1.msra.mxu0 %v2725
    %3352 = vmatprep.subr.mxu0 0.0
    %3353 = vmatpush1.msra.mxu0 %v2726
    %3354 = vmatprep.subr.mxu0 0.0
    %3355 = vmatpush1.msra.mxu0 %v2727
    %3356 = vmatprep.subr.mxu0 0.0
    %3357 = vmatpush1.msra.mxu0 %v2728
    %3358 = vmatprep.subr.mxu0 0.0
    %3359 = vmatpush1.msra.mxu0 %v2729
    %3360 = vmatprep.subr.mxu0 0.0
    %3361 = vmatpush1.msra.mxu0 %v2730
    %3362 = vmatprep.subr.mxu0 0.0
    %3363 = vmatpush1.msra.mxu0 %v2731
    %3364 = vmatprep.subr.mxu0 0.0
    %3365 = vmatpush1.msra.mxu0 %v2732
    %3366 = vmatprep.subr.mxu0 0.0
    %3367 = vmatpush1.msra.mxu0 %v2733
    %3368 = vmatprep.subr.mxu0 0.0
    %3369 = vmatpush1.msra.mxu0 %v2734
    %3370 = vmatprep.subr.mxu0 0.0
    %3371 = vmatpush1.msra.mxu0 %v2735
    %3372 = vmatprep.subr.mxu0 0.0
    %3373 = vmatpush1.msra.mxu0 %v2736
    %3374 = vmatprep.mubr.f32.mxu0 %v3307
    %3375 = vmatmul.mubr.f32.gmra.mrb[0].mxu0 %v3306
    %v3376 = vpop.f32.mrb[0].mxu0
    %v3377 = vadd.f32 0.0, %v3376
    %v3378 = vpop.f32.mrb[0].mxu0
    %3379 = vmatprep.mubr.f32.mxu0 %v3309
    %3380 = vmatmul.mubr.f32.gmra.mrb[0].mxu0 %v3308
    %v3381 = vpop.f32.mrb[0].mxu0
    %v3382 = vadd.f32 0.0, %v3381
    %v3383 = vpop.f32.mrb[0].mxu0
    %3384 = vdwg.mxu0
    %v3385 = vmax.f32 %v2824, %v2903
    %v3386 = vmax.f32 %v2829, %v2908
    %v3387 = vmax.f32 %v3385, %v2982
    %v3388 = vmax.f32 %v3386, %v2987
    %v3389 = vmax.f32 %v3387, %v3061
    %v3390 = vmax.f32 %v3388, %v3066
    %v3391 = vmax.f32 %v3389, %v3140
    %v3392 = vmax.f32 %v3390, %v3145
    %v3393 = vmax.f32 %v3391, %v3219
    %v3394 = vmax.f32 %v3392, %v3224
    %v3395 = vmax.f32 %v3393, %v3298
    %v3396 = vmax.f32 %v3394, %v3303
    %v3397 = vmax.f32 %v3395, %v3377
    %v3398 = vmax.f32 %v3396, %v3382
    %v3399 = vsub.f32 %v2824, %v3397
    %v3400 = vsub.f32 %v2829, %v3398
    %v3401 = vmul.f32 %v3399, 1.442695
    %v3402 = vpow.pop %v3401
    %v3403 = vmul.f32 %v3400, 1.442695
    %v3404 = vpow.pop %v3403
    %v3405 = vadd.f32 %v3402, 0.0
    %v3406 = vadd.f32 %v3404, 0.0
    %vm3407 = vcmask 523264
    %v3409 = vsel %vm3407, %v3402, 0
    %v3412 = vsel %vm3407, %v3404, 0
    %3414 = vmatprep.subr.mxu0 %v2738
    %3415 = vmatpush1.msra.mxu0 %v2737
    %3416 = vmatprep.subr.mxu0 %v2740
    %3417 = vmatpush1.msra.mxu0 %v2739
    %3418 = vmatprep.subr.mxu0 %v2742
    %3419 = vmatpush1.msra.mxu0 %v2741
    %3420 = vmatprep.subr.mxu0 %v2744
    %3421 = vmatpush1.msra.mxu0 %v2743
    %3422 = vmatprep.subr.mxu0 %v2746
    %3423 = vmatpush1.msra.mxu0 %v2745
    %3424 = vmatprep.subr.mxu0 %v2748
    %3425 = vmatpush1.msra.mxu0 %v2747
    %3426 = vmatprep.subr.mxu0 %v2750
    %3427 = vmatpush1.msra.mxu0 %v2749
    %3428 = vmatprep.subr.mxu0 %v2752
    %3429 = vmatpush1.msra.mxu0 %v2751
    %3430 = vmatprep.subr.mxu0 0.0
    %3431 = vmatpush1.msra.mxu0 0.0
    %3432 = vmatprep.subr.mxu0 0.0
    %3433 = vmatpush1.msra.mxu0 0.0
    %3434 = vmatprep.subr.mxu0 0.0
    %3435 = vmatpush1.msra.mxu0 0.0
    %3436 = vmatprep.subr.mxu0 0.0
    %3437 = vmatpush1.msra.mxu0 0.0
    %3438 = vmatprep.subr.mxu0 0.0
    %3439 = vmatpush1.msra.mxu0 0.0
    %3440 = vmatprep.subr.mxu0 0.0
    %3441 = vmatpush1.msra.mxu0 0.0
    %3442 = vmatprep.subr.mxu0 0.0
    %3443 = vmatpush1.msra.mxu0 0.0
    %3444 = vmatprep.subr.mxu0 0.0
    %3445 = vmatpush1.msra.mxu0 0.0
    %3446 = vmatprep.subr.mxu0 0.0
    %3447 = vmatpush1.msra.mxu0 0.0
    %3448 = vmatprep.subr.mxu0 0.0
    %3449 = vmatpush1.msra.mxu0 0.0
    %3450 = vmatprep.subr.mxu0 0.0
    %3451 = vmatpush1.msra.mxu0 0.0
    %3452 = vmatprep.subr.mxu0 0.0
    %3453 = vmatpush1.msra.mxu0 0.0
    %3454 = vmatprep.subr.mxu0 0.0
    %3455 = vmatpush1.msra.mxu0 0.0
    %3456 = vmatprep.subr.mxu0 0.0
    %3457 = vmatpush1.msra.mxu0 0.0
    %3458 = vmatprep.subr.mxu0 0.0
    %3459 = vmatpush1.msra.mxu0 0.0
    %3460 = vmatprep.subr.mxu0 0.0
    %3461 = vmatpush1.msra.mxu0 0.0
    %3462 = vmatprep.subr.mxu0 0.0
    %3463 = vmatpush1.msra.mxu0 0.0
    %3464 = vmatprep.subr.mxu0 0.0
    %3465 = vmatpush1.msra.mxu0 0.0
    %3466 = vmatprep.subr.mxu0 0.0
    %3467 = vmatpush1.msra.mxu0 0.0
    %3468 = vmatprep.subr.mxu0 0.0
    %3469 = vmatpush1.msra.mxu0 0.0
    %3470 = vmatprep.subr.mxu0 0.0
    %3471 = vmatpush1.msra.mxu0 0.0
    %3472 = vmatprep.subr.mxu0 0.0
    %3473 = vmatpush1.msra.mxu0 0.0
    %3474 = vmatprep.subr.mxu0 0.0
    %3475 = vmatpush1.msra.mxu0 0.0
    %3476 = vmatprep.subr.mxu0 0.0
    %3477 = vmatpush1.msra.mxu0 0.0
    %3478 = vmatprep.mubr.f32.mxu0 0.0
    %3479 = vmatmul.mubr.f32.gmra.mrb[0].mxu0 %v3409
    %v3480 = vpop.f32.mrb[0].mxu0
    %v3481 = vadd.f32 0.0, %v3480
    %v3482 = vpop.f32.mrb[0].mxu0
    %v3483 = vadd.f32 0.0, %v3482
    %3484 = vmatprep.mubr.f32.mxu0 0.0
    %3485 = vmatmul.mubr.f32.gmra.mrb[0].mxu0 %v3412
    %v3486 = vpop.f32.mrb[0].mxu0
    %v3487 = vadd.f32 0.0, %v3486
    %v3488 = vpop.f32.mrb[0].mxu0
    %v3489 = vadd.f32 0.0, %v3488
    %3490 = vdwg.mxu0
    %v3491 = vmul.f32 %v3481, %v2156
    %v3492 = vmul.f32 %v3483, %v2158
    %v3493 = vmul.f32 %v3487, %v2162
    %v3494 = vmul.f32 %v3489, %v2164
    %v3495 = vadd.f32 %v3491, 0.0
    %v3496 = vadd.f32 %v3492, 0.0
    %v3497 = vadd.f32 %v3493, 0.0
    %v3498 = vadd.f32 %v3494, 0.0
    %v3499 = vsub.f32 %v2903, %v3397
    %v3500 = vsub.f32 %v2908, %v3398
    %v3501 = vmul.f32 %v3499, 1.442695
    %v3502 = vpow.pop %v3501
    %v3503 = vmul.f32 %v3500, 1.442695
    %v3504 = vpow.pop %v3503
    %v3505 = vadd.f32 %v3405, %v3502
    %v3506 = vadd.f32 %v3406, %v3504
    %v3508 = vsel %vm3407, %v3502, 0
    %v3511 = vsel %vm3407, %v3504, 0
    %3513 = vmatprep.subr.mxu0 %v2738
    %3514 = vmatpush1.msra.mxu0 %v2737
    %3515 = vmatprep.subr.mxu0 %v2740
    %3516 = vmatpush1.msra.mxu0 %v2739
    %3517 = vmatprep.subr.mxu0 %v2742
    %3518 = vmatpush1.msra.mxu0 %v2741
    %3519 = vmatprep.subr.mxu0 %v2744
    %3520 = vmatpush1.msra.mxu0 %v2743
    %3521 = vmatprep.subr.mxu0 %v2746
    %3522 = vmatpush1.msra.mxu0 %v2745
    %3523 = vmatprep.subr.mxu0 %v2748
    %3524 = vmatpush1.msra.mxu0 %v2747
    %3525 = vmatprep.subr.mxu0 %v2750
    %3526 = vmatpush1.msra.mxu0 %v2749
    %3527 = vmatprep.subr.mxu0 %v2752
    %3528 = vmatpush1.msra.mxu0 %v2751
    %3529 = vmatprep.subr.mxu0 0.0
    %3530 = vmatpush1.msra.mxu0 0.0
    %3531 = vmatprep.subr.mxu0 0.0
    %3532 = vmatpush1.msra.mxu0 0.0
    %3533 = vmatprep.subr.mxu0 0.0
    %3534 = vmatpush1.msra.mxu0 0.0
    %3535 = vmatprep.subr.mxu0 0.0
    %3536 = vmatpush1.msra.mxu0 0.0
    %3537 = vmatprep.subr.mxu0 0.0
    %3538 = vmatpush1.msra.mxu0 0.0
    %3539 = vmatprep.subr.mxu0 0.0
    %3540 = vmatpush1.msra.mxu0 0.0
    %3541 = vmatprep.subr.mxu0 0.0
    %3542 = vmatpush1.msra.mxu0 0.0
    %3543 = vmatprep.subr.mxu0 0.0
    %3544 = vmatpush1.msra.mxu0 0.0
    %3545 = vmatprep.subr.mxu0 0.0
    %3546 = vmatpush1.msra.mxu0 0.0
    %3547 = vmatprep.subr.mxu0 0.0
    %3548 = vmatpush1.msra.mxu0 0.0
    %3549 = vmatprep.subr.mxu0 0.0
    %3550 = vmatpush1.msra.mxu0 0.0
    %3551 = vmatprep.subr.mxu0 0.0
    %3552 = vmatpush1.msra.mxu0 0.0
    %3553 = vmatprep.subr.mxu0 0.0
    %3554 = vmatpush1.msra.mxu0 0.0
    %3555 = vmatprep.subr.mxu0 0.0
    %3556 = vmatpush1.msra.mxu0 0.0
    %3557 = vmatprep.subr.mxu0 0.0
    %3558 = vmatpush1.msra.mxu0 0.0
    %3559 = vmatprep.subr.mxu0 0.0
    %3560 = vmatpush1.msra.mxu0 0.0
    %3561 = vmatprep.subr.mxu0 0.0
    %3562 = vmatpush1.msra.mxu0 0.0
    %3563 = vmatprep.subr.mxu0 0.0
    %3564 = vmatpush1.msra.mxu0 0.0
    %3565 = vmatprep.subr.mxu0 0.0
    %3566 = vmatpush1.msra.mxu0 0.0
    %3567 = vmatprep.subr.mxu0 0.0
    %3568 = vmatpush1.msra.mxu0 0.0
    %3569 = vmatprep.subr.mxu0 0.0
    %3570 = vmatpush1.msra.mxu0 0.0
    %3571 = vmatprep.subr.mxu0 0.0
    %3572 = vmatpush1.msra.mxu0 0.0
    %3573 = vmatprep.subr.mxu0 0.0
    %3574 = vmatpush1.msra.mxu0 0.0
    %3575 = vmatprep.subr.mxu0 0.0
    %3576 = vmatpush1.msra.mxu0 0.0
    %3577 = vmatprep.mubr.f32.mxu0 0.0
    %3578 = vmatmul.mubr.f32.gmra.mrb[0].mxu0 %v3508
    %v3579 = vpop.f32.mrb[0].mxu0
    %v3580 = vadd.f32 0.0, %v3579
    %v3581 = vpop.f32.mrb[0].mxu0
    %v3582 = vadd.f32 0.0, %v3581
    %3583 = vmatprep.mubr.f32.mxu0 0.0
    %3584 = vmatmul.mubr.f32.gmra.mrb[0].mxu0 %v3511
    %v3585 = vpop.f32.mrb[0].mxu0
    %v3586 = vadd.f32 0.0, %v3585
    %v3587 = vpop.f32.mrb[0].mxu0
    %v3588 = vadd.f32 0.0, %v3587
    %3589 = vdwg.mxu0
    %v3590 = vmul.f32 %v3580, %v2233
    %v3591 = vmul.f32 %v3582, %v2235
    %v3592 = vmul.f32 %v3586, %v2239
    %v3593 = vmul.f32 %v3588, %v2241
    %v3594 = vadd.f32 %v3495, %v3590
    %v3595 = vadd.f32 %v3496, %v3591
    %v3596 = vadd.f32 %v3497, %v3592
    %v3597 = vadd.f32 %v3498, %v3593
    %v3598 = vsub.f32 %v2982, %v3397
    %v3599 = vsub.f32 %v2987, %v3398
    %v3600 = vmul.f32 %v3598, 1.442695
    %v3601 = vpow.pop %v3600
    %v3602 = vmul.f32 %v3599, 1.442695
    %v3603 = vpow.pop %v3602
    %v3604 = vadd.f32 %v3505, %v3601
    %v3605 = vadd.f32 %v3506, %v3603
    %v3607 = vsel %vm3407, %v3601, 0
    %v3610 = vsel %vm3407, %v3603, 0
    %3612 = vmatprep.subr.mxu0 %v2738
    %3613 = vmatpush1.msra.mxu0 %v2737
    %3614 = vmatprep.subr.mxu0 %v2740
    %3615 = vmatpush1.msra.mxu0 %v2739
    %3616 = vmatprep.subr.mxu0 %v2742
    %3617 = vmatpush1.msra.mxu0 %v2741
    %3618 = vmatprep.subr.mxu0 %v2744
    %3619 = vmatpush1.msra.mxu0 %v2743
    %3620 = vmatprep.subr.mxu0 %v2746
    %3621 = vmatpush1.msra.mxu0 %v2745
    %3622 = vmatprep.subr.mxu0 %v2748
    %3623 = vmatpush1.msra.mxu0 %v2747
    %3624 = vmatprep.subr.mxu0 %v2750
    %3625 = vmatpush1.msra.mxu0 %v2749
    %3626 = vmatprep.subr.mxu0 %v2752
    %3627 = vmatpush1.msra.mxu0 %v2751
    %3628 = vmatprep.subr.mxu0 0.0
    %3629 = vmatpush1.msra.mxu0 0.0
    %3630 = vmatprep.subr.mxu0 0.0
    %3631 = vmatpush1.msra.mxu0 0.0
    %3632 = vmatprep.subr.mxu0 0.0
    %3633 = vmatpush1.msra.mxu0 0.0
    %3634 = vmatprep.subr.mxu0 0.0
    %3635 = vmatpush1.msra.mxu0 0.0
    %3636 = vmatprep.subr.mxu0 0.0
    %3637 = vmatpush1.msra.mxu0 0.0
    %3638 = vmatprep.subr.mxu0 0.0
    %3639 = vmatpush1.msra.mxu0 0.0
    %3640 = vmatprep.subr.mxu0 0.0
    %3641 = vmatpush1.msra.mxu0 0.0
    %3642 = vmatprep.subr.mxu0 0.0
    %3643 = vmatpush1.msra.mxu0 0.0
    %3644 = vmatprep.subr.mxu0 0.0
    %3645 = vmatpush1.msra.mxu0 0.0
    %3646 = vmatprep.subr.mxu0 0.0
    %3647 = vmatpush1.msra.mxu0 0.0
    %3648 = vmatprep.subr.mxu0 0.0
    %3649 = vmatpush1.msra.mxu0 0.0
    %3650 = vmatprep.subr.mxu0 0.0
    %3651 = vmatpush1.msra.mxu0 0.0
    %3652 = vmatprep.subr.mxu0 0.0
    %3653 = vmatpush1.msra.mxu0 0.0
    %3654 = vmatprep.subr.mxu0 0.0
    %3655 = vmatpush1.msra.mxu0 0.0
    %3656 = vmatprep.subr.mxu0 0.0
    %3657 = vmatpush1.msra.mxu0 0.0
    %3658 = vmatprep.subr.mxu0 0.0
    %3659 = vmatpush1.msra.mxu0 0.0
    %3660 = vmatprep.subr.mxu0 0.0
    %3661 = vmatpush1.msra.mxu0 0.0
    %3662 = vmatprep.subr.mxu0 0.0
    %3663 = vmatpush1.msra.mxu0 0.0
    %3664 = vmatprep.subr.mxu0 0.0
    %3665 = vmatpush1.msra.mxu0 0.0
    %3666 = vmatprep.subr.mxu0 0.0
    %3667 = vmatpush1.msra.mxu0 0.0
    %3668 = vmatprep.subr.mxu0 0.0
    %3669 = vmatpush1.msra.mxu0 0.0
    %3670 = vmatprep.subr.mxu0 0.0
    %3671 = vmatpush1.msra.mxu0 0.0
    %3672 = vmatprep.subr.mxu0 0.0
    %3673 = vmatpush1.msra.mxu0 0.0
    %3674 = vmatprep.subr.mxu0 0.0
    %3675 = vmatpush1.msra.mxu0 0.0
    %3676 = vmatprep.mubr.f32.mxu0 0.0
    %3677 = vmatmul.mubr.f32.gmra.mrb[0].mxu0 %v3607
    %v3678 = vpop.f32.mrb[0].mxu0
    %v3679 = vadd.f32 0.0, %v3678
    %v3680 = vpop.f32.mrb[0].mxu0
    %v3681 = vadd.f32 0.0, %v3680
    %3682 = vmatprep.mubr.f32.mxu0 0.0
    %3683 = vmatmul.mubr.f32.gmra.mrb[0].mxu0 %v3610
    %v3684 = vpop.f32.mrb[0].mxu0
    %v3685 = vadd.f32 0.0, %v3684
    %v3686 = vpop.f32.mrb[0].mxu0
    %v3687 = vadd.f32 0.0, %v3686
    %3688 = vdwg.mxu0
    %v3689 = vmul.f32 %v3679, %v2310
    %v3690 = vmul.f32 %v3681, %v2312
    %v3691 = vmul.f32 %v3685, %v2316
    %v3692 = vmul.f32 %v3687, %v2318
    %v3693 = vadd.f32 %v3594, %v3689
    %v3694 = vadd.f32 %v3595, %v3690
    %v3695 = vadd.f32 %v3596, %v3691
    %v3696 = vadd.f32 %v3597, %v3692
    %v3697 = vsub.f32 %v3061, %v3397
    %v3698 = vsub.f32 %v3066, %v3398
    %v3699 = vmul.f32 %v3697, 1.442695
    %v3700 = vpow.pop %v3699
    %v3701 = vmul.f32 %v3698, 1.442695
    %v3702 = vpow.pop %v3701
    %v3703 = vadd.f32 %v3604, %v3700
    %v3704 = vadd.f32 %v3605, %v3702
    %v3706 = vsel %vm3407, %v3700, 0
    %v3709 = vsel %vm3407, %v3702, 0
    %3711 = vmatprep.subr.mxu0 %v2738
    %3712 = vmatpush1.msra.mxu0 %v2737
    %3713 = vmatprep.subr.mxu0 %v2740
    %3714 = vmatpush1.msra.mxu0 %v2739
    %3715 = vmatprep.subr.mxu0 %v2742
    %3716 = vmatpush1.msra.mxu0 %v2741
    %3717 = vmatprep.subr.mxu0 %v2744
    %3718 = vmatpush1.msra.mxu0 %v2743
    %3719 = vmatprep.subr.mxu0 %v2746
    %3720 = vmatpush1.msra.mxu0 %v2745
    %3721 = vmatprep.subr.mxu0 %v2748
    %3722 = vmatpush1.msra.mxu0 %v2747
    %3723 = vmatprep.subr.mxu0 %v2750
    %3724 = vmatpush1.msra.mxu0 %v2749
    %3725 = vmatprep.subr.mxu0 %v2752
    %3726 = vmatpush1.msra.mxu0 %v2751
    %3727 = vmatprep.subr.mxu0 0.0
    %3728 = vmatpush1.msra.mxu0 0.0
    %3729 = vmatprep.subr.mxu0 0.0
    %3730 = vmatpush1.msra.mxu0 0.0
    %3731 = vmatprep.subr.mxu0 0.0
    %3732 = vmatpush1.msra.mxu0 0.0
    %3733 = vmatprep.subr.mxu0 0.0
    %3734 = vmatpush1.msra.mxu0 0.0
    %3735 = vmatprep.subr.mxu0 0.0
    %3736 = vmatpush1.msra.mxu0 0.0
    %3737 = vmatprep.subr.mxu0 0.0
    %3738 = vmatpush1.msra.mxu0 0.0
    %3739 = vmatprep.subr.mxu0 0.0
    %3740 = vmatpush1.msra.mxu0 0.0
    %3741 = vmatprep.subr.mxu0 0.0
    %3742 = vmatpush1.msra.mxu0 0.0
    %3743 = vmatprep.subr.mxu0 0.0
    %3744 = vmatpush1.msra.mxu0 0.0
    %3745 = vmatprep.subr.mxu0 0.0
    %3746 = vmatpush1.msra.mxu0 0.0
    %3747 = vmatprep.subr.mxu0 0.0
    %3748 = vmatpush1.msra.mxu0 0.0
    %3749 = vmatprep.subr.mxu0 0.0
    %3750 = vmatpush1.msra.mxu0 0.0
    %3751 = vmatprep.subr.mxu0 0.0
    %3752 = vmatpush1.msra.mxu0 0.0
    %3753 = vmatprep.subr.mxu0 0.0
    %3754 = vmatpush1.msra.mxu0 0.0
    %3755 = vmatprep.subr.mxu0 0.0
    %3756 = vmatpush1.msra.mxu0 0.0
    %3757 = vmatprep.subr.mxu0 0.0
    %3758 = vmatpush1.msra.mxu0 0.0
    %3759 = vmatprep.subr.mxu0 0.0
    %3760 = vmatpush1.msra.mxu0 0.0
    %3761 = vmatprep.subr.mxu0 0.0
    %3762 = vmatpush1.msra.mxu0 0.0
    %3763 = vmatprep.subr.mxu0 0.0
    %3764 = vmatpush1.msra.mxu0 0.0
    %3765 = vmatprep.subr.mxu0 0.0
    %3766 = vmatpush1.msra.mxu0 0.0
    %3767 = vmatprep.subr.mxu0 0.0
    %3768 = vmatpush1.msra.mxu0 0.0
    %3769 = vmatprep.subr.mxu0 0.0
    %3770 = vmatpush1.msra.mxu0 0.0
    %3771 = vmatprep.subr.mxu0 0.0
    %3772 = vmatpush1.msra.mxu0 0.0
    %3773 = vmatprep.subr.mxu0 0.0
    %3774 = vmatpush1.msra.mxu0 0.0
    %3775 = vmatprep.mubr.f32.mxu0 0.0
    %3776 = vmatmul.mubr.f32.gmra.mrb[0].mxu0 %v3706
    %v3777 = vpop.f32.mrb[0].mxu0
    %v3778 = vadd.f32 0.0, %v3777
    %v3779 = vpop.f32.mrb[0].mxu0
    %v3780 = vadd.f32 0.0, %v3779
    %3781 = vmatprep.mubr.f32.mxu0 0.0
    %3782 = vmatmul.mubr.f32.gmra.mrb[0].mxu0 %v3709
    %v3783 = vpop.f32.mrb[0].mxu0
    %v3784 = vadd.f32 0.0, %v3783
    %v3785 = vpop.f32.mrb[0].mxu0
    %v3786 = vadd.f32 0.0, %v3785
    %3787 = vdwg.mxu0
    %v3788 = vmul.f32 %v3778, %v2387
    %v3789 = vmul.f32 %v3780, %v2389
    %v3790 = vmul.f32 %v3784, %v2393
    %v3791 = vmul.f32 %v3786, %v2395
    %v3792 = vadd.f32 %v3693, %v3788
    %v3793 = vadd.f32 %v3694, %v3789
    %v3794 = vadd.f32 %v3695, %v3790
    %v3795 = vadd.f32 %v3696, %v3791
    %v3796 = vsub.f32 %v3140, %v3397
    %v3797 = vsub.f32 %v3145, %v3398
    %v3798 = vmul.f32 %v3796, 1.442695
    %v3799 = vpow.pop %v3798
    %v3800 = vmul.f32 %v3797, 1.442695
    %v3801 = vpow.pop %v3800
    %v3802 = vadd.f32 %v3703, %v3799
    %v3803 = vadd.f32 %v3704, %v3801
    %v3805 = vsel %vm3407, %v3799, 0
    %v3808 = vsel %vm3407, %v3801, 0
    %3810 = vmatprep.subr.mxu0 %v2738
    %3811 = vmatpush1.msra.mxu0 %v2737
    %3812 = vmatprep.subr.mxu0 %v2740
    %3813 = vmatpush1.msra.mxu0 %v2739
    %3814 = vmatprep.subr.mxu0 %v2742
    %3815 = vmatpush1.msra.mxu0 %v2741
    %3816 = vmatprep.subr.mxu0 %v2744
    %3817 = vmatpush1.msra.mxu0 %v2743
    %3818 = vmatprep.subr.mxu0 %v2746
    %3819 = vmatpush1.msra.mxu0 %v2745
    %3820 = vmatprep.subr.mxu0 %v2748
    %3821 = vmatpush1.msra.mxu0 %v2747
    %3822 = vmatprep.subr.mxu0 %v2750
    %3823 = vmatpush1.msra.mxu0 %v2749
    %3824 = vmatprep.subr.mxu0 %v2752
    %3825 = vmatpush1.msra.mxu0 %v2751
    %3826 = vmatprep.subr.mxu0 0.0
    %3827 = vmatpush1.msra.mxu0 0.0
    %3828 = vmatprep.subr.mxu0 0.0
    %3829 = vmatpush1.msra.mxu0 0.0
    %3830 = vmatprep.subr.mxu0 0.0
    %3831 = vmatpush1.msra.mxu0 0.0
    %3832 = vmatprep.subr.mxu0 0.0
    %3833 = vmatpush1.msra.mxu0 0.0
    %3834 = vmatprep.subr.mxu0 0.0
    %3835 = vmatpush1.msra.mxu0 0.0
    %3836 = vmatprep.subr.mxu0 0.0
    %3837 = vmatpush1.msra.mxu0 0.0
    %3838 = vmatprep.subr.mxu0 0.0
    %3839 = vmatpush1.msra.mxu0 0.0
    %3840 = vmatprep.subr.mxu0 0.0
    %3841 = vmatpush1.msra.mxu0 0.0
    %3842 = vmatprep.subr.mxu0 0.0
    %3843 = vmatpush1.msra.mxu0 0.0
    %3844 = vmatprep.subr.mxu0 0.0
    %3845 = vmatpush1.msra.mxu0 0.0
    %3846 = vmatprep.subr.mxu0 0.0
    %3847 = vmatpush1.msra.mxu0 0.0
    %3848 = vmatprep.subr.mxu0 0.0
    %3849 = vmatpush1.msra.mxu0 0.0
    %3850 = vmatprep.subr.mxu0 0.0
    %3851 = vmatpush1.msra.mxu0 0.0
    %3852 = vmatprep.subr.mxu0 0.0
    %3853 = vmatpush1.msra.mxu0 0.0
    %3854 = vmatprep.subr.mxu0 0.0
    %3855 = vmatpush1.msra.mxu0 0.0
    %3856 = vmatprep.subr.mxu0 0.0
    %3857 = vmatpush1.msra.mxu0 0.0
    %3858 = vmatprep.subr.mxu0 0.0
    %3859 = vmatpush1.msra.mxu0 0.0
    %3860 = vmatprep.subr.mxu0 0.0
    %3861 = vmatpush1.msra.mxu0 0.0
    %3862 = vmatprep.subr.mxu0 0.0
    %3863 = vmatpush1.msra.mxu0 0.0
    %3864 = vmatprep.subr.mxu0 0.0
    %3865 = vmatpush1.msra.mxu0 0.0
    %3866 = vmatprep.subr.mxu0 0.0
    %3867 = vmatpush1.msra.mxu0 0.0
    %3868 = vmatprep.subr.mxu0 0.0
    %3869 = vmatpush1.msra.mxu0 0.0
    %3870 = vmatprep.subr.mxu0 0.0
    %3871 = vmatpush1.msra.mxu0 0.0
    %3872 = vmatprep.subr.mxu0 0.0
    %3873 = vmatpush1.msra.mxu0 0.0
    %3874 = vmatprep.mubr.f32.mxu0 0.0
    %3875 = vmatmul.mubr.f32.gmra.mrb[0].mxu0 %v3805
    %v3876 = vpop.f32.mrb[0].mxu0
    %v3877 = vadd.f32 0.0, %v3876
    %v3878 = vpop.f32.mrb[0].mxu0
    %v3879 = vadd.f32 0.0, %v3878
    %3880 = vmatprep.mubr.f32.mxu0 0.0
    %3881 = vmatmul.mubr.f32.gmra.mrb[0].mxu0 %v3808
    %v3882 = vpop.f32.mrb[0].mxu0
    %v3883 = vadd.f32 0.0, %v3882
    %v3884 = vpop.f32.mrb[0].mxu0
    %v3885 = vadd.f32 0.0, %v3884
    %3886 = vdwg.mxu0
    %v3887 = vmul.f32 %v3877, %v2464
    %v3888 = vmul.f32 %v3879, %v2466
    %v3889 = vmul.f32 %v3883, %v2470
    %v3890 = vmul.f32 %v3885, %v2472
    %v3891 = vadd.f32 %v3792, %v3887
    %v3892 = vadd.f32 %v3793, %v3888
    %v3893 = vadd.f32 %v3794, %v3889
    %v3894 = vadd.f32 %v3795, %v3890
    %v3895 = vsub.f32 %v3219, %v3397
    %v3896 = vsub.f32 %v3224, %v3398
    %v3897 = vmul.f32 %v3895, 1.442695
    %v3898 = vpow.pop %v3897
    %v3899 = vmul.f32 %v3896, 1.442695
    %v3900 = vpow.pop %v3899
    %v3901 = vadd.f32 %v3802, %v3898
    %v3902 = vadd.f32 %v3803, %v3900
    %v3904 = vsel %vm3407, %v3898, 0
    %v3907 = vsel %vm3407, %v3900, 0
    %3909 = vmatprep.subr.mxu0 %v2738
    %3910 = vmatpush1.msra.mxu0 %v2737
    %3911 = vmatprep.subr.mxu0 %v2740
    %3912 = vmatpush1.msra.mxu0 %v2739
    %3913 = vmatprep.subr.mxu0 %v2742
    %3914 = vmatpush1.msra.mxu0 %v2741
    %3915 = vmatprep.subr.mxu0 %v2744
    %3916 = vmatpush1.msra.mxu0 %v2743
    %3917 = vmatprep.subr.mxu0 %v2746
    %3918 = vmatpush1.msra.mxu0 %v2745
    %3919 = vmatprep.subr.mxu0 %v2748
    %3920 = vmatpush1.msra.mxu0 %v2747
    %3921 = vmatprep.subr.mxu0 %v2750
    %3922 = vmatpush1.msra.mxu0 %v2749
    %3923 = vmatprep.subr.mxu0 %v2752
    %3924 = vmatpush1.msra.mxu0 %v2751
    %3925 = vmatprep.subr.mxu0 0.0
    %3926 = vmatpush1.msra.mxu0 0.0
    %3927 = vmatprep.subr.mxu0 0.0
    %3928 = vmatpush1.msra.mxu0 0.0
    %3929 = vmatprep.subr.mxu0 0.0
    %3930 = vmatpush1.msra.mxu0 0.0
    %3931 = vmatprep.subr.mxu0 0.0
    %3932 = vmatpush1.msra.mxu0 0.0
    %3933 = vmatprep.subr.mxu0 0.0
    %3934 = vmatpush1.msra.mxu0 0.0
    %3935 = vmatprep.subr.mxu0 0.0
    %3936 = vmatpush1.msra.mxu0 0.0
    %3937 = vmatprep.subr.mxu0 0.0
    %3938 = vmatpush1.msra.mxu0 0.0
    %3939 = vmatprep.subr.mxu0 0.0
    %3940 = vmatpush1.msra.mxu0 0.0
    %3941 = vmatprep.subr.mxu0 0.0
    %3942 = vmatpush1.msra.mxu0 0.0
    %3943 = vmatprep.subr.mxu0 0.0
    %3944 = vmatpush1.msra.mxu0 0.0
    %3945 = vmatprep.subr.mxu0 0.0
    %3946 = vmatpush1.msra.mxu0 0.0
    %3947 = vmatprep.subr.mxu0 0.0
    %3948 = vmatpush1.msra.mxu0 0.0
    %3949 = vmatprep.subr.mxu0 0.0
    %3950 = vmatpush1.msra.mxu0 0.0
    %3951 = vmatprep.subr.mxu0 0.0
    %3952 = vmatpush1.msra.mxu0 0.0
    %3953 = vmatprep.subr.mxu0 0.0
    %3954 = vmatpush1.msra.mxu0 0.0
    %3955 = vmatprep.subr.mxu0 0.0
    %3956 = vmatpush1.msra.mxu0 0.0
    %3957 = vmatprep.subr.mxu0 0.0
    %3958 = vmatpush1.msra.mxu0 0.0
    %3959 = vmatprep.subr.mxu0 0.0
    %3960 = vmatpush1.msra.mxu0 0.0
    %3961 = vmatprep.subr.mxu0 0.0
    %3962 = vmatpush1.msra.mxu0 0.0
    %3963 = vmatprep.subr.mxu0 0.0
    %3964 = vmatpush1.msra.mxu0 0.0
    %3965 = vmatprep.subr.mxu0 0.0
    %3966 = vmatpush1.msra.mxu0 0.0
    %3967 = vmatprep.subr.mxu0 0.0
    %3968 = vmatpush1.msra.mxu0 0.0
    %3969 = vmatprep.subr.mxu0 0.0
    %3970 = vmatpush1.msra.mxu0 0.0
    %3971 = vmatprep.subr.mxu0 0.0
    %3972 = vmatpush1.msra.mxu0 0.0
    %3973 = vmatprep.mubr.f32.mxu0 0.0
    %3974 = vmatmul.mubr.f32.gmra.mrb[0].mxu0 %v3904
    %v3975 = vpop.f32.mrb[0].mxu0
    %v3976 = vadd.f32 0.0, %v3975
    %v3977 = vpop.f32.mrb[0].mxu0
    %v3978 = vadd.f32 0.0, %v3977
    %3979 = vmatprep.mubr.f32.mxu0 0.0
    %3980 = vmatmul.mubr.f32.gmra.mrb[0].mxu0 %v3907
    %v3981 = vpop.f32.mrb[0].mxu0
    %v3982 = vadd.f32 0.0, %v3981
    %v3983 = vpop.f32.mrb[0].mxu0
    %v3984 = vadd.f32 0.0, %v3983
    %3985 = vdwg.mxu0
    %v3986 = vmul.f32 %v3976, %v2541
    %v3987 = vmul.f32 %v3978, %v2543
    %v3988 = vmul.f32 %v3982, %v2547
    %v3989 = vmul.f32 %v3984, %v2549
    %v3990 = vadd.f32 %v3891, %v3986
    %v3991 = vadd.f32 %v3892, %v3987
    %v3992 = vadd.f32 %v3893, %v3988
    %v3993 = vadd.f32 %v3894, %v3989
    %v3994 = vsub.f32 %v3298, %v3397
    %v3995 = vsub.f32 %v3303, %v3398
    %v3996 = vmul.f32 %v3994, 1.442695
    %v3997 = vpow.pop %v3996
    %v3998 = vmul.f32 %v3995, 1.442695
    %v3999 = vpow.pop %v3998
    %v4000 = vadd.f32 %v3901, %v3997
    %v4001 = vadd.f32 %v3902, %v3999
    %v4003 = vsel %vm3407, %v3997, 0
    %v4006 = vsel %vm3407, %v3999, 0
    %4008 = vmatprep.subr.mxu0 %v2738
    %4009 = vmatpush1.msra.mxu0 %v2737
    %4010 = vmatprep.subr.mxu0 %v2740
    %4011 = vmatpush1.msra.mxu0 %v2739
    %4012 = vmatprep.subr.mxu0 %v2742
    %4013 = vmatpush1.msra.mxu0 %v2741
    %4014 = vmatprep.subr.mxu0 %v2744
    %4015 = vmatpush1.msra.mxu0 %v2743
    %4016 = vmatprep.subr.mxu0 %v2746
    %4017 = vmatpush1.msra.mxu0 %v2745
    %4018 = vmatprep.subr.mxu0 %v2748
    %4019 = vmatpush1.msra.mxu0 %v2747
    %4020 = vmatprep.subr.mxu0 %v2750
    %4021 = vmatpush1.msra.mxu0 %v2749
    %4022 = vmatprep.subr.mxu0 %v2752
    %4023 = vmatpush1.msra.mxu0 %v2751
    %4024 = vmatprep.subr.mxu0 0.0
    %4025 = vmatpush1.msra.mxu0 0.0
    %4026 = vmatprep.subr.mxu0 0.0
    %4027 = vmatpush1.msra.mxu0 0.0
    %4028 = vmatprep.subr.mxu0 0.0
    %4029 = vmatpush1.msra.mxu0 0.0
    %4030 = vmatprep.subr.mxu0 0.0
    %4031 = vmatpush1.msra.mxu0 0.0
    %4032 = vmatprep.subr.mxu0 0.0
    %4033 = vmatpush1.msra.mxu0 0.0
    %4034 = vmatprep.subr.mxu0 0.0
    %4035 = vmatpush1.msra.mxu0 0.0
    %4036 = vmatprep.subr.mxu0 0.0
    %4037 = vmatpush1.msra.mxu0 0.0
    %4038 = vmatprep.subr.mxu0 0.0
    %4039 = vmatpush1.msra.mxu0 0.0
    %4040 = vmatprep.subr.mxu0 0.0
    %4041 = vmatpush1.msra.mxu0 0.0
    %4042 = vmatprep.subr.mxu0 0.0
    %4043 = vmatpush1.msra.mxu0 0.0
    %4044 = vmatprep.subr.mxu0 0.0
    %4045 = vmatpush1.msra.mxu0 0.0
    %4046 = vmatprep.subr.mxu0 0.0
    %4047 = vmatpush1.msra.mxu0 0.0
    %4048 = vmatprep.subr.mxu0 0.0
    %4049 = vmatpush1.msra.mxu0 0.0
    %4050 = vmatprep.subr.mxu0 0.0
    %4051 = vmatpush1.msra.mxu0 0.0
    %4052 = vmatprep.subr.mxu0 0.0
    %4053 = vmatpush1.msra.mxu0 0.0
    %4054 = vmatprep.subr.mxu0 0.0
    %4055 = vmatpush1.msra.mxu0 0.0
    %4056 = vmatprep.subr.mxu0 0.0
    %4057 = vmatpush1.msra.mxu0 0.0
    %4058 = vmatprep.subr.mxu0 0.0
    %4059 = vmatpush1.msra.mxu0 0.0
    %4060 = vmatprep.subr.mxu0 0.0
    %4061 = vmatpush1.msra.mxu0 0.0
    %4062 = vmatprep.subr.mxu0 0.0
    %4063 = vmatpush1.msra.mxu0 0.0
    %4064 = vmatprep.subr.mxu0 0.0
    %4065 = vmatpush1.msra.mxu0 0.0
    %4066 = vmatprep.subr.mxu0 0.0
    %4067 = vmatpush1.msra.mxu0 0.0
    %4068 = vmatprep.subr.mxu0 0.0
    %4069 = vmatpush1.msra.mxu0 0.0
    %4070 = vmatprep.subr.mxu0 0.0
    %4071 = vmatpush1.msra.mxu0 0.0
    %4072 = vmatprep.mubr.f32.mxu0 0.0
    %4073 = vmatmul.mubr.f32.gmra.mrb[0].mxu0 %v4003
    %v4074 = vpop.f32.mrb[0].mxu0
    %v4075 = vadd.f32 0.0, %v4074
    %v4076 = vpop.f32.mrb[0].mxu0
    %v4077 = vadd.f32 0.0, %v4076
    %4078 = vmatprep.mubr.f32.mxu0 0.0
    %4079 = vmatmul.mubr.f32.gmra.mrb[0].mxu0 %v4006
    %v4080 = vpop.f32.mrb[0].mxu0
    %v4081 = vadd.f32 0.0, %v4080
    %v4082 = vpop.f32.mrb[0].mxu0
    %v4083 = vadd.f32 0.0, %v4082
    %4084 = vdwg.mxu0
    %v4085 = vmul.f32 %v4075, %v2618
    %v4086 = vmul.f32 %v4077, %v2620
    %v4087 = vmul.f32 %v4081, %v2624
    %v4088 = vmul.f32 %v4083, %v2626
    %v4089 = vadd.f32 %v3990, %v4085
    %v4090 = vadd.f32 %v3991, %v4086
    %v4091 = vadd.f32 %v3992, %v4087
    %v4092 = vadd.f32 %v3993, %v4088
    %v4093 = vsub.f32 %v3377, %v3397
    %v4094 = vsub.f32 %v3382, %v3398
    %v4095 = vmul.f32 %v4093, 1.442695
    %v4096 = vpow.pop %v4095
    %v4097 = vmul.f32 %v4094, 1.442695
    %v4098 = vpow.pop %v4097
    %v4099 = vadd.f32 %v4000, %v4096
    %v4100 = vadd.f32 %v4001, %v4098
    %v4102 = vsel %vm3407, %v4096, 0
    %v4105 = vsel %vm3407, %v4098, 0
    %4107 = vmatprep.subr.mxu0 %v2738
    %4108 = vmatpush1.msra.mxu0 %v2737
    %4109 = vmatprep.subr.mxu0 %v2740
    %4110 = vmatpush1.msra.mxu0 %v2739
    %4111 = vmatprep.subr.mxu0 %v2742
    %4112 = vmatpush1.msra.mxu0 %v2741
    %4113 = vmatprep.subr.mxu0 %v2744
    %4114 = vmatpush1.msra.mxu0 %v2743
    %4115 = vmatprep.subr.mxu0 %v2746
    %4116 = vmatpush1.msra.mxu0 %v2745
    %4117 = vmatprep.subr.mxu0 %v2748
    %4118 = vmatpush1.msra.mxu0 %v2747
    %4119 = vmatprep.subr.mxu0 %v2750
    %4120 = vmatpush1.msra.mxu0 %v2749
    %4121 = vmatprep.subr.mxu0 %v2752
    %4122 = vmatpush1.msra.mxu0 %v2751
    %4123 = vmatprep.subr.mxu0 0.0
    %4124 = vmatpush1.msra.mxu0 0.0
    %4125 = vmatprep.subr.mxu0 0.0
    %4126 = vmatpush1.msra.mxu0 0.0
    %4127 = vmatprep.subr.mxu0 0.0
    %4128 = vmatpush1.msra.mxu0 0.0
    %4129 = vmatprep.subr.mxu0 0.0
    %4130 = vmatpush1.msra.mxu0 0.0
    %4131 = vmatprep.subr.mxu0 0.0
    %4132 = vmatpush1.msra.mxu0 0.0
    %4133 = vmatprep.subr.mxu0 0.0
    %4134 = vmatpush1.msra.mxu0 0.0
    %4135 = vmatprep.subr.mxu0 0.0
    %4136 = vmatpush1.msra.mxu0 0.0
    %4137 = vmatprep.subr.mxu0 0.0
    %4138 = vmatpush1.msra.mxu0 0.0
    %4139 = vmatprep.subr.mxu0 0.0
    %4140 = vmatpush1.msra.mxu0 0.0
    %4141 = vmatprep.subr.mxu0 0.0
    %4142 = vmatpush1.msra.mxu0 0.0
    %4143 = vmatprep.subr.mxu0 0.0
    %4144 = vmatpush1.msra.mxu0 0.0
    %4145 = vmatprep.subr.mxu0 0.0
    %4146 = vmatpush1.msra.mxu0 0.0
    %4147 = vmatprep.subr.mxu0 0.0
    %4148 = vmatpush1.msra.mxu0 0.0
    %4149 = vmatprep.subr.mxu0 0.0
    %4150 = vmatpush1.msra.mxu0 0.0
    %4151 = vmatprep.subr.mxu0 0.0
    %4152 = vmatpush1.msra.mxu0 0.0
    %4153 = vmatprep.subr.mxu0 0.0
    %4154 = vmatpush1.msra.mxu0 0.0
    %4155 = vmatprep.subr.mxu0 0.0
    %4156 = vmatpush1.msra.mxu0 0.0
    %4157 = vmatprep.subr.mxu0 0.0
    %4158 = vmatpush1.msra.mxu0 0.0
    %4159 = vmatprep.subr.mxu0 0.0
    %4160 = vmatpush1.msra.mxu0 0.0
    %4161 = vmatprep.subr.mxu0 0.0
    %4162 = vmatpush1.msra.mxu0 0.0
    %4163 = vmatprep.subr.mxu0 0.0
    %4164 = vmatpush1.msra.mxu0 0.0
    %4165 = vmatprep.subr.mxu0 0.0
    %4166 = vmatpush1.msra.mxu0 0.0
    %4167 = vmatprep.subr.mxu0 0.0
    %4168 = vmatpush1.msra.mxu0 0.0
    %4169 = vmatprep.subr.mxu0 0.0
    %4170 = vmatpush1.msra.mxu0 0.0
    %4171 = vmatprep.mubr.f32.mxu0 0.0
    %4172 = vmatmul.mubr.f32.gmra.mrb[0].mxu0 %v4102
    %v4173 = vpop.f32.mrb[0].mxu0
    %v4174 = vadd.f32 0.0, %v4173
    %v4175 = vpop.f32.mrb[0].mxu0
    %v4176 = vadd.f32 0.0, %v4175
    %4177 = vmatprep.mubr.f32.mxu0 0.0
    %4178 = vmatmul.mubr.f32.gmra.mrb[0].mxu0 %v4105
    %v4179 = vpop.f32.mrb[0].mxu0
    %v4180 = vadd.f32 0.0, %v4179
    %v4181 = vpop.f32.mrb[0].mxu0
    %v4182 = vadd.f32 0.0, %v4181
    %4183 = vdwg.mxu0
    %v4184 = vmul.f32 %v4174, %v2695
    %v4185 = vmul.f32 %v4176, %v2697
    %v4186 = vmul.f32 %v4180, %v2701
    %v4187 = vmul.f32 %v4182, %v2703
    %v4188 = vadd.f32 %v4089, %v4184
    %v4189 = vadd.f32 %v4090, %v4185
    %v4190 = vadd.f32 %v4091, %v4186
    %v4191 = vadd.f32 %v4092, %v4187
    %v4192 = vrcp.pop %v4099
    %v4193 = vrcp.pop %v4100
    %v4195 = vsel %vm3407, %v4192, 0
    %v4198 = vsel %vm3407, %v4193, 0
    %4200 = vmatprep.subr.mxu0 %v2738
    %4201 = vmatpush1.msra.mxu0 %v2737
    %4202 = vmatprep.subr.mxu0 %v2740
    %4203 = vmatpush1.msra.mxu0 %v2739
    %4204 = vmatprep.subr.mxu0 %v2742
    %4205 = vmatpush1.msra.mxu0 %v2741
    %4206 = vmatprep.subr.mxu0 %v2744
    %4207 = vmatpush1.msra.mxu0 %v2743
    %4208 = vmatprep.subr.mxu0 %v2746
    %4209 = vmatpush1.msra.mxu0 %v2745
    %4210 = vmatprep.subr.mxu0 %v2748
    %4211 = vmatpush1.msra.mxu0 %v2747
    %4212 = vmatprep.subr.mxu0 %v2750
    %4213 = vmatpush1.msra.mxu0 %v2749
    %4214 = vmatprep.subr.mxu0 %v2752
    %4215 = vmatpush1.msra.mxu0 %v2751
    %4216 = vmatprep.subr.mxu0 0.0
    %4217 = vmatpush1.msra.mxu0 0.0
    %4218 = vmatprep.subr.mxu0 0.0
    %4219 = vmatpush1.msra.mxu0 0.0
    %4220 = vmatprep.subr.mxu0 0.0
    %4221 = vmatpush1.msra.mxu0 0.0
    %4222 = vmatprep.subr.mxu0 0.0
    %4223 = vmatpush1.msra.mxu0 0.0
    %4224 = vmatprep.subr.mxu0 0.0
    %4225 = vmatpush1.msra.mxu0 0.0
    %4226 = vmatprep.subr.mxu0 0.0
    %4227 = vmatpush1.msra.mxu0 0.0
    %4228 = vmatprep.subr.mxu0 0.0
    %4229 = vmatpush1.msra.mxu0 0.0
    %4230 = vmatprep.subr.mxu0 0.0
    %4231 = vmatpush1.msra.mxu0 0.0
    %4232 = vmatprep.subr.mxu0 0.0
    %4233 = vmatpush1.msra.mxu0 0.0
    %4234 = vmatprep.subr.mxu0 0.0
    %4235 = vmatpush1.msra.mxu0 0.0
    %4236 = vmatprep.subr.mxu0 0.0
    %4237 = vmatpush1.msra.mxu0 0.0
    %4238 = vmatprep.subr.mxu0 0.0
    %4239 = vmatpush1.msra.mxu0 0.0
    %4240 = vmatprep.subr.mxu0 0.0
    %4241 = vmatpush1.msra.mxu0 0.0
    %4242 = vmatprep.subr.mxu0 0.0
    %4243 = vmatpush1.msra.mxu0 0.0
    %4244 = vmatprep.subr.mxu0 0.0
    %4245 = vmatpush1.msra.mxu0 0.0
    %4246 = vmatprep.subr.mxu0 0.0
    %4247 = vmatpush1.msra.mxu0 0.0
    %4248 = vmatprep.subr.mxu0 0.0
    %4249 = vmatpush1.msra.mxu0 0.0
    %4250 = vmatprep.subr.mxu0 0.0
    %4251 = vmatpush1.msra.mxu0 0.0
    %4252 = vmatprep.subr.mxu0 0.0
    %4253 = vmatpush1.msra.mxu0 0.0
    %4254 = vmatprep.subr.mxu0 0.0
    %4255 = vmatpush1.msra.mxu0 0.0
    %4256 = vmatprep.subr.mxu0 0.0
    %4257 = vmatpush1.msra.mxu0 0.0
    %4258 = vmatprep.subr.mxu0 0.0
    %4259 = vmatpush1.msra.mxu0 0.0
    %4260 = vmatprep.subr.mxu0 0.0
    %4261 = vmatpush1.msra.mxu0 0.0
    %4262 = vmatprep.subr.mxu0 0.0
    %4263 = vmatpush1.msra.mxu0 0.0
    %4264 = vmatprep.mubr.f32.mxu0 0.0
    %4265 = vmatmul.mubr.f32.gmra.mrb[0].mxu0 %v4195
    %v4266 = vpop.f32.mrb[0].mxu0
    %v4267 = vadd.f32 0.0, %v4266
    %v4268 = vpop.f32.mrb[0].mxu0
    %v4269 = vadd.f32 0.0, %v4268
    %4270 = vmatprep.mubr.f32.mxu0 0.0
    %4271 = vmatmul.mubr.f32.gmra.mrb[0].mxu0 %v4198
    %v4272 = vpop.f32.mrb[0].mxu0
    %v4273 = vadd.f32 0.0, %v4272
    %v4274 = vpop.f32.mrb[0].mxu0
    %v4275 = vadd.f32 0.0, %v4274
    %4276 = vdwg.mxu0
    %v4277 = vmul.f32 %v4188, %v4267
    %v4278 = vmul.f32 %v4189, %v4269
    %v4279 = vmul.f32 %v4190, %v4273
    %v4280 = vmul.f32 %v4191, %v4275
    %v4281 = vld [vmem:[#allocation7] sm:$0xff]
    %v4282 = vld [vmem:[#allocation7 + $0x8] sm:$0xff]
    %v4283 = vld [vmem:[#allocation7 + $0x10] sm:$0xff]
    %v4284 = vld [vmem:[#allocation7 + $0x18] sm:$0xff]
    %v4285 = vld [vmem:[#allocation7 + $0x20] sm:$0xff]
    %v4286 = vld [vmem:[#allocation7 + $0x28] sm:$0xff]
    %v4287 = vld [vmem:[#allocation7 + $0x30] sm:$0xff]
    %v4288 = vld [vmem:[#allocation7 + $0x38] sm:$0xff]
    %v4289 = vld [vmem:[#allocation7 + $0x40] sm:$0xff]
    %v4290 = vld [vmem:[#allocation7 + $0x48] sm:$0xff]
    %v4291 = vld [vmem:[#allocation7 + $0x50] sm:$0xff]
    %v4292 = vld [vmem:[#allocation7 + $0x58] sm:$0xff]
    %v4293 = vld [vmem:[#allocation7 + $0x60] sm:$0xff]
    %v4294 = vld [vmem:[#allocation7 + $0x68] sm:$0xff]
    %v4295 = vld [vmem:[#allocation7 + $0x70] sm:$0xff]
    %v4296 = vld [vmem:[#allocation7 + $0x78] sm:$0xff]
    %v4297 = vld [vmem:[#allocation7 + $0x80] sm:$0xff]
    %v4298 = vld [vmem:[#allocation7 + $0x88] sm:$0xff]
    %v4299 = vld [vmem:[#allocation7 + $0x90] sm:$0xff]
    %v4300 = vld [vmem:[#allocation7 + $0x98] sm:$0xff]
    %v4301 = vld [vmem:[#allocation7 + $0xa0] sm:$0xff]
    %v4302 = vld [vmem:[#allocation7 + $0xa8] sm:$0xff]
    %v4303 = vld [vmem:[#allocation7 + $0xb0] sm:$0xff]
    %v4304 = vld [vmem:[#allocation7 + $0xb8] sm:$0xff]
    %v4305 = vld [vmem:[#allocation7 + $0xc0] sm:$0xff]
    %v4306 = vld [vmem:[#allocation7 + $0xc8] sm:$0xff]
    %v4307 = vld [vmem:[#allocation7 + $0xd0] sm:$0xff]
    %v4308 = vld [vmem:[#allocation7 + $0xd8] sm:$0xff]
    %v4309 = vld [vmem:[#allocation7 + $0xe0] sm:$0xff]
    %v4310 = vld [vmem:[#allocation7 + $0xe8] sm:$0xff]
    %v4311 = vld [vmem:[#allocation7 + $0xf0] sm:$0xff]
    %v4312 = vld [vmem:[#allocation7 + $0xf8] sm:$0xff]
    %v4313 = vld [vmem:[#allocation7 + $0x100] sm:$0xff]
    %v4314 = vld [vmem:[#allocation7 + $0x108] sm:$0xff]
    %v4315 = vld [vmem:[#allocation7 + $0x110] sm:$0xff]
    %v4316 = vld [vmem:[#allocation7 + $0x118] sm:$0xff]
    %v4317 = vld [vmem:[#allocation7 + $0x120] sm:$0xff]
    %v4318 = vld [vmem:[#allocation7 + $0x128] sm:$0xff]
    %v4319 = vld [vmem:[#allocation7 + $0x130] sm:$0xff]
    %v4320 = vld [vmem:[#allocation7 + $0x138] sm:$0xff]
    %v4321 = vld [vmem:[#allocation7 + $0x140] sm:$0xff]
    %v4322 = vld [vmem:[#allocation7 + $0x148] sm:$0xff]
    %v4323 = vld [vmem:[#allocation7 + $0x150] sm:$0xff]
    %v4324 = vld [vmem:[#allocation7 + $0x158] sm:$0xff]
    %v4325 = vld [vmem:[#allocation7 + $0x160] sm:$0xff]
    %v4326 = vld [vmem:[#allocation7 + $0x168] sm:$0xff]
    %v4327 = vld [vmem:[#allocation7 + $0x170] sm:$0xff]
    %v4328 = vld [vmem:[#allocation7 + $0x178] sm:$0xff]
    %v4329 = vld [vmem:[#allocation7 + $0x180] sm:$0xff]
    %v4330 = vld [vmem:[#allocation7 + $0x188] sm:$0xff]
    %v4331 = vld [vmem:[#allocation7 + $0x190] sm:$0xff]
    %v4332 = vld [vmem:[#allocation7 + $0x198] sm:$0xff]
    %v4333 = vld [vmem:[#allocation7 + $0x1a0] sm:$0xff]
    %v4334 = vld [vmem:[#allocation7 + $0x1a8] sm:$0xff]
    %v4335 = vld [vmem:[#allocation7 + $0x1b0] sm:$0xff]
    %v4336 = vld [vmem:[#allocation7 + $0x1b8] sm:$0xff]
    %v4337 = vld [vmem:[#allocation7 + $0x1c0] sm:$0xff]
    %v4338 = vld [vmem:[#allocation7 + $0x1c8] sm:$0xff]
    %v4339 = vld [vmem:[#allocation7 + $0x1d0] sm:$0xff]
    %v4340 = vld [vmem:[#allocation7 + $0x1d8] sm:$0xff]
    %v4341 = vld [vmem:[#allocation7 + $0x1e0] sm:$0xff]
    %v4342 = vld [vmem:[#allocation7 + $0x1e8] sm:$0xff]
    %v4343 = vld [vmem:[#allocation7 + $0x1f0] sm:$0xff]
    %v4344 = vld [vmem:[#allocation7 + $0x1f8] sm:$0xff]
    %v4345 = vld [vmem:[#allocation7 + $0x200] sm:$0xff]
    %v4346 = vld [vmem:[#allocation7 + $0x208] sm:$0xff]
    %v4347 = vld [vmem:[#allocation7 + $0x210] sm:$0xff]
    %v4348 = vld [vmem:[#allocation7 + $0x218] sm:$0xff]
    %v4349 = vld [vmem:[#allocation7 + $0x220] sm:$0xff]
    %v4350 = vld [vmem:[#allocation7 + $0x228] sm:$0xff]
    %v4351 = vld [vmem:[#allocation7 + $0x230] sm:$0xff]
    %v4352 = vld [vmem:[#allocation7 + $0x238] sm:$0xff]
    %v4353 = vld [vmem:[#allocation7 + $0x240] sm:$0xff]
    %v4354 = vld [vmem:[#allocation7 + $0x248] sm:$0xff]
    %v4355 = vld [vmem:[#allocation7 + $0x250] sm:$0xff]
    %v4356 = vld [vmem:[#allocation7 + $0x258] sm:$0xff]
    %v4357 = vld [vmem:[#allocation7 + $0x260] sm:$0xff]
    %v4358 = vld [vmem:[#allocation7 + $0x268] sm:$0xff]
    %v4359 = vld [vmem:[#allocation7 + $0x270] sm:$0xff]
    %v4360 = vld [vmem:[#allocation7 + $0x278] sm:$0xff]
    %v4361 = vld [vmem:[#allocation7 + $0x280] sm:$0xff]
    %v4362 = vld [vmem:[#allocation7 + $0x288] sm:$0xff]
    %v4363 = vld [vmem:[#allocation7 + $0x290] sm:$0xff]
    %v4364 = vld [vmem:[#allocation7 + $0x298] sm:$0xff]
    %v4365 = vld [vmem:[#allocation7 + $0x2a0] sm:$0xff]
    %v4366 = vld [vmem:[#allocation7 + $0x2a8] sm:$0xff]
    %v4367 = vld [vmem:[#allocation7 + $0x2b0] sm:$0xff]
    %v4368 = vld [vmem:[#allocation7 + $0x2b8] sm:$0xff]
    %v4369 = vld [vmem:[#allocation7 + $0x2c0] sm:$0xff]
    %v4370 = vld [vmem:[#allocation7 + $0x2c8] sm:$0xff]
    %v4371 = vld [vmem:[#allocation7 + $0x2d0] sm:$0xff]
    %v4372 = vld [vmem:[#allocation7 + $0x2d8] sm:$0xff]
    %v4373 = vld [vmem:[#allocation7 + $0x2e0] sm:$0xff]
    %v4374 = vld [vmem:[#allocation7 + $0x2e8] sm:$0xff]
    %v4375 = vld [vmem:[#allocation7 + $0x2f0] sm:$0xff]
    %v4376 = vld [vmem:[#allocation7 + $0x2f8] sm:$0xff]
    %v4377 = vld [vmem:[#allocation7 + $0x300] sm:$0xff]
    %v4378 = vld [vmem:[#allocation7 + $0x308] sm:$0xff]
    %v4379 = vld [vmem:[#allocation7 + $0x310] sm:$0xff]
    %v4380 = vld [vmem:[#allocation7 + $0x318] sm:$0xff]
    %v4381 = vld [vmem:[#allocation7 + $0x320] sm:$0xff]
    %v4382 = vld [vmem:[#allocation7 + $0x328] sm:$0xff]
    %v4383 = vld [vmem:[#allocation7 + $0x330] sm:$0xff]
    %v4384 = vld [vmem:[#allocation7 + $0x338] sm:$0xff]
    %v4385 = vld [vmem:[#allocation7 + $0x340] sm:$0xff]
    %v4386 = vld [vmem:[#allocation7 + $0x348] sm:$0xff]
    %v4387 = vld [vmem:[#allocation7 + $0x350] sm:$0xff]
    %v4388 = vld [vmem:[#allocation7 + $0x358] sm:$0xff]
    %v4389 = vld [vmem:[#allocation7 + $0x360] sm:$0xff]
    %v4390 = vld [vmem:[#allocation7 + $0x368] sm:$0xff]
    %v4391 = vld [vmem:[#allocation7 + $0x370] sm:$0xff]
    %v4392 = vld [vmem:[#allocation7 + $0x378] sm:$0xff]
    %v4393 = vld [vmem:[#allocation7 + $0x380] sm:$0xff]
    %v4394 = vld [vmem:[#allocation7 + $0x388] sm:$0xff]
    %v4395 = vld [vmem:[#allocation7 + $0x390] sm:$0xff]
    %v4396 = vld [vmem:[#allocation7 + $0x398] sm:$0xff]
    %v4397 = vld [vmem:[#allocation7 + $0x3a0] sm:$0xff]
    %v4398 = vld [vmem:[#allocation7 + $0x3a8] sm:$0xff]
    %v4399 = vld [vmem:[#allocation7 + $0x3b0] sm:$0xff]
    %v4400 = vld [vmem:[#allocation7 + $0x3b8] sm:$0xff]
    %v4401 = vld [vmem:[#allocation7 + $0x3c0] sm:$0xff]
    %v4402 = vld [vmem:[#allocation7 + $0x3c8] sm:$0xff]
    %v4403 = vld [vmem:[#allocation7 + $0x3d0] sm:$0xff]
    %v4404 = vld [vmem:[#allocation7 + $0x3d8] sm:$0xff]
    %v4405 = vld [vmem:[#allocation7 + $0x3e0] sm:$0xff]
    %v4406 = vld [vmem:[#allocation7 + $0x3e8] sm:$0xff]
    %v4407 = vld [vmem:[#allocation7 + $0x3f0] sm:$0xff]
    %v4408 = vld [vmem:[#allocation7 + $0x3f8] sm:$0xff]
    %v4409 = vld [vmem:[#allocation9] sm:$0xf]
    %v4411 = vlaneseq
    %v4412 = vshrl.u32 %v4411, 7
    %v4413 = vsub.s32 0, %v4412
    %v4414 = vrot.slane %v4409, %v4413
    %v4415 = vlaneseq
    %v4416 = vshrl.u32 %v4415, 7
    %v4417 = vsub.s32 1, %v4416
    %v4418 = vrot.slane %v4409, %v4417
    %v4419 = vlaneseq
    %v4420 = vshrl.u32 %v4419, 7
    %v4421 = vsub.s32 2, %v4420
    %v4422 = vrot.slane %v4409, %v4421
    %v4423 = vlaneseq
    %v4424 = vshrl.u32 %v4423, 7
    %v4425 = vsub.s32 3, %v4424
    %v4426 = vrot.slane %v4409, %v4425
    %4431 = vmatprep.subr.mxu0 %v4282
    %4432 = vmatpush1.msra.mxu0 %v4281
    %4433 = vmatprep.subr.mxu0 %v4286
    %4434 = vmatpush1.msra.mxu0 %v4285
    %4435 = vmatprep.subr.mxu0 %v4290
    %4436 = vmatpush1.msra.mxu0 %v4289
    %4437 = vmatprep.subr.mxu0 %v4294
    %4438 = vmatpush1.msra.mxu0 %v4293
    %4439 = vmatprep.subr.mxu0 %v4298
    %4440 = vmatpush1.msra.mxu0 %v4297
    %4441 = vmatprep.subr.mxu0 %v4302
    %4442 = vmatpush1.msra.mxu0 %v4301
    %4443 = vmatprep.subr.mxu0 %v4306
    %4444 = vmatpush1.msra.mxu0 %v4305
    %4445 = vmatprep.subr.mxu0 %v4310
    %4446 = vmatpush1.msra.mxu0 %v4309
    %4447 = vmatprep.subr.mxu0 %v4314
    %4448 = vmatpush1.msra.mxu0 %v4313
    %4449 = vmatprep.subr.mxu0 %v4318
    %4450 = vmatpush1.msra.mxu0 %v4317
    %4451 = vmatprep.subr.mxu0 %v4322
    %4452 = vmatpush1.msra.mxu0 %v4321
    %4453 = vmatprep.subr.mxu0 %v4326
    %4454 = vmatpush1.msra.mxu0 %v4325
    %4455 = vmatprep.subr.mxu0 %v4330
    %4456 = vmatpush1.msra.mxu0 %v4329
    %4457 = vmatprep.subr.mxu0 %v4334
    %4458 = vmatpush1.msra.mxu0 %v4333
    %4459 = vmatprep.subr.mxu0 %v4338
    %4460 = vmatpush1.msra.mxu0 %v4337
    %4461 = vmatprep.subr.mxu0 %v4342
    %4462 = vmatpush1.msra.mxu0 %v4341
    %4463 = vmatprep.subr.mxu0 %v4346
    %4464 = vmatpush1.msra.mxu0 %v4345
    %4465 = vmatprep.subr.mxu0 %v4350
    %4466 = vmatpush1.msra.mxu0 %v4349
    %4467 = vmatprep.subr.mxu0 %v4354
    %4468 = vmatpush1.msra.mxu0 %v4353
    %4469 = vmatprep.subr.mxu0 %v4358
    %4470 = vmatpush1.msra.mxu0 %v4357
    %4471 = vmatprep.subr.mxu0 %v4362
    %4472 = vmatpush1.msra.mxu0 %v4361
    %4473 = vmatprep.subr.mxu0 %v4366
    %4474 = vmatpush1.msra.mxu0 %v4365
    %4475 = vmatprep.subr.mxu0 %v4370
    %4476 = vmatpush1.msra.mxu0 %v4369
    %4477 = vmatprep.subr.mxu0 %v4374
    %4478 = vmatpush1.msra.mxu0 %v4373
    %4479 = vmatprep.subr.mxu0 %v4378
    %4480 = vmatpush1.msra.mxu0 %v4377
    %4481 = vmatprep.subr.mxu0 %v4382
    %4482 = vmatpush1.msra.mxu0 %v4381
    %4483 = vmatprep.subr.mxu0 %v4386
    %4484 = vmatpush1.msra.mxu0 %v4385
    %4485 = vmatprep.subr.mxu0 %v4390
    %4486 = vmatpush1.msra.mxu0 %v4389
    %4487 = vmatprep.subr.mxu0 %v4394
    %4488 = vmatpush1.msra.mxu0 %v4393
    %4489 = vmatprep.subr.mxu0 %v4398
    %4490 = vmatpush1.msra.mxu0 %v4397
    %4491 = vmatprep.subr.mxu0 %v4402
    %4492 = vmatpush1.msra.mxu0 %v4401
    %4493 = vmatprep.subr.mxu0 %v4406
    %4494 = vmatpush1.msra.mxu0 %v4405
    %4495 = vmatprep.mubr.f32.mxu0 %v4278
    %4496 = vmatmul.mubr.f32.gmra.mrb[0].mxu0 %v4277
    %v4497 = vpop.f32.mrb[0].mxu0
    %v4498 = vadd.f32 %v4414, %v4497
    %v4499 = vpop.f32.mrb[0].mxu0
    %v4500 = vadd.f32 %v4418, %v4499
    %4501 = vmatprep.mubr.f32.mxu0 %v4280
    %4502 = vmatmul.mubr.f32.gmra.mrb[0].mxu0 %v4279
    %v4503 = vpop.f32.mrb[0].mxu0
    %v4504 = vadd.f32 %v4414, %v4503
    %v4505 = vpop.f32.mrb[0].mxu0
    %v4506 = vadd.f32 %v4418, %v4505
    %4507 = vdwg.mxu0
    %4508 = vmatprep.subr.mxu0 %v4284
    %4509 = vmatpush1.msra.mxu0 %v4283
    %4510 = vmatprep.subr.mxu0 %v4288
    %4511 = vmatpush1.msra.mxu0 %v4287
    %4512 = vmatprep.subr.mxu0 %v4292
    %4513 = vmatpush1.msra.mxu0 %v4291
    %4514 = vmatprep.subr.mxu0 %v4296
    %4515 = vmatpush1.msra.mxu0 %v4295
    %4516 = vmatprep.subr.mxu0 %v4300
    %4517 = vmatpush1.msra.mxu0 %v4299
    %4518 = vmatprep.subr.mxu0 %v4304
    %4519 = vmatpush1.msra.mxu0 %v4303
    %4520 = vmatprep.subr.mxu0 %v4308
    %4521 = vmatpush1.msra.mxu0 %v4307
    %4522 = vmatprep.subr.mxu0 %v4312
    %4523 = vmatpush1.msra.mxu0 %v4311
    %4524 = vmatprep.subr.mxu0 %v4316
    %4525 = vmatpush1.msra.mxu0 %v4315
    %4526 = vmatprep.subr.mxu0 %v4320
    %4527 = vmatpush1.msra.mxu0 %v4319
    %4528 = vmatprep.subr.mxu0 %v4324
    %4529 = vmatpush1.msra.mxu0 %v4323
    %4530 = vmatprep.subr.mxu0 %v4328
    %4531 = vmatpush1.msra.mxu0 %v4327
    %4532 = vmatprep.subr.mxu0 %v4332
    %4533 = vmatpush1.msra.mxu0 %v4331
    %4534 = vmatprep.subr.mxu0 %v4336
    %4535 = vmatpush1.msra.mxu0 %v4335
    %4536 = vmatprep.subr.mxu0 %v4340
    %4537 = vmatpush1.msra.mxu0 %v4339
    %4538 = vmatprep.subr.mxu0 %v4344
    %4539 = vmatpush1.msra.mxu0 %v4343
    %4540 = vmatprep.subr.mxu0 %v4348
    %4541 = vmatpush1.msra.mxu0 %v4347
    %4542 = vmatprep.subr.mxu0 %v4352
    %4543 = vmatpush1.msra.mxu0 %v4351
    %4544 = vmatprep.subr.mxu0 %v4356
    %4545 = vmatpush1.msra.mxu0 %v4355
    %4546 = vmatprep.subr.mxu0 %v4360
    %4547 = vmatpush1.msra.mxu0 %v4359
    %4548 = vmatprep.subr.mxu0 %v4364
    %4549 = vmatpush1.msra.mxu0 %v4363
    %4550 = vmatprep.subr.mxu0 %v4368
    %4551 = vmatpush1.msra.mxu0 %v4367
    %4552 = vmatprep.subr.mxu0 %v4372
    %4553 = vmatpush1.msra.mxu0 %v4371
    %4554 = vmatprep.subr.mxu0 %v4376
    %4555 = vmatpush1.msra.mxu0 %v4375
    %4556 = vmatprep.subr.mxu0 %v4380
    %4557 = vmatpush1.msra.mxu0 %v4379
    %4558 = vmatprep.subr.mxu0 %v4384
    %4559 = vmatpush1.msra.mxu0 %v4383
    %4560 = vmatprep.subr.mxu0 %v4388
    %4561 = vmatpush1.msra.mxu0 %v4387
    %4562 = vmatprep.subr.mxu0 %v4392
    %4563 = vmatpush1.msra.mxu0 %v4391
    %4564 = vmatprep.subr.mxu0 %v4396
    %4565 = vmatpush1.msra.mxu0 %v4395
    %4566 = vmatprep.subr.mxu0 %v4400
    %4567 = vmatpush1.msra.mxu0 %v4399
    %4568 = vmatprep.subr.mxu0 %v4404
    %4569 = vmatpush1.msra.mxu0 %v4403
    %4570 = vmatprep.subr.mxu0 %v4408
    %4571 = vmatpush1.msra.mxu0 %v4407
    %4572 = vmatprep.mubr.f32.mxu0 %v4278
    %4573 = vmatmul.mubr.f32.gmra.mrb[0].mxu0 %v4277
    %v4574 = vpop.f32.mrb[0].mxu0
    %v4575 = vadd.f32 %v4422, %v4574
    %v4576 = vpop.f32.mrb[0].mxu0
    %v4577 = vadd.f32 %v4426, %v4576
    %4578 = vmatprep.mubr.f32.mxu0 %v4280
    %4579 = vmatmul.mubr.f32.gmra.mrb[0].mxu0 %v4279
    %v4580 = vpop.f32.mrb[0].mxu0
    %v4581 = vadd.f32 %v4422, %v4580
    %v4582 = vpop.f32.mrb[0].mxu0
    %v4583 = vadd.f32 %v4426, %v4582
    %4584 = vdwg.mxu0
    %v4585 = vld [vmem:[%s7] sm:$0xff]
    %v4586 = vld [vmem:[%s7 + $0x8] sm:$0xff]
    %v4587 = vld [vmem:[%s7 + $0x10] sm:$0xff]
    %v4588 = vld [vmem:[%s7 + $0x18] sm:$0xff]
    %v4589 = vld [vmem:[%s7 + $0x20] sm:$0xff]
    %v4590 = vld [vmem:[%s7 + $0x28] sm:$0xff]
    %v4591 = vld [vmem:[%s7 + $0x30] sm:$0xff]
    %v4592 = vld [vmem:[%s7 + $0x38] sm:$0xff]
    %v4593 = vld [vmem:[%s7 + $0x40] sm:$0xff]
    %v4594 = vld [vmem:[%s7 + $0x48] sm:$0xff]
    %v4595 = vld [vmem:[%s7 + $0x50] sm:$0xff]
    %v4596 = vld [vmem:[%s7 + $0x58] sm:$0xff]
    %v4597 = vld [vmem:[%s7 + $0x60] sm:$0xff]
    %v4598 = vld [vmem:[%s7 + $0x68] sm:$0xff]
    %v4599 = vld [vmem:[%s7 + $0x70] sm:$0xff]
    %v4600 = vld [vmem:[%s7 + $0x78] sm:$0xff]
    %v4601 = vld [vmem:[%s7 + $0x80] sm:$0xff]
    %v4602 = vld [vmem:[%s7 + $0x88] sm:$0xff]
    %v4603 = vld [vmem:[%s7 + $0x90] sm:$0xff]
    %v4604 = vld [vmem:[%s7 + $0x98] sm:$0xff]
    %v4605 = vld [vmem:[%s7 + $0xa0] sm:$0xff]
    %v4606 = vld [vmem:[%s7 + $0xa8] sm:$0xff]
    %v4607 = vld [vmem:[%s7 + $0xb0] sm:$0xff]
    %v4608 = vld [vmem:[%s7 + $0xb8] sm:$0xff]
    %v4609 = vld [vmem:[%s7 + $0xc0] sm:$0xff]
    %v4610 = vld [vmem:[%s7 + $0xc8] sm:$0xff]
    %v4611 = vld [vmem:[%s7 + $0xd0] sm:$0xff]
    %v4612 = vld [vmem:[%s7 + $0xd8] sm:$0xff]
    %v4613 = vld [vmem:[%s7 + $0xe0] sm:$0xff]
    %v4614 = vld [vmem:[%s7 + $0xe8] sm:$0xff]
    %v4615 = vld [vmem:[%s7 + $0xf0] sm:$0xff]
    %v4616 = vld [vmem:[%s7 + $0xf8] sm:$0xff]
    %v4617 = vld [vmem:[%s7 + $0x100] sm:$0xff]
    %v4618 = vld [vmem:[%s7 + $0x108] sm:$0xff]
    %v4619 = vld [vmem:[%s7 + $0x110] sm:$0xff]
    %v4620 = vld [vmem:[%s7 + $0x118] sm:$0xff]
    %v4621 = vld [vmem:[%s7 + $0x120] sm:$0xff]
    %v4622 = vld [vmem:[%s7 + $0x128] sm:$0xff]
    %v4623 = vld [vmem:[%s7 + $0x130] sm:$0xff]
    %v4624 = vld [vmem:[%s7 + $0x138] sm:$0xff]
    %v4625 = vld [vmem:[%s7 + $0x140] sm:$0xff]
    %v4626 = vld [vmem:[%s7 + $0x148] sm:$0xff]
    %v4627 = vld [vmem:[%s7 + $0x150] sm:$0xff]
    %v4628 = vld [vmem:[%s7 + $0x158] sm:$0xff]
    %v4629 = vld [vmem:[%s7 + $0x160] sm:$0xff]
    %v4630 = vld [vmem:[%s7 + $0x168] sm:$0xff]
    %v4631 = vld [vmem:[%s7 + $0x170] sm:$0xff]
    %v4632 = vld [vmem:[%s7 + $0x178] sm:$0xff]
    %v4633 = vld [vmem:[%s7 + $0x180] sm:$0xff]
    %v4634 = vld [vmem:[%s7 + $0x188] sm:$0xff]
    %v4635 = vld [vmem:[%s7 + $0x190] sm:$0xff]
    %v4636 = vld [vmem:[%s7 + $0x198] sm:$0xff]
    %v4637 = vld [vmem:[%s7 + $0x1a0] sm:$0xff]
    %v4638 = vld [vmem:[%s7 + $0x1a8] sm:$0xff]
    %v4639 = vld [vmem:[%s7 + $0x1b0] sm:$0xff]
    %v4640 = vld [vmem:[%s7 + $0x1b8] sm:$0xff]
    %v4641 = vld [vmem:[%s7 + $0x1c0] sm:$0xff]
    %v4642 = vld [vmem:[%s7 + $0x1c8] sm:$0xff]
    %v4643 = vld [vmem:[%s7 + $0x1d0] sm:$0xff]
    %v4644 = vld [vmem:[%s7 + $0x1d8] sm:$0xff]
    %v4645 = vld [vmem:[%s7 + $0x1e0] sm:$0xff]
    %v4646 = vld [vmem:[%s7 + $0x1e8] sm:$0xff]
    %v4647 = vld [vmem:[%s7 + $0x1f0] sm:$0xff]
    %v4648 = vld [vmem:[%s7 + $0x1f8] sm:$0xff]
    %4649 = vmatprep.subr.mxu0 0.0
    %4650 = vmatpush1.msra.mxu0 %v4585
    %4651 = vmatprep.subr.mxu0 0.0
    %4652 = vmatpush1.msra.mxu0 %v4586
    %4653 = vmatprep.subr.mxu0 0.0
    %4654 = vmatpush1.msra.mxu0 %v4587
    %4655 = vmatprep.subr.mxu0 0.0
    %4656 = vmatpush1.msra.mxu0 %v4588
    %4657 = vmatprep.subr.mxu0 0.0
    %4658 = vmatpush1.msra.mxu0 %v4589
    %4659 = vmatprep.subr.mxu0 0.0
    %4660 = vmatpush1.msra.mxu0 %v4590
    %4661 = vmatprep.subr.mxu0 0.0
    %4662 = vmatpush1.msra.mxu0 %v4591
    %4663 = vmatprep.subr.mxu0 0.0
    %4664 = vmatpush1.msra.mxu0 %v4592
    %4665 = vmatprep.subr.mxu0 0.0
    %4666 = vmatpush1.msra.mxu0 %v4593
    %4667 = vmatprep.subr.mxu0 0.0
    %4668 = vmatpush1.msra.mxu0 %v4594
    %4669 = vmatprep.subr.mxu0 0.0
    %4670 = vmatpush1.msra.mxu0 %v4595
    %4671 = vmatprep.subr.mxu0 0.0
    %4672 = vmatpush1.msra.mxu0 %v4596
    %4673 = vmatprep.subr.mxu0 0.0
    %4674 = vmatpush1.msra.mxu0 %v4597
    %4675 = vmatprep.subr.mxu0 0.0
    %4676 = vmatpush1.msra.mxu0 %v4598
    %4677 = vmatprep.subr.mxu0 0.0
    %4678 = vmatpush1.msra.mxu0 %v4599
    %4679 = vmatprep.subr.mxu0 0.0
    %4680 = vmatpush1.msra.mxu0 %v4600
    %4681 = vmatprep.subr.mxu0 0.0
    %4682 = vmatpush1.msra.mxu0 %v4601
    %4683 = vmatprep.subr.mxu0 0.0
    %4684 = vmatpush1.msra.mxu0 %v4602
    %4685 = vmatprep.subr.mxu0 0.0
    %4686 = vmatpush1.msra.mxu0 %v4603
    %4687 = vmatprep.subr.mxu0 0.0
    %4688 = vmatpush1.msra.mxu0 %v4604
    %4689 = vmatprep.subr.mxu0 0.0
    %4690 = vmatpush1.msra.mxu0 %v4605
    %4691 = vmatprep.subr.mxu0 0.0
    %4692 = vmatpush1.msra.mxu0 %v4606
    %4693 = vmatprep.subr.mxu0 0.0
    %4694 = vmatpush1.msra.mxu0 %v4607
    %4695 = vmatprep.subr.mxu0 0.0
    %4696 = vmatpush1.msra.mxu0 %v4608
    %4697 = vmatprep.subr.mxu0 0.0
    %4698 = vmatpush1.msra.mxu0 %v4609
    %4699 = vmatprep.subr.mxu0 0.0
    %4700 = vmatpush1.msra.mxu0 %v4610
    %4701 = vmatprep.subr.mxu0 0.0
    %4702 = vmatpush1.msra.mxu0 %v4611
    %4703 = vmatprep.subr.mxu0 0.0
    %4704 = vmatpush1.msra.mxu0 %v4612
    %4705 = vmatprep.subr.mxu0 0.0
    %4706 = vmatpush1.msra.mxu0 %v4613
    %4707 = vmatprep.subr.mxu0 0.0
    %4708 = vmatpush1.msra.mxu0 %v4614
    %4709 = vmatprep.subr.mxu0 0.0
    %4710 = vmatpush1.msra.mxu0 %v4615
    %4711 = vmatprep.subr.mxu0 0.0
    %4712 = vmatpush1.msra.mxu0 %v4616
    %4713 = vmatprep.mubr.f32.mxu0 %v4500
    %4714 = vmatmul.mubr.f32.gmra.mrb[0].mxu0 %v4498
    %v4715 = vpop.f32.mrb[0].mxu0
    %v4716 = vadd.f32 0.0, %v4715
    %v4717 = vpop.f32.mrb[0].mxu0
    %4718 = vmatprep.mubr.f32.mxu0 %v4506
    %4719 = vmatmul.mubr.f32.gmra.mrb[0].mxu0 %v4504
    %v4720 = vpop.f32.mrb[0].mxu0
    %v4721 = vadd.f32 0.0, %v4720
    %v4722 = vpop.f32.mrb[0].mxu0
    %4723 = vdwg.mxu0
    %4724 = vmatprep.subr.mxu0 0.0
    %4725 = vmatpush1.msra.mxu0 %v4617
    %4726 = vmatprep.subr.mxu0 0.0
    %4727 = vmatpush1.msra.mxu0 %v4618
    %4728 = vmatprep.subr.mxu0 0.0
    %4729 = vmatpush1.msra.mxu0 %v4619
    %4730 = vmatprep.subr.mxu0 0.0
    %4731 = vmatpush1.msra.mxu0 %v4620
    %4732 = vmatprep.subr.mxu0 0.0
    %4733 = vmatpush1.msra.mxu0 %v4621
    %4734 = vmatprep.subr.mxu0 0.0
    %4735 = vmatpush1.msra.mxu0 %v4622
    %4736 = vmatprep.subr.mxu0 0.0
    %4737 = vmatpush1.msra.mxu0 %v4623
    %4738 = vmatprep.subr.mxu0 0.0
    %4739 = vmatpush1.msra.mxu0 %v4624
    %4740 = vmatprep.subr.mxu0 0.0
    %4741 = vmatpush1.msra.mxu0 %v4625
    %4742 = vmatprep.subr.mxu0 0.0
    %4743 = vmatpush1.msra.mxu0 %v4626
    %4744 = vmatprep.subr.mxu0 0.0
    %4745 = vmatpush1.msra.mxu0 %v4627
    %4746 = vmatprep.subr.mxu0 0.0
    %4747 = vmatpush1.msra.mxu0 %v4628
    %4748 = vmatprep.subr.mxu0 0.0
    %4749 = vmatpush1.msra.mxu0 %v4629
    %4750 = vmatprep.subr.mxu0 0.0
    %4751 = vmatpush1.msra.mxu0 %v4630
    %4752 = vmatprep.subr.mxu0 0.0
    %4753 = vmatpush1.msra.mxu0 %v4631
    %4754 = vmatprep.subr.mxu0 0.0
    %4755 = vmatpush1.msra.mxu0 %v4632
    %4756 = vmatprep.subr.mxu0 0.0
    %4757 = vmatpush1.msra.mxu0 %v4633
    %4758 = vmatprep.subr.mxu0 0.0
    %4759 = vmatpush1.msra.mxu0 %v4634
    %4760 = vmatprep.subr.mxu0 0.0
    %4761 = vmatpush1.msra.mxu0 %v4635
    %4762 = vmatprep.subr.mxu0 0.0
    %4763 = vmatpush1.msra.mxu0 %v4636
    %4764 = vmatprep.subr.mxu0 0.0
    %4765 = vmatpush1.msra.mxu0 %v4637
    %4766 = vmatprep.subr.mxu0 0.0
    %4767 = vmatpush1.msra.mxu0 %v4638
    %4768 = vmatprep.subr.mxu0 0.0
    %4769 = vmatpush1.msra.mxu0 %v4639
    %4770 = vmatprep.subr.mxu0 0.0
    %4771 = vmatpush1.msra.mxu0 %v4640
    %4772 = vmatprep.subr.mxu0 0.0
    %4773 = vmatpush1.msra.mxu0 %v4641
    %4774 = vmatprep.subr.mxu0 0.0
    %4775 = vmatpush1.msra.mxu0 %v4642
    %4776 = vmatprep.subr.mxu0 0.0
    %4777 = vmatpush1.msra.mxu0 %v4643
    %4778 = vmatprep.subr.mxu0 0.0
    %4779 = vmatpush1.msra.mxu0 %v4644
    %4780 = vmatprep.subr.mxu0 0.0
    %4781 = vmatpush1.msra.mxu0 %v4645
    %4782 = vmatprep.subr.mxu0 0.0
    %4783 = vmatpush1.msra.mxu0 %v4646
    %4784 = vmatprep.subr.mxu0 0.0
    %4785 = vmatpush1.msra.mxu0 %v4647
    %4786 = vmatprep.subr.mxu0 0.0
    %4787 = vmatpush1.msra.mxu0 %v4648
    %4788 = vmatprep.mubr.f32.mxu0 %v4577
    %4789 = vmatmul.mubr.f32.gmra.mrb[0].mxu0 %v4575
    %v4790 = vpop.f32.mrb[0].mxu0
    %v4791 = vadd.f32 %v4716, %v4790
    %v4792 = vpop.f32.mrb[0].mxu0
    %4793 = vmatprep.mubr.f32.mxu0 %v4583
    %4794 = vmatmul.mubr.f32.gmra.mrb[0].mxu0 %v4581
    %v4795 = vpop.f32.mrb[0].mxu0
    %v4796 = vadd.f32 %v4721, %v4795
    %v4797 = vpop.f32.mrb[0].mxu0
    %4798 = vdwg.mxu0
    %v4799 = vld [vmem:[#allocation10] sm:$0xff]
    %v4800 = vld [vmem:[#allocation10 + $0x8] sm:$0xff]
    %v4801 = vld [vmem:[#allocation10 + $0x10] sm:$0xff]
    %v4802 = vld [vmem:[#allocation10 + $0x18] sm:$0xff]
    %v4803 = vld [vmem:[#allocation10 + $0x20] sm:$0xff]
    %v4804 = vld [vmem:[#allocation10 + $0x28] sm:$0xff]
    %v4805 = vld [vmem:[#allocation10 + $0x30] sm:$0xff]
    %v4806 = vld [vmem:[#allocation10 + $0x38] sm:$0xff]
    %v4807 = vld [vmem:[#allocation10 + $0x40] sm:$0xff]
    %v4808 = vld [vmem:[#allocation10 + $0x48] sm:$0xff]
    %v4809 = vld [vmem:[#allocation10 + $0x50] sm:$0xff]
    %v4810 = vld [vmem:[#allocation10 + $0x58] sm:$0xff]
    %v4811 = vld [vmem:[#allocation10 + $0x60] sm:$0xff]
    %v4812 = vld [vmem:[#allocation10 + $0x68] sm:$0xff]
    %v4813 = vld [vmem:[#allocation10 + $0x70] sm:$0xff]
    %v4814 = vld [vmem:[#allocation10 + $0x78] sm:$0xff]
    %v4815 = vld [vmem:[#allocation10 + $0x80] sm:$0xff]
    %v4816 = vld [vmem:[#allocation10 + $0x88] sm:$0xff]
    %v4817 = vld [vmem:[#allocation10 + $0x90] sm:$0xff]
    %v4818 = vld [vmem:[#allocation10 + $0x98] sm:$0xff]
    %v4819 = vld [vmem:[#allocation10 + $0xa0] sm:$0xff]
    %v4820 = vld [vmem:[#allocation10 + $0xa8] sm:$0xff]
    %v4821 = vld [vmem:[#allocation10 + $0xb0] sm:$0xff]
    %v4822 = vld [vmem:[#allocation10 + $0xb8] sm:$0xff]
    %v4823 = vld [vmem:[#allocation10 + $0xc0] sm:$0xff]
    %v4824 = vld [vmem:[#allocation10 + $0xc8] sm:$0xff]
    %v4825 = vld [vmem:[#allocation10 + $0xd0] sm:$0xff]
    %v4826 = vld [vmem:[#allocation10 + $0xd8] sm:$0xff]
    %v4827 = vld [vmem:[#allocation10 + $0xe0] sm:$0xff]
    %v4828 = vld [vmem:[#allocation10 + $0xe8] sm:$0xff]
    %v4829 = vld [vmem:[#allocation10 + $0xf0] sm:$0xff]
    %v4830 = vld [vmem:[#allocation10 + $0xf8] sm:$0xff]
    %v4832 = vsel %vm3407, %v4791, 0
    %v4835 = vsel %vm3407, %v4796, 0
    %4837 = vmatprep.subr.mxu0 %v4800
    %4838 = vmatpush1.msra.mxu0 %v4799
    %4839 = vmatprep.subr.mxu0 %v4804
    %4840 = vmatpush1.msra.mxu0 %v4803
    %4841 = vmatprep.subr.mxu0 %v4808
    %4842 = vmatpush1.msra.mxu0 %v4807
    %4843 = vmatprep.subr.mxu0 %v4812
    %4844 = vmatpush1.msra.mxu0 %v4811
    %4845 = vmatprep.subr.mxu0 %v4816
    %4846 = vmatpush1.msra.mxu0 %v4815
    %4847 = vmatprep.subr.mxu0 %v4820
    %4848 = vmatpush1.msra.mxu0 %v4819
    %4849 = vmatprep.subr.mxu0 %v4824
    %4850 = vmatpush1.msra.mxu0 %v4823
    %4851 = vmatprep.subr.mxu0 %v4828
    %4852 = vmatpush1.msra.mxu0 %v4827
    %4853 = vmatprep.subr.mxu0 0.0
    %4854 = vmatpush1.msra.mxu0 0.0
    %4855 = vmatprep.subr.mxu0 0.0
    %4856 = vmatpush1.msra.mxu0 0.0
    %4857 = vmatprep.subr.mxu0 0.0
    %4858 = vmatpush1.msra.mxu0 0.0
    %4859 = vmatprep.subr.mxu0 0.0
    %4860 = vmatpush1.msra.mxu0 0.0
    %4861 = vmatprep.subr.mxu0 0.0
    %4862 = vmatpush1.msra.mxu0 0.0
    %4863 = vmatprep.subr.mxu0 0.0
    %4864 = vmatpush1.msra.mxu0 0.0
    %4865 = vmatprep.subr.mxu0 0.0
    %4866 = vmatpush1.msra.mxu0 0.0
    %4867 = vmatprep.subr.mxu0 0.0
    %4868 = vmatpush1.msra.mxu0 0.0
    %4869 = vmatprep.subr.mxu0 0.0
    %4870 = vmatpush1.msra.mxu0 0.0
    %4871 = vmatprep.subr.mxu0 0.0
    %4872 = vmatpush1.msra.mxu0 0.0
    %4873 = vmatprep.subr.mxu0 0.0
    %4874 = vmatpush1.msra.mxu0 0.0
    %4875 = vmatprep.subr.mxu0 0.0
    %4876 = vmatpush1.msra.mxu0 0.0
    %4877 = vmatprep.subr.mxu0 0.0
    %4878 = vmatpush1.msra.mxu0 0.0
    %4879 = vmatprep.subr.mxu0 0.0
    %4880 = vmatpush1.msra.mxu0 0.0
    %4881 = vmatprep.subr.mxu0 0.0
    %4882 = vmatpush1.msra.mxu0 0.0
    %4883 = vmatprep.subr.mxu0 0.0
    %4884 = vmatpush1.msra.mxu0 0.0
    %4885 = vmatprep.subr.mxu0 0.0
    %4886 = vmatpush1.msra.mxu0 0.0
    %4887 = vmatprep.subr.mxu0 0.0
    %4888 = vmatpush1.msra.mxu0 0.0
    %4889 = vmatprep.subr.mxu0 0.0
    %4890 = vmatpush1.msra.mxu0 0.0
    %4891 = vmatprep.subr.mxu0 0.0
    %4892 = vmatpush1.msra.mxu0 0.0
    %4893 = vmatprep.subr.mxu0 0.0
    %4894 = vmatpush1.msra.mxu0 0.0
    %4895 = vmatprep.subr.mxu0 0.0
    %4896 = vmatpush1.msra.mxu0 0.0
    %4897 = vmatprep.subr.mxu0 0.0
    %4898 = vmatpush1.msra.mxu0 0.0
    %4899 = vmatprep.subr.mxu0 0.0
    %4900 = vmatpush1.msra.mxu0 0.0
    %4901 = vmatprep.mubr.f32.mxu0 0.0
    %4902 = vmatmul.mubr.f32.gmra.mrb[0].mxu0 %v4832
    %v4903 = vpop.f32.mrb[0].mxu0
    %v4904 = vadd.f32 0.0, %v4903
    %v4905 = vpop.f32.mrb[0].mxu0
    %v4906 = vadd.f32 0.0, %v4905
    %4907 = vmatprep.mubr.f32.mxu0 0.0
    %4908 = vmatmul.mubr.f32.gmra.mrb[0].mxu0 %v4835
    %v4909 = vpop.f32.mrb[0].mxu0
    %v4910 = vadd.f32 0.0, %v4909
    %v4911 = vpop.f32.mrb[0].mxu0
    %v4912 = vadd.f32 0.0, %v4911
    %4913 = vdwg.mxu0
    %4914 = vmatprep.subr.mxu0 %v4802
    %4915 = vmatpush1.msra.mxu0 %v4801
    %4916 = vmatprep.subr.mxu0 %v4806
    %4917 = vmatpush1.msra.mxu0 %v4805
    %4918 = vmatprep.subr.mxu0 %v4810
    %4919 = vmatpush1.msra.mxu0 %v4809
    %4920 = vmatprep.subr.mxu0 %v4814
    %4921 = vmatpush1.msra.mxu0 %v4813
    %4922 = vmatprep.subr.mxu0 %v4818
    %4923 = vmatpush1.msra.mxu0 %v4817
    %4924 = vmatprep.subr.mxu0 %v4822
    %4925 = vmatpush1.msra.mxu0 %v4821
    %4926 = vmatprep.subr.mxu0 %v4826
    %4927 = vmatpush1.msra.mxu0 %v4825
    %4928 = vmatprep.subr.mxu0 %v4830
    %4929 = vmatpush1.msra.mxu0 %v4829
    %4930 = vmatprep.subr.mxu0 0.0
    %4931 = vmatpush1.msra.mxu0 0.0
    %4932 = vmatprep.subr.mxu0 0.0
    %4933 = vmatpush1.msra.mxu0 0.0
    %4934 = vmatprep.subr.mxu0 0.0
    %4935 = vmatpush1.msra.mxu0 0.0
    %4936 = vmatprep.subr.mxu0 0.0
    %4937 = vmatpush1.msra.mxu0 0.0
    %4938 = vmatprep.subr.mxu0 0.0
    %4939 = vmatpush1.msra.mxu0 0.0
    %4940 = vmatprep.subr.mxu0 0.0
    %4941 = vmatpush1.msra.mxu0 0.0
    %4942 = vmatprep.subr.mxu0 0.0
    %4943 = vmatpush1.msra.mxu0 0.0
    %4944 = vmatprep.subr.mxu0 0.0
    %4945 = vmatpush1.msra.mxu0 0.0
    %4946 = vmatprep.subr.mxu0 0.0
    %4947 = vmatpush1.msra.mxu0 0.0
    %4948 = vmatprep.subr.mxu0 0.0
    %4949 = vmatpush1.msra.mxu0 0.0
    %4950 = vmatprep.subr.mxu0 0.0
    %4951 = vmatpush1.msra.mxu0 0.0
    %4952 = vmatprep.subr.mxu0 0.0
    %4953 = vmatpush1.msra.mxu0 0.0
    %4954 = vmatprep.subr.mxu0 0.0
    %4955 = vmatpush1.msra.mxu0 0.0
    %4956 = vmatprep.subr.mxu0 0.0
    %4957 = vmatpush1.msra.mxu0 0.0
    %4958 = vmatprep.subr.mxu0 0.0
    %4959 = vmatpush1.msra.mxu0 0.0
    %4960 = vmatprep.subr.mxu0 0.0
    %4961 = vmatpush1.msra.mxu0 0.0
    %4962 = vmatprep.subr.mxu0 0.0
    %4963 = vmatpush1.msra.mxu0 0.0
    %4964 = vmatprep.subr.mxu0 0.0
    %4965 = vmatpush1.msra.mxu0 0.0
    %4966 = vmatprep.subr.mxu0 0.0
    %4967 = vmatpush1.msra.mxu0 0.0
    %4968 = vmatprep.subr.mxu0 0.0
    %4969 = vmatpush1.msra.mxu0 0.0
    %4970 = vmatprep.subr.mxu0 0.0
    %4971 = vmatpush1.msra.mxu0 0.0
    %4972 = vmatprep.subr.mxu0 0.0
    %4973 = vmatpush1.msra.mxu0 0.0
    %4974 = vmatprep.subr.mxu0 0.0
    %4975 = vmatpush1.msra.mxu0 0.0
    %4976 = vmatprep.subr.mxu0 0.0
    %4977 = vmatpush1.msra.mxu0 0.0
    %4978 = vmatprep.mubr.f32.mxu0 0.0
    %4979 = vmatmul.mubr.f32.gmra.mrb[0].mxu0 %v4832
    %v4980 = vpop.f32.mrb[0].mxu0
    %v4981 = vadd.f32 0.0, %v4980
    %v4982 = vpop.f32.mrb[0].mxu0
    %v4983 = vadd.f32 0.0, %v4982
    %4984 = vmatprep.mubr.f32.mxu0 0.0
    %4985 = vmatmul.mubr.f32.gmra.mrb[0].mxu0 %v4835
    %v4986 = vpop.f32.mrb[0].mxu0
    %v4987 = vadd.f32 0.0, %v4986
    %v4988 = vpop.f32.mrb[0].mxu0
    %v4989 = vadd.f32 0.0, %v4988
    %4990 = vdwg.mxu0
    %v4991 = vsub.f32 %v4498, %v4904
    %v4992 = vsub.f32 %v4500, %v4906
    %v4993 = vsub.f32 %v4575, %v4981
    %v4994 = vsub.f32 %v4577, %v4983
    %v4995 = vsub.f32 %v4504, %v4910
    %v4996 = vsub.f32 %v4506, %v4912
    %v4997 = vsub.f32 %v4581, %v4987
    %v4998 = vsub.f32 %v4583, %v4989
    %v4999 = vmul.f32 %v4991, %v4991
    %v5000 = vmul.f32 %v4992, %v4992
    %v5001 = vmul.f32 %v4993, %v4993
    %v5002 = vmul.f32 %v4994, %v4994
    %v5003 = vmul.f32 %v4995, %v4995
    %v5004 = vmul.f32 %v4996, %v4996
    %v5005 = vmul.f32 %v4997, %v4997
    %v5006 = vmul.f32 %v4998, %v4998
    %5007 = vmatprep.subr.mxu0 0.0
    %5008 = vmatpush1.msra.mxu0 %v4585
    %5009 = vmatprep.subr.mxu0 0.0
    %5010 = vmatpush1.msra.mxu0 %v4586
    %5011 = vmatprep.subr.mxu0 0.0
    %5012 = vmatpush1.msra.mxu0 %v4587
    %5013 = vmatprep.subr.mxu0 0.0
    %5014 = vmatpush1.msra.mxu0 %v4588
    %5015 = vmatprep.subr.mxu0 0.0
    %5016 = vmatpush1.msra.mxu0 %v4589
    %5017 = vmatprep.subr.mxu0 0.0
    %5018 = vmatpush1.msra.mxu0 %v4590
    %5019 = vmatprep.subr.mxu0 0.0
    %5020 = vmatpush1.msra.mxu0 %v4591
    %5021 = vmatprep.subr.mxu0 0.0
    %5022 = vmatpush1.msra.mxu0 %v4592
    %5023 = vmatprep.subr.mxu0 0.0
    %5024 = vmatpush1.msra.mxu0 %v4593
    %5025 = vmatprep.subr.mxu0 0.0
    %5026 = vmatpush1.msra.mxu0 %v4594
    %5027 = vmatprep.subr.mxu0 0.0
    %5028 = vmatpush1.msra.mxu0 %v4595
    %5029 = vmatprep.subr.mxu0 0.0
    %5030 = vmatpush1.msra.mxu0 %v4596
    %5031 = vmatprep.subr.mxu0 0.0
    %5032 = vmatpush1.msra.mxu0 %v4597
    %5033 = vmatprep.subr.mxu0 0.0
    %5034 = vmatpush1.msra.mxu0 %v4598
    %5035 = vmatprep.subr.mxu0 0.0
    %5036 = vmatpush1.msra.mxu0 %v4599
    %5037 = vmatprep.subr.mxu0 0.0
    %5038 = vmatpush1.msra.mxu0 %v4600
    %5039 = vmatprep.subr.mxu0 0.0
    %5040 = vmatpush1.msra.mxu0 %v4601
    %5041 = vmatprep.subr.mxu0 0.0
    %5042 = vmatpush1.msra.mxu0 %v4602
    %5043 = vmatprep.subr.mxu0 0.0
    %5044 = vmatpush1.msra.mxu0 %v4603
    %5045 = vmatprep.subr.mxu0 0.0
    %5046 = vmatpush1.msra.mxu0 %v4604
    %5047 = vmatprep.subr.mxu0 0.0
    %5048 = vmatpush1.msra.mxu0 %v4605
    %5049 = vmatprep.subr.mxu0 0.0
    %5050 = vmatpush1.msra.mxu0 %v4606
    %5051 = vmatprep.subr.mxu0 0.0
    %5052 = vmatpush1.msra.mxu0 %v4607
    %5053 = vmatprep.subr.mxu0 0.0
    %5054 = vmatpush1.msra.mxu0 %v4608
    %5055 = vmatprep.subr.mxu0 0.0
    %5056 = vmatpush1.msra.mxu0 %v4609
    %5057 = vmatprep.subr.mxu0 0.0
    %5058 = vmatpush1.msra.mxu0 %v4610
    %5059 = vmatprep.subr.mxu0 0.0
    %5060 = vmatpush1.msra.mxu0 %v4611
    %5061 = vmatprep.subr.mxu0 0.0
    %5062 = vmatpush1.msra.mxu0 %v4612
    %5063 = vmatprep.subr.mxu0 0.0
    %5064 = vmatpush1.msra.mxu0 %v4613
    %5065 = vmatprep.subr.mxu0 0.0
    %5066 = vmatpush1.msra.mxu0 %v4614
    %5067 = vmatprep.subr.mxu0 0.0
    %5068 = vmatpush1.msra.mxu0 %v4615
    %5069 = vmatprep.subr.mxu0 0.0
    %5070 = vmatpush1.msra.mxu0 %v4616
    %5071 = vmatprep.mubr.f32.mxu0 %v5000
    %5072 = vmatmul.mubr.f32.gmra.mrb[0].mxu0 %v4999
    %v5073 = vpop.f32.mrb[0].mxu0
    %v5074 = vadd.f32 0.0, %v5073
    %v5075 = vpop.f32.mrb[0].mxu0
    %5076 = vmatprep.mubr.f32.mxu0 %v5004
    %5077 = vmatmul.mubr.f32.gmra.mrb[0].mxu0 %v5003
    %v5078 = vpop.f32.mrb[0].mxu0
    %v5079 = vadd.f32 0.0, %v5078
    %v5080 = vpop.f32.mrb[0].mxu0
    %5081 = vdwg.mxu0
    %5082 = vmatprep.subr.mxu0 0.0
    %5083 = vmatpush1.msra.mxu0 %v4617
    %5084 = vmatprep.subr.mxu0 0.0
    %5085 = vmatpush1.msra.mxu0 %v4618
    %5086 = vmatprep.subr.mxu0 0.0
    %5087 = vmatpush1.msra.mxu0 %v4619
    %5088 = vmatprep.subr.mxu0 0.0
    %5089 = vmatpush1.msra.mxu0 %v4620
    %5090 = vmatprep.subr.mxu0 0.0
    %5091 = vmatpush1.msra.mxu0 %v4621
    %5092 = vmatprep.subr.mxu0 0.0
    %5093 = vmatpush1.msra.mxu0 %v4622
    %5094 = vmatprep.subr.mxu0 0.0
    %5095 = vmatpush1.msra.mxu0 %v4623
    %5096 = vmatprep.subr.mxu0 0.0
    %5097 = vmatpush1.msra.mxu0 %v4624
    %5098 = vmatprep.subr.mxu0 0.0
    %5099 = vmatpush1.msra.mxu0 %v4625
    %5100 = vmatprep.subr.mxu0 0.0
    %5101 = vmatpush1.msra.mxu0 %v4626
    %5102 = vmatprep.subr.mxu0 0.0
    %5103 = vmatpush1.msra.mxu0 %v4627
    %5104 = vmatprep.subr.mxu0 0.0
    %5105 = vmatpush1.msra.mxu0 %v4628
    %5106 = vmatprep.subr.mxu0 0.0
    %5107 = vmatpush1.msra.mxu0 %v4629
    %5108 = vmatprep.subr.mxu0 0.0
    %5109 = vmatpush1.msra.mxu0 %v4630
    %5110 = vmatprep.subr.mxu0 0.0
    %5111 = vmatpush1.msra.mxu0 %v4631
    %5112 = vmatprep.subr.mxu0 0.0
    %5113 = vmatpush1.msra.mxu0 %v4632
    %5114 = vmatprep.subr.mxu0 0.0
    %5115 = vmatpush1.msra.mxu0 %v4633
    %5116 = vmatprep.subr.mxu0 0.0
    %5117 = vmatpush1.msra.mxu0 %v4634
    %5118 = vmatprep.subr.mxu0 0.0
    %5119 = vmatpush1.msra.mxu0 %v4635
    %5120 = vmatprep.subr.mxu0 0.0
    %5121 = vmatpush1.msra.mxu0 %v4636
    %5122 = vmatprep.subr.mxu0 0.0
    %5123 = vmatpush1.msra.mxu0 %v4637
    %5124 = vmatprep.subr.mxu0 0.0
    %5125 = vmatpush1.msra.mxu0 %v4638
    %5126 = vmatprep.subr.mxu0 0.0
    %5127 = vmatpush1.msra.mxu0 %v4639
    %5128 = vmatprep.subr.mxu0 0.0
    %5129 = vmatpush1.msra.mxu0 %v4640
    %5130 = vmatprep.subr.mxu0 0.0
    %5131 = vmatpush1.msra.mxu0 %v4641
    %5132 = vmatprep.subr.mxu0 0.0
    %5133 = vmatpush1.msra.mxu0 %v4642
    %5134 = vmatprep.subr.mxu0 0.0
    %5135 = vmatpush1.msra.mxu0 %v4643
    %5136 = vmatprep.subr.mxu0 0.0
    %5137 = vmatpush1.msra.mxu0 %v4644
    %5138 = vmatprep.subr.mxu0 0.0
    %5139 = vmatpush1.msra.mxu0 %v4645
    %5140 = vmatprep.subr.mxu0 0.0
    %5141 = vmatpush1.msra.mxu0 %v4646
    %5142 = vmatprep.subr.mxu0 0.0
    %5143 = vmatpush1.msra.mxu0 %v4647
    %5144 = vmatprep.subr.mxu0 0.0
    %5145 = vmatpush1.msra.mxu0 %v4648
    %5146 = vmatprep.mubr.f32.mxu0 %v5002
    %5147 = vmatmul.mubr.f32.gmra.mrb[0].mxu0 %v5001
    %v5148 = vpop.f32.mrb[0].mxu0
    %v5149 = vadd.f32 %v5074, %v5148
    %v5150 = vpop.f32.mrb[0].mxu0
    %5151 = vmatprep.mubr.f32.mxu0 %v5006
    %5152 = vmatmul.mubr.f32.gmra.mrb[0].mxu0 %v5005
    %v5153 = vpop.f32.mrb[0].mxu0
    %v5154 = vadd.f32 %v5079, %v5153
    %v5155 = vpop.f32.mrb[0].mxu0
    %5156 = vdwg.mxu0
    %v5157 = vrsqrt.pop %v5149
    %v5158 = vmul.f32 %v5149, %v5157
    %vm5159 = vcmp.eq.f32.partialorder %v5149, inf
    %v5160 = vsel %vm5159, %v5149, %v5158
    %vm5161 = vcmp.eq.f32.partialorder %v5149, 0.0
    %v5162 = vand.u32 %v5149, 2147483648
    %v5163 = vsel %vm5161, %v5162, %v5160
    %v5164 = vrsqrt.pop %v5154
    %v5165 = vmul.f32 %v5154, %v5164
    %vm5166 = vcmp.eq.f32.partialorder %v5154, inf
    %v5167 = vsel %vm5166, %v5154, %v5165
    %vm5168 = vcmp.eq.f32.partialorder %v5154, 0.0
    %v5169 = vand.u32 %v5154, 2147483648
    %v5170 = vsel %vm5168, %v5169, %v5167
    %5173 = vrot.lane.b32.xlu0 %v5163, 64
    %v5174 = vpop.permute.xlu0 %5173
    %5175 = vrot.lane.b32.xlu0 %v5170, 64
    %v5176 = vpop.permute.xlu0 %5175
    %v5179 = vsel %vm3407, %v4791, %v5174
    %v5180 = vsel %vm3407, %v4796, %v5176
    %v5183 = vcombine.high %v5179, %v5179
    %v5185 = vunpack.c.l.s4 1983009808
    %v5186 = vunpack.c.0.s8 %v5185
    %v5187 = vlaneseq
    %v5188 = vshrl.u32 %v5187, 7
    %v5189 = vsub.s32 %v5186, %v5188
    %v5190 = vrot.slane %v5179, %v5189
    %v5192 = vunpack.c.l.s4 1983009808
    %v5193 = vunpack.c.0.s8 %v5192
    %v5194 = vlaneseq
    %v5195 = vshrl.u32 %v5194, 7
    %v5196 = vsub.s32 %v5193, %v5195
    %v5197 = vrot.slane %v5183, %v5196
    %v5198 = vcombine.high %v5190, %v5190
    %v5199 = vcombine.high %v5197, %v5197
    %v5200 = vcombine.high %v5180, %v5180
    %v5202 = vunpack.c.l.s4 1983009808
    %v5203 = vunpack.c.0.s8 %v5202
    %v5204 = vlaneseq
    %v5205 = vshrl.u32 %v5204, 7
    %v5206 = vsub.s32 %v5203, %v5205
    %v5207 = vrot.slane %v5180, %v5206
    %v5209 = vunpack.c.l.s4 1983009808
    %v5210 = vunpack.c.0.s8 %v5209
    %v5211 = vlaneseq
    %v5212 = vshrl.u32 %v5211, 7
    %v5213 = vsub.s32 %v5210, %v5212
    %v5214 = vrot.slane %v5200, %v5213
    %v5215 = vcombine.high %v5207, %v5207
    %v5216 = vcombine.high %v5214, %v5214
    %vm5225 = vcmask 1041408
    %v5226 = vsel %vm5225, %v5190, 0.0
    %5227 = vadd.xlane.f32.xlu0 %v5226
    %v5228 = vpop.xlane.xlu0 %5227
    %v5229 = vsel %vm5225, %v5198, 0.0
    %5230 = vadd.xlane.f32.xlu0 %v5229
    %v5231 = vpop.xlane.xlu0 %5230
    %v5232 = vsel %vm5225, %v5197, 0.0
    %5233 = vadd.xlane.f32.xlu0 %v5232
    %v5234 = vpop.xlane.xlu0 %5233
    %v5235 = vsel %vm5225, %v5199, 0.0
    %5236 = vadd.xlane.f32.xlu0 %v5235
    %v5237 = vpop.xlane.xlu0 %5236
    %v5238 = vsel %vm5225, %v5207, 0.0
    %5239 = vadd.xlane.f32.xlu0 %v5238
    %v5240 = vpop.xlane.xlu0 %5239
    %v5241 = vsel %vm5225, %v5215, 0.0
    %5242 = vadd.xlane.f32.xlu0 %v5241
    %v5243 = vpop.xlane.xlu0 %5242
    %v5244 = vsel %vm5225, %v5214, 0.0
    %5245 = vadd.xlane.f32.xlu0 %v5244
    %v5246 = vpop.xlane.xlu0 %5245
    %v5247 = vsel %vm5225, %v5216, 0.0
    %5248 = vadd.xlane.f32.xlu0 %v5247
    %v5249 = vpop.xlane.xlu0 %5248
    %v5250 = vrcp.pop 128.0
    %v5251 = vmul.f32 %v5228, %v5250
    %v5252 = vmul.f32 %v5231, %v5250
    %v5253 = vmul.f32 %v5234, %v5250
    %v5254 = vmul.f32 %v5237, %v5250
    %v5255 = vmul.f32 %v5240, %v5250
    %v5256 = vmul.f32 %v5243, %v5250
    %v5257 = vmul.f32 %v5246, %v5250
    %v5258 = vmul.f32 %v5249, %v5250
    %v5259 = vsel %vm5225, %v5251, 0.0
    %v5260 = vrot.slane %v5259, 4
    %v5261 = vadd.f32 %v5259, %v5260
    %v5262 = vrot.slane %v5261, 2
    %v5263 = vadd.f32 %v5261, %v5262
    %v5264 = vrot.slane %v5263, 1
    %v5265 = vadd.f32 %v5263, %v5264
    %v5266 = vsel %vm5225, %v5252, 0.0
    %v5267 = vrot.slane %v5266, 4
    %v5268 = vadd.f32 %v5266, %v5267
    %v5269 = vrot.slane %v5268, 2
    %v5270 = vadd.f32 %v5268, %v5269
    %v5271 = vrot.slane %v5270, 1
    %v5272 = vadd.f32 %v5270, %v5271
    %v5273 = vsel %vm5225, %v5253, 0.0
    %v5274 = vrot.slane %v5273, 4
    %v5275 = vadd.f32 %v5273, %v5274
    %v5276 = vrot.slane %v5275, 2
    %v5277 = vadd.f32 %v5275, %v5276
    %v5278 = vrot.slane %v5277, 1
    %v5279 = vadd.f32 %v5277, %v5278
    %v5280 = vsel %vm5225, %v5254, 0.0
    %v5281 = vrot.slane %v5280, 4
    %v5282 = vadd.f32 %v5280, %v5281
    %v5283 = vrot.slane %v5282, 2
    %v5284 = vadd.f32 %v5282, %v5283
    %v5285 = vrot.slane %v5284, 1
    %v5286 = vadd.f32 %v5284, %v5285
    %v5287 = vsel %vm5225, %v5255, 0.0
    %v5288 = vrot.slane %v5287, 4
    %v5289 = vadd.f32 %v5287, %v5288
    %v5290 = vrot.slane %v5289, 2
    %v5291 = vadd.f32 %v5289, %v5290
    %v5292 = vrot.slane %v5291, 1
    %v5293 = vadd.f32 %v5291, %v5292
    %v5294 = vsel %vm5225, %v5256, 0.0
    %v5295 = vrot.slane %v5294, 4
    %v5296 = vadd.f32 %v5294, %v5295
    %v5297 = vrot.slane %v5296, 2
    %v5298 = vadd.f32 %v5296, %v5297
    %v5299 = vrot.slane %v5298, 1
    %v5300 = vadd.f32 %v5298, %v5299
    %v5301 = vsel %vm5225, %v5257, 0.0
    %v5302 = vrot.slane %v5301, 4
    %v5303 = vadd.f32 %v5301, %v5302
    %v5304 = vrot.slane %v5303, 2
    %v5305 = vadd.f32 %v5303, %v5304
    %v5306 = vrot.slane %v5305, 1
    %v5307 = vadd.f32 %v5305, %v5306
    %v5308 = vsel %vm5225, %v5258, 0.0
    %v5309 = vrot.slane %v5308, 4
    %v5310 = vadd.f32 %v5308, %v5309
    %v5311 = vrot.slane %v5310, 2
    %v5312 = vadd.f32 %v5310, %v5311
    %v5313 = vrot.slane %v5312, 1
    %v5314 = vadd.f32 %v5312, %v5313
    %v5315 = vrcp.pop 2.0
    %v5316 = vmul.f32 %v5265, %v5315
    %v5317 = vmul.f32 %v5272, %v5315
    %v5318 = vmul.f32 %v5279, %v5315
    %v5319 = vmul.f32 %v5286, %v5315
    %v5320 = vmul.f32 %v5293, %v5315
    %v5321 = vmul.f32 %v5300, %v5315
    %v5322 = vmul.f32 %v5307, %v5315
    %v5323 = vmul.f32 %v5314, %v5315
    %v5324 = vsub.f32 %v5190, %v5316
    %v5325 = vsub.f32 %v5198, %v5317
    %v5326 = vsub.f32 %v5197, %v5318
    %v5327 = vsub.f32 %v5199, %v5319
    %v5328 = vsub.f32 %v5207, %v5320
    %v5329 = vsub.f32 %v5215, %v5321
    %v5330 = vsub.f32 %v5214, %v5322
    %v5331 = vsub.f32 %v5216, %v5323
    %v5332 = vmul.f32 %v5324, %v5324
    %v5333 = vmul.f32 %v5325, %v5325
    %v5334 = vmul.f32 %v5326, %v5326
    %v5335 = vmul.f32 %v5327, %v5327
    %v5336 = vmul.f32 %v5328, %v5328
    %v5337 = vmul.f32 %v5329, %v5329
    %v5338 = vmul.f32 %v5330, %v5330
    %v5339 = vmul.f32 %v5331, %v5331
    %v5340 = vsel %vm5225, %v5332, 0.0
    %5341 = vadd.xlane.f32.xlu0 %v5340
    %v5342 = vpop.xlane.xlu0 %5341
    %v5343 = vsel %vm5225, %v5333, 0.0
    %5344 = vadd.xlane.f32.xlu0 %v5343
    %v5345 = vpop.xlane.xlu0 %5344
    %v5346 = vsel %vm5225, %v5334, 0.0
    %5347 = vadd.xlane.f32.xlu0 %v5346
    %v5348 = vpop.xlane.xlu0 %5347
    %v5349 = vsel %vm5225, %v5335, 0.0
    %5350 = vadd.xlane.f32.xlu0 %v5349
    %v5351 = vpop.xlane.xlu0 %5350
    %v5352 = vsel %vm5225, %v5336, 0.0
    %5353 = vadd.xlane.f32.xlu0 %v5352
    %v5354 = vpop.xlane.xlu0 %5353
    %v5355 = vsel %vm5225, %v5337, 0.0
    %5356 = vadd.xlane.f32.xlu0 %v5355
    %v5357 = vpop.xlane.xlu0 %5356
    %v5358 = vsel %vm5225, %v5338, 0.0
    %5359 = vadd.xlane.f32.xlu0 %v5358
    %v5360 = vpop.xlane.xlu0 %5359
    %v5361 = vsel %vm5225, %v5339, 0.0
    %5362 = vadd.xlane.f32.xlu0 %v5361
    %v5363 = vpop.xlane.xlu0 %5362
    %v5364 = vmul.f32 %v5342, %v5250
    %v5365 = vmul.f32 %v5345, %v5250
    %v5366 = vmul.f32 %v5348, %v5250
    %v5367 = vmul.f32 %v5351, %v5250
    %v5368 = vmul.f32 %v5354, %v5250
    %v5369 = vmul.f32 %v5357, %v5250
    %v5370 = vmul.f32 %v5360, %v5250
    %v5371 = vmul.f32 %v5363, %v5250
    %v5372 = vsel %vm5225, %v5364, 0.0
    %v5373 = vrot.slane %v5372, 4
    %v5374 = vadd.f32 %v5372, %v5373
    %v5375 = vrot.slane %v5374, 2
    %v5376 = vadd.f32 %v5374, %v5375
    %v5377 = vrot.slane %v5376, 1
    %v5378 = vadd.f32 %v5376, %v5377
    %v5379 = vsel %vm5225, %v5365, 0.0
    %v5380 = vrot.slane %v5379, 4
    %v5381 = vadd.f32 %v5379, %v5380
    %v5382 = vrot.slane %v5381, 2
    %v5383 = vadd.f32 %v5381, %v5382
    %v5384 = vrot.slane %v5383, 1
    %v5385 = vadd.f32 %v5383, %v5384
    %v5386 = vsel %vm5225, %v5366, 0.0
    %v5387 = vrot.slane %v5386, 4
    %v5388 = vadd.f32 %v5386, %v5387
    %v5389 = vrot.slane %v5388, 2
    %v5390 = vadd.f32 %v5388, %v5389
    %v5391 = vrot.slane %v5390, 1
    %v5392 = vadd.f32 %v5390, %v5391
    %v5393 = vsel %vm5225, %v5367, 0.0
    %v5394 = vrot.slane %v5393, 4
    %v5395 = vadd.f32 %v5393, %v5394
    %v5396 = vrot.slane %v5395, 2
    %v5397 = vadd.f32 %v5395, %v5396
    %v5398 = vrot.slane %v5397, 1
    %v5399 = vadd.f32 %v5397, %v5398
    %v5400 = vsel %vm5225, %v5368, 0.0
    %v5401 = vrot.slane %v5400, 4
    %v5402 = vadd.f32 %v5400, %v5401
    %v5403 = vrot.slane %v5402, 2
    %v5404 = vadd.f32 %v5402, %v5403
    %v5405 = vrot.slane %v5404, 1
    %v5406 = vadd.f32 %v5404, %v5405
    %v5407 = vsel %vm5225, %v5369, 0.0
    %v5408 = vrot.slane %v5407, 4
    %v5409 = vadd.f32 %v5407, %v5408
    %v5410 = vrot.slane %v5409, 2
    %v5411 = vadd.f32 %v5409, %v5410
    %v5412 = vrot.slane %v5411, 1
    %v5413 = vadd.f32 %v5411, %v5412
    %v5414 = vsel %vm5225, %v5370, 0.0
    %v5415 = vrot.slane %v5414, 4
    %v5416 = vadd.f32 %v5414, %v5415
    %v5417 = vrot.slane %v5416, 2
    %v5418 = vadd.f32 %v5416, %v5417
    %v5419 = vrot.slane %v5418, 1
    %v5420 = vadd.f32 %v5418, %v5419
    %v5421 = vsel %vm5225, %v5371, 0.0
    %v5422 = vrot.slane %v5421, 4
    %v5423 = vadd.f32 %v5421, %v5422
    %v5424 = vrot.slane %v5423, 2
    %v5425 = vadd.f32 %v5423, %v5424
    %v5426 = vrot.slane %v5425, 1
    %v5427 = vadd.f32 %v5425, %v5426
    %v5428 = vmul.f32 %v5378, %v5315
    %v5429 = vmul.f32 %v5385, %v5315
    %v5430 = vmul.f32 %v5392, %v5315
    %v5431 = vmul.f32 %v5399, %v5315
    %v5432 = vmul.f32 %v5406, %v5315
    %v5433 = vmul.f32 %v5413, %v5315
    %v5434 = vmul.f32 %v5420, %v5315
    %v5435 = vmul.f32 %v5427, %v5315
    %v5436 = vadd.f32 %v5428, 1e-05
    %v5437 = vadd.f32 %v5429, 1e-05
    %v5438 = vadd.f32 %v5430, 1e-05
    %v5439 = vadd.f32 %v5431, 1e-05
    %v5440 = vadd.f32 %v5432, 1e-05
    %v5441 = vadd.f32 %v5433, 1e-05
    %v5442 = vadd.f32 %v5434, 1e-05
    %v5443 = vadd.f32 %v5435, 1e-05
    %v5444 = vrsqrt.pop %v5436
    %v5445 = vrsqrt.pop %v5437
    %v5446 = vrsqrt.pop %v5438
    %v5447 = vrsqrt.pop %v5439
    %v5448 = vrsqrt.pop %v5440
    %v5449 = vrsqrt.pop %v5441
    %v5450 = vrsqrt.pop %v5442
    %v5451 = vrsqrt.pop %v5443
    %v5452 = vmul.f32 %v5324, %v5444
    %v5453 = vmul.f32 %v5325, %v5445
    %v5454 = vmul.f32 %v5326, %v5446
    %v5455 = vmul.f32 %v5327, %v5447
    %v5456 = vmul.f32 %v5328, %v5448
    %v5457 = vmul.f32 %v5329, %v5449
    %v5458 = vmul.f32 %v5330, %v5450
    %v5459 = vmul.f32 %v5331, %v5451
    %v5460 = vld [vmem:[#allocation12] sm:$0x3]
    %v5461 = vmul.f32 %v5460, %v5460
    %v5462 = vsel %vm5225, %v5461, 0.0
    %5463 = vadd.xlane.f32.xlu0 %v5462
    %v5464 = vpop.xlane.xlu0 %5463
    %v5465 = vsel %vm5225, %v5464, 0.0
    %v5466 = vrot.slane %v5465, 4
    %v5467 = vadd.f32 %v5465, %v5466
    %v5468 = vrot.slane %v5467, 2
    %v5469 = vadd.f32 %v5467, %v5468
    %v5470 = vrot.slane %v5469, 1
    %v5471 = vadd.f32 %v5469, %v5470
    %v5472 = vmax.f32 %v5471, 1e-24
    %v5473 = vrsqrt.pop %v5472
    %v5474 = vmul.f32 %v5460, %v5473
    %v5475 = vmul.f32 %v5452, %v5474
    %v5476 = vmul.f32 %v5453, %v5474
    %v5477 = vmul.f32 %v5454, %v5474
    %v5478 = vmul.f32 %v5455, %v5474
    %v5479 = vmul.f32 %v5456, %v5474
    %v5480 = vmul.f32 %v5457, %v5474
    %v5481 = vmul.f32 %v5458, %v5474
    %v5482 = vmul.f32 %v5459, %v5474
    %v5483 = vsel %vm5225, %v5475, 0.0
    %5484 = vadd.xlane.f32.xlu0 %v5483
    %v5485 = vpop.xlane.xlu0 %5484
    %v5486 = vsel %vm5225, %v5476, 0.0
    %5487 = vadd.xlane.f32.xlu0 %v5486
    %v5488 = vpop.xlane.xlu0 %5487
    %v5489 = vsel %vm5225, %v5477, 0.0
    %5490 = vadd.xlane.f32.xlu0 %v5489
    %v5491 = vpop.xlane.xlu0 %5490
    %v5492 = vsel %vm5225, %v5478, 0.0
    %5493 = vadd.xlane.f32.xlu0 %v5492
    %v5494 = vpop.xlane.xlu0 %5493
    %v5495 = vsel %vm5225, %v5479, 0.0
    %5496 = vadd.xlane.f32.xlu0 %v5495
    %v5497 = vpop.xlane.xlu0 %5496
    %v5498 = vsel %vm5225, %v5480, 0.0
    %5499 = vadd.xlane.f32.xlu0 %v5498
    %v5500 = vpop.xlane.xlu0 %5499
    %v5501 = vsel %vm5225, %v5481, 0.0
    %5502 = vadd.xlane.f32.xlu0 %v5501
    %v5503 = vpop.xlane.xlu0 %5502
    %v5504 = vsel %vm5225, %v5482, 0.0
    %5505 = vadd.xlane.f32.xlu0 %v5504
    %v5506 = vpop.xlane.xlu0 %5505
    %v5515 = vlaneseq
    %v5516 = vand.u32 %v5515, 127
    %v5517 = vlaneseq
    %v5518 = vshrl.u32 %v5517, 7
    %v5519 = vsub.s32 %v5516, %v5518
    %v5520 = vrot.slane %v5485, %v5519
    %v5521 = vlaneseq
    %v5522 = vshrl.u32 %v5521, 7
    %v5523 = vsub.s32 %v5516, %v5522
    %v5524 = vrot.slane %v5488, %v5523
    %v5525 = vlaneseq
    %v5526 = vshrl.u32 %v5525, 7
    %v5527 = vsub.s32 %v5516, %v5526
    %v5528 = vrot.slane %v5491, %v5527
    %v5529 = vlaneseq
    %v5530 = vshrl.u32 %v5529, 7
    %v5531 = vsub.s32 %v5516, %v5530
    %v5532 = vrot.slane %v5494, %v5531
    %v5533 = vlaneseq
    %v5534 = vshrl.u32 %v5533, 7
    %v5535 = vsub.s32 %v5516, %v5534
    %v5536 = vrot.slane %v5497, %v5535
    %v5537 = vlaneseq
    %v5538 = vshrl.u32 %v5537, 7
    %v5539 = vsub.s32 %v5516, %v5538
    %v5540 = vrot.slane %v5500, %v5539
    %v5541 = vlaneseq
    %v5542 = vshrl.u32 %v5541, 7
    %v5543 = vsub.s32 %v5516, %v5542
    %v5544 = vrot.slane %v5503, %v5543
    %v5545 = vlaneseq
    %v5546 = vshrl.u32 %v5545, 7
    %v5547 = vsub.s32 %v5516, %v5546
    %v5548 = vrot.slane %v5506, %v5547
    %vm5549 = vcmask 1041409
    %v5550 = vsel %vm5549, %v5524, %v5520
    %vm5551 = vcmask 1042434
    %v5552 = vsel %vm5551, %v5528, %v5550
    %vm5553 = vcmask 1043459
    %v5554 = vsel %vm5553, %v5532, %v5552
    %vm5555 = vcmask 1044484
    %v5556 = vsel %vm5555, %v5536, %v5554
    %vm5557 = vcmask 1045509
    %v5558 = vsel %vm5557, %v5540, %v5556
    %vm5559 = vcmask 1046534
    %v5560 = vsel %vm5559, %v5544, %v5558
    %vm5561 = vcmask 1047559
    %v5562 = vsel %vm5561, %v5548, %v5560
    %vm5564 = vcmask 15360
    %v5565 = vsel %vm5564, %v5562, 0.0
    %5566 = vadd.xlane.f32.xlu0 %v5565
    %v5567 = vpop.xlane.xlu0 %5566
    %v5568 = vsub.f32 0.0, %v5567
    %v5569 = vmul.f32 %v5568, 1.442695
    %v5570 = vpow.pop %v5569
    %v5571 = vadd.f32 %v5570, 1.0
    %v5572 = vrcp.pop %v5571
    %v5573 = vmul.f32 1.0, %v5572
    %vm5574 = vcmask 7168
    %5575 = vst.msk [vmem:[%s10] sm:$0xff] %vm5574, %v5573
    // Predicated region
    $region70: #{model_emo_mh_forward.1} parent=1 // pred_check
      _
    $region71: #{model_emo_mh_forward.1} parent=1 // pred_check_branch
      %5577 = sbr.rel (0) target = $region73
    $region72: #{model_emo_mh_forward.1} parent=1 // pred_region
      _
    $region73: #{model_emo_mh_forward.1} parent=1 // pred_fallthru
      _
    // Predicated region
    $region74: #{model_emo_mh_forward.1} parent=1 // pred_check
      _
    $region75: #{model_emo_mh_forward.1} parent=1 // pred_check_branch
      %5579 = sbr.rel (0) target = $region77
    $region76: #{model_emo_mh_forward.1} parent=1 // pred_region
      _
    $region77: #{model_emo_mh_forward.1} parent=1 // pred_fallthru
      _
    %5580 = vsyncpa [#allocation3], 1
    %5581 = vsyncpa [#allocation5], 1
    %5582 = vsyncpa [#allocation8], 1
    %5583 = vsyncpa [#allocation11], 1

</llo_original>
